<compile_context>
chip_gen: v7x
topology: tpu7x:2x2x1
jax: 0.10.0
libtpu: 0.0.40
codegen_flags: <defaults>
</compile_context>

<pallas_src>
import numpy as np
import jax
import jax.numpy as jnp
from jax.experimental import pallas as pl
from jax.experimental.pallas import tpu as pltpu

NEG = -1e9                 # stand-in for float('-inf'): exp(score + NEG - rowmax) -> exactly 0
DOT_DT = jnp.bfloat16      # MXU operand dtype; accumulation stays f32


# ----------------------------------------------------------------------------
# mask / positional-encoding helpers (plain JAX, wrapper side)
# ----------------------------------------------------------------------------

def generate_mask(tgt_sz, src_sz, agent_num, agent_mask):
    return jnp.tile(agent_mask, (tgt_sz // agent_num, src_sz // agent_num))


def generate_ar_mask(sz, agent_num, agent_mask):
    mask = jnp.tile(agent_mask, (sz // agent_num, sz // agent_num))
    frame = jnp.arange(sz) // agent_num
    return jnp.where(frame[None, :] > frame[:, None], NEG, mask)


def build_pos_enc(max_len, d_model):
    pos = jnp.arange(max_len, dtype=jnp.float32)[:, None]
    div = jnp.exp(jnp.arange(0, d_model, 2, dtype=jnp.float32) * (-np.log(10000.0) / d_model))
    pe = jnp.zeros((max_len, d_model), jnp.float32)
    pe = pe.at[:, 0::2].set(jnp.sin(pos * div))
    pe = pe.at[:, 1::2].set(jnp.cos(pos * div))
    return pe  # [max_len, d_model]


# ----------------------------------------------------------------------------
# Fused Pallas kernel: whole AR decode for one chunk of samples (folded into rows)
# ----------------------------------------------------------------------------

def make_decoder_kernel(*, R, S_tot, Sm, D, nhead, nlayer, future_frames):
    """R = rows per frame (= bs*agent_num), S_tot = future_frames*R rows per chunk."""
    hd = D // nhead
    H = nhead
    scale = 1.0 / float(np.sqrt(hd))

    def layer_norm(x, g, b):
        mu = jnp.mean(x, axis=-1, keepdims=True)
        xc = x - mu
        var = jnp.mean(xc * xc, axis=-1, keepdims=True)
        return xc * jax.lax.rsqrt(var + 1e-5) * g + b

    def mha(q, k_bd, v_bd, mask_bd, wo, bo, Sk, ctx):
        # q: [R, D]; k_bd/v_bd: [H*Sk, D] block-diagonal over heads (head h occupies
        # lane block h); mask_bd: [R, H*Sk].  3 MXU dots total for all heads.
        s = jax.lax.dot_general(q.astype(DOT_DT), k_bd.astype(DOT_DT),
                                (((1,), (1,)), ((), ())),
                                preferred_element_type=jnp.float32) * scale + mask_bd
        m = jnp.max(s, axis=-1, keepdims=True)          # global row max; per-head norm cancels it
        e = jnp.exp(s - m)                              # [R, H*Sk] f32
        ctx_un = jnp.dot(e.astype(DOT_DT), v_bd.astype(DOT_DT),
                         preferred_element_type=jnp.float32)   # [R, D] heads lane-packed
        for h in range(H):                              # per-head normalisation (VPU/EUP only)
            inv = pl.reciprocal(
                jnp.sum(e[:, h * Sk:(h + 1) * Sk], axis=-1, keepdims=True), approx=True)
            ctx[:, h * hd:(h + 1) * hd] = ctx_un[:, h * hd:(h + 1) * hd] * inv
        return jnp.dot(ctx[...].astype(DOT_DT), wo, preferred_element_type=jnp.float32) + bo

    def kernel(zproj_ref, stepc_ref, wfb_ref, tmask_ref, mmask_ref,
               kmbd_ref, vmbd_ref,
               saw_ref, sab_ref, saow_ref, saob_ref,
               caqw_ref, caqb_ref, caow_ref, caob_ref,
               f1w_ref, f1b_ref, f2w_ref, f2b_ref,
               lng_ref, lnb_ref,
               o_ref, kc, vc, ctx):
        zproj = zproj_ref[...]        # [R, D]   z @ W_in_z + b_in  (per chunk)
        mmask = mmask_ref[...]        # [R, H*Sm]
        wfb = wfb_ref[...]            # [D, D]   fused out_fc ∘ input_fc_pos (bf16)

        # zero the block-diagonal self-attn K/V caches so masked / unwritten rows are finite
        kc[...] = jnp.zeros((nlayer * H * S_tot, D), jnp.float32)
        vc[...] = jnp.zeros((nlayer * H * S_tot, D), jnp.float32)

        h_prev = None
        for t in range(future_frames):                  # statically unrolled AR loop
            if t == 0:
                x = stepc_ref[0] + zproj                # dec0 @ W_in_pos + pe[0] + zproj
            else:
                # fused autoregressive feedback: one [R,D]x[D,D] dot on the serial path
                x = (jnp.dot(h_prev.astype(DOT_DT), wfb, preferred_element_type=jnp.float32)
                     + stepc_ref[t] + zproj)
            tmask_t = tmask_ref[t * R:(t + 1) * R, :]   # [R, H*S_tot]

            for l in range(nlayer):                     # statically unrolled layer loop
                # TODO(synk): AgentFormerDecoderLayer (agent-aware attention) source was
                # not provided; a standard post-norm transformer decoder layer is used.
                sab = sab_ref[l]; saob = saob_ref[l]
                caqb = caqb_ref[l]; caob = caob_ref[l]
                f1b = f1b_ref[l]; f2b = f2b_ref[l]
                lng = lng_ref[l]; lnb = lnb_ref[l]      # [3, D]

                # ---- self-attention (incremental: only newest frame's rows) ----
                qkv = jnp.dot(x.astype(DOT_DT), saw_ref[l],
                              preferred_element_type=jnp.float32) + sab        # [R, 3D]
                base = l * H * S_tot
                for h in range(H):                      # append K/V into block-diag cache
                    r0 = base + h * S_tot + t * R
                    kc[r0:r0 + R, h * hd:(h + 1) * hd] = qkv[:, D + h * hd:D + (h + 1) * hd]
                    vc[r0:r0 + R, h * hd:(h + 1) * hd] = qkv[:, 2 * D + h * hd:2 * D + (h + 1) * hd]
                k_bd = kc[base:base + H * S_tot, :]
                v_bd = vc[base:base + H * S_tot, :]
                a = mha(qkv[:, 0:D], k_bd, v_bd, tmask_t, saow_ref[l], saob, S_tot, ctx)
                x = layer_norm(x + a, lng[0:1, :], lnb[0:1, :])

                # ---- cross-attention over encoder memory (K/V precomputed, block-diag) ----
                qc = jnp.dot(x.astype(DOT_DT), caqw_ref[l],
                             preferred_element_type=jnp.float32) + caqb
                a = mha(qc, kmbd_ref[l], vmbd_ref[l], mmask, caow_ref[l], caob, Sm, ctx)
                x = layer_norm(x + a, lng[1:2, :], lnb[1:2, :])

                # ---- feed-forward (dropout = identity at inference) ----
                hmid = jnp.maximum(
                    jnp.dot(x.astype(DOT_DT), f1w_ref[l],
                            preferred_element_type=jnp.float32) + f1b, 0.0)
                f = jnp.dot(hmid.astype(DOT_DT), f2w_ref[l],
                            preferred_element_type=jnp.float32) + f2b
                x = layer_norm(x + f, lng[2:3, :], lnb[2:3, :])

            # emit this frame's decoder hidden states (D < 128 lanes -> masked store;
            # acceptable at these sizes, pack wider as D / batch folding grow)
            o_ref[t * R:(t + 1) * R, :] = x
            h_prev = x

    return kernel


# ----------------------------------------------------------------------------
# Wrapper: constant folding, block-diagonal layouts, chunking, pallas_call
# ----------------------------------------------------------------------------

def fused_future_decode(params, z, data, sample_num, cfg):
    an = cfg['agent_num']; fd = cfg['forecast_dim']; nz = cfg['nz']
    D = cfg['model_dim']; FF = cfg['ff_dim']; H = cfg['nhead']; L = cfg['nlayer']
    ff = cfg['future_frames']
    hd = D // H
    B = sample_num
    S_max = ff * an

    # --- sample folding / chunking: rows = (frame, sample, agent); even grid for v7x ---
    num_chunks = 2 if (B % 2 == 0 and B >= 4) else 1
    bs = B // num_chunks
    R = bs * an
    S_tot = ff * R

    mem = data['context_enc'][:, 0, :]              # [Sm, D]; identical across samples
    Sm = mem.shape[0]
    dec0 = data['pre_motion_scene_norm'][-1]        # [an, fd]
    agent_mask = data['agent_mask']

    in_w_pos = params['input_fc_w'][:fd]            # [fd, D]
    in_w_z = params['input_fc_w'][fd:]              # [nz, D]
    in_b = params['input_fc_b']                     # [1, D]
    out_w = params['out_fc_w']; out_b = params['out_fc_b']
    pe = params['pe'][:ff]                          # [ff, D]

    # fused feedback path: out_fc ∘ input_fc_pos  (mathematically identical)
    w_fb = out_w @ in_w_pos                                         # [D, D]
    dec0_t = jnp.tile(dec0, (bs, 1))                                # [R, fd] sample-major rows
    b_fb = (out_b + dec0_t) @ in_w_pos                              # [R, D]
    step_const = jnp.concatenate(
        [(dec0_t @ in_w_pos + pe[0])[None], b_fb[None] + pe[1:, None, :]], axis=0)   # [ff, R, D]

    # z projection through input_fc's z columns, per chunk
    z_b = jnp.transpose(z.reshape(an, B, nz), (1, 0, 2))            # [B, an, nz]
    z_flat = z_b.reshape(num_chunks, R, nz)
    zproj = jnp.einsum('crk,kd->crd', z_flat, in_w_z) + in_b        # [C, R, D]

    # --- masks: block-diagonal over samples, tiled over heads along lanes ---
    rows = np.arange(S_tot)
    frame = rows // R
    within = rows % R
    samp = within // an
    agent = within % an
    ps = frame * an + agent                                         # per-sample row index
    base_t = generate_ar_mask(S_max, an, agent_mask)                # [S_max, S_max]
    tmask = base_t[ps[:, None], ps[None, :]]
    tmask = jnp.where(samp[:, None] == samp[None, :], tmask, NEG)   # [S_tot, S_tot]
    tmask_bd = jnp.tile(tmask, (1, H))                              # [S_tot, H*S_tot]

    base_m = generate_mask(S_max, Sm, an, agent_mask)               # [S_max, Sm]
    mmask = jnp.tile(base_m[:an, :], (bs, 1))                       # [R, Sm] (frame-independent)
    mmask_bd = jnp.tile(mmask, (1, H))                              # [R, H*Sm]

    # --- encoder-memory K/V per layer, in block-diagonal-over-heads layout ---
    km = jnp.einsum('sd,lde->lse', mem, params['ca_kw']) + params['ca_kb']   # [L, Sm, D]
    vm = jnp.einsum('sd,lde->lse', mem, params['ca_vw']) + params['ca_vb']
    km_bd = jnp.zeros((L, H * Sm, D), jnp.float32)
    vm_bd = jnp.zeros((L, H * Sm, D), jnp.float32)
    for h in range(H):
        sl = slice(h * hd, (h + 1) * hd)
        km_bd = km_bd.at[:, h * Sm:(h + 1) * Sm, sl].set(km[:, :, sl])
        vm_bd = vm_bd.at[:, h * Sm:(h + 1) * Sm, sl].set(vm[:, :, sl])

    bf = lambda a: a.astype(jnp.bfloat16)

    kernel = make_decoder_kernel(R=R, S_tot=S_tot, Sm=Sm, D=D,
                                 nhead=H, nlayer=L, future_frames=ff)

    def bcast(shape):
        return pl.BlockSpec(shape, lambda c, _n=len(shape): (0,) * _n)

    in_specs = [
        pl.BlockSpec((None, R, D), lambda c: (c, 0, 0)),   # zproj (per chunk)
        bcast((ff, R, D)),                                 # step_const
        bcast((D, D)),                                     # w_fb
        bcast((S_tot, H * S_tot)),                         # tgt/AR mask (head-tiled)
        bcast((R, H * Sm)),                                # memory mask (head-tiled)
        bcast((L, H * Sm, D)), bcast((L, H * Sm, D)),      # memory K/V (block-diag)
        bcast((L, D, 3 * D)), bcast((L, 1, 3 * D)),        # self-attn fused QKV
        bcast((L, D, D)), bcast((L, 1, D)),                # self-attn out proj
        bcast((L, D, D)), bcast((L, 1, D)),                # cross-attn Q proj
        bcast((L, D, D)), bcast((L, 1, D)),                # cross-attn out proj
        bcast((L, D, FF)), bcast((L, 1, FF)),              # FFN 1
        bcast((L, FF, D)), bcast((L, 1, D)),               # FFN 2
        bcast((L, 3, D)), bcast((L, 3, D)),                # layer norms
    ]

    h_out = pl.pallas_call(
        kernel,
        out_shape=jax.ShapeDtypeStruct((num_chunks, S_tot, D), jnp.float32),
        grid=(num_chunks,),
        in_specs=in_specs,
        out_specs=pl.BlockSpec((None, S_tot, D), lambda c: (c, 0, 0)),
        scratch_shapes=[pltpu.VMEM((L * H * S_tot, D), jnp.float32),   # self-attn K cache
                        pltpu.VMEM((L * H * S_tot, D), jnp.float32),   # self-attn V cache
                        pltpu.VMEM((R, D), jnp.float32)],              # per-attn ctx buffer
        compiler_params=pltpu.CompilerParams(dimension_semantics=("parallel",)),
    )(zproj, step_const, bf(w_fb), tmask_bd, mmask_bd, bf(km_bd), bf(vm_bd),
      bf(params['sa_w']), params['sa_b'], bf(params['sa_ow']), params['sa_ob'],
      bf(params['ca_qw']), params['ca_qb'], bf(params['ca_ow']), params['ca_ob'],
      bf(params['ff1_w']), params['ff1_b'], bf(params['ff2_w']), params['ff2_b'],
      params['ln_g'], params['ln_b'])

    # reorder [chunk, (frame, sample, agent), D] -> [frame, agent, sample, D]
    h = h_out.reshape(num_chunks, ff, bs, an, D)
    h = jnp.transpose(h, (1, 3, 0, 2, 4)).reshape(ff, an, B, D)
    return h


# ----------------------------------------------------------------------------
# parameter init and full forward pass
# ----------------------------------------------------------------------------

def init_params(key, cfg):
    D, FF, fd, nz, L = cfg['model_dim'], cfg['ff_dim'], cfg['forecast_dim'], cfg['nz'], cfg['nlayer']
    in_dim = fd + nz  # input_type = []
    keys = iter(jax.random.split(key, 40))

    def w(shape, scale=0.05):
        return jax.random.normal(next(keys), shape, jnp.float32) * scale

    return {
        'input_fc_w': w((in_dim, D)), 'input_fc_b': w((1, D)),
        'out_fc_w': w((D, fd)),
        'out_fc_b': jnp.zeros((1, fd), jnp.float32),   # initialize_weights() -> zero bias
        'pe': build_pos_enc(cfg['max_t_len'], D),
        # per-layer weights stacked along a leading [nlayer, ...] axis; cross-attn pre-split
        'sa_w': w((L, D, 3 * D)), 'sa_b': w((L, 1, 3 * D)),
        'sa_ow': w((L, D, D)), 'sa_ob': w((L, 1, D)),
        'ca_qw': w((L, D, D)), 'ca_qb': w((L, 1, D)),
        'ca_kw': w((L, D, D)), 'ca_kb': w((L, 1, D)),
        'ca_vw': w((L, D, D)), 'ca_vb': w((L, 1, D)),
        'ca_ow': w((L, D, D)), 'ca_ob': w((L, 1, D)),
        'ff1_w': w((L, D, FF)), 'ff1_b': w((L, 1, FF)),
        'ff2_w': w((L, FF, D)), 'ff2_b': w((L, 1, D)),
        'ln_g': jnp.ones((L, 3, D), jnp.float32), 'ln_b': jnp.zeros((L, 3, D), jnp.float32),
    }


def future_decoder_forward(params, data, sample_num, z, cfg):
    """FutureDecoder.forward(mode='infer', autoregress=True, z given)."""
    an = cfg['agent_num']
    fd = cfg['forecast_dim']
    ff = cfg['future_frames']
    B = sample_num

    # TODO(synk): p_z_dist_infer (Normal/Categorical prior object) is only stored in `data`
    # and never used when z is supplied; distribution classes are not reproduced.

    # whole autoregressive decode in one fused Pallas kernel -> decoder hidden states
    h = fused_future_decode(params, z, data, sample_num, cfg)      # [ff, an, B, D]

    # out_fc + scene_norm ('norm') add (tiny; XLA fuses)
    dec0 = data['pre_motion_scene_norm'][-1]                       # [an, fd]
    seq = (jnp.einsum('fabd,de->fabe', h, params['out_fc_w'])
           + params['out_fc_b'] + dec0[None, :, None, :])          # [ff, an, B, fd]
    seq_out = seq.reshape(ff, an * B, fd)                          # (agent-major, sample-minor)

    dec_motion = seq_out + data['scene_orig']                      # pred_type='scene_norm'
    dec_motion = jnp.transpose(dec_motion, (1, 0, 2))              # [an*B, ff, fd]
    dec_motion = dec_motion.reshape(an, B, ff, fd)                 # infer mode
    return {'infer_seq_out': seq_out, 'infer_dec_motion': dec_motion}


# ----------------------------------------------------------------------------
# main
# ----------------------------------------------------------------------------

if __name__ == "__main__":
    cfg = dict(agent_num=2, forecast_dim=2, nz=4, model_dim=32, ff_dim=64,
               nhead=4, nlayer=2, future_frames=3, past_frames=4, max_t_len=200)
    sample_num = 8   # folded into rows (2 chunks x 4 samples), not the grid

    key = jax.random.PRNGKey(0)
    kp, kd = jax.random.split(key)
    params = init_params(kp, cfg)

    an, fd, nz, D, past = cfg['agent_num'], cfg['forecast_dim'], cfg['nz'], cfg['model_dim'], cfg['past_frames']
    ks = jax.random.split(kd, 8)
    data = {
        'context_enc': jax.random.normal(ks[0], (past * an, 1, D), jnp.float32),
        'pre_motion': jax.random.normal(ks[1], (past, an, fd), jnp.float32),
        'pre_motion_scene_norm': jax.random.normal(ks[2], (past, an, fd), jnp.float32),
        'scene_orig': jax.random.normal(ks[3], (fd,), jnp.float32),
        'agent_mask': jnp.zeros((an, an), jnp.float32),
    }
    z = jax.random.normal(ks[4], (an * sample_num, nz), jnp.float32)

    fwd = jax.jit(lambda p, d, zz: future_decoder_forward(p, d, sample_num, zz, cfg))
    out = fwd(params, data, z)
    jax.block_until_ready(out['infer_dec_motion'])
    assert out['infer_dec_motion'].shape == (an, sample_num, cfg['future_frames'], fd)
    assert out['infer_seq_out'].shape == (cfg['future_frames'], an * sample_num, fd)
    assert bool(jnp.all(jnp.isfinite(out['infer_dec_motion'])))
    assert bool(jnp.all(jnp.isfinite(out['infer_seq_out'])))
    print("KERNEL_OK")
</pallas_src>

<mosaic_0001>
module attributes {stable_mosaic.version = 11 : i64} {
  func.func @kernel(%arg0: i32, %arg1: memref<1x8x32xf32, #tpu.memory_space<vmem>>, %arg2: memref<3x8x32xf32, #tpu.memory_space<vmem>>, %arg3: memref<32x32xbf16, #tpu.memory_space<vmem>>, %arg4: memref<24x96xf32, #tpu.memory_space<vmem>>, %arg5: memref<8x32xf32, #tpu.memory_space<vmem>>, %arg6: memref<2x32x32xbf16, #tpu.memory_space<vmem>>, %arg7: memref<2x32x32xbf16, #tpu.memory_space<vmem>>, %arg8: memref<2x32x96xbf16, #tpu.memory_space<vmem>>, %arg9: memref<2x1x96xf32, #tpu.memory_space<vmem>>, %arg10: memref<2x32x32xbf16, #tpu.memory_space<vmem>>, %arg11: memref<2x1x32xf32, #tpu.memory_space<vmem>>, %arg12: memref<2x32x32xbf16, #tpu.memory_space<vmem>>, %arg13: memref<2x1x32xf32, #tpu.memory_space<vmem>>, %arg14: memref<2x32x32xbf16, #tpu.memory_space<vmem>>, %arg15: memref<2x1x32xf32, #tpu.memory_space<vmem>>, %arg16: memref<2x32x64xbf16, #tpu.memory_space<vmem>>, %arg17: memref<2x1x64xf32, #tpu.memory_space<vmem>>, %arg18: memref<2x64x32xbf16, #tpu.memory_space<vmem>>, %arg19: memref<2x1x32xf32, #tpu.memory_space<vmem>>, %arg20: memref<2x3x32xf32, #tpu.memory_space<vmem>>, %arg21: memref<2x3x32xf32, #tpu.memory_space<vmem>>, %arg22: memref<1x24x32xf32, #tpu.memory_space<vmem>>, %arg23: memref<192x32xf32, #tpu.memory_space<vmem>>, %arg24: memref<192x32xf32, #tpu.memory_space<vmem>>, %arg25: memref<8x32xf32, #tpu.memory_space<vmem>>) attributes {dimension_semantics = [#tpu.dimension_semantics<parallel>], iteration_bounds = array<i64: 2>, scalar_prefetch = 0 : i64, scratch_operands = 3 : i64, tpu.core_type = #tpu.core_type<tc>, window_params = [{transform_indices = @transform_0, window_bounds = array<i64: 1, 8, 32>}, {pipeline_mode = #tpu.pipeline_mode<synchronous>, transform_indices = @transform_1, window_bounds = array<i64: 3, 8, 32>}, {pipeline_mode = #tpu.pipeline_mode<synchronous>, transform_indices = @transform_2, window_bounds = array<i64: 32, 32>}, {pipeline_mode = #tpu.pipeline_mode<synchronous>, transform_indices = @transform_3, window_bounds = array<i64: 24, 96>}, {pipeline_mode = #tpu.pipeline_mode<synchronous>, transform_indices = @transform_4, window_bounds = array<i64: 8, 32>}, {pipeline_mode = #tpu.pipeline_mode<synchronous>, transform_indices = @transform_5, window_bounds = array<i64: 2, 32, 32>}, {pipeline_mode = #tpu.pipeline_mode<synchronous>, transform_indices = @transform_6, window_bounds = array<i64: 2, 32, 32>}, {pipeline_mode = #tpu.pipeline_mode<synchronous>, transform_indices = @transform_7, window_bounds = array<i64: 2, 32, 96>}, {pipeline_mode = #tpu.pipeline_mode<synchronous>, transform_indices = @transform_8, window_bounds = array<i64: 2, 1, 96>}, {pipeline_mode = #tpu.pipeline_mode<synchronous>, transform_indices = @transform_9, window_bounds = array<i64: 2, 32, 32>}, {pipeline_mode = #tpu.pipeline_mode<synchronous>, transform_indices = @transform_10, window_bounds = array<i64: 2, 1, 32>}, {pipeline_mode = #tpu.pipeline_mode<synchronous>, transform_indices = @transform_11, window_bounds = array<i64: 2, 32, 32>}, {pipeline_mode = #tpu.pipeline_mode<synchronous>, transform_indices = @transform_12, window_bounds = array<i64: 2, 1, 32>}, {pipeline_mode = #tpu.pipeline_mode<synchronous>, transform_indices = @transform_13, window_bounds = array<i64: 2, 32, 32>}, {pipeline_mode = #tpu.pipeline_mode<synchronous>, transform_indices = @transform_14, window_bounds = array<i64: 2, 1, 32>}, {pipeline_mode = #tpu.pipeline_mode<synchronous>, transform_indices = @transform_15, window_bounds = array<i64: 2, 32, 64>}, {pipeline_mode = #tpu.pipeline_mode<synchronous>, transform_indices = @transform_16, window_bounds = array<i64: 2, 1, 64>}, {pipeline_mode = #tpu.pipeline_mode<synchronous>, transform_indices = @transform_17, window_bounds = array<i64: 2, 64, 32>}, {pipeline_mode = #tpu.pipeline_mode<synchronous>, transform_indices = @transform_18, window_bounds = array<i64: 2, 1, 32>}, {pipeline_mode = #tpu.pipeline_mode<synchronous>, transform_indices = @transform_19, window_bounds = array<i64: 2, 3, 32>}, {pipeline_mode = #tpu.pipeline_mode<synchronous>, transform_indices = @transform_20, window_bounds = array<i64: 2, 3, 32>}, {transform_indices = @transform_21, window_bounds = array<i64: 1, 24, 32>}]} {
    %c0 = arith.constant 0 : index
    %c0_0 = arith.constant 0 : index
    %c0_1 = arith.constant 0 : index
    %0 = vector.load %arg1[%c0, %c0_0, %c0_1] : memref<1x8x32xf32, #tpu.memory_space<vmem>>, vector<1x8x32xf32>
    %1 = vector.shape_cast %0 : vector<1x8x32xf32> to vector<8x32xf32>
    %c0_2 = arith.constant 0 : index
    %c0_3 = arith.constant 0 : index
    %2 = vector.load %arg5[%c0_2, %c0_3] : memref<8x32xf32, #tpu.memory_space<vmem>>, vector<8x32xf32>
    %c0_4 = arith.constant 0 : index
    %c0_5 = arith.constant 0 : index
    %3 = vector.load %arg3[%c0_4, %c0_5] : memref<32x32xbf16, #tpu.memory_space<vmem>>, vector<32x32xbf16>
    %cst = arith.constant 0.000000e+00 : f32
    %4 = vector.broadcast %cst : f32 to vector<192x32xf32>
    %c0_6 = arith.constant 0 : index
    %c0_7 = arith.constant 0 : index
    %5 = vector.load %arg23[%c0_6, %c0_7] : memref<192x32xf32, #tpu.memory_space<vmem>>, vector<192x32xf32>
    tpu.vector_store %arg23[%c0_6, %c0_7], %4 {strides = array<i32>} : memref<192x32xf32, #tpu.memory_space<vmem>>, vector<192x32xf32>,
    %cst_8 = arith.constant 0.000000e+00 : f32
    %6 = vector.broadcast %cst_8 : f32 to vector<192x32xf32>
    %c0_9 = arith.constant 0 : index
    %c0_10 = arith.constant 0 : index
    %7 = vector.load %arg24[%c0_9, %c0_10] : memref<192x32xf32, #tpu.memory_space<vmem>>, vector<192x32xf32>
    tpu.vector_store %arg24[%c0_9, %c0_10], %6 {strides = array<i32>} : memref<192x32xf32, #tpu.memory_space<vmem>>, vector<192x32xf32>,
    %c0_11 = arith.constant 0 : index
    %c0_12 = arith.constant 0 : index
    %c0_13 = arith.constant 0 : index
    %8 = vector.load %arg2[%c0_11, %c0_12, %c0_13] : memref<3x8x32xf32, #tpu.memory_space<vmem>>, vector<1x8x32xf32>
    %9 = vector.shape_cast %8 : vector<1x8x32xf32> to vector<8x32xf32>
    %10 = arith.addf %9, %1 : vector<8x32xf32>
    %c0_14 = arith.constant 0 : index
    %c0_15 = arith.constant 0 : index
    %11 = vector.load %arg4[%c0_14, %c0_15] : memref<24x96xf32, #tpu.memory_space<vmem>>, vector<8x96xf32>
    %c0_16 = arith.constant 0 : index
    %c0_17 = arith.constant 0 : index
    %c0_18 = arith.constant 0 : index
    %12 = vector.load %arg9[%c0_16, %c0_17, %c0_18] : memref<2x1x96xf32, #tpu.memory_space<vmem>>, vector<1x1x96xf32>
    %13 = vector.shape_cast %12 : vector<1x1x96xf32> to vector<1x96xf32>
    %c0_19 = arith.constant 0 : index
    %c0_20 = arith.constant 0 : index
    %c0_21 = arith.constant 0 : index
    %14 = vector.load %arg11[%c0_19, %c0_20, %c0_21] : memref<2x1x32xf32, #tpu.memory_space<vmem>>, vector<1x1x32xf32>
    %15 = vector.shape_cast %14 : vector<1x1x32xf32> to vector<1x32xf32>
    %c0_22 = arith.constant 0 : index
    %c0_23 = arith.constant 0 : index
    %c0_24 = arith.constant 0 : index
    %16 = vector.load %arg13[%c0_22, %c0_23, %c0_24] : memref<2x1x32xf32, #tpu.memory_space<vmem>>, vector<1x1x32xf32>
    %17 = vector.shape_cast %16 : vector<1x1x32xf32> to vector<1x32xf32>
    %c0_25 = arith.constant 0 : index
    %c0_26 = arith.constant 0 : index
    %c0_27 = arith.constant 0 : index
    %18 = vector.load %arg15[%c0_25, %c0_26, %c0_27] : memref<2x1x32xf32, #tpu.memory_space<vmem>>, vector<1x1x32xf32>
    %19 = vector.shape_cast %18 : vector<1x1x32xf32> to vector<1x32xf32>
    %c0_28 = arith.constant 0 : index
    %c0_29 = arith.constant 0 : index
    %c0_30 = arith.constant 0 : index
    %20 = vector.load %arg17[%c0_28, %c0_29, %c0_30] : memref<2x1x64xf32, #tpu.memory_space<vmem>>, vector<1x1x64xf32>
    %21 = vector.shape_cast %20 : vector<1x1x64xf32> to vector<1x64xf32>
    %c0_31 = arith.constant 0 : index
    %c0_32 = arith.constant 0 : index
    %c0_33 = arith.constant 0 : index
    %22 = vector.load %arg19[%c0_31, %c0_32, %c0_33] : memref<2x1x32xf32, #tpu.memory_space<vmem>>, vector<1x1x32xf32>
    %23 = vector.shape_cast %22 : vector<1x1x32xf32> to vector<1x32xf32>
    %c0_34 = arith.constant 0 : index
    %c0_35 = arith.constant 0 : index
    %c0_36 = arith.constant 0 : index
    %24 = vector.load %arg20[%c0_34, %c0_35, %c0_36] : memref<2x3x32xf32, #tpu.memory_space<vmem>>, vector<1x3x32xf32>
    %25 = vector.shape_cast %24 : vector<1x3x32xf32> to vector<3x32xf32>
    %c0_37 = arith.constant 0 : index
    %c0_38 = arith.constant 0 : index
    %c0_39 = arith.constant 0 : index
    %26 = vector.load %arg21[%c0_37, %c0_38, %c0_39] : memref<2x3x32xf32, #tpu.memory_space<vmem>>, vector<1x3x32xf32>
    %27 = vector.shape_cast %26 : vector<1x3x32xf32> to vector<3x32xf32>
    %28 = arith.truncf %10 : vector<8x32xf32> to vector<8x32xbf16>
    %c0_40 = arith.constant 0 : index
    %c0_41 = arith.constant 0 : index
    %c0_42 = arith.constant 0 : index
    %29 = vector.load %arg8[%c0_40, %c0_41, %c0_42] : memref<2x32x96xbf16, #tpu.memory_space<vmem>>, vector<1x32x96xbf16>
    %30 = vector.shape_cast %29 : vector<1x32x96xbf16> to vector<32x96xbf16>
    %cst_43 = arith.constant dense<0.000000e+00> : vector<8x96xf32>
    %31 = tpu.matmul %28, %30, %cst_43 {dimension_numbers = #tpu.dot_dimension_numbers<[1], [0], [0], [1], [0, 0, 1, 1], [], []>} : vector<8x32xbf16>, vector<32x96xbf16>, vector<8x96xf32> -> vector<8x96xf32>
    %32 = vector.broadcast %13 : vector<1x96xf32> to vector<8x96xf32>
    %33 = arith.addf %31, %32 : vector<8x96xf32>
    %34 = vector.extract_strided_slice %33 {offsets = [0, 32], sizes = [8, 8], strides = [1, 1]} : vector<8x96xf32> to vector<8x8xf32>
    %c0_44 = arith.constant 0 : index
    %c0_45 = arith.constant 0 : index
    %35 = vector.load %arg23[%c0_44, %c0_45] : memref<192x32xf32, #tpu.memory_space<vmem>>, vector<8x8xf32>
    tpu.vector_store %arg23[%c0_44, %c0_45], %34 {strides = array<i32>} : memref<192x32xf32, #tpu.memory_space<vmem>>, vector<8x8xf32>,
    %36 = vector.extract_strided_slice %33 {offsets = [0, 64], sizes = [8, 8], strides = [1, 1]} : vector<8x96xf32> to vector<8x8xf32>
    %c0_46 = arith.constant 0 : index
    %c0_47 = arith.constant 0 : index
    %37 = vector.load %arg24[%c0_46, %c0_47] : memref<192x32xf32, #tpu.memory_space<vmem>>, vector<8x8xf32>
    tpu.vector_store %arg24[%c0_46, %c0_47], %36 {strides = array<i32>} : memref<192x32xf32, #tpu.memory_space<vmem>>, vector<8x8xf32>,
    %38 = vector.extract_strided_slice %33 {offsets = [0, 40], sizes = [8, 8], strides = [1, 1]} : vector<8x96xf32> to vector<8x8xf32>
    %c24 = arith.constant 24 : index
    %c8 = arith.constant 8 : index
    %39 = vector.load %arg23[%c24, %c8] : memref<192x32xf32, #tpu.memory_space<vmem>>, vector<8x8xf32>
    tpu.vector_store %arg23[%c24, %c8], %38 {strides = array<i32>} : memref<192x32xf32, #tpu.memory_space<vmem>>, vector<8x8xf32>,
    %40 = vector.extract_strided_slice %33 {offsets = [0, 72], sizes = [8, 8], strides = [1, 1]} : vector<8x96xf32> to vector<8x8xf32>
    %c24_48 = arith.constant 24 : index
    %c8_49 = arith.constant 8 : index
    %41 = vector.load %arg24[%c24_48, %c8_49] : memref<192x32xf32, #tpu.memory_space<vmem>>, vector<8x8xf32>
    tpu.vector_store %arg24[%c24_48, %c8_49], %40 {strides = array<i32>} : memref<192x32xf32, #tpu.memory_space<vmem>>, vector<8x8xf32>,
    %42 = vector.extract_strided_slice %33 {offsets = [0, 48], sizes = [8, 8], strides = [1, 1]} : vector<8x96xf32> to vector<8x8xf32>
    %c48 = arith.constant 48 : index
    %c16 = arith.constant 16 : index
    %43 = vector.load %arg23[%c48, %c16] : memref<192x32xf32, #tpu.memory_space<vmem>>, vector<8x8xf32>
    tpu.vector_store %arg23[%c48, %c16], %42 {strides = array<i32>} : memref<192x32xf32, #tpu.memory_space<vmem>>, vector<8x8xf32>,
    %44 = vector.extract_strided_slice %33 {offsets = [0, 80], sizes = [8, 8], strides = [1, 1]} : vector<8x96xf32> to vector<8x8xf32>
    %c48_50 = arith.constant 48 : index
    %c16_51 = arith.constant 16 : index
    %45 = vector.load %arg24[%c48_50, %c16_51] : memref<192x32xf32, #tpu.memory_space<vmem>>, vector<8x8xf32>
    tpu.vector_store %arg24[%c48_50, %c16_51], %44 {strides = array<i32>} : memref<192x32xf32, #tpu.memory_space<vmem>>, vector<8x8xf32>,
    %46 = vector.extract_strided_slice %33 {offsets = [0, 56], sizes = [8, 8], strides = [1, 1]} : vector<8x96xf32> to vector<8x8xf32>
    %c72 = arith.constant 72 : index
    %c24_52 = arith.constant 24 : index
    %47 = vector.load %arg23[%c72, %c24_52] : memref<192x32xf32, #tpu.memory_space<vmem>>, vector<8x8xf32>
    tpu.vector_store %arg23[%c72, %c24_52], %46 {strides = array<i32>} : memref<192x32xf32, #tpu.memory_space<vmem>>, vector<8x8xf32>,
    %48 = vector.extract_strided_slice %33 {offsets = [0, 88], sizes = [8, 8], strides = [1, 1]} : vector<8x96xf32> to vector<8x8xf32>
    %c72_53 = arith.constant 72 : index
    %c24_54 = arith.constant 24 : index
    %49 = vector.load %arg24[%c72_53, %c24_54] : memref<192x32xf32, #tpu.memory_space<vmem>>, vector<8x8xf32>
    tpu.vector_store %arg24[%c72_53, %c24_54], %48 {strides = array<i32>} : memref<192x32xf32, #tpu.memory_space<vmem>>, vector<8x8xf32>,
    %c0_55 = arith.constant 0 : index
    %c0_56 = arith.constant 0 : index
    %50 = vector.load %arg23[%c0_55, %c0_56] : memref<192x32xf32, #tpu.memory_space<vmem>>, vector<96x32xf32>
    %c0_57 = arith.constant 0 : index
    %c0_58 = arith.constant 0 : index
    %51 = vector.load %arg24[%c0_57, %c0_58] : memref<192x32xf32, #tpu.memory_space<vmem>>, vector<96x32xf32>
    %52 = vector.extract_strided_slice %33 {offsets = [0, 0], sizes = [8, 32], strides = [1, 1]} : vector<8x96xf32> to vector<8x32xf32>
    %c0_59 = arith.constant 0 : index
    %c0_60 = arith.constant 0 : index
    %c0_61 = arith.constant 0 : index
    %53 = vector.load %arg10[%c0_59, %c0_60, %c0_61] : memref<2x32x32xbf16, #tpu.memory_space<vmem>>, vector<1x32x32xbf16>
    %54 = vector.shape_cast %53 : vector<1x32x32xbf16> to vector<32x32xbf16>
    %55 = arith.truncf %52 : vector<8x32xf32> to vector<8x32xbf16>
    %56 = arith.truncf %50 : vector<96x32xf32> to vector<96x32xbf16>
    %cst_62 = arith.constant dense<0.000000e+00> : vector<8x96xf32>
    %57 = tpu.matmul %55, %56, %cst_62 {dimension_numbers = #tpu.dot_dimension_numbers<[1], [1], [0], [0], [0, 0, 1, 0], [], []>} : vector<8x32xbf16>, vector<96x32xbf16>, vector<8x96xf32> -> vector<8x96xf32>
    %cst_63 = arith.constant 0.353553385 : f32
    %58 = vector.broadcast %cst_63 : f32 to vector<8x96xf32>
    %59 = arith.mulf %57, %58 : vector<8x96xf32>
    %60 = arith.addf %59, %11 : vector<8x96xf32>
    %cst_64 = arith.constant dense<0xFF800000> : vector<8xf32>
    %61 = vector.multi_reduction <maximumf>, %60, %cst_64 [1] : vector<8x96xf32> to vector<8xf32>
    %62 = vector.shape_cast %61 : vector<8xf32> to vector<8x1xf32>
    %63 = vector.broadcast %62 : vector<8x1xf32> to vector<8x96xf32>
    %64 = arith.subf %60, %63 : vector<8x96xf32>
    %65 = math.exp %64 : vector<8x96xf32>
    %66 = arith.truncf %65 : vector<8x96xf32> to vector<8x96xbf16>
    %67 = arith.truncf %51 : vector<96x32xf32> to vector<96x32xbf16>
    %cst_65 = arith.constant dense<0.000000e+00> : vector<8x32xf32>
    %68 = tpu.matmul %66, %67, %cst_65 {dimension_numbers = #tpu.dot_dimension_numbers<[1], [0], [0], [1], [0, 0, 1, 1], [], []>} : vector<8x96xbf16>, vector<96x32xbf16>, vector<8x32xf32> -> vector<8x32xf32>
    %69 = vector.extract_strided_slice %65 {offsets = [0, 0], sizes = [8, 24], strides = [1, 1]} : vector<8x96xf32> to vector<8x24xf32>
    %cst_66 = arith.constant dense<0.000000e+00> : vector<8xf32>
    %70 = vector.multi_reduction <add>, %69, %cst_66 [1] : vector<8x24xf32> to vector<8xf32>
    %71 = vector.shape_cast %70 : vector<8xf32> to vector<8x1xf32>
    %72 = tpu.reciprocal %71 {approx = true} : vector<8x1xf32> -> vector<8x1xf32>
    %73 = vector.extract_strided_slice %68 {offsets = [0, 0], sizes = [8, 8], strides = [1, 1]} : vector<8x32xf32> to vector<8x8xf32>
    %74 = vector.broadcast %72 : vector<8x1xf32> to vector<8x8xf32>
    %75 = arith.mulf %73, %74 : vector<8x8xf32>
    %c0_67 = arith.constant 0 : index
    %c0_68 = arith.constant 0 : index
    %76 = vector.load %arg25[%c0_67, %c0_68] : memref<8x32xf32, #tpu.memory_space<vmem>>, vector<8x8xf32>
    tpu.vector_store %arg25[%c0_67, %c0_68], %75 {strides = array<i32>} : memref<8x32xf32, #tpu.memory_space<vmem>>, vector<8x8xf32>,
    %77 = vector.extract_strided_slice %65 {offsets = [0, 24], sizes = [8, 24], strides = [1, 1]} : vector<8x96xf32> to vector<8x24xf32>
    %cst_69 = arith.constant dense<0.000000e+00> : vector<8xf32>
    %78 = vector.multi_reduction <add>, %77, %cst_69 [1] : vector<8x24xf32> to vector<8xf32>
    %79 = vector.shape_cast %78 : vector<8xf32> to vector<8x1xf32>
    %80 = tpu.reciprocal %79 {approx = true} : vector<8x1xf32> -> vector<8x1xf32>
    %81 = vector.extract_strided_slice %68 {offsets = [0, 8], sizes = [8, 8], strides = [1, 1]} : vector<8x32xf32> to vector<8x8xf32>
    %82 = vector.broadcast %80 : vector<8x1xf32> to vector<8x8xf32>
    %83 = arith.mulf %81, %82 : vector<8x8xf32>
    %c0_70 = arith.constant 0 : index
    %c8_71 = arith.constant 8 : index
    %84 = vector.load %arg25[%c0_70, %c8_71] : memref<8x32xf32, #tpu.memory_space<vmem>>, vector<8x8xf32>
    tpu.vector_store %arg25[%c0_70, %c8_71], %83 {strides = array<i32>} : memref<8x32xf32, #tpu.memory_space<vmem>>, vector<8x8xf32>,
    %85 = vector.extract_strided_slice %65 {offsets = [0, 48], sizes = [8, 24], strides = [1, 1]} : vector<8x96xf32> to vector<8x24xf32>
    %cst_72 = arith.constant dense<0.000000e+00> : vector<8xf32>
    %86 = vector.multi_reduction <add>, %85, %cst_72 [1] : vector<8x24xf32> to vector<8xf32>
    %87 = vector.shape_cast %86 : vector<8xf32> to vector<8x1xf32>
    %88 = tpu.reciprocal %87 {approx = true} : vector<8x1xf32> -> vector<8x1xf32>
    %89 = vector.extract_strided_slice %68 {offsets = [0, 16], sizes = [8, 8], strides = [1, 1]} : vector<8x32xf32> to vector<8x8xf32>
    %90 = vector.broadcast %88 : vector<8x1xf32> to vector<8x8xf32>
    %91 = arith.mulf %89, %90 : vector<8x8xf32>
    %c0_73 = arith.constant 0 : index
    %c16_74 = arith.constant 16 : index
    %92 = vector.load %arg25[%c0_73, %c16_74] : memref<8x32xf32, #tpu.memory_space<vmem>>, vector<8x8xf32>
    tpu.vector_store %arg25[%c0_73, %c16_74], %91 {strides = array<i32>} : memref<8x32xf32, #tpu.memory_space<vmem>>, vector<8x8xf32>,
    %93 = vector.extract_strided_slice %65 {offsets = [0, 72], sizes = [8, 24], strides = [1, 1]} : vector<8x96xf32> to vector<8x24xf32>
    %cst_75 = arith.constant dense<0.000000e+00> : vector<8xf32>
    %94 = vector.multi_reduction <add>, %93, %cst_75 [1] : vector<8x24xf32> to vector<8xf32>
    %95 = vector.shape_cast %94 : vector<8xf32> to vector<8x1xf32>
    %96 = tpu.reciprocal %95 {approx = true} : vector<8x1xf32> -> vector<8x1xf32>
    %97 = vector.extract_strided_slice %68 {offsets = [0, 24], sizes = [8, 8], strides = [1, 1]} : vector<8x32xf32> to vector<8x8xf32>
    %98 = vector.broadcast %96 : vector<8x1xf32> to vector<8x8xf32>
    %99 = arith.mulf %97, %98 : vector<8x8xf32>
    %c0_76 = arith.constant 0 : index
    %c24_77 = arith.constant 24 : index
    %100 = vector.load %arg25[%c0_76, %c24_77] : memref<8x32xf32, #tpu.memory_space<vmem>>, vector<8x8xf32>
    tpu.vector_store %arg25[%c0_76, %c24_77], %99 {strides = array<i32>} : memref<8x32xf32, #tpu.memory_space<vmem>>, vector<8x8xf32>,
    %c0_78 = arith.constant 0 : index
    %c0_79 = arith.constant 0 : index
    %101 = vector.load %arg25[%c0_78, %c0_79] : memref<8x32xf32, #tpu.memory_space<vmem>>, vector<8x32xf32>
    %102 = arith.truncf %101 : vector<8x32xf32> to vector<8x32xbf16>
    %cst_80 = arith.constant dense<0.000000e+00> : vector<8x32xf32>
    %103 = tpu.matmul %102, %54, %cst_80 {dimension_numbers = #tpu.dot_dimension_numbers<[1], [0], [0], [1], [0, 0, 1, 1], [], []>} : vector<8x32xbf16>, vector<32x32xbf16>, vector<8x32xf32> -> vector<8x32xf32>
    %104 = vector.broadcast %15 : vector<1x32xf32> to vector<8x32xf32>
    %105 = arith.addf %103, %104 : vector<8x32xf32>
    %106 = arith.addf %10, %105 : vector<8x32xf32>
    %107 = vector.extract_strided_slice %25 {offsets = [0, 0], sizes = [1, 32], strides = [1, 1]} : vector<3x32xf32> to vector<1x32xf32>
    %108 = vector.extract_strided_slice %27 {offsets = [0, 0], sizes = [1, 32], strides = [1, 1]} : vector<3x32xf32> to vector<1x32xf32>
    %cst_81 = arith.constant dense<0.000000e+00> : vector<8xf32>
    %109 = vector.multi_reduction <add>, %106, %cst_81 [1] : vector<8x32xf32> to vector<8xf32>
    %110 = vector.shape_cast %109 : vector<8xf32> to vector<8x1xf32>
    %cst_82 = arith.constant 3.200000e+01 : f32
    %111 = vector.broadcast %cst_82 : f32 to vector<8x1xf32>
    %112 = arith.divf %110, %111 : vector<8x1xf32>
    %113 = vector.broadcast %112 : vector<8x1xf32> to vector<8x32xf32>
    %114 = arith.subf %106, %113 : vector<8x32xf32>
    %115 = arith.mulf %114, %114 : vector<8x32xf32>
    %cst_83 = arith.constant dense<0.000000e+00> : vector<8xf32>
    %116 = vector.multi_reduction <add>, %115, %cst_83 [1] : vector<8x32xf32> to vector<8xf32>
    %117 = vector.shape_cast %116 : vector<8xf32> to vector<8x1xf32>
    %cst_84 = arith.constant 3.200000e+01 : f32
    %118 = vector.broadcast %cst_84 : f32 to vector<8x1xf32>
    %119 = arith.divf %117, %118 : vector<8x1xf32>
    %cst_85 = arith.constant 9.99999974E-6 : f32
    %120 = vector.broadcast %cst_85 : f32 to vector<8x1xf32>
    %121 = arith.addf %119, %120 : vector<8x1xf32>
    %122 = math.rsqrt %121 : vector<8x1xf32>
    %123 = vector.broadcast %122 : vector<8x1xf32> to vector<8x32xf32>
    %124 = arith.mulf %114, %123 : vector<8x32xf32>
    %125 = vector.broadcast %107 : vector<1x32xf32> to vector<8x32xf32>
    %126 = arith.mulf %124, %125 : vector<8x32xf32>
    %127 = vector.broadcast %108 : vector<1x32xf32> to vector<8x32xf32>
    %128 = arith.addf %126, %127 : vector<8x32xf32>
    %129 = arith.truncf %128 : vector<8x32xf32> to vector<8x32xbf16>
    %c0_86 = arith.constant 0 : index
    %c0_87 = arith.constant 0 : index
    %c0_88 = arith.constant 0 : index
    %130 = vector.load %arg12[%c0_86, %c0_87, %c0_88] : memref<2x32x32xbf16, #tpu.memory_space<vmem>>, vector<1x32x32xbf16>
    %131 = vector.shape_cast %130 : vector<1x32x32xbf16> to vector<32x32xbf16>
    %cst_89 = arith.constant dense<0.000000e+00> : vector<8x32xf32>
    %132 = tpu.matmul %129, %131, %cst_89 {dimension_numbers = #tpu.dot_dimension_numbers<[1], [0], [0], [1], [0, 0, 1, 1], [], []>} : vector<8x32xbf16>, vector<32x32xbf16>, vector<8x32xf32> -> vector<8x32xf32>
    %133 = vector.broadcast %17 : vector<1x32xf32> to vector<8x32xf32>
    %134 = arith.addf %132, %133 : vector<8x32xf32>
    %c0_90 = arith.constant 0 : index
    %c0_91 = arith.constant 0 : index
    %c0_92 = arith.constant 0 : index
    %135 = vector.load %arg6[%c0_90, %c0_91, %c0_92] : memref<2x32x32xbf16, #tpu.memory_space<vmem>>, vector<1x32x32xbf16>
    %136 = vector.shape_cast %135 : vector<1x32x32xbf16> to vector<32x32xbf16>
    %c0_93 = arith.constant 0 : index
    %c0_94 = arith.constant 0 : index
    %c0_95 = arith.constant 0 : index
    %137 = vector.load %arg7[%c0_93, %c0_94, %c0_95] : memref<2x32x32xbf16, #tpu.memory_space<vmem>>, vector<1x32x32xbf16>
    %138 = vector.shape_cast %137 : vector<1x32x32xbf16> to vector<32x32xbf16>
    %c0_96 = arith.constant 0 : index
    %c0_97 = arith.constant 0 : index
    %c0_98 = arith.constant 0 : index
    %139 = vector.load %arg14[%c0_96, %c0_97, %c0_98] : memref<2x32x32xbf16, #tpu.memory_space<vmem>>, vector<1x32x32xbf16>
    %140 = vector.shape_cast %139 : vector<1x32x32xbf16> to vector<32x32xbf16>
    %141 = arith.truncf %134 : vector<8x32xf32> to vector<8x32xbf16>
    %cst_99 = arith.constant dense<0.000000e+00> : vector<8x32xf32>
    %142 = tpu.matmul %141, %136, %cst_99 {dimension_numbers = #tpu.dot_dimension_numbers<[1], [1], [0], [0], [0, 0, 1, 0], [], []>} : vector<8x32xbf16>, vector<32x32xbf16>, vector<8x32xf32> -> vector<8x32xf32>
    %cst_100 = arith.constant 0.353553385 : f32
    %143 = vector.broadcast %cst_100 : f32 to vector<8x32xf32>
    %144 = arith.mulf %142, %143 : vector<8x32xf32>
    %145 = arith.addf %144, %2 : vector<8x32xf32>
    %cst_101 = arith.constant dense<0xFF800000> : vector<8xf32>
    %146 = vector.multi_reduction <maximumf>, %145, %cst_101 [1] : vector<8x32xf32> to vector<8xf32>
    %147 = vector.shape_cast %146 : vector<8xf32> to vector<8x1xf32>
    %148 = vector.broadcast %147 : vector<8x1xf32> to vector<8x32xf32>
    %149 = arith.subf %145, %148 : vector<8x32xf32>
    %150 = math.exp %149 : vector<8x32xf32>
    %151 = arith.truncf %150 : vector<8x32xf32> to vector<8x32xbf16>
    %cst_102 = arith.constant dense<0.000000e+00> : vector<8x32xf32>
    %152 = tpu.matmul %151, %138, %cst_102 {dimension_numbers = #tpu.dot_dimension_numbers<[1], [0], [0], [1], [0, 0, 1, 1], [], []>} : vector<8x32xbf16>, vector<32x32xbf16>, vector<8x32xf32> -> vector<8x32xf32>
    %153 = vector.extract_strided_slice %150 {offsets = [0, 0], sizes = [8, 8], strides = [1, 1]} : vector<8x32xf32> to vector<8x8xf32>
    %cst_103 = arith.constant dense<0.000000e+00> : vector<8xf32>
    %154 = vector.multi_reduction <add>, %153, %cst_103 [1] : vector<8x8xf32> to vector<8xf32>
    %155 = vector.shape_cast %154 : vector<8xf32> to vector<8x1xf32>
    %156 = tpu.reciprocal %155 {approx = true} : vector<8x1xf32> -> vector<8x1xf32>
    %157 = vector.extract_strided_slice %152 {offsets = [0, 0], sizes = [8, 8], strides = [1, 1]} : vector<8x32xf32> to vector<8x8xf32>
    %158 = vector.broadcast %156 : vector<8x1xf32> to vector<8x8xf32>
    %159 = arith.mulf %157, %158 : vector<8x8xf32>
    %c0_104 = arith.constant 0 : index
    %c0_105 = arith.constant 0 : index
    %160 = vector.load %arg25[%c0_104, %c0_105] : memref<8x32xf32, #tpu.memory_space<vmem>>, vector<8x8xf32>
    tpu.vector_store %arg25[%c0_104, %c0_105], %159 {strides = array<i32>} : memref<8x32xf32, #tpu.memory_space<vmem>>, vector<8x8xf32>,
    %161 = vector.extract_strided_slice %150 {offsets = [0, 8], sizes = [8, 8], strides = [1, 1]} : vector<8x32xf32> to vector<8x8xf32>
    %cst_106 = arith.constant dense<0.000000e+00> : vector<8xf32>
    %162 = vector.multi_reduction <add>, %161, %cst_106 [1] : vector<8x8xf32> to vector<8xf32>
    %163 = vector.shape_cast %162 : vector<8xf32> to vector<8x1xf32>
    %164 = tpu.reciprocal %163 {approx = true} : vector<8x1xf32> -> vector<8x1xf32>
    %165 = vector.extract_strided_slice %152 {offsets = [0, 8], sizes = [8, 8], strides = [1, 1]} : vector<8x32xf32> to vector<8x8xf32>
    %166 = vector.broadcast %164 : vector<8x1xf32> to vector<8x8xf32>
    %167 = arith.mulf %165, %166 : vector<8x8xf32>
    %c0_107 = arith.constant 0 : index
    %c8_108 = arith.constant 8 : index
    %168 = vector.load %arg25[%c0_107, %c8_108] : memref<8x32xf32, #tpu.memory_space<vmem>>, vector<8x8xf32>
    tpu.vector_store %arg25[%c0_107, %c8_108], %167 {strides = array<i32>} : memref<8x32xf32, #tpu.memory_space<vmem>>, vector<8x8xf32>,
    %169 = vector.extract_strided_slice %150 {offsets = [0, 16], sizes = [8, 8], strides = [1, 1]} : vector<8x32xf32> to vector<8x8xf32>
    %cst_109 = arith.constant dense<0.000000e+00> : vector<8xf32>
    %170 = vector.multi_reduction <add>, %169, %cst_109 [1] : vector<8x8xf32> to vector<8xf32>
    %171 = vector.shape_cast %170 : vector<8xf32> to vector<8x1xf32>
    %172 = tpu.reciprocal %171 {approx = true} : vector<8x1xf32> -> vector<8x1xf32>
    %173 = vector.extract_strided_slice %152 {offsets = [0, 16], sizes = [8, 8], strides = [1, 1]} : vector<8x32xf32> to vector<8x8xf32>
    %174 = vector.broadcast %172 : vector<8x1xf32> to vector<8x8xf32>
    %175 = arith.mulf %173, %174 : vector<8x8xf32>
    %c0_110 = arith.constant 0 : index
    %c16_111 = arith.constant 16 : index
    %176 = vector.load %arg25[%c0_110, %c16_111] : memref<8x32xf32, #tpu.memory_space<vmem>>, vector<8x8xf32>
    tpu.vector_store %arg25[%c0_110, %c16_111], %175 {strides = array<i32>} : memref<8x32xf32, #tpu.memory_space<vmem>>, vector<8x8xf32>,
    %177 = vector.extract_strided_slice %150 {offsets = [0, 24], sizes = [8, 8], strides = [1, 1]} : vector<8x32xf32> to vector<8x8xf32>
    %cst_112 = arith.constant dense<0.000000e+00> : vector<8xf32>
    %178 = vector.multi_reduction <add>, %177, %cst_112 [1] : vector<8x8xf32> to vector<8xf32>
    %179 = vector.shape_cast %178 : vector<8xf32> to vector<8x1xf32>
    %180 = tpu.reciprocal %179 {approx = true} : vector<8x1xf32> -> vector<8x1xf32>
    %181 = vector.extract_strided_slice %152 {offsets = [0, 24], sizes = [8, 8], strides = [1, 1]} : vector<8x32xf32> to vector<8x8xf32>
    %182 = vector.broadcast %180 : vector<8x1xf32> to vector<8x8xf32>
    %183 = arith.mulf %181, %182 : vector<8x8xf32>
    %c0_113 = arith.constant 0 : index
    %c24_114 = arith.constant 24 : index
    %184 = vector.load %arg25[%c0_113, %c24_114] : memref<8x32xf32, #tpu.memory_space<vmem>>, vector<8x8xf32>
    tpu.vector_store %arg25[%c0_113, %c24_114], %183 {strides = array<i32>} : memref<8x32xf32, #tpu.memory_space<vmem>>, vector<8x8xf32>,
    %c0_115 = arith.constant 0 : index
    %c0_116 = arith.constant 0 : index
    %185 = vector.load %arg25[%c0_115, %c0_116] : memref<8x32xf32, #tpu.memory_space<vmem>>, vector<8x32xf32>
    %186 = arith.truncf %185 : vector<8x32xf32> to vector<8x32xbf16>
    %cst_117 = arith.constant dense<0.000000e+00> : vector<8x32xf32>
    %187 = tpu.matmul %186, %140, %cst_117 {dimension_numbers = #tpu.dot_dimension_numbers<[1], [0], [0], [1], [0, 0, 1, 1], [], []>} : vector<8x32xbf16>, vector<32x32xbf16>, vector<8x32xf32> -> vector<8x32xf32>
    %188 = vector.broadcast %19 : vector<1x32xf32> to vector<8x32xf32>
    %189 = arith.addf %187, %188 : vector<8x32xf32>
    %190 = arith.addf %128, %189 : vector<8x32xf32>
    %191 = vector.extract_strided_slice %25 {offsets = [1, 0], sizes = [1, 32], strides = [1, 1]} : vector<3x32xf32> to vector<1x32xf32>
    %192 = vector.extract_strided_slice %27 {offsets = [1, 0], sizes = [1, 32], strides = [1, 1]} : vector<3x32xf32> to vector<1x32xf32>
    %cst_118 = arith.constant dense<0.000000e+00> : vector<8xf32>
    %193 = vector.multi_reduction <add>, %190, %cst_118 [1] : vector<8x32xf32> to vector<8xf32>
    %194 = vector.shape_cast %193 : vector<8xf32> to vector<8x1xf32>
    %cst_119 = arith.constant 3.200000e+01 : f32
    %195 = vector.broadcast %cst_119 : f32 to vector<8x1xf32>
    %196 = arith.divf %194, %195 : vector<8x1xf32>
    %197 = vector.broadcast %196 : vector<8x1xf32> to vector<8x32xf32>
    %198 = arith.subf %190, %197 : vector<8x32xf32>
    %199 = arith.mulf %198, %198 : vector<8x32xf32>
    %cst_120 = arith.constant dense<0.000000e+00> : vector<8xf32>
    %200 = vector.multi_reduction <add>, %199, %cst_120 [1] : vector<8x32xf32> to vector<8xf32>
    %201 = vector.shape_cast %200 : vector<8xf32> to vector<8x1xf32>
    %cst_121 = arith.constant 3.200000e+01 : f32
    %202 = vector.broadcast %cst_121 : f32 to vector<8x1xf32>
    %203 = arith.divf %201, %202 : vector<8x1xf32>
    %cst_122 = arith.constant 9.99999974E-6 : f32
    %204 = vector.broadcast %cst_122 : f32 to vector<8x1xf32>
    %205 = arith.addf %203, %204 : vector<8x1xf32>
    %206 = math.rsqrt %205 : vector<8x1xf32>
    %207 = vector.broadcast %206 : vector<8x1xf32> to vector<8x32xf32>
    %208 = arith.mulf %198, %207 : vector<8x32xf32>
    %209 = vector.broadcast %191 : vector<1x32xf32> to vector<8x32xf32>
    %210 = arith.mulf %208, %209 : vector<8x32xf32>
    %211 = vector.broadcast %192 : vector<1x32xf32> to vector<8x32xf32>
    %212 = arith.addf %210, %211 : vector<8x32xf32>
    %213 = arith.truncf %212 : vector<8x32xf32> to vector<8x32xbf16>
    %c0_123 = arith.constant 0 : index
    %c0_124 = arith.constant 0 : index
    %c0_125 = arith.constant 0 : index
    %214 = vector.load %arg16[%c0_123, %c0_124, %c0_125] : memref<2x32x64xbf16, #tpu.memory_space<vmem>>, vector<1x32x64xbf16>
    %215 = vector.shape_cast %214 : vector<1x32x64xbf16> to vector<32x64xbf16>
    %cst_126 = arith.constant dense<0.000000e+00> : vector<8x64xf32>
    %216 = tpu.matmul %213, %215, %cst_126 {dimension_numbers = #tpu.dot_dimension_numbers<[1], [0], [0], [1], [0, 0, 1, 1], [], []>} : vector<8x32xbf16>, vector<32x64xbf16>, vector<8x64xf32> -> vector<8x64xf32>
    %217 = vector.broadcast %21 : vector<1x64xf32> to vector<8x64xf32>
    %218 = arith.addf %216, %217 : vector<8x64xf32>
    %cst_127 = arith.constant 0.000000e+00 : f32
    %219 = vector.broadcast %cst_127 : f32 to vector<8x64xf32>
    %220 = arith.maximumf %218, %219 : vector<8x64xf32>
    %221 = arith.truncf %220 : vector<8x64xf32> to vector<8x64xbf16>
    %c0_128 = arith.constant 0 : index
    %c0_129 = arith.constant 0 : index
    %c0_130 = arith.constant 0 : index
    %222 = vector.load %arg18[%c0_128, %c0_129, %c0_130] : memref<2x64x32xbf16, #tpu.memory_space<vmem>>, vector<1x64x32xbf16>
    %223 = vector.shape_cast %222 : vector<1x64x32xbf16> to vector<64x32xbf16>
    %cst_131 = arith.constant dense<0.000000e+00> : vector<8x32xf32>
    %224 = tpu.matmul %221, %223, %cst_131 {dimension_numbers = #tpu.dot_dimension_numbers<[1], [0], [0], [1], [0, 0, 1, 1], [], []>} : vector<8x64xbf16>, vector<64x32xbf16>, vector<8x32xf32> -> vector<8x32xf32>
    %225 = vector.broadcast %23 : vector<1x32xf32> to vector<8x32xf32>
    %226 = arith.addf %224, %225 : vector<8x32xf32>
    %227 = arith.addf %212, %226 : vector<8x32xf32>
    %228 = vector.extract_strided_slice %25 {offsets = [2, 0], sizes = [1, 32], strides = [1, 1]} : vector<3x32xf32> to vector<1x32xf32>
    %229 = vector.extract_strided_slice %27 {offsets = [2, 0], sizes = [1, 32], strides = [1, 1]} : vector<3x32xf32> to vector<1x32xf32>
    %cst_132 = arith.constant dense<0.000000e+00> : vector<8xf32>
    %230 = vector.multi_reduction <add>, %227, %cst_132 [1] : vector<8x32xf32> to vector<8xf32>
    %231 = vector.shape_cast %230 : vector<8xf32> to vector<8x1xf32>
    %cst_133 = arith.constant 3.200000e+01 : f32
    %232 = vector.broadcast %cst_133 : f32 to vector<8x1xf32>
    %233 = arith.divf %231, %232 : vector<8x1xf32>
    %234 = vector.broadcast %233 : vector<8x1xf32> to vector<8x32xf32>
    %235 = arith.subf %227, %234 : vector<8x32xf32>
    %236 = arith.mulf %235, %235 : vector<8x32xf32>
    %cst_134 = arith.constant dense<0.000000e+00> : vector<8xf32>
    %237 = vector.multi_reduction <add>, %236, %cst_134 [1] : vector<8x32xf32> to vector<8xf32>
    %238 = vector.shape_cast %237 : vector<8xf32> to vector<8x1xf32>
    %cst_135 = arith.constant 3.200000e+01 : f32
    %239 = vector.broadcast %cst_135 : f32 to vector<8x1xf32>
    %240 = arith.divf %238, %239 : vector<8x1xf32>
    %cst_136 = arith.constant 9.99999974E-6 : f32
    %241 = vector.broadcast %cst_136 : f32 to vector<8x1xf32>
    %242 = arith.addf %240, %241 : vector<8x1xf32>
    %243 = math.rsqrt %242 : vector<8x1xf32>
    %244 = vector.broadcast %243 : vector<8x1xf32> to vector<8x32xf32>
    %245 = arith.mulf %235, %244 : vector<8x32xf32>
    %246 = vector.broadcast %228 : vector<1x32xf32> to vector<8x32xf32>
    %247 = arith.mulf %245, %246 : vector<8x32xf32>
    %248 = vector.broadcast %229 : vector<1x32xf32> to vector<8x32xf32>
    %249 = arith.addf %247, %248 : vector<8x32xf32>
    %c1 = arith.constant 1 : index
    %c0_137 = arith.constant 0 : index
    %c0_138 = arith.constant 0 : index
    %250 = vector.load %arg9[%c1, %c0_137, %c0_138] : memref<2x1x96xf32, #tpu.memory_space<vmem>>, vector<1x1x96xf32>
    %251 = vector.shape_cast %250 : vector<1x1x96xf32> to vector<1x96xf32>
    %c1_139 = arith.constant 1 : index
    %c0_140 = arith.constant 0 : index
    %c0_141 = arith.constant 0 : index
    %252 = vector.load %arg11[%c1_139, %c0_140, %c0_141] : memref<2x1x32xf32, #tpu.memory_space<vmem>>, vector<1x1x32xf32>
    %253 = vector.shape_cast %252 : vector<1x1x32xf32> to vector<1x32xf32>
    %c1_142 = arith.constant 1 : index
    %c0_143 = arith.constant 0 : index
    %c0_144 = arith.constant 0 : index
    %254 = vector.load %arg13[%c1_142, %c0_143, %c0_144] : memref<2x1x32xf32, #tpu.memory_space<vmem>>, vector<1x1x32xf32>
    %255 = vector.shape_cast %254 : vector<1x1x32xf32> to vector<1x32xf32>
    %c1_145 = arith.constant 1 : index
    %c0_146 = arith.constant 0 : index
    %c0_147 = arith.constant 0 : index
    %256 = vector.load %arg15[%c1_145, %c0_146, %c0_147] : memref<2x1x32xf32, #tpu.memory_space<vmem>>, vector<1x1x32xf32>
    %257 = vector.shape_cast %256 : vector<1x1x32xf32> to vector<1x32xf32>
    %c1_148 = arith.constant 1 : index
    %c0_149 = arith.constant 0 : index
    %c0_150 = arith.constant 0 : index
    %258 = vector.load %arg17[%c1_148, %c0_149, %c0_150] : memref<2x1x64xf32, #tpu.memory_space<vmem>>, vector<1x1x64xf32>
    %259 = vector.shape_cast %258 : vector<1x1x64xf32> to vector<1x64xf32>
    %c1_151 = arith.constant 1 : index
    %c0_152 = arith.constant 0 : index
    %c0_153 = arith.constant 0 : index
    %260 = vector.load %arg19[%c1_151, %c0_152, %c0_153] : memref<2x1x32xf32, #tpu.memory_space<vmem>>, vector<1x1x32xf32>
    %261 = vector.shape_cast %260 : vector<1x1x32xf32> to vector<1x32xf32>
    %c1_154 = arith.constant 1 : index
    %c0_155 = arith.constant 0 : index
    %c0_156 = arith.constant 0 : index
    %262 = vector.load %arg20[%c1_154, %c0_155, %c0_156] : memref<2x3x32xf32, #tpu.memory_space<vmem>>, vector<1x3x32xf32>
    %263 = vector.shape_cast %262 : vector<1x3x32xf32> to vector<3x32xf32>
    %c1_157 = arith.constant 1 : index
    %c0_158 = arith.constant 0 : index
    %c0_159 = arith.constant 0 : index
    %264 = vector.load %arg21[%c1_157, %c0_158, %c0_159] : memref<2x3x32xf32, #tpu.memory_space<vmem>>, vector<1x3x32xf32>
    %265 = vector.shape_cast %264 : vector<1x3x32xf32> to vector<3x32xf32>
    %266 = arith.truncf %249 : vector<8x32xf32> to vector<8x32xbf16>
    %c1_160 = arith.constant 1 : index
    %c0_161 = arith.constant 0 : index
    %c0_162 = arith.constant 0 : index
    %267 = vector.load %arg8[%c1_160, %c0_161, %c0_162] : memref<2x32x96xbf16, #tpu.memory_space<vmem>>, vector<1x32x96xbf16>
    %268 = vector.shape_cast %267 : vector<1x32x96xbf16> to vector<32x96xbf16>
    %cst_163 = arith.constant dense<0.000000e+00> : vector<8x96xf32>
    %269 = tpu.matmul %266, %268, %cst_163 {dimension_numbers = #tpu.dot_dimension_numbers<[1], [0], [0], [1], [0, 0, 1, 1], [], []>} : vector<8x32xbf16>, vector<32x96xbf16>, vector<8x96xf32> -> vector<8x96xf32>
    %270 = vector.broadcast %251 : vector<1x96xf32> to vector<8x96xf32>
    %271 = arith.addf %269, %270 : vector<8x96xf32>
    %272 = vector.extract_strided_slice %271 {offsets = [0, 32], sizes = [8, 8], strides = [1, 1]} : vector<8x96xf32> to vector<8x8xf32>
    %c96 = arith.constant 96 : index
    %c0_164 = arith.constant 0 : index
    %273 = vector.load %arg23[%c96, %c0_164] : memref<192x32xf32, #tpu.memory_space<vmem>>, vector<8x8xf32>
    tpu.vector_store %arg23[%c96, %c0_164], %272 {strides = array<i32>} : memref<192x32xf32, #tpu.memory_space<vmem>>, vector<8x8xf32>,
    %274 = vector.extract_strided_slice %271 {offsets = [0, 64], sizes = [8, 8], strides = [1, 1]} : vector<8x96xf32> to vector<8x8xf32>
    %c96_165 = arith.constant 96 : index
    %c0_166 = arith.constant 0 : index
    %275 = vector.load %arg24[%c96_165, %c0_166] : memref<192x32xf32, #tpu.memory_space<vmem>>, vector<8x8xf32>
    tpu.vector_store %arg24[%c96_165, %c0_166], %274 {strides = array<i32>} : memref<192x32xf32, #tpu.memory_space<vmem>>, vector<8x8xf32>,
    %276 = vector.extract_strided_slice %271 {offsets = [0, 40], sizes = [8, 8], strides = [1, 1]} : vector<8x96xf32> to vector<8x8xf32>
    %c120 = arith.constant 120 : index
    %c8_167 = arith.constant 8 : index
    %277 = vector.load %arg23[%c120, %c8_167] : memref<192x32xf32, #tpu.memory_space<vmem>>, vector<8x8xf32>
    tpu.vector_store %arg23[%c120, %c8_167], %276 {strides = array<i32>} : memref<192x32xf32, #tpu.memory_space<vmem>>, vector<8x8xf32>,
    %278 = vector.extract_strided_slice %271 {offsets = [0, 72], sizes = [8, 8], strides = [1, 1]} : vector<8x96xf32> to vector<8x8xf32>
    %c120_168 = arith.constant 120 : index
    %c8_169 = arith.constant 8 : index
    %279 = vector.load %arg24[%c120_168, %c8_169] : memref<192x32xf32, #tpu.memory_space<vmem>>, vector<8x8xf32>
    tpu.vector_store %arg24[%c120_168, %c8_169], %278 {strides = array<i32>} : memref<192x32xf32, #tpu.memory_space<vmem>>, vector<8x8xf32>,
    %280 = vector.extract_strided_slice %271 {offsets = [0, 48], sizes = [8, 8], strides = [1, 1]} : vector<8x96xf32> to vector<8x8xf32>
    %c144 = arith.constant 144 : index
    %c16_170 = arith.constant 16 : index
    %281 = vector.load %arg23[%c144, %c16_170] : memref<192x32xf32, #tpu.memory_space<vmem>>, vector<8x8xf32>
    tpu.vector_store %arg23[%c144, %c16_170], %280 {strides = array<i32>} : memref<192x32xf32, #tpu.memory_space<vmem>>, vector<8x8xf32>,
    %282 = vector.extract_strided_slice %271 {offsets = [0, 80], sizes = [8, 8], strides = [1, 1]} : vector<8x96xf32> to vector<8x8xf32>
    %c144_171 = arith.constant 144 : index
    %c16_172 = arith.constant 16 : index
    %283 = vector.load %arg24[%c144_171, %c16_172] : memref<192x32xf32, #tpu.memory_space<vmem>>, vector<8x8xf32>
    tpu.vector_store %arg24[%c144_171, %c16_172], %282 {strides = array<i32>} : memref<192x32xf32, #tpu.memory_space<vmem>>, vector<8x8xf32>,
    %284 = vector.extract_strided_slice %271 {offsets = [0, 56], sizes = [8, 8], strides = [1, 1]} : vector<8x96xf32> to vector<8x8xf32>
    %c168 = arith.constant 168 : index
    %c24_173 = arith.constant 24 : index
    %285 = vector.load %arg23[%c168, %c24_173] : memref<192x32xf32, #tpu.memory_space<vmem>>, vector<8x8xf32>
    tpu.vector_store %arg23[%c168, %c24_173], %284 {strides = array<i32>} : memref<192x32xf32, #tpu.memory_space<vmem>>, vector<8x8xf32>,
    %286 = vector.extract_strided_slice %271 {offsets = [0, 88], sizes = [8, 8], strides = [1, 1]} : vector<8x96xf32> to vector<8x8xf32>
    %c168_174 = arith.constant 168 : index
    %c24_175 = arith.constant 24 : index
    %287 = vector.load %arg24[%c168_174, %c24_175] : memref<192x32xf32, #tpu.memory_space<vmem>>, vector<8x8xf32>
    tpu.vector_store %arg24[%c168_174, %c24_175], %286 {strides = array<i32>} : memref<192x32xf32, #tpu.memory_space<vmem>>, vector<8x8xf32>,
    %c96_176 = arith.constant 96 : index
    %c0_177 = arith.constant 0 : index
    %288 = vector.load %arg23[%c96_176, %c0_177] : memref<192x32xf32, #tpu.memory_space<vmem>>, vector<96x32xf32>
    %c96_178 = arith.constant 96 : index
    %c0_179 = arith.constant 0 : index
    %289 = vector.load %arg24[%c96_178, %c0_179] : memref<192x32xf32, #tpu.memory_space<vmem>>, vector<96x32xf32>
    %290 = vector.extract_strided_slice %271 {offsets = [0, 0], sizes = [8, 32], strides = [1, 1]} : vector<8x96xf32> to vector<8x32xf32>
    %c1_180 = arith.constant 1 : index
    %c0_181 = arith.constant 0 : index
    %c0_182 = arith.constant 0 : index
    %291 = vector.load %arg10[%c1_180, %c0_181, %c0_182] : memref<2x32x32xbf16, #tpu.memory_space<vmem>>, vector<1x32x32xbf16>
    %292 = vector.shape_cast %291 : vector<1x32x32xbf16> to vector<32x32xbf16>
    %293 = arith.truncf %290 : vector<8x32xf32> to vector<8x32xbf16>
    %294 = arith.truncf %288 : vector<96x32xf32> to vector<96x32xbf16>
    %cst_183 = arith.constant dense<0.000000e+00> : vector<8x96xf32>
    %295 = tpu.matmul %293, %294, %cst_183 {dimension_numbers = #tpu.dot_dimension_numbers<[1], [1], [0], [0], [0, 0, 1, 0], [], []>} : vector<8x32xbf16>, vector<96x32xbf16>, vector<8x96xf32> -> vector<8x96xf32>
    %cst_184 = arith.constant 0.353553385 : f32
    %296 = vector.broadcast %cst_184 : f32 to vector<8x96xf32>
    %297 = arith.mulf %295, %296 : vector<8x96xf32>
    %298 = arith.addf %297, %11 : vector<8x96xf32>
    %cst_185 = arith.constant dense<0xFF800000> : vector<8xf32>
    %299 = vector.multi_reduction <maximumf>, %298, %cst_185 [1] : vector<8x96xf32> to vector<8xf32>
    %300 = vector.shape_cast %299 : vector<8xf32> to vector<8x1xf32>
    %301 = vector.broadcast %300 : vector<8x1xf32> to vector<8x96xf32>
    %302 = arith.subf %298, %301 : vector<8x96xf32>
    %303 = math.exp %302 : vector<8x96xf32>
    %304 = arith.truncf %303 : vector<8x96xf32> to vector<8x96xbf16>
    %305 = arith.truncf %289 : vector<96x32xf32> to vector<96x32xbf16>
    %cst_186 = arith.constant dense<0.000000e+00> : vector<8x32xf32>
    %306 = tpu.matmul %304, %305, %cst_186 {dimension_numbers = #tpu.dot_dimension_numbers<[1], [0], [0], [1], [0, 0, 1, 1], [], []>} : vector<8x96xbf16>, vector<96x32xbf16>, vector<8x32xf32> -> vector<8x32xf32>
    %307 = vector.extract_strided_slice %303 {offsets = [0, 0], sizes = [8, 24], strides = [1, 1]} : vector<8x96xf32> to vector<8x24xf32>
    %cst_187 = arith.constant dense<0.000000e+00> : vector<8xf32>
    %308 = vector.multi_reduction <add>, %307, %cst_187 [1] : vector<8x24xf32> to vector<8xf32>
    %309 = vector.shape_cast %308 : vector<8xf32> to vector<8x1xf32>
    %310 = tpu.reciprocal %309 {approx = true} : vector<8x1xf32> -> vector<8x1xf32>
    %311 = vector.extract_strided_slice %306 {offsets = [0, 0], sizes = [8, 8], strides = [1, 1]} : vector<8x32xf32> to vector<8x8xf32>
    %312 = vector.broadcast %310 : vector<8x1xf32> to vector<8x8xf32>
    %313 = arith.mulf %311, %312 : vector<8x8xf32>
    %c0_188 = arith.constant 0 : index
    %c0_189 = arith.constant 0 : index
    %314 = vector.load %arg25[%c0_188, %c0_189] : memref<8x32xf32, #tpu.memory_space<vmem>>, vector<8x8xf32>
    tpu.vector_store %arg25[%c0_188, %c0_189], %313 {strides = array<i32>} : memref<8x32xf32, #tpu.memory_space<vmem>>, vector<8x8xf32>,
    %315 = vector.extract_strided_slice %303 {offsets = [0, 24], sizes = [8, 24], strides = [1, 1]} : vector<8x96xf32> to vector<8x24xf32>
    %cst_190 = arith.constant dense<0.000000e+00> : vector<8xf32>
    %316 = vector.multi_reduction <add>, %315, %cst_190 [1] : vector<8x24xf32> to vector<8xf32>
    %317 = vector.shape_cast %316 : vector<8xf32> to vector<8x1xf32>
    %318 = tpu.reciprocal %317 {approx = true} : vector<8x1xf32> -> vector<8x1xf32>
    %319 = vector.extract_strided_slice %306 {offsets = [0, 8], sizes = [8, 8], strides = [1, 1]} : vector<8x32xf32> to vector<8x8xf32>
    %320 = vector.broadcast %318 : vector<8x1xf32> to vector<8x8xf32>
    %321 = arith.mulf %319, %320 : vector<8x8xf32>
    %c0_191 = arith.constant 0 : index
    %c8_192 = arith.constant 8 : index
    %322 = vector.load %arg25[%c0_191, %c8_192] : memref<8x32xf32, #tpu.memory_space<vmem>>, vector<8x8xf32>
    tpu.vector_store %arg25[%c0_191, %c8_192], %321 {strides = array<i32>} : memref<8x32xf32, #tpu.memory_space<vmem>>, vector<8x8xf32>,
    %323 = vector.extract_strided_slice %303 {offsets = [0, 48], sizes = [8, 24], strides = [1, 1]} : vector<8x96xf32> to vector<8x24xf32>
    %cst_193 = arith.constant dense<0.000000e+00> : vector<8xf32>
    %324 = vector.multi_reduction <add>, %323, %cst_193 [1] : vector<8x24xf32> to vector<8xf32>
    %325 = vector.shape_cast %324 : vector<8xf32> to vector<8x1xf32>
    %326 = tpu.reciprocal %325 {approx = true} : vector<8x1xf32> -> vector<8x1xf32>
    %327 = vector.extract_strided_slice %306 {offsets = [0, 16], sizes = [8, 8], strides = [1, 1]} : vector<8x32xf32> to vector<8x8xf32>
    %328 = vector.broadcast %326 : vector<8x1xf32> to vector<8x8xf32>
    %329 = arith.mulf %327, %328 : vector<8x8xf32>
    %c0_194 = arith.constant 0 : index
    %c16_195 = arith.constant 16 : index
    %330 = vector.load %arg25[%c0_194, %c16_195] : memref<8x32xf32, #tpu.memory_space<vmem>>, vector<8x8xf32>
    tpu.vector_store %arg25[%c0_194, %c16_195], %329 {strides = array<i32>} : memref<8x32xf32, #tpu.memory_space<vmem>>, vector<8x8xf32>,
    %331 = vector.extract_strided_slice %303 {offsets = [0, 72], sizes = [8, 24], strides = [1, 1]} : vector<8x96xf32> to vector<8x24xf32>
    %cst_196 = arith.constant dense<0.000000e+00> : vector<8xf32>
    %332 = vector.multi_reduction <add>, %331, %cst_196 [1] : vector<8x24xf32> to vector<8xf32>
    %333 = vector.shape_cast %332 : vector<8xf32> to vector<8x1xf32>
    %334 = tpu.reciprocal %333 {approx = true} : vector<8x1xf32> -> vector<8x1xf32>
    %335 = vector.extract_strided_slice %306 {offsets = [0, 24], sizes = [8, 8], strides = [1, 1]} : vector<8x32xf32> to vector<8x8xf32>
    %336 = vector.broadcast %334 : vector<8x1xf32> to vector<8x8xf32>
    %337 = arith.mulf %335, %336 : vector<8x8xf32>
    %c0_197 = arith.constant 0 : index
    %c24_198 = arith.constant 24 : index
    %338 = vector.load %arg25[%c0_197, %c24_198] : memref<8x32xf32, #tpu.memory_space<vmem>>, vector<8x8xf32>
    tpu.vector_store %arg25[%c0_197, %c24_198], %337 {strides = array<i32>} : memref<8x32xf32, #tpu.memory_space<vmem>>, vector<8x8xf32>,
    %c0_199 = arith.constant 0 : index
    %c0_200 = arith.constant 0 : index
    %339 = vector.load %arg25[%c0_199, %c0_200] : memref<8x32xf32, #tpu.memory_space<vmem>>, vector<8x32xf32>
    %340 = arith.truncf %339 : vector<8x32xf32> to vector<8x32xbf16>
    %cst_201 = arith.constant dense<0.000000e+00> : vector<8x32xf32>
    %341 = tpu.matmul %340, %292, %cst_201 {dimension_numbers = #tpu.dot_dimension_numbers<[1], [0], [0], [1], [0, 0, 1, 1], [], []>} : vector<8x32xbf16>, vector<32x32xbf16>, vector<8x32xf32> -> vector<8x32xf32>
    %342 = vector.broadcast %253 : vector<1x32xf32> to vector<8x32xf32>
    %343 = arith.addf %341, %342 : vector<8x32xf32>
    %344 = arith.addf %249, %343 : vector<8x32xf32>
    %345 = vector.extract_strided_slice %263 {offsets = [0, 0], sizes = [1, 32], strides = [1, 1]} : vector<3x32xf32> to vector<1x32xf32>
    %346 = vector.extract_strided_slice %265 {offsets = [0, 0], sizes = [1, 32], strides = [1, 1]} : vector<3x32xf32> to vector<1x32xf32>
    %cst_202 = arith.constant dense<0.000000e+00> : vector<8xf32>
    %347 = vector.multi_reduction <add>, %344, %cst_202 [1] : vector<8x32xf32> to vector<8xf32>
    %348 = vector.shape_cast %347 : vector<8xf32> to vector<8x1xf32>
    %cst_203 = arith.constant 3.200000e+01 : f32
    %349 = vector.broadcast %cst_203 : f32 to vector<8x1xf32>
    %350 = arith.divf %348, %349 : vector<8x1xf32>
    %351 = vector.broadcast %350 : vector<8x1xf32> to vector<8x32xf32>
    %352 = arith.subf %344, %351 : vector<8x32xf32>
    %353 = arith.mulf %352, %352 : vector<8x32xf32>
    %cst_204 = arith.constant dense<0.000000e+00> : vector<8xf32>
    %354 = vector.multi_reduction <add>, %353, %cst_204 [1] : vector<8x32xf32> to vector<8xf32>
    %355 = vector.shape_cast %354 : vector<8xf32> to vector<8x1xf32>
    %cst_205 = arith.constant 3.200000e+01 : f32
    %356 = vector.broadcast %cst_205 : f32 to vector<8x1xf32>
    %357 = arith.divf %355, %356 : vector<8x1xf32>
    %cst_206 = arith.constant 9.99999974E-6 : f32
    %358 = vector.broadcast %cst_206 : f32 to vector<8x1xf32>
    %359 = arith.addf %357, %358 : vector<8x1xf32>
    %360 = math.rsqrt %359 : vector<8x1xf32>
    %361 = vector.broadcast %360 : vector<8x1xf32> to vector<8x32xf32>
    %362 = arith.mulf %352, %361 : vector<8x32xf32>
    %363 = vector.broadcast %345 : vector<1x32xf32> to vector<8x32xf32>
    %364 = arith.mulf %362, %363 : vector<8x32xf32>
    %365 = vector.broadcast %346 : vector<1x32xf32> to vector<8x32xf32>
    %366 = arith.addf %364, %365 : vector<8x32xf32>
    %367 = arith.truncf %366 : vector<8x32xf32> to vector<8x32xbf16>
    %c1_207 = arith.constant 1 : index
    %c0_208 = arith.constant 0 : index
    %c0_209 = arith.constant 0 : index
    %368 = vector.load %arg12[%c1_207, %c0_208, %c0_209] : memref<2x32x32xbf16, #tpu.memory_space<vmem>>, vector<1x32x32xbf16>
    %369 = vector.shape_cast %368 : vector<1x32x32xbf16> to vector<32x32xbf16>
    %cst_210 = arith.constant dense<0.000000e+00> : vector<8x32xf32>
    %370 = tpu.matmul %367, %369, %cst_210 {dimension_numbers = #tpu.dot_dimension_numbers<[1], [0], [0], [1], [0, 0, 1, 1], [], []>} : vector<8x32xbf16>, vector<32x32xbf16>, vector<8x32xf32> -> vector<8x32xf32>
    %371 = vector.broadcast %255 : vector<1x32xf32> to vector<8x32xf32>
    %372 = arith.addf %370, %371 : vector<8x32xf32>
    %c1_211 = arith.constant 1 : index
    %c0_212 = arith.constant 0 : index
    %c0_213 = arith.constant 0 : index
    %373 = vector.load %arg6[%c1_211, %c0_212, %c0_213] : memref<2x32x32xbf16, #tpu.memory_space<vmem>>, vector<1x32x32xbf16>
    %374 = vector.shape_cast %373 : vector<1x32x32xbf16> to vector<32x32xbf16>
    %c1_214 = arith.constant 1 : index
    %c0_215 = arith.constant 0 : index
    %c0_216 = arith.constant 0 : index
    %375 = vector.load %arg7[%c1_214, %c0_215, %c0_216] : memref<2x32x32xbf16, #tpu.memory_space<vmem>>, vector<1x32x32xbf16>
    %376 = vector.shape_cast %375 : vector<1x32x32xbf16> to vector<32x32xbf16>
    %c1_217 = arith.constant 1 : index
    %c0_218 = arith.constant 0 : index
    %c0_219 = arith.constant 0 : index
    %377 = vector.load %arg14[%c1_217, %c0_218, %c0_219] : memref<2x32x32xbf16, #tpu.memory_space<vmem>>, vector<1x32x32xbf16>
    %378 = vector.shape_cast %377 : vector<1x32x32xbf16> to vector<32x32xbf16>
    %379 = arith.truncf %372 : vector<8x32xf32> to vector<8x32xbf16>
    %cst_220 = arith.constant dense<0.000000e+00> : vector<8x32xf32>
    %380 = tpu.matmul %379, %374, %cst_220 {dimension_numbers = #tpu.dot_dimension_numbers<[1], [1], [0], [0], [0, 0, 1, 0], [], []>} : vector<8x32xbf16>, vector<32x32xbf16>, vector<8x32xf32> -> vector<8x32xf32>
    %cst_221 = arith.constant 0.353553385 : f32
    %381 = vector.broadcast %cst_221 : f32 to vector<8x32xf32>
    %382 = arith.mulf %380, %381 : vector<8x32xf32>
    %383 = arith.addf %382, %2 : vector<8x32xf32>
    %cst_222 = arith.constant dense<0xFF800000> : vector<8xf32>
    %384 = vector.multi_reduction <maximumf>, %383, %cst_222 [1] : vector<8x32xf32> to vector<8xf32>
    %385 = vector.shape_cast %384 : vector<8xf32> to vector<8x1xf32>
    %386 = vector.broadcast %385 : vector<8x1xf32> to vector<8x32xf32>
    %387 = arith.subf %383, %386 : vector<8x32xf32>
    %388 = math.exp %387 : vector<8x32xf32>
    %389 = arith.truncf %388 : vector<8x32xf32> to vector<8x32xbf16>
    %cst_223 = arith.constant dense<0.000000e+00> : vector<8x32xf32>
    %390 = tpu.matmul %389, %376, %cst_223 {dimension_numbers = #tpu.dot_dimension_numbers<[1], [0], [0], [1], [0, 0, 1, 1], [], []>} : vector<8x32xbf16>, vector<32x32xbf16>, vector<8x32xf32> -> vector<8x32xf32>
    %391 = vector.extract_strided_slice %388 {offsets = [0, 0], sizes = [8, 8], strides = [1, 1]} : vector<8x32xf32> to vector<8x8xf32>
    %cst_224 = arith.constant dense<0.000000e+00> : vector<8xf32>
    %392 = vector.multi_reduction <add>, %391, %cst_224 [1] : vector<8x8xf32> to vector<8xf32>
    %393 = vector.shape_cast %392 : vector<8xf32> to vector<8x1xf32>
    %394 = tpu.reciprocal %393 {approx = true} : vector<8x1xf32> -> vector<8x1xf32>
    %395 = vector.extract_strided_slice %390 {offsets = [0, 0], sizes = [8, 8], strides = [1, 1]} : vector<8x32xf32> to vector<8x8xf32>
    %396 = vector.broadcast %394 : vector<8x1xf32> to vector<8x8xf32>
    %397 = arith.mulf %395, %396 : vector<8x8xf32>
    %c0_225 = arith.constant 0 : index
    %c0_226 = arith.constant 0 : index
    %398 = vector.load %arg25[%c0_225, %c0_226] : memref<8x32xf32, #tpu.memory_space<vmem>>, vector<8x8xf32>
    tpu.vector_store %arg25[%c0_225, %c0_226], %397 {strides = array<i32>} : memref<8x32xf32, #tpu.memory_space<vmem>>, vector<8x8xf32>,
    %399 = vector.extract_strided_slice %388 {offsets = [0, 8], sizes = [8, 8], strides = [1, 1]} : vector<8x32xf32> to vector<8x8xf32>
    %cst_227 = arith.constant dense<0.000000e+00> : vector<8xf32>
    %400 = vector.multi_reduction <add>, %399, %cst_227 [1] : vector<8x8xf32> to vector<8xf32>
    %401 = vector.shape_cast %400 : vector<8xf32> to vector<8x1xf32>
    %402 = tpu.reciprocal %401 {approx = true} : vector<8x1xf32> -> vector<8x1xf32>
    %403 = vector.extract_strided_slice %390 {offsets = [0, 8], sizes = [8, 8], strides = [1, 1]} : vector<8x32xf32> to vector<8x8xf32>
    %404 = vector.broadcast %402 : vector<8x1xf32> to vector<8x8xf32>
    %405 = arith.mulf %403, %404 : vector<8x8xf32>
    %c0_228 = arith.constant 0 : index
    %c8_229 = arith.constant 8 : index
    %406 = vector.load %arg25[%c0_228, %c8_229] : memref<8x32xf32, #tpu.memory_space<vmem>>, vector<8x8xf32>
    tpu.vector_store %arg25[%c0_228, %c8_229], %405 {strides = array<i32>} : memref<8x32xf32, #tpu.memory_space<vmem>>, vector<8x8xf32>,
    %407 = vector.extract_strided_slice %388 {offsets = [0, 16], sizes = [8, 8], strides = [1, 1]} : vector<8x32xf32> to vector<8x8xf32>
    %cst_230 = arith.constant dense<0.000000e+00> : vector<8xf32>
    %408 = vector.multi_reduction <add>, %407, %cst_230 [1] : vector<8x8xf32> to vector<8xf32>
    %409 = vector.shape_cast %408 : vector<8xf32> to vector<8x1xf32>
    %410 = tpu.reciprocal %409 {approx = true} : vector<8x1xf32> -> vector<8x1xf32>
    %411 = vector.extract_strided_slice %390 {offsets = [0, 16], sizes = [8, 8], strides = [1, 1]} : vector<8x32xf32> to vector<8x8xf32>
    %412 = vector.broadcast %410 : vector<8x1xf32> to vector<8x8xf32>
    %413 = arith.mulf %411, %412 : vector<8x8xf32>
    %c0_231 = arith.constant 0 : index
    %c16_232 = arith.constant 16 : index
    %414 = vector.load %arg25[%c0_231, %c16_232] : memref<8x32xf32, #tpu.memory_space<vmem>>, vector<8x8xf32>
    tpu.vector_store %arg25[%c0_231, %c16_232], %413 {strides = array<i32>} : memref<8x32xf32, #tpu.memory_space<vmem>>, vector<8x8xf32>,
    %415 = vector.extract_strided_slice %388 {offsets = [0, 24], sizes = [8, 8], strides = [1, 1]} : vector<8x32xf32> to vector<8x8xf32>
    %cst_233 = arith.constant dense<0.000000e+00> : vector<8xf32>
    %416 = vector.multi_reduction <add>, %415, %cst_233 [1] : vector<8x8xf32> to vector<8xf32>
    %417 = vector.shape_cast %416 : vector<8xf32> to vector<8x1xf32>
    %418 = tpu.reciprocal %417 {approx = true} : vector<8x1xf32> -> vector<8x1xf32>
    %419 = vector.extract_strided_slice %390 {offsets = [0, 24], sizes = [8, 8], strides = [1, 1]} : vector<8x32xf32> to vector<8x8xf32>
    %420 = vector.broadcast %418 : vector<8x1xf32> to vector<8x8xf32>
    %421 = arith.mulf %419, %420 : vector<8x8xf32>
    %c0_234 = arith.constant 0 : index
    %c24_235 = arith.constant 24 : index
    %422 = vector.load %arg25[%c0_234, %c24_235] : memref<8x32xf32, #tpu.memory_space<vmem>>, vector<8x8xf32>
    tpu.vector_store %arg25[%c0_234, %c24_235], %421 {strides = array<i32>} : memref<8x32xf32, #tpu.memory_space<vmem>>, vector<8x8xf32>,
    %c0_236 = arith.constant 0 : index
    %c0_237 = arith.constant 0 : index
    %423 = vector.load %arg25[%c0_236, %c0_237] : memref<8x32xf32, #tpu.memory_space<vmem>>, vector<8x32xf32>
    %424 = arith.truncf %423 : vector<8x32xf32> to vector<8x32xbf16>
    %cst_238 = arith.constant dense<0.000000e+00> : vector<8x32xf32>
    %425 = tpu.matmul %424, %378, %cst_238 {dimension_numbers = #tpu.dot_dimension_numbers<[1], [0], [0], [1], [0, 0, 1, 1], [], []>} : vector<8x32xbf16>, vector<32x32xbf16>, vector<8x32xf32> -> vector<8x32xf32>
    %426 = vector.broadcast %257 : vector<1x32xf32> to vector<8x32xf32>
    %427 = arith.addf %425, %426 : vector<8x32xf32>
    %428 = arith.addf %366, %427 : vector<8x32xf32>
    %429 = vector.extract_strided_slice %263 {offsets = [1, 0], sizes = [1, 32], strides = [1, 1]} : vector<3x32xf32> to vector<1x32xf32>
    %430 = vector.extract_strided_slice %265 {offsets = [1, 0], sizes = [1, 32], strides = [1, 1]} : vector<3x32xf32> to vector<1x32xf32>
    %cst_239 = arith.constant dense<0.000000e+00> : vector<8xf32>
    %431 = vector.multi_reduction <add>, %428, %cst_239 [1] : vector<8x32xf32> to vector<8xf32>
    %432 = vector.shape_cast %431 : vector<8xf32> to vector<8x1xf32>
    %cst_240 = arith.constant 3.200000e+01 : f32
    %433 = vector.broadcast %cst_240 : f32 to vector<8x1xf32>
    %434 = arith.divf %432, %433 : vector<8x1xf32>
    %435 = vector.broadcast %434 : vector<8x1xf32> to vector<8x32xf32>
    %436 = arith.subf %428, %435 : vector<8x32xf32>
    %437 = arith.mulf %436, %436 : vector<8x32xf32>
    %cst_241 = arith.constant dense<0.000000e+00> : vector<8xf32>
    %438 = vector.multi_reduction <add>, %437, %cst_241 [1] : vector<8x32xf32> to vector<8xf32>
    %439 = vector.shape_cast %438 : vector<8xf32> to vector<8x1xf32>
    %cst_242 = arith.constant 3.200000e+01 : f32
    %440 = vector.broadcast %cst_242 : f32 to vector<8x1xf32>
    %441 = arith.divf %439, %440 : vector<8x1xf32>
    %cst_243 = arith.constant 9.99999974E-6 : f32
    %442 = vector.broadcast %cst_243 : f32 to vector<8x1xf32>
    %443 = arith.addf %441, %442 : vector<8x1xf32>
    %444 = math.rsqrt %443 : vector<8x1xf32>
    %445 = vector.broadcast %444 : vector<8x1xf32> to vector<8x32xf32>
    %446 = arith.mulf %436, %445 : vector<8x32xf32>
    %447 = vector.broadcast %429 : vector<1x32xf32> to vector<8x32xf32>
    %448 = arith.mulf %446, %447 : vector<8x32xf32>
    %449 = vector.broadcast %430 : vector<1x32xf32> to vector<8x32xf32>
    %450 = arith.addf %448, %449 : vector<8x32xf32>
    %451 = arith.truncf %450 : vector<8x32xf32> to vector<8x32xbf16>
    %c1_244 = arith.constant 1 : index
    %c0_245 = arith.constant 0 : index
    %c0_246 = arith.constant 0 : index
    %452 = vector.load %arg16[%c1_244, %c0_245, %c0_246] : memref<2x32x64xbf16, #tpu.memory_space<vmem>>, vector<1x32x64xbf16>
    %453 = vector.shape_cast %452 : vector<1x32x64xbf16> to vector<32x64xbf16>
    %cst_247 = arith.constant dense<0.000000e+00> : vector<8x64xf32>
    %454 = tpu.matmul %451, %453, %cst_247 {dimension_numbers = #tpu.dot_dimension_numbers<[1], [0], [0], [1], [0, 0, 1, 1], [], []>} : vector<8x32xbf16>, vector<32x64xbf16>, vector<8x64xf32> -> vector<8x64xf32>
    %455 = vector.broadcast %259 : vector<1x64xf32> to vector<8x64xf32>
    %456 = arith.addf %454, %455 : vector<8x64xf32>
    %cst_248 = arith.constant 0.000000e+00 : f32
    %457 = vector.broadcast %cst_248 : f32 to vector<8x64xf32>
    %458 = arith.maximumf %456, %457 : vector<8x64xf32>
    %459 = arith.truncf %458 : vector<8x64xf32> to vector<8x64xbf16>
    %c1_249 = arith.constant 1 : index
    %c0_250 = arith.constant 0 : index
    %c0_251 = arith.constant 0 : index
    %460 = vector.load %arg18[%c1_249, %c0_250, %c0_251] : memref<2x64x32xbf16, #tpu.memory_space<vmem>>, vector<1x64x32xbf16>
    %461 = vector.shape_cast %460 : vector<1x64x32xbf16> to vector<64x32xbf16>
    %cst_252 = arith.constant dense<0.000000e+00> : vector<8x32xf32>
    %462 = tpu.matmul %459, %461, %cst_252 {dimension_numbers = #tpu.dot_dimension_numbers<[1], [0], [0], [1], [0, 0, 1, 1], [], []>} : vector<8x64xbf16>, vector<64x32xbf16>, vector<8x32xf32> -> vector<8x32xf32>
    %463 = vector.broadcast %261 : vector<1x32xf32> to vector<8x32xf32>
    %464 = arith.addf %462, %463 : vector<8x32xf32>
    %465 = arith.addf %450, %464 : vector<8x32xf32>
    %466 = vector.extract_strided_slice %263 {offsets = [2, 0], sizes = [1, 32], strides = [1, 1]} : vector<3x32xf32> to vector<1x32xf32>
    %467 = vector.extract_strided_slice %265 {offsets = [2, 0], sizes = [1, 32], strides = [1, 1]} : vector<3x32xf32> to vector<1x32xf32>
    %cst_253 = arith.constant dense<0.000000e+00> : vector<8xf32>
    %468 = vector.multi_reduction <add>, %465, %cst_253 [1] : vector<8x32xf32> to vector<8xf32>
    %469 = vector.shape_cast %468 : vector<8xf32> to vector<8x1xf32>
    %cst_254 = arith.constant 3.200000e+01 : f32
    %470 = vector.broadcast %cst_254 : f32 to vector<8x1xf32>
    %471 = arith.divf %469, %470 : vector<8x1xf32>
    %472 = vector.broadcast %471 : vector<8x1xf32> to vector<8x32xf32>
    %473 = arith.subf %465, %472 : vector<8x32xf32>
    %474 = arith.mulf %473, %473 : vector<8x32xf32>
    %cst_255 = arith.constant dense<0.000000e+00> : vector<8xf32>
    %475 = vector.multi_reduction <add>, %474, %cst_255 [1] : vector<8x32xf32> to vector<8xf32>
    %476 = vector.shape_cast %475 : vector<8xf32> to vector<8x1xf32>
    %cst_256 = arith.constant 3.200000e+01 : f32
    %477 = vector.broadcast %cst_256 : f32 to vector<8x1xf32>
    %478 = arith.divf %476, %477 : vector<8x1xf32>
    %cst_257 = arith.constant 9.99999974E-6 : f32
    %479 = vector.broadcast %cst_257 : f32 to vector<8x1xf32>
    %480 = arith.addf %478, %479 : vector<8x1xf32>
    %481 = math.rsqrt %480 : vector<8x1xf32>
    %482 = vector.broadcast %481 : vector<8x1xf32> to vector<8x32xf32>
    %483 = arith.mulf %473, %482 : vector<8x32xf32>
    %484 = vector.broadcast %466 : vector<1x32xf32> to vector<8x32xf32>
    %485 = arith.mulf %483, %484 : vector<8x32xf32>
    %486 = vector.broadcast %467 : vector<1x32xf32> to vector<8x32xf32>
    %487 = arith.addf %485, %486 : vector<8x32xf32>
    %c0_258 = arith.constant 0 : index
    %c0_259 = arith.constant 0 : index
    %c0_260 = arith.constant 0 : index
    %488 = vector.load %arg22[%c0_258, %c0_259, %c0_260] : memref<1x24x32xf32, #tpu.memory_space<vmem>>, vector<1x8x32xf32>
    %489 = vector.shape_cast %488 : vector<1x8x32xf32> to vector<8x32xf32>
    %490 = vector.shape_cast %487 : vector<8x32xf32> to vector<1x8x32xf32>
    tpu.vector_store %arg22[%c0_258, %c0_259, %c0_260], %490 {strides = array<i32>} : memref<1x24x32xf32, #tpu.memory_space<vmem>>, vector<1x8x32xf32>,
    %491 = arith.truncf %487 : vector<8x32xf32> to vector<8x32xbf16>
    %cst_261 = arith.constant dense<0.000000e+00> : vector<8x32xf32>
    %492 = tpu.matmul %491, %3, %cst_261 {dimension_numbers = #tpu.dot_dimension_numbers<[1], [0], [0], [1], [0, 0, 1, 1], [], []>} : vector<8x32xbf16>, vector<32x32xbf16>, vector<8x32xf32> -> vector<8x32xf32>
    %c1_262 = arith.constant 1 : index
    %c0_263 = arith.constant 0 : index
    %c0_264 = arith.constant 0 : index
    %493 = vector.load %arg2[%c1_262, %c0_263, %c0_264] : memref<3x8x32xf32, #tpu.memory_space<vmem>>, vector<1x8x32xf32>
    %494 = vector.shape_cast %493 : vector<1x8x32xf32> to vector<8x32xf32>
    %495 = arith.addf %492, %494 : vector<8x32xf32>
    %496 = arith.addf %495, %1 : vector<8x32xf32>
    %c8_265 = arith.constant 8 : index
    %c0_266 = arith.constant 0 : index
    %497 = vector.load %arg4[%c8_265, %c0_266] : memref<24x96xf32, #tpu.memory_space<vmem>>, vector<8x96xf32>
    %c0_267 = arith.constant 0 : index
    %c0_268 = arith.constant 0 : index
    %c0_269 = arith.constant 0 : index
    %498 = vector.load %arg9[%c0_267, %c0_268, %c0_269] : memref<2x1x96xf32, #tpu.memory_space<vmem>>, vector<1x1x96xf32>
    %499 = vector.shape_cast %498 : vector<1x1x96xf32> to vector<1x96xf32>
    %c0_270 = arith.constant 0 : index
    %c0_271 = arith.constant 0 : index
    %c0_272 = arith.constant 0 : index
    %500 = vector.load %arg11[%c0_270, %c0_271, %c0_272] : memref<2x1x32xf32, #tpu.memory_space<vmem>>, vector<1x1x32xf32>
    %501 = vector.shape_cast %500 : vector<1x1x32xf32> to vector<1x32xf32>
    %c0_273 = arith.constant 0 : index
    %c0_274 = arith.constant 0 : index
    %c0_275 = arith.constant 0 : index
    %502 = vector.load %arg13[%c0_273, %c0_274, %c0_275] : memref<2x1x32xf32, #tpu.memory_space<vmem>>, vector<1x1x32xf32>
    %503 = vector.shape_cast %502 : vector<1x1x32xf32> to vector<1x32xf32>
    %c0_276 = arith.constant 0 : index
    %c0_277 = arith.constant 0 : index
    %c0_278 = arith.constant 0 : index
    %504 = vector.load %arg15[%c0_276, %c0_277, %c0_278] : memref<2x1x32xf32, #tpu.memory_space<vmem>>, vector<1x1x32xf32>
    %505 = vector.shape_cast %504 : vector<1x1x32xf32> to vector<1x32xf32>
    %c0_279 = arith.constant 0 : index
    %c0_280 = arith.constant 0 : index
    %c0_281 = arith.constant 0 : index
    %506 = vector.load %arg17[%c0_279, %c0_280, %c0_281] : memref<2x1x64xf32, #tpu.memory_space<vmem>>, vector<1x1x64xf32>
    %507 = vector.shape_cast %506 : vector<1x1x64xf32> to vector<1x64xf32>
    %c0_282 = arith.constant 0 : index
    %c0_283 = arith.constant 0 : index
    %c0_284 = arith.constant 0 : index
    %508 = vector.load %arg19[%c0_282, %c0_283, %c0_284] : memref<2x1x32xf32, #tpu.memory_space<vmem>>, vector<1x1x32xf32>
    %509 = vector.shape_cast %508 : vector<1x1x32xf32> to vector<1x32xf32>
    %c0_285 = arith.constant 0 : index
    %c0_286 = arith.constant 0 : index
    %c0_287 = arith.constant 0 : index
    %510 = vector.load %arg20[%c0_285, %c0_286, %c0_287] : memref<2x3x32xf32, #tpu.memory_space<vmem>>, vector<1x3x32xf32>
    %511 = vector.shape_cast %510 : vector<1x3x32xf32> to vector<3x32xf32>
    %c0_288 = arith.constant 0 : index
    %c0_289 = arith.constant 0 : index
    %c0_290 = arith.constant 0 : index
    %512 = vector.load %arg21[%c0_288, %c0_289, %c0_290] : memref<2x3x32xf32, #tpu.memory_space<vmem>>, vector<1x3x32xf32>
    %513 = vector.shape_cast %512 : vector<1x3x32xf32> to vector<3x32xf32>
    %514 = arith.truncf %496 : vector<8x32xf32> to vector<8x32xbf16>
    %c0_291 = arith.constant 0 : index
    %c0_292 = arith.constant 0 : index
    %c0_293 = arith.constant 0 : index
    %515 = vector.load %arg8[%c0_291, %c0_292, %c0_293] : memref<2x32x96xbf16, #tpu.memory_space<vmem>>, vector<1x32x96xbf16>
    %516 = vector.shape_cast %515 : vector<1x32x96xbf16> to vector<32x96xbf16>
    %cst_294 = arith.constant dense<0.000000e+00> : vector<8x96xf32>
    %517 = tpu.matmul %514, %516, %cst_294 {dimension_numbers = #tpu.dot_dimension_numbers<[1], [0], [0], [1], [0, 0, 1, 1], [], []>} : vector<8x32xbf16>, vector<32x96xbf16>, vector<8x96xf32> -> vector<8x96xf32>
    %518 = vector.broadcast %499 : vector<1x96xf32> to vector<8x96xf32>
    %519 = arith.addf %517, %518 : vector<8x96xf32>
    %520 = vector.extract_strided_slice %519 {offsets = [0, 32], sizes = [8, 8], strides = [1, 1]} : vector<8x96xf32> to vector<8x8xf32>
    %c8_295 = arith.constant 8 : index
    %c0_296 = arith.constant 0 : index
    %521 = vector.load %arg23[%c8_295, %c0_296] : memref<192x32xf32, #tpu.memory_space<vmem>>, vector<8x8xf32>
    tpu.vector_store %arg23[%c8_295, %c0_296], %520 {strides = array<i32>} : memref<192x32xf32, #tpu.memory_space<vmem>>, vector<8x8xf32>,
    %522 = vector.extract_strided_slice %519 {offsets = [0, 64], sizes = [8, 8], strides = [1, 1]} : vector<8x96xf32> to vector<8x8xf32>
    %c8_297 = arith.constant 8 : index
    %c0_298 = arith.constant 0 : index
    %523 = vector.load %arg24[%c8_297, %c0_298] : memref<192x32xf32, #tpu.memory_space<vmem>>, vector<8x8xf32>
    tpu.vector_store %arg24[%c8_297, %c0_298], %522 {strides = array<i32>} : memref<192x32xf32, #tpu.memory_space<vmem>>, vector<8x8xf32>,
    %524 = vector.extract_strided_slice %519 {offsets = [0, 40], sizes = [8, 8], strides = [1, 1]} : vector<8x96xf32> to vector<8x8xf32>
    %c32 = arith.constant 32 : index
    %c8_299 = arith.constant 8 : index
    %525 = vector.load %arg23[%c32, %c8_299] : memref<192x32xf32, #tpu.memory_space<vmem>>, vector<8x8xf32>
    tpu.vector_store %arg23[%c32, %c8_299], %524 {strides = array<i32>} : memref<192x32xf32, #tpu.memory_space<vmem>>, vector<8x8xf32>,
    %526 = vector.extract_strided_slice %519 {offsets = [0, 72], sizes = [8, 8], strides = [1, 1]} : vector<8x96xf32> to vector<8x8xf32>
    %c32_300 = arith.constant 32 : index
    %c8_301 = arith.constant 8 : index
    %527 = vector.load %arg24[%c32_300, %c8_301] : memref<192x32xf32, #tpu.memory_space<vmem>>, vector<8x8xf32>
    tpu.vector_store %arg24[%c32_300, %c8_301], %526 {strides = array<i32>} : memref<192x32xf32, #tpu.memory_space<vmem>>, vector<8x8xf32>,
    %528 = vector.extract_strided_slice %519 {offsets = [0, 48], sizes = [8, 8], strides = [1, 1]} : vector<8x96xf32> to vector<8x8xf32>
    %c56 = arith.constant 56 : index
    %c16_302 = arith.constant 16 : index
    %529 = vector.load %arg23[%c56, %c16_302] : memref<192x32xf32, #tpu.memory_space<vmem>>, vector<8x8xf32>
    tpu.vector_store %arg23[%c56, %c16_302], %528 {strides = array<i32>} : memref<192x32xf32, #tpu.memory_space<vmem>>, vector<8x8xf32>,
    %530 = vector.extract_strided_slice %519 {offsets = [0, 80], sizes = [8, 8], strides = [1, 1]} : vector<8x96xf32> to vector<8x8xf32>
    %c56_303 = arith.constant 56 : index
    %c16_304 = arith.constant 16 : index
    %531 = vector.load %arg24[%c56_303, %c16_304] : memref<192x32xf32, #tpu.memory_space<vmem>>, vector<8x8xf32>
    tpu.vector_store %arg24[%c56_303, %c16_304], %530 {strides = array<i32>} : memref<192x32xf32, #tpu.memory_space<vmem>>, vector<8x8xf32>,
    %532 = vector.extract_strided_slice %519 {offsets = [0, 56], sizes = [8, 8], strides = [1, 1]} : vector<8x96xf32> to vector<8x8xf32>
    %c80 = arith.constant 80 : index
    %c24_305 = arith.constant 24 : index
    %533 = vector.load %arg23[%c80, %c24_305] : memref<192x32xf32, #tpu.memory_space<vmem>>, vector<8x8xf32>
    tpu.vector_store %arg23[%c80, %c24_305], %532 {strides = array<i32>} : memref<192x32xf32, #tpu.memory_space<vmem>>, vector<8x8xf32>,
    %534 = vector.extract_strided_slice %519 {offsets = [0, 88], sizes = [8, 8], strides = [1, 1]} : vector<8x96xf32> to vector<8x8xf32>
    %c80_306 = arith.constant 80 : index
    %c24_307 = arith.constant 24 : index
    %535 = vector.load %arg24[%c80_306, %c24_307] : memref<192x32xf32, #tpu.memory_space<vmem>>, vector<8x8xf32>
    tpu.vector_store %arg24[%c80_306, %c24_307], %534 {strides = array<i32>} : memref<192x32xf32, #tpu.memory_space<vmem>>, vector<8x8xf32>,
    %c0_308 = arith.constant 0 : index
    %c0_309 = arith.constant 0 : index
    %536 = vector.load %arg23[%c0_308, %c0_309] : memref<192x32xf32, #tpu.memory_space<vmem>>, vector<96x32xf32>
    %c0_310 = arith.constant 0 : index
    %c0_311 = arith.constant 0 : index
    %537 = vector.load %arg24[%c0_310, %c0_311] : memref<192x32xf32, #tpu.memory_space<vmem>>, vector<96x32xf32>
    %538 = vector.extract_strided_slice %519 {offsets = [0, 0], sizes = [8, 32], strides = [1, 1]} : vector<8x96xf32> to vector<8x32xf32>
    %c0_312 = arith.constant 0 : index
    %c0_313 = arith.constant 0 : index
    %c0_314 = arith.constant 0 : index
    %539 = vector.load %arg10[%c0_312, %c0_313, %c0_314] : memref<2x32x32xbf16, #tpu.memory_space<vmem>>, vector<1x32x32xbf16>
    %540 = vector.shape_cast %539 : vector<1x32x32xbf16> to vector<32x32xbf16>
    %541 = arith.truncf %538 : vector<8x32xf32> to vector<8x32xbf16>
    %542 = arith.truncf %536 : vector<96x32xf32> to vector<96x32xbf16>
    %cst_315 = arith.constant dense<0.000000e+00> : vector<8x96xf32>
    %543 = tpu.matmul %541, %542, %cst_315 {dimension_numbers = #tpu.dot_dimension_numbers<[1], [1], [0], [0], [0, 0, 1, 0], [], []>} : vector<8x32xbf16>, vector<96x32xbf16>, vector<8x96xf32> -> vector<8x96xf32>
    %cst_316 = arith.constant 0.353553385 : f32
    %544 = vector.broadcast %cst_316 : f32 to vector<8x96xf32>
    %545 = arith.mulf %543, %544 : vector<8x96xf32>
    %546 = arith.addf %545, %497 : vector<8x96xf32>
    %cst_317 = arith.constant dense<0xFF800000> : vector<8xf32>
    %547 = vector.multi_reduction <maximumf>, %546, %cst_317 [1] : vector<8x96xf32> to vector<8xf32>
    %548 = vector.shape_cast %547 : vector<8xf32> to vector<8x1xf32>
    %549 = vector.broadcast %548 : vector<8x1xf32> to vector<8x96xf32>
    %550 = arith.subf %546, %549 : vector<8x96xf32>
    %551 = math.exp %550 : vector<8x96xf32>
    %552 = arith.truncf %551 : vector<8x96xf32> to vector<8x96xbf16>
    %553 = arith.truncf %537 : vector<96x32xf32> to vector<96x32xbf16>
    %cst_318 = arith.constant dense<0.000000e+00> : vector<8x32xf32>
    %554 = tpu.matmul %552, %553, %cst_318 {dimension_numbers = #tpu.dot_dimension_numbers<[1], [0], [0], [1], [0, 0, 1, 1], [], []>} : vector<8x96xbf16>, vector<96x32xbf16>, vector<8x32xf32> -> vector<8x32xf32>
    %555 = vector.extract_strided_slice %551 {offsets = [0, 0], sizes = [8, 24], strides = [1, 1]} : vector<8x96xf32> to vector<8x24xf32>
    %cst_319 = arith.constant dense<0.000000e+00> : vector<8xf32>
    %556 = vector.multi_reduction <add>, %555, %cst_319 [1] : vector<8x24xf32> to vector<8xf32>
    %557 = vector.shape_cast %556 : vector<8xf32> to vector<8x1xf32>
    %558 = tpu.reciprocal %557 {approx = true} : vector<8x1xf32> -> vector<8x1xf32>
    %559 = vector.extract_strided_slice %554 {offsets = [0, 0], sizes = [8, 8], strides = [1, 1]} : vector<8x32xf32> to vector<8x8xf32>
    %560 = vector.broadcast %558 : vector<8x1xf32> to vector<8x8xf32>
    %561 = arith.mulf %559, %560 : vector<8x8xf32>
    %c0_320 = arith.constant 0 : index
    %c0_321 = arith.constant 0 : index
    %562 = vector.load %arg25[%c0_320, %c0_321] : memref<8x32xf32, #tpu.memory_space<vmem>>, vector<8x8xf32>
    tpu.vector_store %arg25[%c0_320, %c0_321], %561 {strides = array<i32>} : memref<8x32xf32, #tpu.memory_space<vmem>>, vector<8x8xf32>,
    %563 = vector.extract_strided_slice %551 {offsets = [0, 24], sizes = [8, 24], strides = [1, 1]} : vector<8x96xf32> to vector<8x24xf32>
    %cst_322 = arith.constant dense<0.000000e+00> : vector<8xf32>
    %564 = vector.multi_reduction <add>, %563, %cst_322 [1] : vector<8x24xf32> to vector<8xf32>
    %565 = vector.shape_cast %564 : vector<8xf32> to vector<8x1xf32>
    %566 = tpu.reciprocal %565 {approx = true} : vector<8x1xf32> -> vector<8x1xf32>
    %567 = vector.extract_strided_slice %554 {offsets = [0, 8], sizes = [8, 8], strides = [1, 1]} : vector<8x32xf32> to vector<8x8xf32>
    %568 = vector.broadcast %566 : vector<8x1xf32> to vector<8x8xf32>
    %569 = arith.mulf %567, %568 : vector<8x8xf32>
    %c0_323 = arith.constant 0 : index
    %c8_324 = arith.constant 8 : index
    %570 = vector.load %arg25[%c0_323, %c8_324] : memref<8x32xf32, #tpu.memory_space<vmem>>, vector<8x8xf32>
    tpu.vector_store %arg25[%c0_323, %c8_324], %569 {strides = array<i32>} : memref<8x32xf32, #tpu.memory_space<vmem>>, vector<8x8xf32>,
    %571 = vector.extract_strided_slice %551 {offsets = [0, 48], sizes = [8, 24], strides = [1, 1]} : vector<8x96xf32> to vector<8x24xf32>
    %cst_325 = arith.constant dense<0.000000e+00> : vector<8xf32>
    %572 = vector.multi_reduction <add>, %571, %cst_325 [1] : vector<8x24xf32> to vector<8xf32>
    %573 = vector.shape_cast %572 : vector<8xf32> to vector<8x1xf32>
    %574 = tpu.reciprocal %573 {approx = true} : vector<8x1xf32> -> vector<8x1xf32>
    %575 = vector.extract_strided_slice %554 {offsets = [0, 16], sizes = [8, 8], strides = [1, 1]} : vector<8x32xf32> to vector<8x8xf32>
    %576 = vector.broadcast %574 : vector<8x1xf32> to vector<8x8xf32>
    %577 = arith.mulf %575, %576 : vector<8x8xf32>
    %c0_326 = arith.constant 0 : index
    %c16_327 = arith.constant 16 : index
    %578 = vector.load %arg25[%c0_326, %c16_327] : memref<8x32xf32, #tpu.memory_space<vmem>>, vector<8x8xf32>
    tpu.vector_store %arg25[%c0_326, %c16_327], %577 {strides = array<i32>} : memref<8x32xf32, #tpu.memory_space<vmem>>, vector<8x8xf32>,
    %579 = vector.extract_strided_slice %551 {offsets = [0, 72], sizes = [8, 24], strides = [1, 1]} : vector<8x96xf32> to vector<8x24xf32>
    %cst_328 = arith.constant dense<0.000000e+00> : vector<8xf32>
    %580 = vector.multi_reduction <add>, %579, %cst_328 [1] : vector<8x24xf32> to vector<8xf32>
    %581 = vector.shape_cast %580 : vector<8xf32> to vector<8x1xf32>
    %582 = tpu.reciprocal %581 {approx = true} : vector<8x1xf32> -> vector<8x1xf32>
    %583 = vector.extract_strided_slice %554 {offsets = [0, 24], sizes = [8, 8], strides = [1, 1]} : vector<8x32xf32> to vector<8x8xf32>
    %584 = vector.broadcast %582 : vector<8x1xf32> to vector<8x8xf32>
    %585 = arith.mulf %583, %584 : vector<8x8xf32>
    %c0_329 = arith.constant 0 : index
    %c24_330 = arith.constant 24 : index
    %586 = vector.load %arg25[%c0_329, %c24_330] : memref<8x32xf32, #tpu.memory_space<vmem>>, vector<8x8xf32>
    tpu.vector_store %arg25[%c0_329, %c24_330], %585 {strides = array<i32>} : memref<8x32xf32, #tpu.memory_space<vmem>>, vector<8x8xf32>,
    %c0_331 = arith.constant 0 : index
    %c0_332 = arith.constant 0 : index
    %587 = vector.load %arg25[%c0_331, %c0_332] : memref<8x32xf32, #tpu.memory_space<vmem>>, vector<8x32xf32>
    %588 = arith.truncf %587 : vector<8x32xf32> to vector<8x32xbf16>
    %cst_333 = arith.constant dense<0.000000e+00> : vector<8x32xf32>
    %589 = tpu.matmul %588, %540, %cst_333 {dimension_numbers = #tpu.dot_dimension_numbers<[1], [0], [0], [1], [0, 0, 1, 1], [], []>} : vector<8x32xbf16>, vector<32x32xbf16>, vector<8x32xf32> -> vector<8x32xf32>
    %590 = vector.broadcast %501 : vector<1x32xf32> to vector<8x32xf32>
    %591 = arith.addf %589, %590 : vector<8x32xf32>
    %592 = arith.addf %496, %591 : vector<8x32xf32>
    %593 = vector.extract_strided_slice %511 {offsets = [0, 0], sizes = [1, 32], strides = [1, 1]} : vector<3x32xf32> to vector<1x32xf32>
    %594 = vector.extract_strided_slice %513 {offsets = [0, 0], sizes = [1, 32], strides = [1, 1]} : vector<3x32xf32> to vector<1x32xf32>
    %cst_334 = arith.constant dense<0.000000e+00> : vector<8xf32>
    %595 = vector.multi_reduction <add>, %592, %cst_334 [1] : vector<8x32xf32> to vector<8xf32>
    %596 = vector.shape_cast %595 : vector<8xf32> to vector<8x1xf32>
    %cst_335 = arith.constant 3.200000e+01 : f32
    %597 = vector.broadcast %cst_335 : f32 to vector<8x1xf32>
    %598 = arith.divf %596, %597 : vector<8x1xf32>
    %599 = vector.broadcast %598 : vector<8x1xf32> to vector<8x32xf32>
    %600 = arith.subf %592, %599 : vector<8x32xf32>
    %601 = arith.mulf %600, %600 : vector<8x32xf32>
    %cst_336 = arith.constant dense<0.000000e+00> : vector<8xf32>
    %602 = vector.multi_reduction <add>, %601, %cst_336 [1] : vector<8x32xf32> to vector<8xf32>
    %603 = vector.shape_cast %602 : vector<8xf32> to vector<8x1xf32>
    %cst_337 = arith.constant 3.200000e+01 : f32
    %604 = vector.broadcast %cst_337 : f32 to vector<8x1xf32>
    %605 = arith.divf %603, %604 : vector<8x1xf32>
    %cst_338 = arith.constant 9.99999974E-6 : f32
    %606 = vector.broadcast %cst_338 : f32 to vector<8x1xf32>
    %607 = arith.addf %605, %606 : vector<8x1xf32>
    %608 = math.rsqrt %607 : vector<8x1xf32>
    %609 = vector.broadcast %608 : vector<8x1xf32> to vector<8x32xf32>
    %610 = arith.mulf %600, %609 : vector<8x32xf32>
    %611 = vector.broadcast %593 : vector<1x32xf32> to vector<8x32xf32>
    %612 = arith.mulf %610, %611 : vector<8x32xf32>
    %613 = vector.broadcast %594 : vector<1x32xf32> to vector<8x32xf32>
    %614 = arith.addf %612, %613 : vector<8x32xf32>
    %615 = arith.truncf %614 : vector<8x32xf32> to vector<8x32xbf16>
    %c0_339 = arith.constant 0 : index
    %c0_340 = arith.constant 0 : index
    %c0_341 = arith.constant 0 : index
    %616 = vector.load %arg12[%c0_339, %c0_340, %c0_341] : memref<2x32x32xbf16, #tpu.memory_space<vmem>>, vector<1x32x32xbf16>
    %617 = vector.shape_cast %616 : vector<1x32x32xbf16> to vector<32x32xbf16>
    %cst_342 = arith.constant dense<0.000000e+00> : vector<8x32xf32>
    %618 = tpu.matmul %615, %617, %cst_342 {dimension_numbers = #tpu.dot_dimension_numbers<[1], [0], [0], [1], [0, 0, 1, 1], [], []>} : vector<8x32xbf16>, vector<32x32xbf16>, vector<8x32xf32> -> vector<8x32xf32>
    %619 = vector.broadcast %503 : vector<1x32xf32> to vector<8x32xf32>
    %620 = arith.addf %618, %619 : vector<8x32xf32>
    %c0_343 = arith.constant 0 : index
    %c0_344 = arith.constant 0 : index
    %c0_345 = arith.constant 0 : index
    %621 = vector.load %arg6[%c0_343, %c0_344, %c0_345] : memref<2x32x32xbf16, #tpu.memory_space<vmem>>, vector<1x32x32xbf16>
    %622 = vector.shape_cast %621 : vector<1x32x32xbf16> to vector<32x32xbf16>
    %c0_346 = arith.constant 0 : index
    %c0_347 = arith.constant 0 : index
    %c0_348 = arith.constant 0 : index
    %623 = vector.load %arg7[%c0_346, %c0_347, %c0_348] : memref<2x32x32xbf16, #tpu.memory_space<vmem>>, vector<1x32x32xbf16>
    %624 = vector.shape_cast %623 : vector<1x32x32xbf16> to vector<32x32xbf16>
    %c0_349 = arith.constant 0 : index
    %c0_350 = arith.constant 0 : index
    %c0_351 = arith.constant 0 : index
    %625 = vector.load %arg14[%c0_349, %c0_350, %c0_351] : memref<2x32x32xbf16, #tpu.memory_space<vmem>>, vector<1x32x32xbf16>
    %626 = vector.shape_cast %625 : vector<1x32x32xbf16> to vector<32x32xbf16>
    %627 = arith.truncf %620 : vector<8x32xf32> to vector<8x32xbf16>
    %cst_352 = arith.constant dense<0.000000e+00> : vector<8x32xf32>
    %628 = tpu.matmul %627, %622, %cst_352 {dimension_numbers = #tpu.dot_dimension_numbers<[1], [1], [0], [0], [0, 0, 1, 0], [], []>} : vector<8x32xbf16>, vector<32x32xbf16>, vector<8x32xf32> -> vector<8x32xf32>
    %cst_353 = arith.constant 0.353553385 : f32
    %629 = vector.broadcast %cst_353 : f32 to vector<8x32xf32>
    %630 = arith.mulf %628, %629 : vector<8x32xf32>
    %631 = arith.addf %630, %2 : vector<8x32xf32>
    %cst_354 = arith.constant dense<0xFF800000> : vector<8xf32>
    %632 = vector.multi_reduction <maximumf>, %631, %cst_354 [1] : vector<8x32xf32> to vector<8xf32>
    %633 = vector.shape_cast %632 : vector<8xf32> to vector<8x1xf32>
    %634 = vector.broadcast %633 : vector<8x1xf32> to vector<8x32xf32>
    %635 = arith.subf %631, %634 : vector<8x32xf32>
    %636 = math.exp %635 : vector<8x32xf32>
    %637 = arith.truncf %636 : vector<8x32xf32> to vector<8x32xbf16>
    %cst_355 = arith.constant dense<0.000000e+00> : vector<8x32xf32>
    %638 = tpu.matmul %637, %624, %cst_355 {dimension_numbers = #tpu.dot_dimension_numbers<[1], [0], [0], [1], [0, 0, 1, 1], [], []>} : vector<8x32xbf16>, vector<32x32xbf16>, vector<8x32xf32> -> vector<8x32xf32>
    %639 = vector.extract_strided_slice %636 {offsets = [0, 0], sizes = [8, 8], strides = [1, 1]} : vector<8x32xf32> to vector<8x8xf32>
    %cst_356 = arith.constant dense<0.000000e+00> : vector<8xf32>
    %640 = vector.multi_reduction <add>, %639, %cst_356 [1] : vector<8x8xf32> to vector<8xf32>
    %641 = vector.shape_cast %640 : vector<8xf32> to vector<8x1xf32>
    %642 = tpu.reciprocal %641 {approx = true} : vector<8x1xf32> -> vector<8x1xf32>
    %643 = vector.extract_strided_slice %638 {offsets = [0, 0], sizes = [8, 8], strides = [1, 1]} : vector<8x32xf32> to vector<8x8xf32>
    %644 = vector.broadcast %642 : vector<8x1xf32> to vector<8x8xf32>
    %645 = arith.mulf %643, %644 : vector<8x8xf32>
    %c0_357 = arith.constant 0 : index
    %c0_358 = arith.constant 0 : index
    %646 = vector.load %arg25[%c0_357, %c0_358] : memref<8x32xf32, #tpu.memory_space<vmem>>, vector<8x8xf32>
    tpu.vector_store %arg25[%c0_357, %c0_358], %645 {strides = array<i32>} : memref<8x32xf32, #tpu.memory_space<vmem>>, vector<8x8xf32>,
    %647 = vector.extract_strided_slice %636 {offsets = [0, 8], sizes = [8, 8], strides = [1, 1]} : vector<8x32xf32> to vector<8x8xf32>
    %cst_359 = arith.constant dense<0.000000e+00> : vector<8xf32>
    %648 = vector.multi_reduction <add>, %647, %cst_359 [1] : vector<8x8xf32> to vector<8xf32>
    %649 = vector.shape_cast %648 : vector<8xf32> to vector<8x1xf32>
    %650 = tpu.reciprocal %649 {approx = true} : vector<8x1xf32> -> vector<8x1xf32>
    %651 = vector.extract_strided_slice %638 {offsets = [0, 8], sizes = [8, 8], strides = [1, 1]} : vector<8x32xf32> to vector<8x8xf32>
    %652 = vector.broadcast %650 : vector<8x1xf32> to vector<8x8xf32>
    %653 = arith.mulf %651, %652 : vector<8x8xf32>
    %c0_360 = arith.constant 0 : index
    %c8_361 = arith.constant 8 : index
    %654 = vector.load %arg25[%c0_360, %c8_361] : memref<8x32xf32, #tpu.memory_space<vmem>>, vector<8x8xf32>
    tpu.vector_store %arg25[%c0_360, %c8_361], %653 {strides = array<i32>} : memref<8x32xf32, #tpu.memory_space<vmem>>, vector<8x8xf32>,
    %655 = vector.extract_strided_slice %636 {offsets = [0, 16], sizes = [8, 8], strides = [1, 1]} : vector<8x32xf32> to vector<8x8xf32>
    %cst_362 = arith.constant dense<0.000000e+00> : vector<8xf32>
    %656 = vector.multi_reduction <add>, %655, %cst_362 [1] : vector<8x8xf32> to vector<8xf32>
    %657 = vector.shape_cast %656 : vector<8xf32> to vector<8x1xf32>
    %658 = tpu.reciprocal %657 {approx = true} : vector<8x1xf32> -> vector<8x1xf32>
    %659 = vector.extract_strided_slice %638 {offsets = [0, 16], sizes = [8, 8], strides = [1, 1]} : vector<8x32xf32> to vector<8x8xf32>
    %660 = vector.broadcast %658 : vector<8x1xf32> to vector<8x8xf32>
    %661 = arith.mulf %659, %660 : vector<8x8xf32>
    %c0_363 = arith.constant 0 : index
    %c16_364 = arith.constant 16 : index
    %662 = vector.load %arg25[%c0_363, %c16_364] : memref<8x32xf32, #tpu.memory_space<vmem>>, vector<8x8xf32>
    tpu.vector_store %arg25[%c0_363, %c16_364], %661 {strides = array<i32>} : memref<8x32xf32, #tpu.memory_space<vmem>>, vector<8x8xf32>,
    %663 = vector.extract_strided_slice %636 {offsets = [0, 24], sizes = [8, 8], strides = [1, 1]} : vector<8x32xf32> to vector<8x8xf32>
    %cst_365 = arith.constant dense<0.000000e+00> : vector<8xf32>
    %664 = vector.multi_reduction <add>, %663, %cst_365 [1] : vector<8x8xf32> to vector<8xf32>
    %665 = vector.shape_cast %664 : vector<8xf32> to vector<8x1xf32>
    %666 = tpu.reciprocal %665 {approx = true} : vector<8x1xf32> -> vector<8x1xf32>
    %667 = vector.extract_strided_slice %638 {offsets = [0, 24], sizes = [8, 8], strides = [1, 1]} : vector<8x32xf32> to vector<8x8xf32>
    %668 = vector.broadcast %666 : vector<8x1xf32> to vector<8x8xf32>
    %669 = arith.mulf %667, %668 : vector<8x8xf32>
    %c0_366 = arith.constant 0 : index
    %c24_367 = arith.constant 24 : index
    %670 = vector.load %arg25[%c0_366, %c24_367] : memref<8x32xf32, #tpu.memory_space<vmem>>, vector<8x8xf32>
    tpu.vector_store %arg25[%c0_366, %c24_367], %669 {strides = array<i32>} : memref<8x32xf32, #tpu.memory_space<vmem>>, vector<8x8xf32>,
    %c0_368 = arith.constant 0 : index
    %c0_369 = arith.constant 0 : index
    %671 = vector.load %arg25[%c0_368, %c0_369] : memref<8x32xf32, #tpu.memory_space<vmem>>, vector<8x32xf32>
    %672 = arith.truncf %671 : vector<8x32xf32> to vector<8x32xbf16>
    %cst_370 = arith.constant dense<0.000000e+00> : vector<8x32xf32>
    %673 = tpu.matmul %672, %626, %cst_370 {dimension_numbers = #tpu.dot_dimension_numbers<[1], [0], [0], [1], [0, 0, 1, 1], [], []>} : vector<8x32xbf16>, vector<32x32xbf16>, vector<8x32xf32> -> vector<8x32xf32>
    %674 = vector.broadcast %505 : vector<1x32xf32> to vector<8x32xf32>
    %675 = arith.addf %673, %674 : vector<8x32xf32>
    %676 = arith.addf %614, %675 : vector<8x32xf32>
    %677 = vector.extract_strided_slice %511 {offsets = [1, 0], sizes = [1, 32], strides = [1, 1]} : vector<3x32xf32> to vector<1x32xf32>
    %678 = vector.extract_strided_slice %513 {offsets = [1, 0], sizes = [1, 32], strides = [1, 1]} : vector<3x32xf32> to vector<1x32xf32>
    %cst_371 = arith.constant dense<0.000000e+00> : vector<8xf32>
    %679 = vector.multi_reduction <add>, %676, %cst_371 [1] : vector<8x32xf32> to vector<8xf32>
    %680 = vector.shape_cast %679 : vector<8xf32> to vector<8x1xf32>
    %cst_372 = arith.constant 3.200000e+01 : f32
    %681 = vector.broadcast %cst_372 : f32 to vector<8x1xf32>
    %682 = arith.divf %680, %681 : vector<8x1xf32>
    %683 = vector.broadcast %682 : vector<8x1xf32> to vector<8x32xf32>
    %684 = arith.subf %676, %683 : vector<8x32xf32>
    %685 = arith.mulf %684, %684 : vector<8x32xf32>
    %cst_373 = arith.constant dense<0.000000e+00> : vector<8xf32>
    %686 = vector.multi_reduction <add>, %685, %cst_373 [1] : vector<8x32xf32> to vector<8xf32>
    %687 = vector.shape_cast %686 : vector<8xf32> to vector<8x1xf32>
    %cst_374 = arith.constant 3.200000e+01 : f32
    %688 = vector.broadcast %cst_374 : f32 to vector<8x1xf32>
    %689 = arith.divf %687, %688 : vector<8x1xf32>
    %cst_375 = arith.constant 9.99999974E-6 : f32
    %690 = vector.broadcast %cst_375 : f32 to vector<8x1xf32>
    %691 = arith.addf %689, %690 : vector<8x1xf32>
    %692 = math.rsqrt %691 : vector<8x1xf32>
    %693 = vector.broadcast %692 : vector<8x1xf32> to vector<8x32xf32>
    %694 = arith.mulf %684, %693 : vector<8x32xf32>
    %695 = vector.broadcast %677 : vector<1x32xf32> to vector<8x32xf32>
    %696 = arith.mulf %694, %695 : vector<8x32xf32>
    %697 = vector.broadcast %678 : vector<1x32xf32> to vector<8x32xf32>
    %698 = arith.addf %696, %697 : vector<8x32xf32>
    %699 = arith.truncf %698 : vector<8x32xf32> to vector<8x32xbf16>
    %c0_376 = arith.constant 0 : index
    %c0_377 = arith.constant 0 : index
    %c0_378 = arith.constant 0 : index
    %700 = vector.load %arg16[%c0_376, %c0_377, %c0_378] : memref<2x32x64xbf16, #tpu.memory_space<vmem>>, vector<1x32x64xbf16>
    %701 = vector.shape_cast %700 : vector<1x32x64xbf16> to vector<32x64xbf16>
    %cst_379 = arith.constant dense<0.000000e+00> : vector<8x64xf32>
    %702 = tpu.matmul %699, %701, %cst_379 {dimension_numbers = #tpu.dot_dimension_numbers<[1], [0], [0], [1], [0, 0, 1, 1], [], []>} : vector<8x32xbf16>, vector<32x64xbf16>, vector<8x64xf32> -> vector<8x64xf32>
    %703 = vector.broadcast %507 : vector<1x64xf32> to vector<8x64xf32>
    %704 = arith.addf %702, %703 : vector<8x64xf32>
    %cst_380 = arith.constant 0.000000e+00 : f32
    %705 = vector.broadcast %cst_380 : f32 to vector<8x64xf32>
    %706 = arith.maximumf %704, %705 : vector<8x64xf32>
    %707 = arith.truncf %706 : vector<8x64xf32> to vector<8x64xbf16>
    %c0_381 = arith.constant 0 : index
    %c0_382 = arith.constant 0 : index
    %c0_383 = arith.constant 0 : index
    %708 = vector.load %arg18[%c0_381, %c0_382, %c0_383] : memref<2x64x32xbf16, #tpu.memory_space<vmem>>, vector<1x64x32xbf16>
    %709 = vector.shape_cast %708 : vector<1x64x32xbf16> to vector<64x32xbf16>
    %cst_384 = arith.constant dense<0.000000e+00> : vector<8x32xf32>
    %710 = tpu.matmul %707, %709, %cst_384 {dimension_numbers = #tpu.dot_dimension_numbers<[1], [0], [0], [1], [0, 0, 1, 1], [], []>} : vector<8x64xbf16>, vector<64x32xbf16>, vector<8x32xf32> -> vector<8x32xf32>
    %711 = vector.broadcast %509 : vector<1x32xf32> to vector<8x32xf32>
    %712 = arith.addf %710, %711 : vector<8x32xf32>
    %713 = arith.addf %698, %712 : vector<8x32xf32>
    %714 = vector.extract_strided_slice %511 {offsets = [2, 0], sizes = [1, 32], strides = [1, 1]} : vector<3x32xf32> to vector<1x32xf32>
    %715 = vector.extract_strided_slice %513 {offsets = [2, 0], sizes = [1, 32], strides = [1, 1]} : vector<3x32xf32> to vector<1x32xf32>
    %cst_385 = arith.constant dense<0.000000e+00> : vector<8xf32>
    %716 = vector.multi_reduction <add>, %713, %cst_385 [1] : vector<8x32xf32> to vector<8xf32>
    %717 = vector.shape_cast %716 : vector<8xf32> to vector<8x1xf32>
    %cst_386 = arith.constant 3.200000e+01 : f32
    %718 = vector.broadcast %cst_386 : f32 to vector<8x1xf32>
    %719 = arith.divf %717, %718 : vector<8x1xf32>
    %720 = vector.broadcast %719 : vector<8x1xf32> to vector<8x32xf32>
    %721 = arith.subf %713, %720 : vector<8x32xf32>
    %722 = arith.mulf %721, %721 : vector<8x32xf32>
    %cst_387 = arith.constant dense<0.000000e+00> : vector<8xf32>
    %723 = vector.multi_reduction <add>, %722, %cst_387 [1] : vector<8x32xf32> to vector<8xf32>
    %724 = vector.shape_cast %723 : vector<8xf32> to vector<8x1xf32>
    %cst_388 = arith.constant 3.200000e+01 : f32
    %725 = vector.broadcast %cst_388 : f32 to vector<8x1xf32>
    %726 = arith.divf %724, %725 : vector<8x1xf32>
    %cst_389 = arith.constant 9.99999974E-6 : f32
    %727 = vector.broadcast %cst_389 : f32 to vector<8x1xf32>
    %728 = arith.addf %726, %727 : vector<8x1xf32>
    %729 = math.rsqrt %728 : vector<8x1xf32>
    %730 = vector.broadcast %729 : vector<8x1xf32> to vector<8x32xf32>
    %731 = arith.mulf %721, %730 : vector<8x32xf32>
    %732 = vector.broadcast %714 : vector<1x32xf32> to vector<8x32xf32>
    %733 = arith.mulf %731, %732 : vector<8x32xf32>
    %734 = vector.broadcast %715 : vector<1x32xf32> to vector<8x32xf32>
    %735 = arith.addf %733, %734 : vector<8x32xf32>
    %c1_390 = arith.constant 1 : index
    %c0_391 = arith.constant 0 : index
    %c0_392 = arith.constant 0 : index
    %736 = vector.load %arg9[%c1_390, %c0_391, %c0_392] : memref<2x1x96xf32, #tpu.memory_space<vmem>>, vector<1x1x96xf32>
    %737 = vector.shape_cast %736 : vector<1x1x96xf32> to vector<1x96xf32>
    %c1_393 = arith.constant 1 : index
    %c0_394 = arith.constant 0 : index
    %c0_395 = arith.constant 0 : index
    %738 = vector.load %arg11[%c1_393, %c0_394, %c0_395] : memref<2x1x32xf32, #tpu.memory_space<vmem>>, vector<1x1x32xf32>
    %739 = vector.shape_cast %738 : vector<1x1x32xf32> to vector<1x32xf32>
    %c1_396 = arith.constant 1 : index
    %c0_397 = arith.constant 0 : index
    %c0_398 = arith.constant 0 : index
    %740 = vector.load %arg13[%c1_396, %c0_397, %c0_398] : memref<2x1x32xf32, #tpu.memory_space<vmem>>, vector<1x1x32xf32>
    %741 = vector.shape_cast %740 : vector<1x1x32xf32> to vector<1x32xf32>
    %c1_399 = arith.constant 1 : index
    %c0_400 = arith.constant 0 : index
    %c0_401 = arith.constant 0 : index
    %742 = vector.load %arg15[%c1_399, %c0_400, %c0_401] : memref<2x1x32xf32, #tpu.memory_space<vmem>>, vector<1x1x32xf32>
    %743 = vector.shape_cast %742 : vector<1x1x32xf32> to vector<1x32xf32>
    %c1_402 = arith.constant 1 : index
    %c0_403 = arith.constant 0 : index
    %c0_404 = arith.constant 0 : index
    %744 = vector.load %arg17[%c1_402, %c0_403, %c0_404] : memref<2x1x64xf32, #tpu.memory_space<vmem>>, vector<1x1x64xf32>
    %745 = vector.shape_cast %744 : vector<1x1x64xf32> to vector<1x64xf32>
    %c1_405 = arith.constant 1 : index
    %c0_406 = arith.constant 0 : index
    %c0_407 = arith.constant 0 : index
    %746 = vector.load %arg19[%c1_405, %c0_406, %c0_407] : memref<2x1x32xf32, #tpu.memory_space<vmem>>, vector<1x1x32xf32>
    %747 = vector.shape_cast %746 : vector<1x1x32xf32> to vector<1x32xf32>
    %c1_408 = arith.constant 1 : index
    %c0_409 = arith.constant 0 : index
    %c0_410 = arith.constant 0 : index
    %748 = vector.load %arg20[%c1_408, %c0_409, %c0_410] : memref<2x3x32xf32, #tpu.memory_space<vmem>>, vector<1x3x32xf32>
    %749 = vector.shape_cast %748 : vector<1x3x32xf32> to vector<3x32xf32>
    %c1_411 = arith.constant 1 : index
    %c0_412 = arith.constant 0 : index
    %c0_413 = arith.constant 0 : index
    %750 = vector.load %arg21[%c1_411, %c0_412, %c0_413] : memref<2x3x32xf32, #tpu.memory_space<vmem>>, vector<1x3x32xf32>
    %751 = vector.shape_cast %750 : vector<1x3x32xf32> to vector<3x32xf32>
    %752 = arith.truncf %735 : vector<8x32xf32> to vector<8x32xbf16>
    %c1_414 = arith.constant 1 : index
    %c0_415 = arith.constant 0 : index
    %c0_416 = arith.constant 0 : index
    %753 = vector.load %arg8[%c1_414, %c0_415, %c0_416] : memref<2x32x96xbf16, #tpu.memory_space<vmem>>, vector<1x32x96xbf16>
    %754 = vector.shape_cast %753 : vector<1x32x96xbf16> to vector<32x96xbf16>
    %cst_417 = arith.constant dense<0.000000e+00> : vector<8x96xf32>
    %755 = tpu.matmul %752, %754, %cst_417 {dimension_numbers = #tpu.dot_dimension_numbers<[1], [0], [0], [1], [0, 0, 1, 1], [], []>} : vector<8x32xbf16>, vector<32x96xbf16>, vector<8x96xf32> -> vector<8x96xf32>
    %756 = vector.broadcast %737 : vector<1x96xf32> to vector<8x96xf32>
    %757 = arith.addf %755, %756 : vector<8x96xf32>
    %758 = vector.extract_strided_slice %757 {offsets = [0, 32], sizes = [8, 8], strides = [1, 1]} : vector<8x96xf32> to vector<8x8xf32>
    %c104 = arith.constant 104 : index
    %c0_418 = arith.constant 0 : index
    %759 = vector.load %arg23[%c104, %c0_418] : memref<192x32xf32, #tpu.memory_space<vmem>>, vector<8x8xf32>
    tpu.vector_store %arg23[%c104, %c0_418], %758 {strides = array<i32>} : memref<192x32xf32, #tpu.memory_space<vmem>>, vector<8x8xf32>,
    %760 = vector.extract_strided_slice %757 {offsets = [0, 64], sizes = [8, 8], strides = [1, 1]} : vector<8x96xf32> to vector<8x8xf32>
    %c104_419 = arith.constant 104 : index
    %c0_420 = arith.constant 0 : index
    %761 = vector.load %arg24[%c104_419, %c0_420] : memref<192x32xf32, #tpu.memory_space<vmem>>, vector<8x8xf32>
    tpu.vector_store %arg24[%c104_419, %c0_420], %760 {strides = array<i32>} : memref<192x32xf32, #tpu.memory_space<vmem>>, vector<8x8xf32>,
    %762 = vector.extract_strided_slice %757 {offsets = [0, 40], sizes = [8, 8], strides = [1, 1]} : vector<8x96xf32> to vector<8x8xf32>
    %c128 = arith.constant 128 : index
    %c8_421 = arith.constant 8 : index
    %763 = vector.load %arg23[%c128, %c8_421] : memref<192x32xf32, #tpu.memory_space<vmem>>, vector<8x8xf32>
    tpu.vector_store %arg23[%c128, %c8_421], %762 {strides = array<i32>} : memref<192x32xf32, #tpu.memory_space<vmem>>, vector<8x8xf32>,
    %764 = vector.extract_strided_slice %757 {offsets = [0, 72], sizes = [8, 8], strides = [1, 1]} : vector<8x96xf32> to vector<8x8xf32>
    %c128_422 = arith.constant 128 : index
    %c8_423 = arith.constant 8 : index
    %765 = vector.load %arg24[%c128_422, %c8_423] : memref<192x32xf32, #tpu.memory_space<vmem>>, vector<8x8xf32>
    tpu.vector_store %arg24[%c128_422, %c8_423], %764 {strides = array<i32>} : memref<192x32xf32, #tpu.memory_space<vmem>>, vector<8x8xf32>,
    %766 = vector.extract_strided_slice %757 {offsets = [0, 48], sizes = [8, 8], strides = [1, 1]} : vector<8x96xf32> to vector<8x8xf32>
    %c152 = arith.constant 152 : index
    %c16_424 = arith.constant 16 : index
    %767 = vector.load %arg23[%c152, %c16_424] : memref<192x32xf32, #tpu.memory_space<vmem>>, vector<8x8xf32>
    tpu.vector_store %arg23[%c152, %c16_424], %766 {strides = array<i32>} : memref<192x32xf32, #tpu.memory_space<vmem>>, vector<8x8xf32>,
    %768 = vector.extract_strided_slice %757 {offsets = [0, 80], sizes = [8, 8], strides = [1, 1]} : vector<8x96xf32> to vector<8x8xf32>
    %c152_425 = arith.constant 152 : index
    %c16_426 = arith.constant 16 : index
    %769 = vector.load %arg24[%c152_425, %c16_426] : memref<192x32xf32, #tpu.memory_space<vmem>>, vector<8x8xf32>
    tpu.vector_store %arg24[%c152_425, %c16_426], %768 {strides = array<i32>} : memref<192x32xf32, #tpu.memory_space<vmem>>, vector<8x8xf32>,
    %770 = vector.extract_strided_slice %757 {offsets = [0, 56], sizes = [8, 8], strides = [1, 1]} : vector<8x96xf32> to vector<8x8xf32>
    %c176 = arith.constant 176 : index
    %c24_427 = arith.constant 24 : index
    %771 = vector.load %arg23[%c176, %c24_427] : memref<192x32xf32, #tpu.memory_space<vmem>>, vector<8x8xf32>
    tpu.vector_store %arg23[%c176, %c24_427], %770 {strides = array<i32>} : memref<192x32xf32, #tpu.memory_space<vmem>>, vector<8x8xf32>,
    %772 = vector.extract_strided_slice %757 {offsets = [0, 88], sizes = [8, 8], strides = [1, 1]} : vector<8x96xf32> to vector<8x8xf32>
    %c176_428 = arith.constant 176 : index
    %c24_429 = arith.constant 24 : index
    %773 = vector.load %arg24[%c176_428, %c24_429] : memref<192x32xf32, #tpu.memory_space<vmem>>, vector<8x8xf32>
    tpu.vector_store %arg24[%c176_428, %c24_429], %772 {strides = array<i32>} : memref<192x32xf32, #tpu.memory_space<vmem>>, vector<8x8xf32>,
    %c96_430 = arith.constant 96 : index
    %c0_431 = arith.constant 0 : index
    %774 = vector.load %arg23[%c96_430, %c0_431] : memref<192x32xf32, #tpu.memory_space<vmem>>, vector<96x32xf32>
    %c96_432 = arith.constant 96 : index
    %c0_433 = arith.constant 0 : index
    %775 = vector.load %arg24[%c96_432, %c0_433] : memref<192x32xf32, #tpu.memory_space<vmem>>, vector<96x32xf32>
    %776 = vector.extract_strided_slice %757 {offsets = [0, 0], sizes = [8, 32], strides = [1, 1]} : vector<8x96xf32> to vector<8x32xf32>
    %c1_434 = arith.constant 1 : index
    %c0_435 = arith.constant 0 : index
    %c0_436 = arith.constant 0 : index
    %777 = vector.load %arg10[%c1_434, %c0_435, %c0_436] : memref<2x32x32xbf16, #tpu.memory_space<vmem>>, vector<1x32x32xbf16>
    %778 = vector.shape_cast %777 : vector<1x32x32xbf16> to vector<32x32xbf16>
    %779 = arith.truncf %776 : vector<8x32xf32> to vector<8x32xbf16>
    %780 = arith.truncf %774 : vector<96x32xf32> to vector<96x32xbf16>
    %cst_437 = arith.constant dense<0.000000e+00> : vector<8x96xf32>
    %781 = tpu.matmul %779, %780, %cst_437 {dimension_numbers = #tpu.dot_dimension_numbers<[1], [1], [0], [0], [0, 0, 1, 0], [], []>} : vector<8x32xbf16>, vector<96x32xbf16>, vector<8x96xf32> -> vector<8x96xf32>
    %cst_438 = arith.constant 0.353553385 : f32
    %782 = vector.broadcast %cst_438 : f32 to vector<8x96xf32>
    %783 = arith.mulf %781, %782 : vector<8x96xf32>
    %784 = arith.addf %783, %497 : vector<8x96xf32>
    %cst_439 = arith.constant dense<0xFF800000> : vector<8xf32>
    %785 = vector.multi_reduction <maximumf>, %784, %cst_439 [1] : vector<8x96xf32> to vector<8xf32>
    %786 = vector.shape_cast %785 : vector<8xf32> to vector<8x1xf32>
    %787 = vector.broadcast %786 : vector<8x1xf32> to vector<8x96xf32>
    %788 = arith.subf %784, %787 : vector<8x96xf32>
    %789 = math.exp %788 : vector<8x96xf32>
    %790 = arith.truncf %789 : vector<8x96xf32> to vector<8x96xbf16>
    %791 = arith.truncf %775 : vector<96x32xf32> to vector<96x32xbf16>
    %cst_440 = arith.constant dense<0.000000e+00> : vector<8x32xf32>
    %792 = tpu.matmul %790, %791, %cst_440 {dimension_numbers = #tpu.dot_dimension_numbers<[1], [0], [0], [1], [0, 0, 1, 1], [], []>} : vector<8x96xbf16>, vector<96x32xbf16>, vector<8x32xf32> -> vector<8x32xf32>
    %793 = vector.extract_strided_slice %789 {offsets = [0, 0], sizes = [8, 24], strides = [1, 1]} : vector<8x96xf32> to vector<8x24xf32>
    %cst_441 = arith.constant dense<0.000000e+00> : vector<8xf32>
    %794 = vector.multi_reduction <add>, %793, %cst_441 [1] : vector<8x24xf32> to vector<8xf32>
    %795 = vector.shape_cast %794 : vector<8xf32> to vector<8x1xf32>
    %796 = tpu.reciprocal %795 {approx = true} : vector<8x1xf32> -> vector<8x1xf32>
    %797 = vector.extract_strided_slice %792 {offsets = [0, 0], sizes = [8, 8], strides = [1, 1]} : vector<8x32xf32> to vector<8x8xf32>
    %798 = vector.broadcast %796 : vector<8x1xf32> to vector<8x8xf32>
    %799 = arith.mulf %797, %798 : vector<8x8xf32>
    %c0_442 = arith.constant 0 : index
    %c0_443 = arith.constant 0 : index
    %800 = vector.load %arg25[%c0_442, %c0_443] : memref<8x32xf32, #tpu.memory_space<vmem>>, vector<8x8xf32>
    tpu.vector_store %arg25[%c0_442, %c0_443], %799 {strides = array<i32>} : memref<8x32xf32, #tpu.memory_space<vmem>>, vector<8x8xf32>,
    %801 = vector.extract_strided_slice %789 {offsets = [0, 24], sizes = [8, 24], strides = [1, 1]} : vector<8x96xf32> to vector<8x24xf32>
    %cst_444 = arith.constant dense<0.000000e+00> : vector<8xf32>
    %802 = vector.multi_reduction <add>, %801, %cst_444 [1] : vector<8x24xf32> to vector<8xf32>
    %803 = vector.shape_cast %802 : vector<8xf32> to vector<8x1xf32>
    %804 = tpu.reciprocal %803 {approx = true} : vector<8x1xf32> -> vector<8x1xf32>
    %805 = vector.extract_strided_slice %792 {offsets = [0, 8], sizes = [8, 8], strides = [1, 1]} : vector<8x32xf32> to vector<8x8xf32>
    %806 = vector.broadcast %804 : vector<8x1xf32> to vector<8x8xf32>
    %807 = arith.mulf %805, %806 : vector<8x8xf32>
    %c0_445 = arith.constant 0 : index
    %c8_446 = arith.constant 8 : index
    %808 = vector.load %arg25[%c0_445, %c8_446] : memref<8x32xf32, #tpu.memory_space<vmem>>, vector<8x8xf32>
    tpu.vector_store %arg25[%c0_445, %c8_446], %807 {strides = array<i32>} : memref<8x32xf32, #tpu.memory_space<vmem>>, vector<8x8xf32>,
    %809 = vector.extract_strided_slice %789 {offsets = [0, 48], sizes = [8, 24], strides = [1, 1]} : vector<8x96xf32> to vector<8x24xf32>
    %cst_447 = arith.constant dense<0.000000e+00> : vector<8xf32>
    %810 = vector.multi_reduction <add>, %809, %cst_447 [1] : vector<8x24xf32> to vector<8xf32>
    %811 = vector.shape_cast %810 : vector<8xf32> to vector<8x1xf32>
    %812 = tpu.reciprocal %811 {approx = true} : vector<8x1xf32> -> vector<8x1xf32>
    %813 = vector.extract_strided_slice %792 {offsets = [0, 16], sizes = [8, 8], strides = [1, 1]} : vector<8x32xf32> to vector<8x8xf32>
    %814 = vector.broadcast %812 : vector<8x1xf32> to vector<8x8xf32>
    %815 = arith.mulf %813, %814 : vector<8x8xf32>
    %c0_448 = arith.constant 0 : index
    %c16_449 = arith.constant 16 : index
    %816 = vector.load %arg25[%c0_448, %c16_449] : memref<8x32xf32, #tpu.memory_space<vmem>>, vector<8x8xf32>
    tpu.vector_store %arg25[%c0_448, %c16_449], %815 {strides = array<i32>} : memref<8x32xf32, #tpu.memory_space<vmem>>, vector<8x8xf32>,
    %817 = vector.extract_strided_slice %789 {offsets = [0, 72], sizes = [8, 24], strides = [1, 1]} : vector<8x96xf32> to vector<8x24xf32>
    %cst_450 = arith.constant dense<0.000000e+00> : vector<8xf32>
    %818 = vector.multi_reduction <add>, %817, %cst_450 [1] : vector<8x24xf32> to vector<8xf32>
    %819 = vector.shape_cast %818 : vector<8xf32> to vector<8x1xf32>
    %820 = tpu.reciprocal %819 {approx = true} : vector<8x1xf32> -> vector<8x1xf32>
    %821 = vector.extract_strided_slice %792 {offsets = [0, 24], sizes = [8, 8], strides = [1, 1]} : vector<8x32xf32> to vector<8x8xf32>
    %822 = vector.broadcast %820 : vector<8x1xf32> to vector<8x8xf32>
    %823 = arith.mulf %821, %822 : vector<8x8xf32>
    %c0_451 = arith.constant 0 : index
    %c24_452 = arith.constant 24 : index
    %824 = vector.load %arg25[%c0_451, %c24_452] : memref<8x32xf32, #tpu.memory_space<vmem>>, vector<8x8xf32>
    tpu.vector_store %arg25[%c0_451, %c24_452], %823 {strides = array<i32>} : memref<8x32xf32, #tpu.memory_space<vmem>>, vector<8x8xf32>,
    %c0_453 = arith.constant 0 : index
    %c0_454 = arith.constant 0 : index
    %825 = vector.load %arg25[%c0_453, %c0_454] : memref<8x32xf32, #tpu.memory_space<vmem>>, vector<8x32xf32>
    %826 = arith.truncf %825 : vector<8x32xf32> to vector<8x32xbf16>
    %cst_455 = arith.constant dense<0.000000e+00> : vector<8x32xf32>
    %827 = tpu.matmul %826, %778, %cst_455 {dimension_numbers = #tpu.dot_dimension_numbers<[1], [0], [0], [1], [0, 0, 1, 1], [], []>} : vector<8x32xbf16>, vector<32x32xbf16>, vector<8x32xf32> -> vector<8x32xf32>
    %828 = vector.broadcast %739 : vector<1x32xf32> to vector<8x32xf32>
    %829 = arith.addf %827, %828 : vector<8x32xf32>
    %830 = arith.addf %735, %829 : vector<8x32xf32>
    %831 = vector.extract_strided_slice %749 {offsets = [0, 0], sizes = [1, 32], strides = [1, 1]} : vector<3x32xf32> to vector<1x32xf32>
    %832 = vector.extract_strided_slice %751 {offsets = [0, 0], sizes = [1, 32], strides = [1, 1]} : vector<3x32xf32> to vector<1x32xf32>
    %cst_456 = arith.constant dense<0.000000e+00> : vector<8xf32>
    %833 = vector.multi_reduction <add>, %830, %cst_456 [1] : vector<8x32xf32> to vector<8xf32>
    %834 = vector.shape_cast %833 : vector<8xf32> to vector<8x1xf32>
    %cst_457 = arith.constant 3.200000e+01 : f32
    %835 = vector.broadcast %cst_457 : f32 to vector<8x1xf32>
    %836 = arith.divf %834, %835 : vector<8x1xf32>
    %837 = vector.broadcast %836 : vector<8x1xf32> to vector<8x32xf32>
    %838 = arith.subf %830, %837 : vector<8x32xf32>
    %839 = arith.mulf %838, %838 : vector<8x32xf32>
    %cst_458 = arith.constant dense<0.000000e+00> : vector<8xf32>
    %840 = vector.multi_reduction <add>, %839, %cst_458 [1] : vector<8x32xf32> to vector<8xf32>
    %841 = vector.shape_cast %840 : vector<8xf32> to vector<8x1xf32>
    %cst_459 = arith.constant 3.200000e+01 : f32
    %842 = vector.broadcast %cst_459 : f32 to vector<8x1xf32>
    %843 = arith.divf %841, %842 : vector<8x1xf32>
    %cst_460 = arith.constant 9.99999974E-6 : f32
    %844 = vector.broadcast %cst_460 : f32 to vector<8x1xf32>
    %845 = arith.addf %843, %844 : vector<8x1xf32>
    %846 = math.rsqrt %845 : vector<8x1xf32>
    %847 = vector.broadcast %846 : vector<8x1xf32> to vector<8x32xf32>
    %848 = arith.mulf %838, %847 : vector<8x32xf32>
    %849 = vector.broadcast %831 : vector<1x32xf32> to vector<8x32xf32>
    %850 = arith.mulf %848, %849 : vector<8x32xf32>
    %851 = vector.broadcast %832 : vector<1x32xf32> to vector<8x32xf32>
    %852 = arith.addf %850, %851 : vector<8x32xf32>
    %853 = arith.truncf %852 : vector<8x32xf32> to vector<8x32xbf16>
    %c1_461 = arith.constant 1 : index
    %c0_462 = arith.constant 0 : index
    %c0_463 = arith.constant 0 : index
    %854 = vector.load %arg12[%c1_461, %c0_462, %c0_463] : memref<2x32x32xbf16, #tpu.memory_space<vmem>>, vector<1x32x32xbf16>
    %855 = vector.shape_cast %854 : vector<1x32x32xbf16> to vector<32x32xbf16>
    %cst_464 = arith.constant dense<0.000000e+00> : vector<8x32xf32>
    %856 = tpu.matmul %853, %855, %cst_464 {dimension_numbers = #tpu.dot_dimension_numbers<[1], [0], [0], [1], [0, 0, 1, 1], [], []>} : vector<8x32xbf16>, vector<32x32xbf16>, vector<8x32xf32> -> vector<8x32xf32>
    %857 = vector.broadcast %741 : vector<1x32xf32> to vector<8x32xf32>
    %858 = arith.addf %856, %857 : vector<8x32xf32>
    %c1_465 = arith.constant 1 : index
    %c0_466 = arith.constant 0 : index
    %c0_467 = arith.constant 0 : index
    %859 = vector.load %arg6[%c1_465, %c0_466, %c0_467] : memref<2x32x32xbf16, #tpu.memory_space<vmem>>, vector<1x32x32xbf16>
    %860 = vector.shape_cast %859 : vector<1x32x32xbf16> to vector<32x32xbf16>
    %c1_468 = arith.constant 1 : index
    %c0_469 = arith.constant 0 : index
    %c0_470 = arith.constant 0 : index
    %861 = vector.load %arg7[%c1_468, %c0_469, %c0_470] : memref<2x32x32xbf16, #tpu.memory_space<vmem>>, vector<1x32x32xbf16>
    %862 = vector.shape_cast %861 : vector<1x32x32xbf16> to vector<32x32xbf16>
    %c1_471 = arith.constant 1 : index
    %c0_472 = arith.constant 0 : index
    %c0_473 = arith.constant 0 : index
    %863 = vector.load %arg14[%c1_471, %c0_472, %c0_473] : memref<2x32x32xbf16, #tpu.memory_space<vmem>>, vector<1x32x32xbf16>
    %864 = vector.shape_cast %863 : vector<1x32x32xbf16> to vector<32x32xbf16>
    %865 = arith.truncf %858 : vector<8x32xf32> to vector<8x32xbf16>
    %cst_474 = arith.constant dense<0.000000e+00> : vector<8x32xf32>
    %866 = tpu.matmul %865, %860, %cst_474 {dimension_numbers = #tpu.dot_dimension_numbers<[1], [1], [0], [0], [0, 0, 1, 0], [], []>} : vector<8x32xbf16>, vector<32x32xbf16>, vector<8x32xf32> -> vector<8x32xf32>
    %cst_475 = arith.constant 0.353553385 : f32
    %867 = vector.broadcast %cst_475 : f32 to vector<8x32xf32>
    %868 = arith.mulf %866, %867 : vector<8x32xf32>
    %869 = arith.addf %868, %2 : vector<8x32xf32>
    %cst_476 = arith.constant dense<0xFF800000> : vector<8xf32>
    %870 = vector.multi_reduction <maximumf>, %869, %cst_476 [1] : vector<8x32xf32> to vector<8xf32>
    %871 = vector.shape_cast %870 : vector<8xf32> to vector<8x1xf32>
    %872 = vector.broadcast %871 : vector<8x1xf32> to vector<8x32xf32>
    %873 = arith.subf %869, %872 : vector<8x32xf32>
    %874 = math.exp %873 : vector<8x32xf32>
    %875 = arith.truncf %874 : vector<8x32xf32> to vector<8x32xbf16>
    %cst_477 = arith.constant dense<0.000000e+00> : vector<8x32xf32>
    %876 = tpu.matmul %875, %862, %cst_477 {dimension_numbers = #tpu.dot_dimension_numbers<[1], [0], [0], [1], [0, 0, 1, 1], [], []>} : vector<8x32xbf16>, vector<32x32xbf16>, vector<8x32xf32> -> vector<8x32xf32>
    %877 = vector.extract_strided_slice %874 {offsets = [0, 0], sizes = [8, 8], strides = [1, 1]} : vector<8x32xf32> to vector<8x8xf32>
    %cst_478 = arith.constant dense<0.000000e+00> : vector<8xf32>
    %878 = vector.multi_reduction <add>, %877, %cst_478 [1] : vector<8x8xf32> to vector<8xf32>
    %879 = vector.shape_cast %878 : vector<8xf32> to vector<8x1xf32>
    %880 = tpu.reciprocal %879 {approx = true} : vector<8x1xf32> -> vector<8x1xf32>
    %881 = vector.extract_strided_slice %876 {offsets = [0, 0], sizes = [8, 8], strides = [1, 1]} : vector<8x32xf32> to vector<8x8xf32>
    %882 = vector.broadcast %880 : vector<8x1xf32> to vector<8x8xf32>
    %883 = arith.mulf %881, %882 : vector<8x8xf32>
    %c0_479 = arith.constant 0 : index
    %c0_480 = arith.constant 0 : index
    %884 = vector.load %arg25[%c0_479, %c0_480] : memref<8x32xf32, #tpu.memory_space<vmem>>, vector<8x8xf32>
    tpu.vector_store %arg25[%c0_479, %c0_480], %883 {strides = array<i32>} : memref<8x32xf32, #tpu.memory_space<vmem>>, vector<8x8xf32>,
    %885 = vector.extract_strided_slice %874 {offsets = [0, 8], sizes = [8, 8], strides = [1, 1]} : vector<8x32xf32> to vector<8x8xf32>
    %cst_481 = arith.constant dense<0.000000e+00> : vector<8xf32>
    %886 = vector.multi_reduction <add>, %885, %cst_481 [1] : vector<8x8xf32> to vector<8xf32>
    %887 = vector.shape_cast %886 : vector<8xf32> to vector<8x1xf32>
    %888 = tpu.reciprocal %887 {approx = true} : vector<8x1xf32> -> vector<8x1xf32>
    %889 = vector.extract_strided_slice %876 {offsets = [0, 8], sizes = [8, 8], strides = [1, 1]} : vector<8x32xf32> to vector<8x8xf32>
    %890 = vector.broadcast %888 : vector<8x1xf32> to vector<8x8xf32>
    %891 = arith.mulf %889, %890 : vector<8x8xf32>
    %c0_482 = arith.constant 0 : index
    %c8_483 = arith.constant 8 : index
    %892 = vector.load %arg25[%c0_482, %c8_483] : memref<8x32xf32, #tpu.memory_space<vmem>>, vector<8x8xf32>
    tpu.vector_store %arg25[%c0_482, %c8_483], %891 {strides = array<i32>} : memref<8x32xf32, #tpu.memory_space<vmem>>, vector<8x8xf32>,
    %893 = vector.extract_strided_slice %874 {offsets = [0, 16], sizes = [8, 8], strides = [1, 1]} : vector<8x32xf32> to vector<8x8xf32>
    %cst_484 = arith.constant dense<0.000000e+00> : vector<8xf32>
    %894 = vector.multi_reduction <add>, %893, %cst_484 [1] : vector<8x8xf32> to vector<8xf32>
    %895 = vector.shape_cast %894 : vector<8xf32> to vector<8x1xf32>
    %896 = tpu.reciprocal %895 {approx = true} : vector<8x1xf32> -> vector<8x1xf32>
    %897 = vector.extract_strided_slice %876 {offsets = [0, 16], sizes = [8, 8], strides = [1, 1]} : vector<8x32xf32> to vector<8x8xf32>
    %898 = vector.broadcast %896 : vector<8x1xf32> to vector<8x8xf32>
    %899 = arith.mulf %897, %898 : vector<8x8xf32>
    %c0_485 = arith.constant 0 : index
    %c16_486 = arith.constant 16 : index
    %900 = vector.load %arg25[%c0_485, %c16_486] : memref<8x32xf32, #tpu.memory_space<vmem>>, vector<8x8xf32>
    tpu.vector_store %arg25[%c0_485, %c16_486], %899 {strides = array<i32>} : memref<8x32xf32, #tpu.memory_space<vmem>>, vector<8x8xf32>,
    %901 = vector.extract_strided_slice %874 {offsets = [0, 24], sizes = [8, 8], strides = [1, 1]} : vector<8x32xf32> to vector<8x8xf32>
    %cst_487 = arith.constant dense<0.000000e+00> : vector<8xf32>
    %902 = vector.multi_reduction <add>, %901, %cst_487 [1] : vector<8x8xf32> to vector<8xf32>
    %903 = vector.shape_cast %902 : vector<8xf32> to vector<8x1xf32>
    %904 = tpu.reciprocal %903 {approx = true} : vector<8x1xf32> -> vector<8x1xf32>
    %905 = vector.extract_strided_slice %876 {offsets = [0, 24], sizes = [8, 8], strides = [1, 1]} : vector<8x32xf32> to vector<8x8xf32>
    %906 = vector.broadcast %904 : vector<8x1xf32> to vector<8x8xf32>
    %907 = arith.mulf %905, %906 : vector<8x8xf32>
    %c0_488 = arith.constant 0 : index
    %c24_489 = arith.constant 24 : index
    %908 = vector.load %arg25[%c0_488, %c24_489] : memref<8x32xf32, #tpu.memory_space<vmem>>, vector<8x8xf32>
    tpu.vector_store %arg25[%c0_488, %c24_489], %907 {strides = array<i32>} : memref<8x32xf32, #tpu.memory_space<vmem>>, vector<8x8xf32>,
    %c0_490 = arith.constant 0 : index
    %c0_491 = arith.constant 0 : index
    %909 = vector.load %arg25[%c0_490, %c0_491] : memref<8x32xf32, #tpu.memory_space<vmem>>, vector<8x32xf32>
    %910 = arith.truncf %909 : vector<8x32xf32> to vector<8x32xbf16>
    %cst_492 = arith.constant dense<0.000000e+00> : vector<8x32xf32>
    %911 = tpu.matmul %910, %864, %cst_492 {dimension_numbers = #tpu.dot_dimension_numbers<[1], [0], [0], [1], [0, 0, 1, 1], [], []>} : vector<8x32xbf16>, vector<32x32xbf16>, vector<8x32xf32> -> vector<8x32xf32>
    %912 = vector.broadcast %743 : vector<1x32xf32> to vector<8x32xf32>
    %913 = arith.addf %911, %912 : vector<8x32xf32>
    %914 = arith.addf %852, %913 : vector<8x32xf32>
    %915 = vector.extract_strided_slice %749 {offsets = [1, 0], sizes = [1, 32], strides = [1, 1]} : vector<3x32xf32> to vector<1x32xf32>
    %916 = vector.extract_strided_slice %751 {offsets = [1, 0], sizes = [1, 32], strides = [1, 1]} : vector<3x32xf32> to vector<1x32xf32>
    %cst_493 = arith.constant dense<0.000000e+00> : vector<8xf32>
    %917 = vector.multi_reduction <add>, %914, %cst_493 [1] : vector<8x32xf32> to vector<8xf32>
    %918 = vector.shape_cast %917 : vector<8xf32> to vector<8x1xf32>
    %cst_494 = arith.constant 3.200000e+01 : f32
    %919 = vector.broadcast %cst_494 : f32 to vector<8x1xf32>
    %920 = arith.divf %918, %919 : vector<8x1xf32>
    %921 = vector.broadcast %920 : vector<8x1xf32> to vector<8x32xf32>
    %922 = arith.subf %914, %921 : vector<8x32xf32>
    %923 = arith.mulf %922, %922 : vector<8x32xf32>
    %cst_495 = arith.constant dense<0.000000e+00> : vector<8xf32>
    %924 = vector.multi_reduction <add>, %923, %cst_495 [1] : vector<8x32xf32> to vector<8xf32>
    %925 = vector.shape_cast %924 : vector<8xf32> to vector<8x1xf32>
    %cst_496 = arith.constant 3.200000e+01 : f32
    %926 = vector.broadcast %cst_496 : f32 to vector<8x1xf32>
    %927 = arith.divf %925, %926 : vector<8x1xf32>
    %cst_497 = arith.constant 9.99999974E-6 : f32
    %928 = vector.broadcast %cst_497 : f32 to vector<8x1xf32>
    %929 = arith.addf %927, %928 : vector<8x1xf32>
    %930 = math.rsqrt %929 : vector<8x1xf32>
    %931 = vector.broadcast %930 : vector<8x1xf32> to vector<8x32xf32>
    %932 = arith.mulf %922, %931 : vector<8x32xf32>
    %933 = vector.broadcast %915 : vector<1x32xf32> to vector<8x32xf32>
    %934 = arith.mulf %932, %933 : vector<8x32xf32>
    %935 = vector.broadcast %916 : vector<1x32xf32> to vector<8x32xf32>
    %936 = arith.addf %934, %935 : vector<8x32xf32>
    %937 = arith.truncf %936 : vector<8x32xf32> to vector<8x32xbf16>
    %c1_498 = arith.constant 1 : index
    %c0_499 = arith.constant 0 : index
    %c0_500 = arith.constant 0 : index
    %938 = vector.load %arg16[%c1_498, %c0_499, %c0_500] : memref<2x32x64xbf16, #tpu.memory_space<vmem>>, vector<1x32x64xbf16>
    %939 = vector.shape_cast %938 : vector<1x32x64xbf16> to vector<32x64xbf16>
    %cst_501 = arith.constant dense<0.000000e+00> : vector<8x64xf32>
    %940 = tpu.matmul %937, %939, %cst_501 {dimension_numbers = #tpu.dot_dimension_numbers<[1], [0], [0], [1], [0, 0, 1, 1], [], []>} : vector<8x32xbf16>, vector<32x64xbf16>, vector<8x64xf32> -> vector<8x64xf32>
    %941 = vector.broadcast %745 : vector<1x64xf32> to vector<8x64xf32>
    %942 = arith.addf %940, %941 : vector<8x64xf32>
    %cst_502 = arith.constant 0.000000e+00 : f32
    %943 = vector.broadcast %cst_502 : f32 to vector<8x64xf32>
    %944 = arith.maximumf %942, %943 : vector<8x64xf32>
    %945 = arith.truncf %944 : vector<8x64xf32> to vector<8x64xbf16>
    %c1_503 = arith.constant 1 : index
    %c0_504 = arith.constant 0 : index
    %c0_505 = arith.constant 0 : index
    %946 = vector.load %arg18[%c1_503, %c0_504, %c0_505] : memref<2x64x32xbf16, #tpu.memory_space<vmem>>, vector<1x64x32xbf16>
    %947 = vector.shape_cast %946 : vector<1x64x32xbf16> to vector<64x32xbf16>
    %cst_506 = arith.constant dense<0.000000e+00> : vector<8x32xf32>
    %948 = tpu.matmul %945, %947, %cst_506 {dimension_numbers = #tpu.dot_dimension_numbers<[1], [0], [0], [1], [0, 0, 1, 1], [], []>} : vector<8x64xbf16>, vector<64x32xbf16>, vector<8x32xf32> -> vector<8x32xf32>
    %949 = vector.broadcast %747 : vector<1x32xf32> to vector<8x32xf32>
    %950 = arith.addf %948, %949 : vector<8x32xf32>
    %951 = arith.addf %936, %950 : vector<8x32xf32>
    %952 = vector.extract_strided_slice %749 {offsets = [2, 0], sizes = [1, 32], strides = [1, 1]} : vector<3x32xf32> to vector<1x32xf32>
    %953 = vector.extract_strided_slice %751 {offsets = [2, 0], sizes = [1, 32], strides = [1, 1]} : vector<3x32xf32> to vector<1x32xf32>
    %cst_507 = arith.constant dense<0.000000e+00> : vector<8xf32>
    %954 = vector.multi_reduction <add>, %951, %cst_507 [1] : vector<8x32xf32> to vector<8xf32>
    %955 = vector.shape_cast %954 : vector<8xf32> to vector<8x1xf32>
    %cst_508 = arith.constant 3.200000e+01 : f32
    %956 = vector.broadcast %cst_508 : f32 to vector<8x1xf32>
    %957 = arith.divf %955, %956 : vector<8x1xf32>
    %958 = vector.broadcast %957 : vector<8x1xf32> to vector<8x32xf32>
    %959 = arith.subf %951, %958 : vector<8x32xf32>
    %960 = arith.mulf %959, %959 : vector<8x32xf32>
    %cst_509 = arith.constant dense<0.000000e+00> : vector<8xf32>
    %961 = vector.multi_reduction <add>, %960, %cst_509 [1] : vector<8x32xf32> to vector<8xf32>
    %962 = vector.shape_cast %961 : vector<8xf32> to vector<8x1xf32>
    %cst_510 = arith.constant 3.200000e+01 : f32
    %963 = vector.broadcast %cst_510 : f32 to vector<8x1xf32>
    %964 = arith.divf %962, %963 : vector<8x1xf32>
    %cst_511 = arith.constant 9.99999974E-6 : f32
    %965 = vector.broadcast %cst_511 : f32 to vector<8x1xf32>
    %966 = arith.addf %964, %965 : vector<8x1xf32>
    %967 = math.rsqrt %966 : vector<8x1xf32>
    %968 = vector.broadcast %967 : vector<8x1xf32> to vector<8x32xf32>
    %969 = arith.mulf %959, %968 : vector<8x32xf32>
    %970 = vector.broadcast %952 : vector<1x32xf32> to vector<8x32xf32>
    %971 = arith.mulf %969, %970 : vector<8x32xf32>
    %972 = vector.broadcast %953 : vector<1x32xf32> to vector<8x32xf32>
    %973 = arith.addf %971, %972 : vector<8x32xf32>
    %c0_512 = arith.constant 0 : index
    %c8_513 = arith.constant 8 : index
    %c0_514 = arith.constant 0 : index
    %974 = vector.load %arg22[%c0_512, %c8_513, %c0_514] : memref<1x24x32xf32, #tpu.memory_space<vmem>>, vector<1x8x32xf32>
    %975 = vector.shape_cast %974 : vector<1x8x32xf32> to vector<8x32xf32>
    %976 = vector.shape_cast %973 : vector<8x32xf32> to vector<1x8x32xf32>
    tpu.vector_store %arg22[%c0_512, %c8_513, %c0_514], %976 {strides = array<i32>} : memref<1x24x32xf32, #tpu.memory_space<vmem>>, vector<1x8x32xf32>,
    %977 = arith.truncf %973 : vector<8x32xf32> to vector<8x32xbf16>
    %cst_515 = arith.constant dense<0.000000e+00> : vector<8x32xf32>
    %978 = tpu.matmul %977, %3, %cst_515 {dimension_numbers = #tpu.dot_dimension_numbers<[1], [0], [0], [1], [0, 0, 1, 1], [], []>} : vector<8x32xbf16>, vector<32x32xbf16>, vector<8x32xf32> -> vector<8x32xf32>
    %c2 = arith.constant 2 : index
    %c0_516 = arith.constant 0 : index
    %c0_517 = arith.constant 0 : index
    %979 = vector.load %arg2[%c2, %c0_516, %c0_517] : memref<3x8x32xf32, #tpu.memory_space<vmem>>, vector<1x8x32xf32>
    %980 = vector.shape_cast %979 : vector<1x8x32xf32> to vector<8x32xf32>
    %981 = arith.addf %978, %980 : vector<8x32xf32>
    %982 = arith.addf %981, %1 : vector<8x32xf32>
    %c16_518 = arith.constant 16 : index
    %c0_519 = arith.constant 0 : index
    %983 = vector.load %arg4[%c16_518, %c0_519] : memref<24x96xf32, #tpu.memory_space<vmem>>, vector<8x96xf32>
    %c0_520 = arith.constant 0 : index
    %c0_521 = arith.constant 0 : index
    %c0_522 = arith.constant 0 : index
    %984 = vector.load %arg9[%c0_520, %c0_521, %c0_522] : memref<2x1x96xf32, #tpu.memory_space<vmem>>, vector<1x1x96xf32>
    %985 = vector.shape_cast %984 : vector<1x1x96xf32> to vector<1x96xf32>
    %c0_523 = arith.constant 0 : index
    %c0_524 = arith.constant 0 : index
    %c0_525 = arith.constant 0 : index
    %986 = vector.load %arg11[%c0_523, %c0_524, %c0_525] : memref<2x1x32xf32, #tpu.memory_space<vmem>>, vector<1x1x32xf32>
    %987 = vector.shape_cast %986 : vector<1x1x32xf32> to vector<1x32xf32>
    %c0_526 = arith.constant 0 : index
    %c0_527 = arith.constant 0 : index
    %c0_528 = arith.constant 0 : index
    %988 = vector.load %arg13[%c0_526, %c0_527, %c0_528] : memref<2x1x32xf32, #tpu.memory_space<vmem>>, vector<1x1x32xf32>
    %989 = vector.shape_cast %988 : vector<1x1x32xf32> to vector<1x32xf32>
    %c0_529 = arith.constant 0 : index
    %c0_530 = arith.constant 0 : index
    %c0_531 = arith.constant 0 : index
    %990 = vector.load %arg15[%c0_529, %c0_530, %c0_531] : memref<2x1x32xf32, #tpu.memory_space<vmem>>, vector<1x1x32xf32>
    %991 = vector.shape_cast %990 : vector<1x1x32xf32> to vector<1x32xf32>
    %c0_532 = arith.constant 0 : index
    %c0_533 = arith.constant 0 : index
    %c0_534 = arith.constant 0 : index
    %992 = vector.load %arg17[%c0_532, %c0_533, %c0_534] : memref<2x1x64xf32, #tpu.memory_space<vmem>>, vector<1x1x64xf32>
    %993 = vector.shape_cast %992 : vector<1x1x64xf32> to vector<1x64xf32>
    %c0_535 = arith.constant 0 : index
    %c0_536 = arith.constant 0 : index
    %c0_537 = arith.constant 0 : index
    %994 = vector.load %arg19[%c0_535, %c0_536, %c0_537] : memref<2x1x32xf32, #tpu.memory_space<vmem>>, vector<1x1x32xf32>
    %995 = vector.shape_cast %994 : vector<1x1x32xf32> to vector<1x32xf32>
    %c0_538 = arith.constant 0 : index
    %c0_539 = arith.constant 0 : index
    %c0_540 = arith.constant 0 : index
    %996 = vector.load %arg20[%c0_538, %c0_539, %c0_540] : memref<2x3x32xf32, #tpu.memory_space<vmem>>, vector<1x3x32xf32>
    %997 = vector.shape_cast %996 : vector<1x3x32xf32> to vector<3x32xf32>
    %c0_541 = arith.constant 0 : index
    %c0_542 = arith.constant 0 : index
    %c0_543 = arith.constant 0 : index
    %998 = vector.load %arg21[%c0_541, %c0_542, %c0_543] : memref<2x3x32xf32, #tpu.memory_space<vmem>>, vector<1x3x32xf32>
    %999 = vector.shape_cast %998 : vector<1x3x32xf32> to vector<3x32xf32>
    %1000 = arith.truncf %982 : vector<8x32xf32> to vector<8x32xbf16>
    %c0_544 = arith.constant 0 : index
    %c0_545 = arith.constant 0 : index
    %c0_546 = arith.constant 0 : index
    %1001 = vector.load %arg8[%c0_544, %c0_545, %c0_546] : memref<2x32x96xbf16, #tpu.memory_space<vmem>>, vector<1x32x96xbf16>
    %1002 = vector.shape_cast %1001 : vector<1x32x96xbf16> to vector<32x96xbf16>
    %cst_547 = arith.constant dense<0.000000e+00> : vector<8x96xf32>
    %1003 = tpu.matmul %1000, %1002, %cst_547 {dimension_numbers = #tpu.dot_dimension_numbers<[1], [0], [0], [1], [0, 0, 1, 1], [], []>} : vector<8x32xbf16>, vector<32x96xbf16>, vector<8x96xf32> -> vector<8x96xf32>
    %1004 = vector.broadcast %985 : vector<1x96xf32> to vector<8x96xf32>
    %1005 = arith.addf %1003, %1004 : vector<8x96xf32>
    %1006 = vector.extract_strided_slice %1005 {offsets = [0, 32], sizes = [8, 8], strides = [1, 1]} : vector<8x96xf32> to vector<8x8xf32>
    %c16_548 = arith.constant 16 : index
    %c0_549 = arith.constant 0 : index
    %1007 = vector.load %arg23[%c16_548, %c0_549] : memref<192x32xf32, #tpu.memory_space<vmem>>, vector<8x8xf32>
    tpu.vector_store %arg23[%c16_548, %c0_549], %1006 {strides = array<i32>} : memref<192x32xf32, #tpu.memory_space<vmem>>, vector<8x8xf32>,
    %1008 = vector.extract_strided_slice %1005 {offsets = [0, 64], sizes = [8, 8], strides = [1, 1]} : vector<8x96xf32> to vector<8x8xf32>
    %c16_550 = arith.constant 16 : index
    %c0_551 = arith.constant 0 : index
    %1009 = vector.load %arg24[%c16_550, %c0_551] : memref<192x32xf32, #tpu.memory_space<vmem>>, vector<8x8xf32>
    tpu.vector_store %arg24[%c16_550, %c0_551], %1008 {strides = array<i32>} : memref<192x32xf32, #tpu.memory_space<vmem>>, vector<8x8xf32>,
    %1010 = vector.extract_strided_slice %1005 {offsets = [0, 40], sizes = [8, 8], strides = [1, 1]} : vector<8x96xf32> to vector<8x8xf32>
    %c40 = arith.constant 40 : index
    %c8_552 = arith.constant 8 : index
    %1011 = vector.load %arg23[%c40, %c8_552] : memref<192x32xf32, #tpu.memory_space<vmem>>, vector<8x8xf32>
    tpu.vector_store %arg23[%c40, %c8_552], %1010 {strides = array<i32>} : memref<192x32xf32, #tpu.memory_space<vmem>>, vector<8x8xf32>,
    %1012 = vector.extract_strided_slice %1005 {offsets = [0, 72], sizes = [8, 8], strides = [1, 1]} : vector<8x96xf32> to vector<8x8xf32>
    %c40_553 = arith.constant 40 : index
    %c8_554 = arith.constant 8 : index
    %1013 = vector.load %arg24[%c40_553, %c8_554] : memref<192x32xf32, #tpu.memory_space<vmem>>, vector<8x8xf32>
    tpu.vector_store %arg24[%c40_553, %c8_554], %1012 {strides = array<i32>} : memref<192x32xf32, #tpu.memory_space<vmem>>, vector<8x8xf32>,
    %1014 = vector.extract_strided_slice %1005 {offsets = [0, 48], sizes = [8, 8], strides = [1, 1]} : vector<8x96xf32> to vector<8x8xf32>
    %c64 = arith.constant 64 : index
    %c16_555 = arith.constant 16 : index
    %1015 = vector.load %arg23[%c64, %c16_555] : memref<192x32xf32, #tpu.memory_space<vmem>>, vector<8x8xf32>
    tpu.vector_store %arg23[%c64, %c16_555], %1014 {strides = array<i32>} : memref<192x32xf32, #tpu.memory_space<vmem>>, vector<8x8xf32>,
    %1016 = vector.extract_strided_slice %1005 {offsets = [0, 80], sizes = [8, 8], strides = [1, 1]} : vector<8x96xf32> to vector<8x8xf32>
    %c64_556 = arith.constant 64 : index
    %c16_557 = arith.constant 16 : index
    %1017 = vector.load %arg24[%c64_556, %c16_557] : memref<192x32xf32, #tpu.memory_space<vmem>>, vector<8x8xf32>
    tpu.vector_store %arg24[%c64_556, %c16_557], %1016 {strides = array<i32>} : memref<192x32xf32, #tpu.memory_space<vmem>>, vector<8x8xf32>,
    %1018 = vector.extract_strided_slice %1005 {offsets = [0, 56], sizes = [8, 8], strides = [1, 1]} : vector<8x96xf32> to vector<8x8xf32>
    %c88 = arith.constant 88 : index
    %c24_558 = arith.constant 24 : index
    %1019 = vector.load %arg23[%c88, %c24_558] : memref<192x32xf32, #tpu.memory_space<vmem>>, vector<8x8xf32>
    tpu.vector_store %arg23[%c88, %c24_558], %1018 {strides = array<i32>} : memref<192x32xf32, #tpu.memory_space<vmem>>, vector<8x8xf32>,
    %1020 = vector.extract_strided_slice %1005 {offsets = [0, 88], sizes = [8, 8], strides = [1, 1]} : vector<8x96xf32> to vector<8x8xf32>
    %c88_559 = arith.constant 88 : index
    %c24_560 = arith.constant 24 : index
    %1021 = vector.load %arg24[%c88_559, %c24_560] : memref<192x32xf32, #tpu.memory_space<vmem>>, vector<8x8xf32>
    tpu.vector_store %arg24[%c88_559, %c24_560], %1020 {strides = array<i32>} : memref<192x32xf32, #tpu.memory_space<vmem>>, vector<8x8xf32>,
    %c0_561 = arith.constant 0 : index
    %c0_562 = arith.constant 0 : index
    %1022 = vector.load %arg23[%c0_561, %c0_562] : memref<192x32xf32, #tpu.memory_space<vmem>>, vector<96x32xf32>
    %c0_563 = arith.constant 0 : index
    %c0_564 = arith.constant 0 : index
    %1023 = vector.load %arg24[%c0_563, %c0_564] : memref<192x32xf32, #tpu.memory_space<vmem>>, vector<96x32xf32>
    %1024 = vector.extract_strided_slice %1005 {offsets = [0, 0], sizes = [8, 32], strides = [1, 1]} : vector<8x96xf32> to vector<8x32xf32>
    %c0_565 = arith.constant 0 : index
    %c0_566 = arith.constant 0 : index
    %c0_567 = arith.constant 0 : index
    %1025 = vector.load %arg10[%c0_565, %c0_566, %c0_567] : memref<2x32x32xbf16, #tpu.memory_space<vmem>>, vector<1x32x32xbf16>
    %1026 = vector.shape_cast %1025 : vector<1x32x32xbf16> to vector<32x32xbf16>
    %1027 = arith.truncf %1024 : vector<8x32xf32> to vector<8x32xbf16>
    %1028 = arith.truncf %1022 : vector<96x32xf32> to vector<96x32xbf16>
    %cst_568 = arith.constant dense<0.000000e+00> : vector<8x96xf32>
    %1029 = tpu.matmul %1027, %1028, %cst_568 {dimension_numbers = #tpu.dot_dimension_numbers<[1], [1], [0], [0], [0, 0, 1, 0], [], []>} : vector<8x32xbf16>, vector<96x32xbf16>, vector<8x96xf32> -> vector<8x96xf32>
    %cst_569 = arith.constant 0.353553385 : f32
    %1030 = vector.broadcast %cst_569 : f32 to vector<8x96xf32>
    %1031 = arith.mulf %1029, %1030 : vector<8x96xf32>
    %1032 = arith.addf %1031, %983 : vector<8x96xf32>
    %cst_570 = arith.constant dense<0xFF800000> : vector<8xf32>
    %1033 = vector.multi_reduction <maximumf>, %1032, %cst_570 [1] : vector<8x96xf32> to vector<8xf32>
    %1034 = vector.shape_cast %1033 : vector<8xf32> to vector<8x1xf32>
    %1035 = vector.broadcast %1034 : vector<8x1xf32> to vector<8x96xf32>
    %1036 = arith.subf %1032, %1035 : vector<8x96xf32>
    %1037 = math.exp %1036 : vector<8x96xf32>
    %1038 = arith.truncf %1037 : vector<8x96xf32> to vector<8x96xbf16>
    %1039 = arith.truncf %1023 : vector<96x32xf32> to vector<96x32xbf16>
    %cst_571 = arith.constant dense<0.000000e+00> : vector<8x32xf32>
    %1040 = tpu.matmul %1038, %1039, %cst_571 {dimension_numbers = #tpu.dot_dimension_numbers<[1], [0], [0], [1], [0, 0, 1, 1], [], []>} : vector<8x96xbf16>, vector<96x32xbf16>, vector<8x32xf32> -> vector<8x32xf32>
    %1041 = vector.extract_strided_slice %1037 {offsets = [0, 0], sizes = [8, 24], strides = [1, 1]} : vector<8x96xf32> to vector<8x24xf32>
    %cst_572 = arith.constant dense<0.000000e+00> : vector<8xf32>
    %1042 = vector.multi_reduction <add>, %1041, %cst_572 [1] : vector<8x24xf32> to vector<8xf32>
    %1043 = vector.shape_cast %1042 : vector<8xf32> to vector<8x1xf32>
    %1044 = tpu.reciprocal %1043 {approx = true} : vector<8x1xf32> -> vector<8x1xf32>
    %1045 = vector.extract_strided_slice %1040 {offsets = [0, 0], sizes = [8, 8], strides = [1, 1]} : vector<8x32xf32> to vector<8x8xf32>
    %1046 = vector.broadcast %1044 : vector<8x1xf32> to vector<8x8xf32>
    %1047 = arith.mulf %1045, %1046 : vector<8x8xf32>
    %c0_573 = arith.constant 0 : index
    %c0_574 = arith.constant 0 : index
    %1048 = vector.load %arg25[%c0_573, %c0_574] : memref<8x32xf32, #tpu.memory_space<vmem>>, vector<8x8xf32>
    tpu.vector_store %arg25[%c0_573, %c0_574], %1047 {strides = array<i32>} : memref<8x32xf32, #tpu.memory_space<vmem>>, vector<8x8xf32>,
    %1049 = vector.extract_strided_slice %1037 {offsets = [0, 24], sizes = [8, 24], strides = [1, 1]} : vector<8x96xf32> to vector<8x24xf32>
    %cst_575 = arith.constant dense<0.000000e+00> : vector<8xf32>
    %1050 = vector.multi_reduction <add>, %1049, %cst_575 [1] : vector<8x24xf32> to vector<8xf32>
    %1051 = vector.shape_cast %1050 : vector<8xf32> to vector<8x1xf32>
    %1052 = tpu.reciprocal %1051 {approx = true} : vector<8x1xf32> -> vector<8x1xf32>
    %1053 = vector.extract_strided_slice %1040 {offsets = [0, 8], sizes = [8, 8], strides = [1, 1]} : vector<8x32xf32> to vector<8x8xf32>
    %1054 = vector.broadcast %1052 : vector<8x1xf32> to vector<8x8xf32>
    %1055 = arith.mulf %1053, %1054 : vector<8x8xf32>
    %c0_576 = arith.constant 0 : index
    %c8_577 = arith.constant 8 : index
    %1056 = vector.load %arg25[%c0_576, %c8_577] : memref<8x32xf32, #tpu.memory_space<vmem>>, vector<8x8xf32>
    tpu.vector_store %arg25[%c0_576, %c8_577], %1055 {strides = array<i32>} : memref<8x32xf32, #tpu.memory_space<vmem>>, vector<8x8xf32>,
    %1057 = vector.extract_strided_slice %1037 {offsets = [0, 48], sizes = [8, 24], strides = [1, 1]} : vector<8x96xf32> to vector<8x24xf32>
    %cst_578 = arith.constant dense<0.000000e+00> : vector<8xf32>
    %1058 = vector.multi_reduction <add>, %1057, %cst_578 [1] : vector<8x24xf32> to vector<8xf32>
    %1059 = vector.shape_cast %1058 : vector<8xf32> to vector<8x1xf32>
    %1060 = tpu.reciprocal %1059 {approx = true} : vector<8x1xf32> -> vector<8x1xf32>
    %1061 = vector.extract_strided_slice %1040 {offsets = [0, 16], sizes = [8, 8], strides = [1, 1]} : vector<8x32xf32> to vector<8x8xf32>
    %1062 = vector.broadcast %1060 : vector<8x1xf32> to vector<8x8xf32>
    %1063 = arith.mulf %1061, %1062 : vector<8x8xf32>
    %c0_579 = arith.constant 0 : index
    %c16_580 = arith.constant 16 : index
    %1064 = vector.load %arg25[%c0_579, %c16_580] : memref<8x32xf32, #tpu.memory_space<vmem>>, vector<8x8xf32>
    tpu.vector_store %arg25[%c0_579, %c16_580], %1063 {strides = array<i32>} : memref<8x32xf32, #tpu.memory_space<vmem>>, vector<8x8xf32>,
    %1065 = vector.extract_strided_slice %1037 {offsets = [0, 72], sizes = [8, 24], strides = [1, 1]} : vector<8x96xf32> to vector<8x24xf32>
    %cst_581 = arith.constant dense<0.000000e+00> : vector<8xf32>
    %1066 = vector.multi_reduction <add>, %1065, %cst_581 [1] : vector<8x24xf32> to vector<8xf32>
    %1067 = vector.shape_cast %1066 : vector<8xf32> to vector<8x1xf32>
    %1068 = tpu.reciprocal %1067 {approx = true} : vector<8x1xf32> -> vector<8x1xf32>
    %1069 = vector.extract_strided_slice %1040 {offsets = [0, 24], sizes = [8, 8], strides = [1, 1]} : vector<8x32xf32> to vector<8x8xf32>
    %1070 = vector.broadcast %1068 : vector<8x1xf32> to vector<8x8xf32>
    %1071 = arith.mulf %1069, %1070 : vector<8x8xf32>
    %c0_582 = arith.constant 0 : index
    %c24_583 = arith.constant 24 : index
    %1072 = vector.load %arg25[%c0_582, %c24_583] : memref<8x32xf32, #tpu.memory_space<vmem>>, vector<8x8xf32>
    tpu.vector_store %arg25[%c0_582, %c24_583], %1071 {strides = array<i32>} : memref<8x32xf32, #tpu.memory_space<vmem>>, vector<8x8xf32>,
    %c0_584 = arith.constant 0 : index
    %c0_585 = arith.constant 0 : index
    %1073 = vector.load %arg25[%c0_584, %c0_585] : memref<8x32xf32, #tpu.memory_space<vmem>>, vector<8x32xf32>
    %1074 = arith.truncf %1073 : vector<8x32xf32> to vector<8x32xbf16>
    %cst_586 = arith.constant dense<0.000000e+00> : vector<8x32xf32>
    %1075 = tpu.matmul %1074, %1026, %cst_586 {dimension_numbers = #tpu.dot_dimension_numbers<[1], [0], [0], [1], [0, 0, 1, 1], [], []>} : vector<8x32xbf16>, vector<32x32xbf16>, vector<8x32xf32> -> vector<8x32xf32>
    %1076 = vector.broadcast %987 : vector<1x32xf32> to vector<8x32xf32>
    %1077 = arith.addf %1075, %1076 : vector<8x32xf32>
    %1078 = arith.addf %982, %1077 : vector<8x32xf32>
    %1079 = vector.extract_strided_slice %997 {offsets = [0, 0], sizes = [1, 32], strides = [1, 1]} : vector<3x32xf32> to vector<1x32xf32>
    %1080 = vector.extract_strided_slice %999 {offsets = [0, 0], sizes = [1, 32], strides = [1, 1]} : vector<3x32xf32> to vector<1x32xf32>
    %cst_587 = arith.constant dense<0.000000e+00> : vector<8xf32>
    %1081 = vector.multi_reduction <add>, %1078, %cst_587 [1] : vector<8x32xf32> to vector<8xf32>
    %1082 = vector.shape_cast %1081 : vector<8xf32> to vector<8x1xf32>
    %cst_588 = arith.constant 3.200000e+01 : f32
    %1083 = vector.broadcast %cst_588 : f32 to vector<8x1xf32>
    %1084 = arith.divf %1082, %1083 : vector<8x1xf32>
    %1085 = vector.broadcast %1084 : vector<8x1xf32> to vector<8x32xf32>
    %1086 = arith.subf %1078, %1085 : vector<8x32xf32>
    %1087 = arith.mulf %1086, %1086 : vector<8x32xf32>
    %cst_589 = arith.constant dense<0.000000e+00> : vector<8xf32>
    %1088 = vector.multi_reduction <add>, %1087, %cst_589 [1] : vector<8x32xf32> to vector<8xf32>
    %1089 = vector.shape_cast %1088 : vector<8xf32> to vector<8x1xf32>
    %cst_590 = arith.constant 3.200000e+01 : f32
    %1090 = vector.broadcast %cst_590 : f32 to vector<8x1xf32>
    %1091 = arith.divf %1089, %1090 : vector<8x1xf32>
    %cst_591 = arith.constant 9.99999974E-6 : f32
    %1092 = vector.broadcast %cst_591 : f32 to vector<8x1xf32>
    %1093 = arith.addf %1091, %1092 : vector<8x1xf32>
    %1094 = math.rsqrt %1093 : vector<8x1xf32>
    %1095 = vector.broadcast %1094 : vector<8x1xf32> to vector<8x32xf32>
    %1096 = arith.mulf %1086, %1095 : vector<8x32xf32>
    %1097 = vector.broadcast %1079 : vector<1x32xf32> to vector<8x32xf32>
    %1098 = arith.mulf %1096, %1097 : vector<8x32xf32>
    %1099 = vector.broadcast %1080 : vector<1x32xf32> to vector<8x32xf32>
    %1100 = arith.addf %1098, %1099 : vector<8x32xf32>
    %1101 = arith.truncf %1100 : vector<8x32xf32> to vector<8x32xbf16>
    %c0_592 = arith.constant 0 : index
    %c0_593 = arith.constant 0 : index
    %c0_594 = arith.constant 0 : index
    %1102 = vector.load %arg12[%c0_592, %c0_593, %c0_594] : memref<2x32x32xbf16, #tpu.memory_space<vmem>>, vector<1x32x32xbf16>
    %1103 = vector.shape_cast %1102 : vector<1x32x32xbf16> to vector<32x32xbf16>
    %cst_595 = arith.constant dense<0.000000e+00> : vector<8x32xf32>
    %1104 = tpu.matmul %1101, %1103, %cst_595 {dimension_numbers = #tpu.dot_dimension_numbers<[1], [0], [0], [1], [0, 0, 1, 1], [], []>} : vector<8x32xbf16>, vector<32x32xbf16>, vector<8x32xf32> -> vector<8x32xf32>
    %1105 = vector.broadcast %989 : vector<1x32xf32> to vector<8x32xf32>
    %1106 = arith.addf %1104, %1105 : vector<8x32xf32>
    %c0_596 = arith.constant 0 : index
    %c0_597 = arith.constant 0 : index
    %c0_598 = arith.constant 0 : index
    %1107 = vector.load %arg6[%c0_596, %c0_597, %c0_598] : memref<2x32x32xbf16, #tpu.memory_space<vmem>>, vector<1x32x32xbf16>
    %1108 = vector.shape_cast %1107 : vector<1x32x32xbf16> to vector<32x32xbf16>
    %c0_599 = arith.constant 0 : index
    %c0_600 = arith.constant 0 : index
    %c0_601 = arith.constant 0 : index
    %1109 = vector.load %arg7[%c0_599, %c0_600, %c0_601] : memref<2x32x32xbf16, #tpu.memory_space<vmem>>, vector<1x32x32xbf16>
    %1110 = vector.shape_cast %1109 : vector<1x32x32xbf16> to vector<32x32xbf16>
    %c0_602 = arith.constant 0 : index
    %c0_603 = arith.constant 0 : index
    %c0_604 = arith.constant 0 : index
    %1111 = vector.load %arg14[%c0_602, %c0_603, %c0_604] : memref<2x32x32xbf16, #tpu.memory_space<vmem>>, vector<1x32x32xbf16>
    %1112 = vector.shape_cast %1111 : vector<1x32x32xbf16> to vector<32x32xbf16>
    %1113 = arith.truncf %1106 : vector<8x32xf32> to vector<8x32xbf16>
    %cst_605 = arith.constant dense<0.000000e+00> : vector<8x32xf32>
    %1114 = tpu.matmul %1113, %1108, %cst_605 {dimension_numbers = #tpu.dot_dimension_numbers<[1], [1], [0], [0], [0, 0, 1, 0], [], []>} : vector<8x32xbf16>, vector<32x32xbf16>, vector<8x32xf32> -> vector<8x32xf32>
    %cst_606 = arith.constant 0.353553385 : f32
    %1115 = vector.broadcast %cst_606 : f32 to vector<8x32xf32>
    %1116 = arith.mulf %1114, %1115 : vector<8x32xf32>
    %1117 = arith.addf %1116, %2 : vector<8x32xf32>
    %cst_607 = arith.constant dense<0xFF800000> : vector<8xf32>
    %1118 = vector.multi_reduction <maximumf>, %1117, %cst_607 [1] : vector<8x32xf32> to vector<8xf32>
    %1119 = vector.shape_cast %1118 : vector<8xf32> to vector<8x1xf32>
    %1120 = vector.broadcast %1119 : vector<8x1xf32> to vector<8x32xf32>
    %1121 = arith.subf %1117, %1120 : vector<8x32xf32>
    %1122 = math.exp %1121 : vector<8x32xf32>
    %1123 = arith.truncf %1122 : vector<8x32xf32> to vector<8x32xbf16>
    %cst_608 = arith.constant dense<0.000000e+00> : vector<8x32xf32>
    %1124 = tpu.matmul %1123, %1110, %cst_608 {dimension_numbers = #tpu.dot_dimension_numbers<[1], [0], [0], [1], [0, 0, 1, 1], [], []>} : vector<8x32xbf16>, vector<32x32xbf16>, vector<8x32xf32> -> vector<8x32xf32>
    %1125 = vector.extract_strided_slice %1122 {offsets = [0, 0], sizes = [8, 8], strides = [1, 1]} : vector<8x32xf32> to vector<8x8xf32>
    %cst_609 = arith.constant dense<0.000000e+00> : vector<8xf32>
    %1126 = vector.multi_reduction <add>, %1125, %cst_609 [1] : vector<8x8xf32> to vector<8xf32>
    %1127 = vector.shape_cast %1126 : vector<8xf32> to vector<8x1xf32>
    %1128 = tpu.reciprocal %1127 {approx = true} : vector<8x1xf32> -> vector<8x1xf32>
    %1129 = vector.extract_strided_slice %1124 {offsets = [0, 0], sizes = [8, 8], strides = [1, 1]} : vector<8x32xf32> to vector<8x8xf32>
    %1130 = vector.broadcast %1128 : vector<8x1xf32> to vector<8x8xf32>
    %1131 = arith.mulf %1129, %1130 : vector<8x8xf32>
    %c0_610 = arith.constant 0 : index
    %c0_611 = arith.constant 0 : index
    %1132 = vector.load %arg25[%c0_610, %c0_611] : memref<8x32xf32, #tpu.memory_space<vmem>>, vector<8x8xf32>
    tpu.vector_store %arg25[%c0_610, %c0_611], %1131 {strides = array<i32>} : memref<8x32xf32, #tpu.memory_space<vmem>>, vector<8x8xf32>,
    %1133 = vector.extract_strided_slice %1122 {offsets = [0, 8], sizes = [8, 8], strides = [1, 1]} : vector<8x32xf32> to vector<8x8xf32>
    %cst_612 = arith.constant dense<0.000000e+00> : vector<8xf32>
    %1134 = vector.multi_reduction <add>, %1133, %cst_612 [1] : vector<8x8xf32> to vector<8xf32>
    %1135 = vector.shape_cast %1134 : vector<8xf32> to vector<8x1xf32>
    %1136 = tpu.reciprocal %1135 {approx = true} : vector<8x1xf32> -> vector<8x1xf32>
    %1137 = vector.extract_strided_slice %1124 {offsets = [0, 8], sizes = [8, 8], strides = [1, 1]} : vector<8x32xf32> to vector<8x8xf32>
    %1138 = vector.broadcast %1136 : vector<8x1xf32> to vector<8x8xf32>
    %1139 = arith.mulf %1137, %1138 : vector<8x8xf32>
    %c0_613 = arith.constant 0 : index
    %c8_614 = arith.constant 8 : index
    %1140 = vector.load %arg25[%c0_613, %c8_614] : memref<8x32xf32, #tpu.memory_space<vmem>>, vector<8x8xf32>
    tpu.vector_store %arg25[%c0_613, %c8_614], %1139 {strides = array<i32>} : memref<8x32xf32, #tpu.memory_space<vmem>>, vector<8x8xf32>,
    %1141 = vector.extract_strided_slice %1122 {offsets = [0, 16], sizes = [8, 8], strides = [1, 1]} : vector<8x32xf32> to vector<8x8xf32>
    %cst_615 = arith.constant dense<0.000000e+00> : vector<8xf32>
    %1142 = vector.multi_reduction <add>, %1141, %cst_615 [1] : vector<8x8xf32> to vector<8xf32>
    %1143 = vector.shape_cast %1142 : vector<8xf32> to vector<8x1xf32>
    %1144 = tpu.reciprocal %1143 {approx = true} : vector<8x1xf32> -> vector<8x1xf32>
    %1145 = vector.extract_strided_slice %1124 {offsets = [0, 16], sizes = [8, 8], strides = [1, 1]} : vector<8x32xf32> to vector<8x8xf32>
    %1146 = vector.broadcast %1144 : vector<8x1xf32> to vector<8x8xf32>
    %1147 = arith.mulf %1145, %1146 : vector<8x8xf32>
    %c0_616 = arith.constant 0 : index
    %c16_617 = arith.constant 16 : index
    %1148 = vector.load %arg25[%c0_616, %c16_617] : memref<8x32xf32, #tpu.memory_space<vmem>>, vector<8x8xf32>
    tpu.vector_store %arg25[%c0_616, %c16_617], %1147 {strides = array<i32>} : memref<8x32xf32, #tpu.memory_space<vmem>>, vector<8x8xf32>,
    %1149 = vector.extract_strided_slice %1122 {offsets = [0, 24], sizes = [8, 8], strides = [1, 1]} : vector<8x32xf32> to vector<8x8xf32>
    %cst_618 = arith.constant dense<0.000000e+00> : vector<8xf32>
    %1150 = vector.multi_reduction <add>, %1149, %cst_618 [1] : vector<8x8xf32> to vector<8xf32>
    %1151 = vector.shape_cast %1150 : vector<8xf32> to vector<8x1xf32>
    %1152 = tpu.reciprocal %1151 {approx = true} : vector<8x1xf32> -> vector<8x1xf32>
    %1153 = vector.extract_strided_slice %1124 {offsets = [0, 24], sizes = [8, 8], strides = [1, 1]} : vector<8x32xf32> to vector<8x8xf32>
    %1154 = vector.broadcast %1152 : vector<8x1xf32> to vector<8x8xf32>
    %1155 = arith.mulf %1153, %1154 : vector<8x8xf32>
    %c0_619 = arith.constant 0 : index
    %c24_620 = arith.constant 24 : index
    %1156 = vector.load %arg25[%c0_619, %c24_620] : memref<8x32xf32, #tpu.memory_space<vmem>>, vector<8x8xf32>
    tpu.vector_store %arg25[%c0_619, %c24_620], %1155 {strides = array<i32>} : memref<8x32xf32, #tpu.memory_space<vmem>>, vector<8x8xf32>,
    %c0_621 = arith.constant 0 : index
    %c0_622 = arith.constant 0 : index
    %1157 = vector.load %arg25[%c0_621, %c0_622] : memref<8x32xf32, #tpu.memory_space<vmem>>, vector<8x32xf32>
    %1158 = arith.truncf %1157 : vector<8x32xf32> to vector<8x32xbf16>
    %cst_623 = arith.constant dense<0.000000e+00> : vector<8x32xf32>
    %1159 = tpu.matmul %1158, %1112, %cst_623 {dimension_numbers = #tpu.dot_dimension_numbers<[1], [0], [0], [1], [0, 0, 1, 1], [], []>} : vector<8x32xbf16>, vector<32x32xbf16>, vector<8x32xf32> -> vector<8x32xf32>
    %1160 = vector.broadcast %991 : vector<1x32xf32> to vector<8x32xf32>
    %1161 = arith.addf %1159, %1160 : vector<8x32xf32>
    %1162 = arith.addf %1100, %1161 : vector<8x32xf32>
    %1163 = vector.extract_strided_slice %997 {offsets = [1, 0], sizes = [1, 32], strides = [1, 1]} : vector<3x32xf32> to vector<1x32xf32>
    %1164 = vector.extract_strided_slice %999 {offsets = [1, 0], sizes = [1, 32], strides = [1, 1]} : vector<3x32xf32> to vector<1x32xf32>
    %cst_624 = arith.constant dense<0.000000e+00> : vector<8xf32>
    %1165 = vector.multi_reduction <add>, %1162, %cst_624 [1] : vector<8x32xf32> to vector<8xf32>
    %1166 = vector.shape_cast %1165 : vector<8xf32> to vector<8x1xf32>
    %cst_625 = arith.constant 3.200000e+01 : f32
    %1167 = vector.broadcast %cst_625 : f32 to vector<8x1xf32>
    %1168 = arith.divf %1166, %1167 : vector<8x1xf32>
    %1169 = vector.broadcast %1168 : vector<8x1xf32> to vector<8x32xf32>
    %1170 = arith.subf %1162, %1169 : vector<8x32xf32>
    %1171 = arith.mulf %1170, %1170 : vector<8x32xf32>
    %cst_626 = arith.constant dense<0.000000e+00> : vector<8xf32>
    %1172 = vector.multi_reduction <add>, %1171, %cst_626 [1] : vector<8x32xf32> to vector<8xf32>
    %1173 = vector.shape_cast %1172 : vector<8xf32> to vector<8x1xf32>
    %cst_627 = arith.constant 3.200000e+01 : f32
    %1174 = vector.broadcast %cst_627 : f32 to vector<8x1xf32>
    %1175 = arith.divf %1173, %1174 : vector<8x1xf32>
    %cst_628 = arith.constant 9.99999974E-6 : f32
    %1176 = vector.broadcast %cst_628 : f32 to vector<8x1xf32>
    %1177 = arith.addf %1175, %1176 : vector<8x1xf32>
    %1178 = math.rsqrt %1177 : vector<8x1xf32>
    %1179 = vector.broadcast %1178 : vector<8x1xf32> to vector<8x32xf32>
    %1180 = arith.mulf %1170, %1179 : vector<8x32xf32>
    %1181 = vector.broadcast %1163 : vector<1x32xf32> to vector<8x32xf32>
    %1182 = arith.mulf %1180, %1181 : vector<8x32xf32>
    %1183 = vector.broadcast %1164 : vector<1x32xf32> to vector<8x32xf32>
    %1184 = arith.addf %1182, %1183 : vector<8x32xf32>
    %1185 = arith.truncf %1184 : vector<8x32xf32> to vector<8x32xbf16>
    %c0_629 = arith.constant 0 : index
    %c0_630 = arith.constant 0 : index
    %c0_631 = arith.constant 0 : index
    %1186 = vector.load %arg16[%c0_629, %c0_630, %c0_631] : memref<2x32x64xbf16, #tpu.memory_space<vmem>>, vector<1x32x64xbf16>
    %1187 = vector.shape_cast %1186 : vector<1x32x64xbf16> to vector<32x64xbf16>
    %cst_632 = arith.constant dense<0.000000e+00> : vector<8x64xf32>
    %1188 = tpu.matmul %1185, %1187, %cst_632 {dimension_numbers = #tpu.dot_dimension_numbers<[1], [0], [0], [1], [0, 0, 1, 1], [], []>} : vector<8x32xbf16>, vector<32x64xbf16>, vector<8x64xf32> -> vector<8x64xf32>
    %1189 = vector.broadcast %993 : vector<1x64xf32> to vector<8x64xf32>
    %1190 = arith.addf %1188, %1189 : vector<8x64xf32>
    %cst_633 = arith.constant 0.000000e+00 : f32
    %1191 = vector.broadcast %cst_633 : f32 to vector<8x64xf32>
    %1192 = arith.maximumf %1190, %1191 : vector<8x64xf32>
    %1193 = arith.truncf %1192 : vector<8x64xf32> to vector<8x64xbf16>
    %c0_634 = arith.constant 0 : index
    %c0_635 = arith.constant 0 : index
    %c0_636 = arith.constant 0 : index
    %1194 = vector.load %arg18[%c0_634, %c0_635, %c0_636] : memref<2x64x32xbf16, #tpu.memory_space<vmem>>, vector<1x64x32xbf16>
    %1195 = vector.shape_cast %1194 : vector<1x64x32xbf16> to vector<64x32xbf16>
    %cst_637 = arith.constant dense<0.000000e+00> : vector<8x32xf32>
    %1196 = tpu.matmul %1193, %1195, %cst_637 {dimension_numbers = #tpu.dot_dimension_numbers<[1], [0], [0], [1], [0, 0, 1, 1], [], []>} : vector<8x64xbf16>, vector<64x32xbf16>, vector<8x32xf32> -> vector<8x32xf32>
    %1197 = vector.broadcast %995 : vector<1x32xf32> to vector<8x32xf32>
    %1198 = arith.addf %1196, %1197 : vector<8x32xf32>
    %1199 = arith.addf %1184, %1198 : vector<8x32xf32>
    %1200 = vector.extract_strided_slice %997 {offsets = [2, 0], sizes = [1, 32], strides = [1, 1]} : vector<3x32xf32> to vector<1x32xf32>
    %1201 = vector.extract_strided_slice %999 {offsets = [2, 0], sizes = [1, 32], strides = [1, 1]} : vector<3x32xf32> to vector<1x32xf32>
    %cst_638 = arith.constant dense<0.000000e+00> : vector<8xf32>
    %1202 = vector.multi_reduction <add>, %1199, %cst_638 [1] : vector<8x32xf32> to vector<8xf32>
    %1203 = vector.shape_cast %1202 : vector<8xf32> to vector<8x1xf32>
    %cst_639 = arith.constant 3.200000e+01 : f32
    %1204 = vector.broadcast %cst_639 : f32 to vector<8x1xf32>
    %1205 = arith.divf %1203, %1204 : vector<8x1xf32>
    %1206 = vector.broadcast %1205 : vector<8x1xf32> to vector<8x32xf32>
    %1207 = arith.subf %1199, %1206 : vector<8x32xf32>
    %1208 = arith.mulf %1207, %1207 : vector<8x32xf32>
    %cst_640 = arith.constant dense<0.000000e+00> : vector<8xf32>
    %1209 = vector.multi_reduction <add>, %1208, %cst_640 [1] : vector<8x32xf32> to vector<8xf32>
    %1210 = vector.shape_cast %1209 : vector<8xf32> to vector<8x1xf32>
    %cst_641 = arith.constant 3.200000e+01 : f32
    %1211 = vector.broadcast %cst_641 : f32 to vector<8x1xf32>
    %1212 = arith.divf %1210, %1211 : vector<8x1xf32>
    %cst_642 = arith.constant 9.99999974E-6 : f32
    %1213 = vector.broadcast %cst_642 : f32 to vector<8x1xf32>
    %1214 = arith.addf %1212, %1213 : vector<8x1xf32>
    %1215 = math.rsqrt %1214 : vector<8x1xf32>
    %1216 = vector.broadcast %1215 : vector<8x1xf32> to vector<8x32xf32>
    %1217 = arith.mulf %1207, %1216 : vector<8x32xf32>
    %1218 = vector.broadcast %1200 : vector<1x32xf32> to vector<8x32xf32>
    %1219 = arith.mulf %1217, %1218 : vector<8x32xf32>
    %1220 = vector.broadcast %1201 : vector<1x32xf32> to vector<8x32xf32>
    %1221 = arith.addf %1219, %1220 : vector<8x32xf32>
    %c1_643 = arith.constant 1 : index
    %c0_644 = arith.constant 0 : index
    %c0_645 = arith.constant 0 : index
    %1222 = vector.load %arg9[%c1_643, %c0_644, %c0_645] : memref<2x1x96xf32, #tpu.memory_space<vmem>>, vector<1x1x96xf32>
    %1223 = vector.shape_cast %1222 : vector<1x1x96xf32> to vector<1x96xf32>
    %c1_646 = arith.constant 1 : index
    %c0_647 = arith.constant 0 : index
    %c0_648 = arith.constant 0 : index
    %1224 = vector.load %arg11[%c1_646, %c0_647, %c0_648] : memref<2x1x32xf32, #tpu.memory_space<vmem>>, vector<1x1x32xf32>
    %1225 = vector.shape_cast %1224 : vector<1x1x32xf32> to vector<1x32xf32>
    %c1_649 = arith.constant 1 : index
    %c0_650 = arith.constant 0 : index
    %c0_651 = arith.constant 0 : index
    %1226 = vector.load %arg13[%c1_649, %c0_650, %c0_651] : memref<2x1x32xf32, #tpu.memory_space<vmem>>, vector<1x1x32xf32>
    %1227 = vector.shape_cast %1226 : vector<1x1x32xf32> to vector<1x32xf32>
    %c1_652 = arith.constant 1 : index
    %c0_653 = arith.constant 0 : index
    %c0_654 = arith.constant 0 : index
    %1228 = vector.load %arg15[%c1_652, %c0_653, %c0_654] : memref<2x1x32xf32, #tpu.memory_space<vmem>>, vector<1x1x32xf32>
    %1229 = vector.shape_cast %1228 : vector<1x1x32xf32> to vector<1x32xf32>
    %c1_655 = arith.constant 1 : index
    %c0_656 = arith.constant 0 : index
    %c0_657 = arith.constant 0 : index
    %1230 = vector.load %arg17[%c1_655, %c0_656, %c0_657] : memref<2x1x64xf32, #tpu.memory_space<vmem>>, vector<1x1x64xf32>
    %1231 = vector.shape_cast %1230 : vector<1x1x64xf32> to vector<1x64xf32>
    %c1_658 = arith.constant 1 : index
    %c0_659 = arith.constant 0 : index
    %c0_660 = arith.constant 0 : index
    %1232 = vector.load %arg19[%c1_658, %c0_659, %c0_660] : memref<2x1x32xf32, #tpu.memory_space<vmem>>, vector<1x1x32xf32>
    %1233 = vector.shape_cast %1232 : vector<1x1x32xf32> to vector<1x32xf32>
    %c1_661 = arith.constant 1 : index
    %c0_662 = arith.constant 0 : index
    %c0_663 = arith.constant 0 : index
    %1234 = vector.load %arg20[%c1_661, %c0_662, %c0_663] : memref<2x3x32xf32, #tpu.memory_space<vmem>>, vector<1x3x32xf32>
    %1235 = vector.shape_cast %1234 : vector<1x3x32xf32> to vector<3x32xf32>
    %c1_664 = arith.constant 1 : index
    %c0_665 = arith.constant 0 : index
    %c0_666 = arith.constant 0 : index
    %1236 = vector.load %arg21[%c1_664, %c0_665, %c0_666] : memref<2x3x32xf32, #tpu.memory_space<vmem>>, vector<1x3x32xf32>
    %1237 = vector.shape_cast %1236 : vector<1x3x32xf32> to vector<3x32xf32>
    %1238 = arith.truncf %1221 : vector<8x32xf32> to vector<8x32xbf16>
    %c1_667 = arith.constant 1 : index
    %c0_668 = arith.constant 0 : index
    %c0_669 = arith.constant 0 : index
    %1239 = vector.load %arg8[%c1_667, %c0_668, %c0_669] : memref<2x32x96xbf16, #tpu.memory_space<vmem>>, vector<1x32x96xbf16>
    %1240 = vector.shape_cast %1239 : vector<1x32x96xbf16> to vector<32x96xbf16>
    %cst_670 = arith.constant dense<0.000000e+00> : vector<8x96xf32>
    %1241 = tpu.matmul %1238, %1240, %cst_670 {dimension_numbers = #tpu.dot_dimension_numbers<[1], [0], [0], [1], [0, 0, 1, 1], [], []>} : vector<8x32xbf16>, vector<32x96xbf16>, vector<8x96xf32> -> vector<8x96xf32>
    %1242 = vector.broadcast %1223 : vector<1x96xf32> to vector<8x96xf32>
    %1243 = arith.addf %1241, %1242 : vector<8x96xf32>
    %1244 = vector.extract_strided_slice %1243 {offsets = [0, 32], sizes = [8, 8], strides = [1, 1]} : vector<8x96xf32> to vector<8x8xf32>
    %c112 = arith.constant 112 : index
    %c0_671 = arith.constant 0 : index
    %1245 = vector.load %arg23[%c112, %c0_671] : memref<192x32xf32, #tpu.memory_space<vmem>>, vector<8x8xf32>
    tpu.vector_store %arg23[%c112, %c0_671], %1244 {strides = array<i32>} : memref<192x32xf32, #tpu.memory_space<vmem>>, vector<8x8xf32>,
    %1246 = vector.extract_strided_slice %1243 {offsets = [0, 64], sizes = [8, 8], strides = [1, 1]} : vector<8x96xf32> to vector<8x8xf32>
    %c112_672 = arith.constant 112 : index
    %c0_673 = arith.constant 0 : index
    %1247 = vector.load %arg24[%c112_672, %c0_673] : memref<192x32xf32, #tpu.memory_space<vmem>>, vector<8x8xf32>
    tpu.vector_store %arg24[%c112_672, %c0_673], %1246 {strides = array<i32>} : memref<192x32xf32, #tpu.memory_space<vmem>>, vector<8x8xf32>,
    %1248 = vector.extract_strided_slice %1243 {offsets = [0, 40], sizes = [8, 8], strides = [1, 1]} : vector<8x96xf32> to vector<8x8xf32>
    %c136 = arith.constant 136 : index
    %c8_674 = arith.constant 8 : index
    %1249 = vector.load %arg23[%c136, %c8_674] : memref<192x32xf32, #tpu.memory_space<vmem>>, vector<8x8xf32>
    tpu.vector_store %arg23[%c136, %c8_674], %1248 {strides = array<i32>} : memref<192x32xf32, #tpu.memory_space<vmem>>, vector<8x8xf32>,
    %1250 = vector.extract_strided_slice %1243 {offsets = [0, 72], sizes = [8, 8], strides = [1, 1]} : vector<8x96xf32> to vector<8x8xf32>
    %c136_675 = arith.constant 136 : index
    %c8_676 = arith.constant 8 : index
    %1251 = vector.load %arg24[%c136_675, %c8_676] : memref<192x32xf32, #tpu.memory_space<vmem>>, vector<8x8xf32>
    tpu.vector_store %arg24[%c136_675, %c8_676], %1250 {strides = array<i32>} : memref<192x32xf32, #tpu.memory_space<vmem>>, vector<8x8xf32>,
    %1252 = vector.extract_strided_slice %1243 {offsets = [0, 48], sizes = [8, 8], strides = [1, 1]} : vector<8x96xf32> to vector<8x8xf32>
    %c160 = arith.constant 160 : index
    %c16_677 = arith.constant 16 : index
    %1253 = vector.load %arg23[%c160, %c16_677] : memref<192x32xf32, #tpu.memory_space<vmem>>, vector<8x8xf32>
    tpu.vector_store %arg23[%c160, %c16_677], %1252 {strides = array<i32>} : memref<192x32xf32, #tpu.memory_space<vmem>>, vector<8x8xf32>,
    %1254 = vector.extract_strided_slice %1243 {offsets = [0, 80], sizes = [8, 8], strides = [1, 1]} : vector<8x96xf32> to vector<8x8xf32>
    %c160_678 = arith.constant 160 : index
    %c16_679 = arith.constant 16 : index
    %1255 = vector.load %arg24[%c160_678, %c16_679] : memref<192x32xf32, #tpu.memory_space<vmem>>, vector<8x8xf32>
    tpu.vector_store %arg24[%c160_678, %c16_679], %1254 {strides = array<i32>} : memref<192x32xf32, #tpu.memory_space<vmem>>, vector<8x8xf32>,
    %1256 = vector.extract_strided_slice %1243 {offsets = [0, 56], sizes = [8, 8], strides = [1, 1]} : vector<8x96xf32> to vector<8x8xf32>
    %c184 = arith.constant 184 : index
    %c24_680 = arith.constant 24 : index
    %1257 = vector.load %arg23[%c184, %c24_680] : memref<192x32xf32, #tpu.memory_space<vmem>>, vector<8x8xf32>
    tpu.vector_store %arg23[%c184, %c24_680], %1256 {strides = array<i32>} : memref<192x32xf32, #tpu.memory_space<vmem>>, vector<8x8xf32>,
    %1258 = vector.extract_strided_slice %1243 {offsets = [0, 88], sizes = [8, 8], strides = [1, 1]} : vector<8x96xf32> to vector<8x8xf32>
    %c184_681 = arith.constant 184 : index
    %c24_682 = arith.constant 24 : index
    %1259 = vector.load %arg24[%c184_681, %c24_682] : memref<192x32xf32, #tpu.memory_space<vmem>>, vector<8x8xf32>
    tpu.vector_store %arg24[%c184_681, %c24_682], %1258 {strides = array<i32>} : memref<192x32xf32, #tpu.memory_space<vmem>>, vector<8x8xf32>,
    %c96_683 = arith.constant 96 : index
    %c0_684 = arith.constant 0 : index
    %1260 = vector.load %arg23[%c96_683, %c0_684] : memref<192x32xf32, #tpu.memory_space<vmem>>, vector<96x32xf32>
    %c96_685 = arith.constant 96 : index
    %c0_686 = arith.constant 0 : index
    %1261 = vector.load %arg24[%c96_685, %c0_686] : memref<192x32xf32, #tpu.memory_space<vmem>>, vector<96x32xf32>
    %1262 = vector.extract_strided_slice %1243 {offsets = [0, 0], sizes = [8, 32], strides = [1, 1]} : vector<8x96xf32> to vector<8x32xf32>
    %c1_687 = arith.constant 1 : index
    %c0_688 = arith.constant 0 : index
    %c0_689 = arith.constant 0 : index
    %1263 = vector.load %arg10[%c1_687, %c0_688, %c0_689] : memref<2x32x32xbf16, #tpu.memory_space<vmem>>, vector<1x32x32xbf16>
    %1264 = vector.shape_cast %1263 : vector<1x32x32xbf16> to vector<32x32xbf16>
    %1265 = arith.truncf %1262 : vector<8x32xf32> to vector<8x32xbf16>
    %1266 = arith.truncf %1260 : vector<96x32xf32> to vector<96x32xbf16>
    %cst_690 = arith.constant dense<0.000000e+00> : vector<8x96xf32>
    %1267 = tpu.matmul %1265, %1266, %cst_690 {dimension_numbers = #tpu.dot_dimension_numbers<[1], [1], [0], [0], [0, 0, 1, 0], [], []>} : vector<8x32xbf16>, vector<96x32xbf16>, vector<8x96xf32> -> vector<8x96xf32>
    %cst_691 = arith.constant 0.353553385 : f32
    %1268 = vector.broadcast %cst_691 : f32 to vector<8x96xf32>
    %1269 = arith.mulf %1267, %1268 : vector<8x96xf32>
    %1270 = arith.addf %1269, %983 : vector<8x96xf32>
    %cst_692 = arith.constant dense<0xFF800000> : vector<8xf32>
    %1271 = vector.multi_reduction <maximumf>, %1270, %cst_692 [1] : vector<8x96xf32> to vector<8xf32>
    %1272 = vector.shape_cast %1271 : vector<8xf32> to vector<8x1xf32>
    %1273 = vector.broadcast %1272 : vector<8x1xf32> to vector<8x96xf32>
    %1274 = arith.subf %1270, %1273 : vector<8x96xf32>
    %1275 = math.exp %1274 : vector<8x96xf32>
    %1276 = arith.truncf %1275 : vector<8x96xf32> to vector<8x96xbf16>
    %1277 = arith.truncf %1261 : vector<96x32xf32> to vector<96x32xbf16>
    %cst_693 = arith.constant dense<0.000000e+00> : vector<8x32xf32>
    %1278 = tpu.matmul %1276, %1277, %cst_693 {dimension_numbers = #tpu.dot_dimension_numbers<[1], [0], [0], [1], [0, 0, 1, 1], [], []>} : vector<8x96xbf16>, vector<96x32xbf16>, vector<8x32xf32> -> vector<8x32xf32>
    %1279 = vector.extract_strided_slice %1275 {offsets = [0, 0], sizes = [8, 24], strides = [1, 1]} : vector<8x96xf32> to vector<8x24xf32>
    %cst_694 = arith.constant dense<0.000000e+00> : vector<8xf32>
    %1280 = vector.multi_reduction <add>, %1279, %cst_694 [1] : vector<8x24xf32> to vector<8xf32>
    %1281 = vector.shape_cast %1280 : vector<8xf32> to vector<8x1xf32>
    %1282 = tpu.reciprocal %1281 {approx = true} : vector<8x1xf32> -> vector<8x1xf32>
    %1283 = vector.extract_strided_slice %1278 {offsets = [0, 0], sizes = [8, 8], strides = [1, 1]} : vector<8x32xf32> to vector<8x8xf32>
    %1284 = vector.broadcast %1282 : vector<8x1xf32> to vector<8x8xf32>
    %1285 = arith.mulf %1283, %1284 : vector<8x8xf32>
    %c0_695 = arith.constant 0 : index
    %c0_696 = arith.constant 0 : index
    %1286 = vector.load %arg25[%c0_695, %c0_696] : memref<8x32xf32, #tpu.memory_space<vmem>>, vector<8x8xf32>
    tpu.vector_store %arg25[%c0_695, %c0_696], %1285 {strides = array<i32>} : memref<8x32xf32, #tpu.memory_space<vmem>>, vector<8x8xf32>,
    %1287 = vector.extract_strided_slice %1275 {offsets = [0, 24], sizes = [8, 24], strides = [1, 1]} : vector<8x96xf32> to vector<8x24xf32>
    %cst_697 = arith.constant dense<0.000000e+00> : vector<8xf32>
    %1288 = vector.multi_reduction <add>, %1287, %cst_697 [1] : vector<8x24xf32> to vector<8xf32>
    %1289 = vector.shape_cast %1288 : vector<8xf32> to vector<8x1xf32>
    %1290 = tpu.reciprocal %1289 {approx = true} : vector<8x1xf32> -> vector<8x1xf32>
    %1291 = vector.extract_strided_slice %1278 {offsets = [0, 8], sizes = [8, 8], strides = [1, 1]} : vector<8x32xf32> to vector<8x8xf32>
    %1292 = vector.broadcast %1290 : vector<8x1xf32> to vector<8x8xf32>
    %1293 = arith.mulf %1291, %1292 : vector<8x8xf32>
    %c0_698 = arith.constant 0 : index
    %c8_699 = arith.constant 8 : index
    %1294 = vector.load %arg25[%c0_698, %c8_699] : memref<8x32xf32, #tpu.memory_space<vmem>>, vector<8x8xf32>
    tpu.vector_store %arg25[%c0_698, %c8_699], %1293 {strides = array<i32>} : memref<8x32xf32, #tpu.memory_space<vmem>>, vector<8x8xf32>,
    %1295 = vector.extract_strided_slice %1275 {offsets = [0, 48], sizes = [8, 24], strides = [1, 1]} : vector<8x96xf32> to vector<8x24xf32>
    %cst_700 = arith.constant dense<0.000000e+00> : vector<8xf32>
    %1296 = vector.multi_reduction <add>, %1295, %cst_700 [1] : vector<8x24xf32> to vector<8xf32>
    %1297 = vector.shape_cast %1296 : vector<8xf32> to vector<8x1xf32>
    %1298 = tpu.reciprocal %1297 {approx = true} : vector<8x1xf32> -> vector<8x1xf32>
    %1299 = vector.extract_strided_slice %1278 {offsets = [0, 16], sizes = [8, 8], strides = [1, 1]} : vector<8x32xf32> to vector<8x8xf32>
    %1300 = vector.broadcast %1298 : vector<8x1xf32> to vector<8x8xf32>
    %1301 = arith.mulf %1299, %1300 : vector<8x8xf32>
    %c0_701 = arith.constant 0 : index
    %c16_702 = arith.constant 16 : index
    %1302 = vector.load %arg25[%c0_701, %c16_702] : memref<8x32xf32, #tpu.memory_space<vmem>>, vector<8x8xf32>
    tpu.vector_store %arg25[%c0_701, %c16_702], %1301 {strides = array<i32>} : memref<8x32xf32, #tpu.memory_space<vmem>>, vector<8x8xf32>,
    %1303 = vector.extract_strided_slice %1275 {offsets = [0, 72], sizes = [8, 24], strides = [1, 1]} : vector<8x96xf32> to vector<8x24xf32>
    %cst_703 = arith.constant dense<0.000000e+00> : vector<8xf32>
    %1304 = vector.multi_reduction <add>, %1303, %cst_703 [1] : vector<8x24xf32> to vector<8xf32>
    %1305 = vector.shape_cast %1304 : vector<8xf32> to vector<8x1xf32>
    %1306 = tpu.reciprocal %1305 {approx = true} : vector<8x1xf32> -> vector<8x1xf32>
    %1307 = vector.extract_strided_slice %1278 {offsets = [0, 24], sizes = [8, 8], strides = [1, 1]} : vector<8x32xf32> to vector<8x8xf32>
    %1308 = vector.broadcast %1306 : vector<8x1xf32> to vector<8x8xf32>
    %1309 = arith.mulf %1307, %1308 : vector<8x8xf32>
    %c0_704 = arith.constant 0 : index
    %c24_705 = arith.constant 24 : index
    %1310 = vector.load %arg25[%c0_704, %c24_705] : memref<8x32xf32, #tpu.memory_space<vmem>>, vector<8x8xf32>
    tpu.vector_store %arg25[%c0_704, %c24_705], %1309 {strides = array<i32>} : memref<8x32xf32, #tpu.memory_space<vmem>>, vector<8x8xf32>,
    %c0_706 = arith.constant 0 : index
    %c0_707 = arith.constant 0 : index
    %1311 = vector.load %arg25[%c0_706, %c0_707] : memref<8x32xf32, #tpu.memory_space<vmem>>, vector<8x32xf32>
    %1312 = arith.truncf %1311 : vector<8x32xf32> to vector<8x32xbf16>
    %cst_708 = arith.constant dense<0.000000e+00> : vector<8x32xf32>
    %1313 = tpu.matmul %1312, %1264, %cst_708 {dimension_numbers = #tpu.dot_dimension_numbers<[1], [0], [0], [1], [0, 0, 1, 1], [], []>} : vector<8x32xbf16>, vector<32x32xbf16>, vector<8x32xf32> -> vector<8x32xf32>
    %1314 = vector.broadcast %1225 : vector<1x32xf32> to vector<8x32xf32>
    %1315 = arith.addf %1313, %1314 : vector<8x32xf32>
    %1316 = arith.addf %1221, %1315 : vector<8x32xf32>
    %1317 = vector.extract_strided_slice %1235 {offsets = [0, 0], sizes = [1, 32], strides = [1, 1]} : vector<3x32xf32> to vector<1x32xf32>
    %1318 = vector.extract_strided_slice %1237 {offsets = [0, 0], sizes = [1, 32], strides = [1, 1]} : vector<3x32xf32> to vector<1x32xf32>
    %cst_709 = arith.constant dense<0.000000e+00> : vector<8xf32>
    %1319 = vector.multi_reduction <add>, %1316, %cst_709 [1] : vector<8x32xf32> to vector<8xf32>
    %1320 = vector.shape_cast %1319 : vector<8xf32> to vector<8x1xf32>
    %cst_710 = arith.constant 3.200000e+01 : f32
    %1321 = vector.broadcast %cst_710 : f32 to vector<8x1xf32>
    %1322 = arith.divf %1320, %1321 : vector<8x1xf32>
    %1323 = vector.broadcast %1322 : vector<8x1xf32> to vector<8x32xf32>
    %1324 = arith.subf %1316, %1323 : vector<8x32xf32>
    %1325 = arith.mulf %1324, %1324 : vector<8x32xf32>
    %cst_711 = arith.constant dense<0.000000e+00> : vector<8xf32>
    %1326 = vector.multi_reduction <add>, %1325, %cst_711 [1] : vector<8x32xf32> to vector<8xf32>
    %1327 = vector.shape_cast %1326 : vector<8xf32> to vector<8x1xf32>
    %cst_712 = arith.constant 3.200000e+01 : f32
    %1328 = vector.broadcast %cst_712 : f32 to vector<8x1xf32>
    %1329 = arith.divf %1327, %1328 : vector<8x1xf32>
    %cst_713 = arith.constant 9.99999974E-6 : f32
    %1330 = vector.broadcast %cst_713 : f32 to vector<8x1xf32>
    %1331 = arith.addf %1329, %1330 : vector<8x1xf32>
    %1332 = math.rsqrt %1331 : vector<8x1xf32>
    %1333 = vector.broadcast %1332 : vector<8x1xf32> to vector<8x32xf32>
    %1334 = arith.mulf %1324, %1333 : vector<8x32xf32>
    %1335 = vector.broadcast %1317 : vector<1x32xf32> to vector<8x32xf32>
    %1336 = arith.mulf %1334, %1335 : vector<8x32xf32>
    %1337 = vector.broadcast %1318 : vector<1x32xf32> to vector<8x32xf32>
    %1338 = arith.addf %1336, %1337 : vector<8x32xf32>
    %1339 = arith.truncf %1338 : vector<8x32xf32> to vector<8x32xbf16>
    %c1_714 = arith.constant 1 : index
    %c0_715 = arith.constant 0 : index
    %c0_716 = arith.constant 0 : index
    %1340 = vector.load %arg12[%c1_714, %c0_715, %c0_716] : memref<2x32x32xbf16, #tpu.memory_space<vmem>>, vector<1x32x32xbf16>
    %1341 = vector.shape_cast %1340 : vector<1x32x32xbf16> to vector<32x32xbf16>
    %cst_717 = arith.constant dense<0.000000e+00> : vector<8x32xf32>
    %1342 = tpu.matmul %1339, %1341, %cst_717 {dimension_numbers = #tpu.dot_dimension_numbers<[1], [0], [0], [1], [0, 0, 1, 1], [], []>} : vector<8x32xbf16>, vector<32x32xbf16>, vector<8x32xf32> -> vector<8x32xf32>
    %1343 = vector.broadcast %1227 : vector<1x32xf32> to vector<8x32xf32>
    %1344 = arith.addf %1342, %1343 : vector<8x32xf32>
    %c1_718 = arith.constant 1 : index
    %c0_719 = arith.constant 0 : index
    %c0_720 = arith.constant 0 : index
    %1345 = vector.load %arg6[%c1_718, %c0_719, %c0_720] : memref<2x32x32xbf16, #tpu.memory_space<vmem>>, vector<1x32x32xbf16>
    %1346 = vector.shape_cast %1345 : vector<1x32x32xbf16> to vector<32x32xbf16>
    %c1_721 = arith.constant 1 : index
    %c0_722 = arith.constant 0 : index
    %c0_723 = arith.constant 0 : index
    %1347 = vector.load %arg7[%c1_721, %c0_722, %c0_723] : memref<2x32x32xbf16, #tpu.memory_space<vmem>>, vector<1x32x32xbf16>
    %1348 = vector.shape_cast %1347 : vector<1x32x32xbf16> to vector<32x32xbf16>
    %c1_724 = arith.constant 1 : index
    %c0_725 = arith.constant 0 : index
    %c0_726 = arith.constant 0 : index
    %1349 = vector.load %arg14[%c1_724, %c0_725, %c0_726] : memref<2x32x32xbf16, #tpu.memory_space<vmem>>, vector<1x32x32xbf16>
    %1350 = vector.shape_cast %1349 : vector<1x32x32xbf16> to vector<32x32xbf16>
    %1351 = arith.truncf %1344 : vector<8x32xf32> to vector<8x32xbf16>
    %cst_727 = arith.constant dense<0.000000e+00> : vector<8x32xf32>
    %1352 = tpu.matmul %1351, %1346, %cst_727 {dimension_numbers = #tpu.dot_dimension_numbers<[1], [1], [0], [0], [0, 0, 1, 0], [], []>} : vector<8x32xbf16>, vector<32x32xbf16>, vector<8x32xf32> -> vector<8x32xf32>
    %cst_728 = arith.constant 0.353553385 : f32
    %1353 = vector.broadcast %cst_728 : f32 to vector<8x32xf32>
    %1354 = arith.mulf %1352, %1353 : vector<8x32xf32>
    %1355 = arith.addf %1354, %2 : vector<8x32xf32>
    %cst_729 = arith.constant dense<0xFF800000> : vector<8xf32>
    %1356 = vector.multi_reduction <maximumf>, %1355, %cst_729 [1] : vector<8x32xf32> to vector<8xf32>
    %1357 = vector.shape_cast %1356 : vector<8xf32> to vector<8x1xf32>
    %1358 = vector.broadcast %1357 : vector<8x1xf32> to vector<8x32xf32>
    %1359 = arith.subf %1355, %1358 : vector<8x32xf32>
    %1360 = math.exp %1359 : vector<8x32xf32>
    %1361 = arith.truncf %1360 : vector<8x32xf32> to vector<8x32xbf16>
    %cst_730 = arith.constant dense<0.000000e+00> : vector<8x32xf32>
    %1362 = tpu.matmul %1361, %1348, %cst_730 {dimension_numbers = #tpu.dot_dimension_numbers<[1], [0], [0], [1], [0, 0, 1, 1], [], []>} : vector<8x32xbf16>, vector<32x32xbf16>, vector<8x32xf32> -> vector<8x32xf32>
    %1363 = vector.extract_strided_slice %1360 {offsets = [0, 0], sizes = [8, 8], strides = [1, 1]} : vector<8x32xf32> to vector<8x8xf32>
    %cst_731 = arith.constant dense<0.000000e+00> : vector<8xf32>
    %1364 = vector.multi_reduction <add>, %1363, %cst_731 [1] : vector<8x8xf32> to vector<8xf32>
    %1365 = vector.shape_cast %1364 : vector<8xf32> to vector<8x1xf32>
    %1366 = tpu.reciprocal %1365 {approx = true} : vector<8x1xf32> -> vector<8x1xf32>
    %1367 = vector.extract_strided_slice %1362 {offsets = [0, 0], sizes = [8, 8], strides = [1, 1]} : vector<8x32xf32> to vector<8x8xf32>
    %1368 = vector.broadcast %1366 : vector<8x1xf32> to vector<8x8xf32>
    %1369 = arith.mulf %1367, %1368 : vector<8x8xf32>
    %c0_732 = arith.constant 0 : index
    %c0_733 = arith.constant 0 : index
    %1370 = vector.load %arg25[%c0_732, %c0_733] : memref<8x32xf32, #tpu.memory_space<vmem>>, vector<8x8xf32>
    tpu.vector_store %arg25[%c0_732, %c0_733], %1369 {strides = array<i32>} : memref<8x32xf32, #tpu.memory_space<vmem>>, vector<8x8xf32>,
    %1371 = vector.extract_strided_slice %1360 {offsets = [0, 8], sizes = [8, 8], strides = [1, 1]} : vector<8x32xf32> to vector<8x8xf32>
    %cst_734 = arith.constant dense<0.000000e+00> : vector<8xf32>
    %1372 = vector.multi_reduction <add>, %1371, %cst_734 [1] : vector<8x8xf32> to vector<8xf32>
    %1373 = vector.shape_cast %1372 : vector<8xf32> to vector<8x1xf32>
    %1374 = tpu.reciprocal %1373 {approx = true} : vector<8x1xf32> -> vector<8x1xf32>
    %1375 = vector.extract_strided_slice %1362 {offsets = [0, 8], sizes = [8, 8], strides = [1, 1]} : vector<8x32xf32> to vector<8x8xf32>
    %1376 = vector.broadcast %1374 : vector<8x1xf32> to vector<8x8xf32>
    %1377 = arith.mulf %1375, %1376 : vector<8x8xf32>
    %c0_735 = arith.constant 0 : index
    %c8_736 = arith.constant 8 : index
    %1378 = vector.load %arg25[%c0_735, %c8_736] : memref<8x32xf32, #tpu.memory_space<vmem>>, vector<8x8xf32>
    tpu.vector_store %arg25[%c0_735, %c8_736], %1377 {strides = array<i32>} : memref<8x32xf32, #tpu.memory_space<vmem>>, vector<8x8xf32>,
    %1379 = vector.extract_strided_slice %1360 {offsets = [0, 16], sizes = [8, 8], strides = [1, 1]} : vector<8x32xf32> to vector<8x8xf32>
    %cst_737 = arith.constant dense<0.000000e+00> : vector<8xf32>
    %1380 = vector.multi_reduction <add>, %1379, %cst_737 [1] : vector<8x8xf32> to vector<8xf32>
    %1381 = vector.shape_cast %1380 : vector<8xf32> to vector<8x1xf32>
    %1382 = tpu.reciprocal %1381 {approx = true} : vector<8x1xf32> -> vector<8x1xf32>
    %1383 = vector.extract_strided_slice %1362 {offsets = [0, 16], sizes = [8, 8], strides = [1, 1]} : vector<8x32xf32> to vector<8x8xf32>
    %1384 = vector.broadcast %1382 : vector<8x1xf32> to vector<8x8xf32>
    %1385 = arith.mulf %1383, %1384 : vector<8x8xf32>
    %c0_738 = arith.constant 0 : index
    %c16_739 = arith.constant 16 : index
    %1386 = vector.load %arg25[%c0_738, %c16_739] : memref<8x32xf32, #tpu.memory_space<vmem>>, vector<8x8xf32>
    tpu.vector_store %arg25[%c0_738, %c16_739], %1385 {strides = array<i32>} : memref<8x32xf32, #tpu.memory_space<vmem>>, vector<8x8xf32>,
    %1387 = vector.extract_strided_slice %1360 {offsets = [0, 24], sizes = [8, 8], strides = [1, 1]} : vector<8x32xf32> to vector<8x8xf32>
    %cst_740 = arith.constant dense<0.000000e+00> : vector<8xf32>
    %1388 = vector.multi_reduction <add>, %1387, %cst_740 [1] : vector<8x8xf32> to vector<8xf32>
    %1389 = vector.shape_cast %1388 : vector<8xf32> to vector<8x1xf32>
    %1390 = tpu.reciprocal %1389 {approx = true} : vector<8x1xf32> -> vector<8x1xf32>
    %1391 = vector.extract_strided_slice %1362 {offsets = [0, 24], sizes = [8, 8], strides = [1, 1]} : vector<8x32xf32> to vector<8x8xf32>
    %1392 = vector.broadcast %1390 : vector<8x1xf32> to vector<8x8xf32>
    %1393 = arith.mulf %1391, %1392 : vector<8x8xf32>
    %c0_741 = arith.constant 0 : index
    %c24_742 = arith.constant 24 : index
    %1394 = vector.load %arg25[%c0_741, %c24_742] : memref<8x32xf32, #tpu.memory_space<vmem>>, vector<8x8xf32>
    tpu.vector_store %arg25[%c0_741, %c24_742], %1393 {strides = array<i32>} : memref<8x32xf32, #tpu.memory_space<vmem>>, vector<8x8xf32>,
    %c0_743 = arith.constant 0 : index
    %c0_744 = arith.constant 0 : index
    %1395 = vector.load %arg25[%c0_743, %c0_744] : memref<8x32xf32, #tpu.memory_space<vmem>>, vector<8x32xf32>
    %1396 = arith.truncf %1395 : vector<8x32xf32> to vector<8x32xbf16>
    %cst_745 = arith.constant dense<0.000000e+00> : vector<8x32xf32>
    %1397 = tpu.matmul %1396, %1350, %cst_745 {dimension_numbers = #tpu.dot_dimension_numbers<[1], [0], [0], [1], [0, 0, 1, 1], [], []>} : vector<8x32xbf16>, vector<32x32xbf16>, vector<8x32xf32> -> vector<8x32xf32>
    %1398 = vector.broadcast %1229 : vector<1x32xf32> to vector<8x32xf32>
    %1399 = arith.addf %1397, %1398 : vector<8x32xf32>
    %1400 = arith.addf %1338, %1399 : vector<8x32xf32>
    %1401 = vector.extract_strided_slice %1235 {offsets = [1, 0], sizes = [1, 32], strides = [1, 1]} : vector<3x32xf32> to vector<1x32xf32>
    %1402 = vector.extract_strided_slice %1237 {offsets = [1, 0], sizes = [1, 32], strides = [1, 1]} : vector<3x32xf32> to vector<1x32xf32>
    %cst_746 = arith.constant dense<0.000000e+00> : vector<8xf32>
    %1403 = vector.multi_reduction <add>, %1400, %cst_746 [1] : vector<8x32xf32> to vector<8xf32>
    %1404 = vector.shape_cast %1403 : vector<8xf32> to vector<8x1xf32>
    %cst_747 = arith.constant 3.200000e+01 : f32
    %1405 = vector.broadcast %cst_747 : f32 to vector<8x1xf32>
    %1406 = arith.divf %1404, %1405 : vector<8x1xf32>
    %1407 = vector.broadcast %1406 : vector<8x1xf32> to vector<8x32xf32>
    %1408 = arith.subf %1400, %1407 : vector<8x32xf32>
    %1409 = arith.mulf %1408, %1408 : vector<8x32xf32>
    %cst_748 = arith.constant dense<0.000000e+00> : vector<8xf32>
    %1410 = vector.multi_reduction <add>, %1409, %cst_748 [1] : vector<8x32xf32> to vector<8xf32>
    %1411 = vector.shape_cast %1410 : vector<8xf32> to vector<8x1xf32>
    %cst_749 = arith.constant 3.200000e+01 : f32
    %1412 = vector.broadcast %cst_749 : f32 to vector<8x1xf32>
    %1413 = arith.divf %1411, %1412 : vector<8x1xf32>
    %cst_750 = arith.constant 9.99999974E-6 : f32
    %1414 = vector.broadcast %cst_750 : f32 to vector<8x1xf32>
    %1415 = arith.addf %1413, %1414 : vector<8x1xf32>
    %1416 = math.rsqrt %1415 : vector<8x1xf32>
    %1417 = vector.broadcast %1416 : vector<8x1xf32> to vector<8x32xf32>
    %1418 = arith.mulf %1408, %1417 : vector<8x32xf32>
    %1419 = vector.broadcast %1401 : vector<1x32xf32> to vector<8x32xf32>
    %1420 = arith.mulf %1418, %1419 : vector<8x32xf32>
    %1421 = vector.broadcast %1402 : vector<1x32xf32> to vector<8x32xf32>
    %1422 = arith.addf %1420, %1421 : vector<8x32xf32>
    %1423 = arith.truncf %1422 : vector<8x32xf32> to vector<8x32xbf16>
    %c1_751 = arith.constant 1 : index
    %c0_752 = arith.constant 0 : index
    %c0_753 = arith.constant 0 : index
    %1424 = vector.load %arg16[%c1_751, %c0_752, %c0_753] : memref<2x32x64xbf16, #tpu.memory_space<vmem>>, vector<1x32x64xbf16>
    %1425 = vector.shape_cast %1424 : vector<1x32x64xbf16> to vector<32x64xbf16>
    %cst_754 = arith.constant dense<0.000000e+00> : vector<8x64xf32>
    %1426 = tpu.matmul %1423, %1425, %cst_754 {dimension_numbers = #tpu.dot_dimension_numbers<[1], [0], [0], [1], [0, 0, 1, 1], [], []>} : vector<8x32xbf16>, vector<32x64xbf16>, vector<8x64xf32> -> vector<8x64xf32>
    %1427 = vector.broadcast %1231 : vector<1x64xf32> to vector<8x64xf32>
    %1428 = arith.addf %1426, %1427 : vector<8x64xf32>
    %cst_755 = arith.constant 0.000000e+00 : f32
    %1429 = vector.broadcast %cst_755 : f32 to vector<8x64xf32>
    %1430 = arith.maximumf %1428, %1429 : vector<8x64xf32>
    %1431 = arith.truncf %1430 : vector<8x64xf32> to vector<8x64xbf16>
    %c1_756 = arith.constant 1 : index
    %c0_757 = arith.constant 0 : index
    %c0_758 = arith.constant 0 : index
    %1432 = vector.load %arg18[%c1_756, %c0_757, %c0_758] : memref<2x64x32xbf16, #tpu.memory_space<vmem>>, vector<1x64x32xbf16>
    %1433 = vector.shape_cast %1432 : vector<1x64x32xbf16> to vector<64x32xbf16>
    %cst_759 = arith.constant dense<0.000000e+00> : vector<8x32xf32>
    %1434 = tpu.matmul %1431, %1433, %cst_759 {dimension_numbers = #tpu.dot_dimension_numbers<[1], [0], [0], [1], [0, 0, 1, 1], [], []>} : vector<8x64xbf16>, vector<64x32xbf16>, vector<8x32xf32> -> vector<8x32xf32>
    %1435 = vector.broadcast %1233 : vector<1x32xf32> to vector<8x32xf32>
    %1436 = arith.addf %1434, %1435 : vector<8x32xf32>
    %1437 = arith.addf %1422, %1436 : vector<8x32xf32>
    %1438 = vector.extract_strided_slice %1235 {offsets = [2, 0], sizes = [1, 32], strides = [1, 1]} : vector<3x32xf32> to vector<1x32xf32>
    %1439 = vector.extract_strided_slice %1237 {offsets = [2, 0], sizes = [1, 32], strides = [1, 1]} : vector<3x32xf32> to vector<1x32xf32>
    %cst_760 = arith.constant dense<0.000000e+00> : vector<8xf32>
    %1440 = vector.multi_reduction <add>, %1437, %cst_760 [1] : vector<8x32xf32> to vector<8xf32>
    %1441 = vector.shape_cast %1440 : vector<8xf32> to vector<8x1xf32>
    %cst_761 = arith.constant 3.200000e+01 : f32
    %1442 = vector.broadcast %cst_761 : f32 to vector<8x1xf32>
    %1443 = arith.divf %1441, %1442 : vector<8x1xf32>
    %1444 = vector.broadcast %1443 : vector<8x1xf32> to vector<8x32xf32>
    %1445 = arith.subf %1437, %1444 : vector<8x32xf32>
    %1446 = arith.mulf %1445, %1445 : vector<8x32xf32>
    %cst_762 = arith.constant dense<0.000000e+00> : vector<8xf32>
    %1447 = vector.multi_reduction <add>, %1446, %cst_762 [1] : vector<8x32xf32> to vector<8xf32>
    %1448 = vector.shape_cast %1447 : vector<8xf32> to vector<8x1xf32>
    %cst_763 = arith.constant 3.200000e+01 : f32
    %1449 = vector.broadcast %cst_763 : f32 to vector<8x1xf32>
    %1450 = arith.divf %1448, %1449 : vector<8x1xf32>
    %cst_764 = arith.constant 9.99999974E-6 : f32
    %1451 = vector.broadcast %cst_764 : f32 to vector<8x1xf32>
    %1452 = arith.addf %1450, %1451 : vector<8x1xf32>
    %1453 = math.rsqrt %1452 : vector<8x1xf32>
    %1454 = vector.broadcast %1453 : vector<8x1xf32> to vector<8x32xf32>
    %1455 = arith.mulf %1445, %1454 : vector<8x32xf32>
    %1456 = vector.broadcast %1438 : vector<1x32xf32> to vector<8x32xf32>
    %1457 = arith.mulf %1455, %1456 : vector<8x32xf32>
    %1458 = vector.broadcast %1439 : vector<1x32xf32> to vector<8x32xf32>
    %1459 = arith.addf %1457, %1458 : vector<8x32xf32>
    %c0_765 = arith.constant 0 : index
    %c16_766 = arith.constant 16 : index
    %c0_767 = arith.constant 0 : index
    %1460 = vector.load %arg22[%c0_765, %c16_766, %c0_767] : memref<1x24x32xf32, #tpu.memory_space<vmem>>, vector<1x8x32xf32>
    %1461 = vector.shape_cast %1460 : vector<1x8x32xf32> to vector<8x32xf32>
    %1462 = vector.shape_cast %1459 : vector<8x32xf32> to vector<1x8x32xf32>
    tpu.vector_store %arg22[%c0_765, %c16_766, %c0_767], %1462 {strides = array<i32>} : memref<1x24x32xf32, #tpu.memory_space<vmem>>, vector<1x8x32xf32>,
    return
  }
  func.func @transform_0(%arg0: i32) -> (i32, i32, i32) {
    %c0_i32 = arith.constant 0 : i32
    %c0_i32_0 = arith.constant 0 : i32
    %c0_i32_1 = arith.constant 0 : i32
    return %arg0, %c0_i32, %c0_i32_0 : i32, i32, i32
  }
  func.func @transform_1(%arg0: i32) -> (i32, i32, i32) {
    %c0_i32 = arith.constant 0 : i32
    %c0_i32_0 = arith.constant 0 : i32
    %c0_i32_1 = arith.constant 0 : i32
    %c0_i32_2 = arith.constant 0 : i32
    return %c0_i32, %c0_i32_0, %c0_i32_1 : i32, i32, i32
  }
  func.func @transform_2(%arg0: i32) -> (i32, i32) {
    %c0_i32 = arith.constant 0 : i32
    %c0_i32_0 = arith.constant 0 : i32
    %c0_i32_1 = arith.constant 0 : i32
    return %c0_i32, %c0_i32_0 : i32, i32
  }
  func.func @transform_3(%arg0: i32) -> (i32, i32) {
    %c0_i32 = arith.constant 0 : i32
    %c0_i32_0 = arith.constant 0 : i32
    %c0_i32_1 = arith.constant 0 : i32
    return %c0_i32, %c0_i32_0 : i32, i32
  }
  func.func @transform_4(%arg0: i32) -> (i32, i32) {
    %c0_i32 = arith.constant 0 : i32
    %c0_i32_0 = arith.constant 0 : i32
    %c0_i32_1 = arith.constant 0 : i32
    return %c0_i32, %c0_i32_0 : i32, i32
  }
  func.func @transform_5(%arg0: i32) -> (i32, i32, i32) {
    %c0_i32 = arith.constant 0 : i32
    %c0_i32_0 = arith.constant 0 : i32
    %c0_i32_1 = arith.constant 0 : i32
    %c0_i32_2 = arith.constant 0 : i32
    return %c0_i32, %c0_i32_0, %c0_i32_1 : i32, i32, i32
  }
  func.func @transform_6(%arg0: i32) -> (i32, i32, i32) {
    %c0_i32 = arith.constant 0 : i32
    %c0_i32_0 = arith.constant 0 : i32
    %c0_i32_1 = arith.constant 0 : i32
    %c0_i32_2 = arith.constant 0 : i32
    return %c0_i32, %c0_i32_0, %c0_i32_1 : i32, i32, i32
  }
  func.func @transform_7(%arg0: i32) -> (i32, i32, i32) {
    %c0_i32 = arith.constant 0 : i32
    %c0_i32_0 = arith.constant 0 : i32
    %c0_i32_1 = arith.constant 0 : i32
    %c0_i32_2 = arith.constant 0 : i32
    return %c0_i32, %c0_i32_0, %c0_i32_1 : i32, i32, i32
  }
  func.func @transform_8(%arg0: i32) -> (i32, i32, i32) {
    %c0_i32 = arith.constant 0 : i32
    %c0_i32_0 = arith.constant 0 : i32
    %c0_i32_1 = arith.constant 0 : i32
    %c0_i32_2 = arith.constant 0 : i32
    return %c0_i32, %c0_i32_0, %c0_i32_1 : i32, i32, i32
  }
  func.func @transform_9(%arg0: i32) -> (i32, i32, i32) {
    %c0_i32 = arith.constant 0 : i32
    %c0_i32_0 = arith.constant 0 : i32
    %c0_i32_1 = arith.constant 0 : i32
    %c0_i32_2 = arith.constant 0 : i32
    return %c0_i32, %c0_i32_0, %c0_i32_1 : i32, i32, i32
  }
  func.func @transform_10(%arg0: i32) -> (i32, i32, i32) {
    %c0_i32 = arith.constant 0 : i32
    %c0_i32_0 = arith.constant 0 : i32
    %c0_i32_1 = arith.constant 0 : i32
    %c0_i32_2 = arith.constant 0 : i32
    return %c0_i32, %c0_i32_0, %c0_i32_1 : i32, i32, i32
  }
  func.func @transform_11(%arg0: i32) -> (i32, i32, i32) {
    %c0_i32 = arith.constant 0 : i32
    %c0_i32_0 = arith.constant 0 : i32
    %c0_i32_1 = arith.constant 0 : i32
    %c0_i32_2 = arith.constant 0 : i32
    return %c0_i32, %c0_i32_0, %c0_i32_1 : i32, i32, i32
  }
  func.func @transform_12(%arg0: i32) -> (i32, i32, i32) {
    %c0_i32 = arith.constant 0 : i32
    %c0_i32_0 = arith.constant 0 : i32
    %c0_i32_1 = arith.constant 0 : i32
    %c0_i32_2 = arith.constant 0 : i32
    return %c0_i32, %c0_i32_0, %c0_i32_1 : i32, i32, i32
  }
  func.func @transform_13(%arg0: i32) -> (i32, i32, i32) {
    %c0_i32 = arith.constant 0 : i32
    %c0_i32_0 = arith.constant 0 : i32
    %c0_i32_1 = arith.constant 0 : i32
    %c0_i32_2 = arith.constant 0 : i32
    return %c0_i32, %c0_i32_0, %c0_i32_1 : i32, i32, i32
  }
  func.func @transform_14(%arg0: i32) -> (i32, i32, i32) {
    %c0_i32 = arith.constant 0 : i32
    %c0_i32_0 = arith.constant 0 : i32
    %c0_i32_1 = arith.constant 0 : i32
    %c0_i32_2 = arith.constant 0 : i32
    return %c0_i32, %c0_i32_0, %c0_i32_1 : i32, i32, i32
  }
  func.func @transform_15(%arg0: i32) -> (i32, i32, i32) {
    %c0_i32 = arith.constant 0 : i32
    %c0_i32_0 = arith.constant 0 : i32
    %c0_i32_1 = arith.constant 0 : i32
    %c0_i32_2 = arith.constant 0 : i32
    return %c0_i32, %c0_i32_0, %c0_i32_1 : i32, i32, i32
  }
  func.func @transform_16(%arg0: i32) -> (i32, i32, i32) {
    %c0_i32 = arith.constant 0 : i32
    %c0_i32_0 = arith.constant 0 : i32
    %c0_i32_1 = arith.constant 0 : i32
    %c0_i32_2 = arith.constant 0 : i32
    return %c0_i32, %c0_i32_0, %c0_i32_1 : i32, i32, i32
  }
  func.func @transform_17(%arg0: i32) -> (i32, i32, i32) {
    %c0_i32 = arith.constant 0 : i32
    %c0_i32_0 = arith.constant 0 : i32
    %c0_i32_1 = arith.constant 0 : i32
    %c0_i32_2 = arith.constant 0 : i32
    return %c0_i32, %c0_i32_0, %c0_i32_1 : i32, i32, i32
  }
  func.func @transform_18(%arg0: i32) -> (i32, i32, i32) {
    %c0_i32 = arith.constant 0 : i32
    %c0_i32_0 = arith.constant 0 : i32
    %c0_i32_1 = arith.constant 0 : i32
    %c0_i32_2 = arith.constant 0 : i32
    return %c0_i32, %c0_i32_0, %c0_i32_1 : i32, i32, i32
  }
  func.func @transform_19(%arg0: i32) -> (i32, i32, i32) {
    %c0_i32 = arith.constant 0 : i32
    %c0_i32_0 = arith.constant 0 : i32
    %c0_i32_1 = arith.constant 0 : i32
    %c0_i32_2 = arith.constant 0 : i32
    return %c0_i32, %c0_i32_0, %c0_i32_1 : i32, i32, i32
  }
  func.func @transform_20(%arg0: i32) -> (i32, i32, i32) {
    %c0_i32 = arith.constant 0 : i32
    %c0_i32_0 = arith.constant 0 : i32
    %c0_i32_1 = arith.constant 0 : i32
    %c0_i32_2 = arith.constant 0 : i32
    return %c0_i32, %c0_i32_0, %c0_i32_1 : i32, i32, i32
  }
  func.func @transform_21(%arg0: i32) -> (i32, i32, i32) {
    %c0_i32 = arith.constant 0 : i32
    %c0_i32_0 = arith.constant 0 : i32
    %c0_i32_1 = arith.constant 0 : i32
    return %arg0, %c0_i32, %c0_i32_0 : i32, i32, i32
  }
}

</mosaic_0001>

<llo_original>
// kernel: tile.31
$region0: #{tile.31}
  %s0 = inlined_call_operand.vmem [shape: f32[4,2,2], index: 0, kind: input, shape index: {}]
  %s1 = inlined_call_operand.vmem [shape: f32[8,2], index: 1, kind: output, shape index: {}]
  $region1: #{tile.31} parent=0
    #allocation0 [shape = 'u8[4096]{0}', space=vmem, size = 0x1000, scoped, tag = 'scoped mem for output reshape']
    #allocation1 [shape = 'u8[8192]{0}', space=vmem, size = 0x2000, scoped, tag = 'scoped mem for input reshape']
    %s3 = sshllo.u32 0, 4
    %s4 = scalar_lea.vmem %s0, 4
    %v5 = vld [vmem:[%s4] sm:%s3]
    %s6 = scalar_lea.vmem [#allocation1], 8
    %7 = vst [vmem:[%s6] sm:%s3] %v5
    %v8 = vld [vmem:[%s0] sm:%s3]
    %9 = vst [vmem:[#allocation1] sm:%s3] %v8
    %s10 = smov 3
    %v11 = vld [vmem:[#allocation1] ss:$8 sm:%s10]
    %vm12 = vcmask 15360
    %13 = vst.msk [vmem:[#allocation0] sm:$0x3] %vm12, %v11
    %s14 = scalar_lea.vmem [#allocation1], 3
    %s15 = smov 3
    %v16 = vld [vmem:[%s14] ss:$8 sm:%s15]
    %17 = vrot.lane.b32.xlu0 %v16, 6
    %v18 = vpop.permute.xlu0 %17
    %vm19 = vcmask 64560
    %20 = vst.msk [vmem:[#allocation0] sm:$0x3] %vm19, %v18
    %s21 = scalar_lea.vmem [#allocation1], 2
    %s22 = smov 3
    %v23 = vld [vmem:[%s21] ss:$8 sm:%s22]
    %24 = vrot.lane.b32.xlu0 %v23, 4
    %v25 = vpop.permute.xlu0 %24
    %vm26 = vcmask 48160
    %27 = vst.msk [vmem:[#allocation0] sm:$0x3] %vm26, %v25
    %s28 = scalar_lea.vmem [#allocation1], 1
    %s29 = smov 3
    %v30 = vld [vmem:[%s28] ss:$8 sm:%s29]
    %31 = vrot.lane.b32.xlu0 %v30, 2
    %v32 = vpop.permute.xlu0 %31
    %vm33 = vcmask 31760
    %34 = vst.msk [vmem:[#allocation0] sm:$0x3] %vm33, %v32
    %s36 = sshllo.u32 0, 2
    %v38 = vld [vmem:[#allocation0] sm:%s36]
    %s39 = sshllo.u32 0, 2
    %40 = vst [vmem:[%s1] sm:%s39] %v38

// kernel: tile.35
$region0: #{tile.35}
  #allocation0 [shape = 's32[1]{0}', space=sflag, size = 0x4, scoped, tag = 'scoped memory for tile.35']
  %s0 = inlined_call_operand.vmem [shape: f32[2,2], index: 0, kind: input, shape index: {}]
  %s1 = inlined_call_operand.vmem [shape: f32[3,2,3,2], index: 1, kind: output, shape index: {}]
  // Predicated region
  $region2: #{tile.35} parent=0 // pred_check
    _
  $region3: #{tile.35} parent=0 // pred_check_branch
    %3 = sbr.rel (0) target = $region5
  $region4: #{tile.35} parent=0 // pred_region
    _
  $region5: #{tile.35} parent=0 // pred_fallthru
    _
  %v4 = vld [vmem:[%s0] ss:$0 sm:$0xff]
  %5 = vst [vmem:[%s1] sm:$0xf] %v4
  %s6 = scalar_lea.vmem %s1, 8
  %7 = vst [vmem:[%s6] sm:$0xf] %v4
  %s8 = scalar_lea.vmem %s1, 16
  %9 = vst [vmem:[%s8] sm:$0xf] %v4
  %s10 = scalar_lea.vmem %s0, 1
  %v11 = vld [vmem:[%s10] ss:$0 sm:$0xff]
  %s12 = scalar_lea.vmem %s1, 4
  %13 = vst [vmem:[%s12] sm:$0xf] %v11
  %s14 = scalar_lea.vmem %s1, 12
  %15 = vst [vmem:[%s14] sm:$0xf] %v11
  %s16 = scalar_lea.vmem %s1, 20
  %17 = vst [vmem:[%s16] sm:$0xf] %v11

// kernel: tile.36
$region0: #{tile.36}
  %s0 = inlined_call_operand.vmem [shape: f32[3,2,3,2], index: 0, kind: input, shape index: {}]
  %s1 = inlined_call_operand.vmem [shape: f32[6,6], index: 1, kind: output, shape index: {}]
  $region1: #{tile.36} parent=0
    #allocation0 [shape = 'u8[24576]{0}', space=vmem, size = 0x6000, scoped, tag = 'scoped mem for input reshape']
    %s3 = sshllo.u32 0, 4
    %s4 = smul.addr 4, 5
    %s5 = scalar_lea.vmem %s0, %s4
    %v6 = vld [vmem:[%s5] sm:%s3]
    %s7 = scalar_lea.vmem [#allocation0], 40
    %8 = vst [vmem:[%s7] sm:%s3] %v6
    %s9 = smul.addr 4, 4
    %s10 = scalar_lea.vmem %s0, %s9
    %v11 = vld [vmem:[%s10] sm:%s3]
    %s12 = scalar_lea.vmem [#allocation0], 32
    %13 = vst [vmem:[%s12] sm:%s3] %v11
    %s14 = smul.addr 4, 3
    %s15 = scalar_lea.vmem %s0, %s14
    %v16 = vld [vmem:[%s15] sm:%s3]
    %s17 = scalar_lea.vmem [#allocation0], 24
    %18 = vst [vmem:[%s17] sm:%s3] %v16
    %s19 = smul.addr 4, 2
    %s20 = scalar_lea.vmem %s0, %s19
    %v21 = vld [vmem:[%s20] sm:%s3]
    %s22 = scalar_lea.vmem [#allocation0], 16
    %23 = vst [vmem:[%s22] sm:%s3] %v21
    %s24 = scalar_lea.vmem %s0, 4
    %v25 = vld [vmem:[%s24] sm:%s3]
    %s26 = scalar_lea.vmem [#allocation0], 8
    %27 = vst [vmem:[%s26] sm:%s3] %v25
    %v28 = vld [vmem:[%s0] sm:%s3]
    %29 = vst [vmem:[#allocation0] sm:%s3] %v28
    %v30 = vld [vmem:[#allocation0] ss:$8 sm:$0xf]
    %s31 = smov 48
    %v32 = vld [vmem:[#allocation0] ss:$8 sm:%s31]
    %vm33 = vcmask 1045508
    %v34 = vsel %vm33, %v32, %v30
    %vm35 = vcmask 15360
    %36 = vst.msk [vmem:[%s1] sm:$0x3f] %vm35, %v34
    %s37 = scalar_lea.vmem [#allocation0], 2
    %v38 = vld [vmem:[%s37] ss:$8 sm:$0xf]
    %s39 = scalar_lea.vmem [#allocation0], 2
    %s40 = smov 48
    %v41 = vld [vmem:[%s39] ss:$8 sm:%s40]
    %vm42 = vcmask 1045508
    %v43 = vsel %vm42, %v41, %v38
    %44 = vrot.lane.b32.xlu0 %v43, 4
    %v45 = vpop.permute.xlu0 %44
    %vm46 = vcmask 48160
    %47 = vst.msk [vmem:[%s1] sm:$0x3f] %vm46, %v45
    %s48 = scalar_lea.vmem [#allocation0], 1
    %v49 = vld [vmem:[%s48] ss:$8 sm:$0xf]
    %s50 = scalar_lea.vmem [#allocation0], 1
    %s51 = smov 48
    %v52 = vld [vmem:[%s50] ss:$8 sm:%s51]
    %vm53 = vcmask 1045508
    %v54 = vsel %vm53, %v52, %v49
    %55 = vrot.lane.b32.xlu0 %v54, 2
    %v56 = vpop.permute.xlu0 %55
    %vm57 = vcmask 31760
    %58 = vst.msk [vmem:[%s1] sm:$0x3f] %vm57, %v56

// kernel: tile.41
$region0: #{tile.41}
  %s0 = inlined_call_operand.vmem [shape: f32[24,4,24], index: 0, kind: input, shape index: {}]
  %s1 = inlined_call_operand.vmem [shape: f32[24,96], index: 1, kind: output, shape index: {}]
  $region1: #{tile.41} parent=0
    #allocation0 [shape = 'u8[98304]{0}', space=vmem, size = 0x18000, scoped, tag = 'scoped mem for input reshape']
    %s3 = sshllo.u32 0, 4
    %s4 = smul.addr 4, 23
    %s5 = scalar_lea.vmem %s0, %s4
    %v6 = vld [vmem:[%s5] sm:%s3]
    %s7 = scalar_lea.vmem [#allocation0], 184
    %8 = vst [vmem:[%s7] sm:%s3] %v6
    %s9 = smul.addr 4, 22
    %s10 = scalar_lea.vmem %s0, %s9
    %v11 = vld [vmem:[%s10] sm:%s3]
    %s12 = scalar_lea.vmem [#allocation0], 176
    %13 = vst [vmem:[%s12] sm:%s3] %v11
    %s14 = smul.addr 4, 21
    %s15 = scalar_lea.vmem %s0, %s14
    %v16 = vld [vmem:[%s15] sm:%s3]
    %s17 = scalar_lea.vmem [#allocation0], 168
    %18 = vst [vmem:[%s17] sm:%s3] %v16
    %s19 = smul.addr 4, 20
    %s20 = scalar_lea.vmem %s0, %s19
    %v21 = vld [vmem:[%s20] sm:%s3]
    %s22 = scalar_lea.vmem [#allocation0], 160
    %23 = vst [vmem:[%s22] sm:%s3] %v21
    %s24 = smul.addr 4, 19
    %s25 = scalar_lea.vmem %s0, %s24
    %v26 = vld [vmem:[%s25] sm:%s3]
    %s27 = scalar_lea.vmem [#allocation0], 152
    %28 = vst [vmem:[%s27] sm:%s3] %v26
    %s29 = smul.addr 4, 18
    %s30 = scalar_lea.vmem %s0, %s29
    %v31 = vld [vmem:[%s30] sm:%s3]
    %s32 = scalar_lea.vmem [#allocation0], 144
    %33 = vst [vmem:[%s32] sm:%s3] %v31
    %s34 = smul.addr 4, 17
    %s35 = scalar_lea.vmem %s0, %s34
    %v36 = vld [vmem:[%s35] sm:%s3]
    %s37 = scalar_lea.vmem [#allocation0], 136
    %38 = vst [vmem:[%s37] sm:%s3] %v36
    %s39 = smul.addr 4, 16
    %s40 = scalar_lea.vmem %s0, %s39
    %v41 = vld [vmem:[%s40] sm:%s3]
    %s42 = scalar_lea.vmem [#allocation0], 128
    %43 = vst [vmem:[%s42] sm:%s3] %v41
    %s44 = smul.addr 4, 15
    %s45 = scalar_lea.vmem %s0, %s44
    %v46 = vld [vmem:[%s45] sm:%s3]
    %s47 = scalar_lea.vmem [#allocation0], 120
    %48 = vst [vmem:[%s47] sm:%s3] %v46
    %s49 = smul.addr 4, 14
    %s50 = scalar_lea.vmem %s0, %s49
    %v51 = vld [vmem:[%s50] sm:%s3]
    %s52 = scalar_lea.vmem [#allocation0], 112
    %53 = vst [vmem:[%s52] sm:%s3] %v51
    %s54 = smul.addr 4, 13
    %s55 = scalar_lea.vmem %s0, %s54
    %v56 = vld [vmem:[%s55] sm:%s3]
    %s57 = scalar_lea.vmem [#allocation0], 104
    %58 = vst [vmem:[%s57] sm:%s3] %v56
    %s59 = smul.addr 4, 12
    %s60 = scalar_lea.vmem %s0, %s59
    %v61 = vld [vmem:[%s60] sm:%s3]
    %s62 = scalar_lea.vmem [#allocation0], 96
    %63 = vst [vmem:[%s62] sm:%s3] %v61
    %s64 = smul.addr 4, 11
    %s65 = scalar_lea.vmem %s0, %s64
    %v66 = vld [vmem:[%s65] sm:%s3]
    %s67 = scalar_lea.vmem [#allocation0], 88
    %68 = vst [vmem:[%s67] sm:%s3] %v66
    %s69 = smul.addr 4, 10
    %s70 = scalar_lea.vmem %s0, %s69
    %v71 = vld [vmem:[%s70] sm:%s3]
    %s72 = scalar_lea.vmem [#allocation0], 80
    %73 = vst [vmem:[%s72] sm:%s3] %v71
    %s74 = smul.addr 4, 9
    %s75 = scalar_lea.vmem %s0, %s74
    %v76 = vld [vmem:[%s75] sm:%s3]
    %s77 = scalar_lea.vmem [#allocation0], 72
    %78 = vst [vmem:[%s77] sm:%s3] %v76
    %s79 = smul.addr 4, 8
    %s80 = scalar_lea.vmem %s0, %s79
    %v81 = vld [vmem:[%s80] sm:%s3]
    %s82 = scalar_lea.vmem [#allocation0], 64
    %83 = vst [vmem:[%s82] sm:%s3] %v81
    %s84 = smul.addr 4, 7
    %s85 = scalar_lea.vmem %s0, %s84
    %v86 = vld [vmem:[%s85] sm:%s3]
    %s87 = scalar_lea.vmem [#allocation0], 56
    %88 = vst [vmem:[%s87] sm:%s3] %v86
    %s89 = smul.addr 4, 6
    %s90 = scalar_lea.vmem %s0, %s89
    %v91 = vld [vmem:[%s90] sm:%s3]
    %s92 = scalar_lea.vmem [#allocation0], 48
    %93 = vst [vmem:[%s92] sm:%s3] %v91
    %s94 = smul.addr 4, 5
    %s95 = scalar_lea.vmem %s0, %s94
    %v96 = vld [vmem:[%s95] sm:%s3]
    %s97 = scalar_lea.vmem [#allocation0], 40
    %98 = vst [vmem:[%s97] sm:%s3] %v96
    %s99 = smul.addr 4, 4
    %s100 = scalar_lea.vmem %s0, %s99
    %v101 = vld [vmem:[%s100] sm:%s3]
    %s102 = scalar_lea.vmem [#allocation0], 32
    %103 = vst [vmem:[%s102] sm:%s3] %v101
    %s104 = smul.addr 4, 3
    %s105 = scalar_lea.vmem %s0, %s104
    %v106 = vld [vmem:[%s105] sm:%s3]
    %s107 = scalar_lea.vmem [#allocation0], 24
    %108 = vst [vmem:[%s107] sm:%s3] %v106
    %s109 = smul.addr 4, 2
    %s110 = scalar_lea.vmem %s0, %s109
    %v111 = vld [vmem:[%s110] sm:%s3]
    %s112 = scalar_lea.vmem [#allocation0], 16
    %113 = vst [vmem:[%s112] sm:%s3] %v111
    %s114 = scalar_lea.vmem %s0, 4
    %v115 = vld [vmem:[%s114] sm:%s3]
    %s116 = scalar_lea.vmem [#allocation0], 8
    %117 = vst [vmem:[%s116] sm:%s3] %v115
    %v118 = vld [vmem:[%s0] sm:%s3]
    %119 = vst [vmem:[#allocation0] sm:%s3] %v118
    %v120 = vld [vmem:[#allocation0] ss:$8 sm:$0xf]
    %v121 = vld [vmem:[#allocation0] ss:$8 sm:$0xf0]
    %vm122 = vcmask 1047556
    %v123 = vsel %vm122, %v121, %v120
    %vm124 = vcmask 195584
    %125 = vst.msk [vmem:[%s1] sm:$0xff] %vm124, %v123
    %s126 = scalar_lea.vmem [#allocation0], 64
    %v127 = vld [vmem:[%s126] ss:$8 sm:$0xf]
    %s128 = scalar_lea.vmem [#allocation0], 64
    %v129 = vld [vmem:[%s128] ss:$8 sm:$0xf0]
    %vm130 = vcmask 1047556
    %v131 = vsel %vm130, %v129, %v127
    %vm132 = vcmask 195584
    %s133 = scalar_lea.vmem %s1, 8
    %134 = vst.msk [vmem:[%s133] sm:$0xff] %vm132, %v131
    %s135 = scalar_lea.vmem [#allocation0], 128
    %v136 = vld [vmem:[%s135] ss:$8 sm:$0xf]
    %s137 = scalar_lea.vmem [#allocation0], 128
    %v138 = vld [vmem:[%s137] ss:$8 sm:$0xf0]
    %vm139 = vcmask 1047556
    %v140 = vsel %vm139, %v138, %v136
    %vm141 = vcmask 195584
    %s142 = scalar_lea.vmem %s1, 16
    %143 = vst.msk [vmem:[%s142] sm:$0xff] %vm141, %v140
    %s144 = scalar_lea.vmem [#allocation0], 3
    %v145 = vld [vmem:[%s144] ss:$8 sm:$0xf]
    %s146 = scalar_lea.vmem [#allocation0], 3
    %v147 = vld [vmem:[%s146] ss:$8 sm:$0xf0]
    %vm148 = vcmask 1047556
    %v149 = vsel %vm148, %v147, %v145
    %150 = vrot.lane.b32.xlu0 %v149, 72
    %v151 = vpop.permute.xlu0 %150
    %vm152 = vcmask 785984
    %153 = vst.msk [vmem:[%s1] sm:$0xff] %vm152, %v151
    %s154 = scalar_lea.vmem [#allocation0], 67
    %v155 = vld [vmem:[%s154] ss:$8 sm:$0xf]
    %s156 = scalar_lea.vmem [#allocation0], 67
    %v157 = vld [vmem:[%s156] ss:$8 sm:$0xf0]
    %vm158 = vcmask 1047556
    %v159 = vsel %vm158, %v157, %v155
    %160 = vrot.lane.b32.xlu0 %v159, 72
    %v161 = vpop.permute.xlu0 %160
    %vm162 = vcmask 785984
    %s163 = scalar_lea.vmem %s1, 8
    %164 = vst.msk [vmem:[%s163] sm:$0xff] %vm162, %v161
    %s165 = scalar_lea.vmem [#allocation0], 131
    %v166 = vld [vmem:[%s165] ss:$8 sm:$0xf]
    %s167 = scalar_lea.vmem [#allocation0], 131
    %v168 = vld [vmem:[%s167] ss:$8 sm:$0xf0]
    %vm169 = vcmask 1047556
    %v170 = vsel %vm169, %v168, %v166
    %171 = vrot.lane.b32.xlu0 %v170, 72
    %v172 = vpop.permute.xlu0 %171
    %vm173 = vcmask 785984
    %s174 = scalar_lea.vmem %s1, 16
    %175 = vst.msk [vmem:[%s174] sm:$0xff] %vm173, %v172
    %s176 = scalar_lea.vmem [#allocation0], 2
    %v177 = vld [vmem:[%s176] ss:$8 sm:$0xf]
    %s178 = scalar_lea.vmem [#allocation0], 2
    %v179 = vld [vmem:[%s178] ss:$8 sm:$0xf0]
    %vm180 = vcmask 1047556
    %v181 = vsel %vm180, %v179, %v177
    %182 = vrot.lane.b32.xlu0 %v181, 48
    %v183 = vpop.permute.xlu0 %182
    %vm184 = vcmask 589184
    %185 = vst.msk [vmem:[%s1] sm:$0xff] %vm184, %v183
    %s186 = scalar_lea.vmem [#allocation0], 66
    %v187 = vld [vmem:[%s186] ss:$8 sm:$0xf]
    %s188 = scalar_lea.vmem [#allocation0], 66
    %v189 = vld [vmem:[%s188] ss:$8 sm:$0xf0]
    %vm190 = vcmask 1047556
    %v191 = vsel %vm190, %v189, %v187
    %192 = vrot.lane.b32.xlu0 %v191, 48
    %v193 = vpop.permute.xlu0 %192
    %vm194 = vcmask 589184
    %s195 = scalar_lea.vmem %s1, 8
    %196 = vst.msk [vmem:[%s195] sm:$0xff] %vm194, %v193
    %s197 = scalar_lea.vmem [#allocation0], 130
    %v198 = vld [vmem:[%s197] ss:$8 sm:$0xf]
    %s199 = scalar_lea.vmem [#allocation0], 130
    %v200 = vld [vmem:[%s199] ss:$8 sm:$0xf0]
    %vm201 = vcmask 1047556
    %v202 = vsel %vm201, %v200, %v198
    %203 = vrot.lane.b32.xlu0 %v202, 48
    %v204 = vpop.permute.xlu0 %203
    %vm205 = vcmask 589184
    %s206 = scalar_lea.vmem %s1, 16
    %207 = vst.msk [vmem:[%s206] sm:$0xff] %vm205, %v204
    %s208 = scalar_lea.vmem [#allocation0], 1
    %v209 = vld [vmem:[%s208] ss:$8 sm:$0xf]
    %s210 = scalar_lea.vmem [#allocation0], 1
    %v211 = vld [vmem:[%s210] ss:$8 sm:$0xf0]
    %vm212 = vcmask 1047556
    %v213 = vsel %vm212, %v211, %v209
    %214 = vrot.lane.b32.xlu0 %v213, 24
    %v215 = vpop.permute.xlu0 %214
    %vm216 = vcmask 392384
    %217 = vst.msk [vmem:[%s1] sm:$0xff] %vm216, %v215
    %s218 = scalar_lea.vmem [#allocation0], 65
    %v219 = vld [vmem:[%s218] ss:$8 sm:$0xf]
    %s220 = scalar_lea.vmem [#allocation0], 65
    %v221 = vld [vmem:[%s220] ss:$8 sm:$0xf0]
    %vm222 = vcmask 1047556
    %v223 = vsel %vm222, %v221, %v219
    %224 = vrot.lane.b32.xlu0 %v223, 24
    %v225 = vpop.permute.xlu0 %224
    %vm226 = vcmask 392384
    %s227 = scalar_lea.vmem %s1, 8
    %228 = vst.msk [vmem:[%s227] sm:$0xff] %vm226, %v225
    %s229 = scalar_lea.vmem [#allocation0], 129
    %v230 = vld [vmem:[%s229] ss:$8 sm:$0xf]
    %s231 = scalar_lea.vmem [#allocation0], 129
    %v232 = vld [vmem:[%s231] ss:$8 sm:$0xf0]
    %vm233 = vcmask 1047556
    %v234 = vsel %vm233, %v232, %v230
    %235 = vrot.lane.b32.xlu0 %v234, 24
    %v236 = vpop.permute.xlu0 %235
    %vm237 = vcmask 392384
    %s238 = scalar_lea.vmem %s1, 16
    %239 = vst.msk [vmem:[%s238] sm:$0xff] %vm237, %v236

// kernel: tile.55
$region0: #{tile.55}
  %s0 = inlined_call_operand.vmem [shape: f32[8,4,8], index: 0, kind: input, shape index: {}]
  %s1 = inlined_call_operand.vmem [shape: f32[8,32], index: 1, kind: output, shape index: {}]
  $region1: #{tile.55} parent=0
    #allocation0 [shape = 'u8[32768]{0}', space=vmem, size = 0x8000, scoped, tag = 'scoped mem for input reshape']
    %s3 = sshllo.u32 0, 4
    %s4 = smul.addr 4, 7
    %s5 = scalar_lea.vmem %s0, %s4
    %v6 = vld [vmem:[%s5] sm:%s3]
    %s7 = scalar_lea.vmem [#allocation0], 56
    %8 = vst [vmem:[%s7] sm:%s3] %v6
    %s9 = smul.addr 4, 6
    %s10 = scalar_lea.vmem %s0, %s9
    %v11 = vld [vmem:[%s10] sm:%s3]
    %s12 = scalar_lea.vmem [#allocation0], 48
    %13 = vst [vmem:[%s12] sm:%s3] %v11
    %s14 = smul.addr 4, 5
    %s15 = scalar_lea.vmem %s0, %s14
    %v16 = vld [vmem:[%s15] sm:%s3]
    %s17 = scalar_lea.vmem [#allocation0], 40
    %18 = vst [vmem:[%s17] sm:%s3] %v16
    %s19 = smul.addr 4, 4
    %s20 = scalar_lea.vmem %s0, %s19
    %v21 = vld [vmem:[%s20] sm:%s3]
    %s22 = scalar_lea.vmem [#allocation0], 32
    %23 = vst [vmem:[%s22] sm:%s3] %v21
    %s24 = smul.addr 4, 3
    %s25 = scalar_lea.vmem %s0, %s24
    %v26 = vld [vmem:[%s25] sm:%s3]
    %s27 = scalar_lea.vmem [#allocation0], 24
    %28 = vst [vmem:[%s27] sm:%s3] %v26
    %s29 = smul.addr 4, 2
    %s30 = scalar_lea.vmem %s0, %s29
    %v31 = vld [vmem:[%s30] sm:%s3]
    %s32 = scalar_lea.vmem [#allocation0], 16
    %33 = vst [vmem:[%s32] sm:%s3] %v31
    %s34 = scalar_lea.vmem %s0, 4
    %v35 = vld [vmem:[%s34] sm:%s3]
    %s36 = scalar_lea.vmem [#allocation0], 8
    %37 = vst [vmem:[%s36] sm:%s3] %v35
    %v38 = vld [vmem:[%s0] sm:%s3]
    %39 = vst [vmem:[#allocation0] sm:%s3] %v38
    %v40 = vld [vmem:[#allocation0] ss:$8 sm:$0xf]
    %v41 = vld [vmem:[#allocation0] ss:$8 sm:$0xf0]
    %vm42 = vcmask 1047556
    %v43 = vsel %vm42, %v41, %v40
    %vm44 = vcmask 64512
    %45 = vst.msk [vmem:[%s1] sm:$0xff] %vm44, %v43
    %s46 = scalar_lea.vmem [#allocation0], 3
    %v47 = vld [vmem:[%s46] ss:$8 sm:$0xf]
    %s48 = scalar_lea.vmem [#allocation0], 3
    %v49 = vld [vmem:[%s48] ss:$8 sm:$0xf0]
    %vm50 = vcmask 1047556
    %v51 = vsel %vm50, %v49, %v47
    %52 = vrot.lane.b32.xlu0 %v51, 24
    %v53 = vpop.permute.xlu0 %52
    %vm54 = vcmask 261312
    %55 = vst.msk [vmem:[%s1] sm:$0xff] %vm54, %v53
    %s56 = scalar_lea.vmem [#allocation0], 2
    %v57 = vld [vmem:[%s56] ss:$8 sm:$0xf]
    %s58 = scalar_lea.vmem [#allocation0], 2
    %v59 = vld [vmem:[%s58] ss:$8 sm:$0xf0]
    %vm60 = vcmask 1047556
    %v61 = vsel %vm60, %v59, %v57
    %62 = vrot.lane.b32.xlu0 %v61, 16
    %v63 = vpop.permute.xlu0 %62
    %vm64 = vcmask 195712
    %65 = vst.msk [vmem:[%s1] sm:$0xff] %vm64, %v63
    %s66 = scalar_lea.vmem [#allocation0], 1
    %v67 = vld [vmem:[%s66] ss:$8 sm:$0xf]
    %s68 = scalar_lea.vmem [#allocation0], 1
    %v69 = vld [vmem:[%s68] ss:$8 sm:$0xf0]
    %vm70 = vcmask 1047556
    %v71 = vsel %vm70, %v69, %v67
    %72 = vrot.lane.b32.xlu0 %v71, 8
    %v73 = vpop.permute.xlu0 %72
    %vm74 = vcmask 130112
    %75 = vst.msk [vmem:[%s1] sm:$0xff] %vm74, %v73

// kernel: _lambda_.1
$region0: #{_lambda_.1}
  #allocation0 [shape = 'u32[]', space=smem, size = 0x4, offset = 0x4, fixed_abs, tag = 'smem constant byte address 0x4 - core index']
  #allocation1 [shape = 'u32[144,128]{1,0:T(1,128)}', space=vmem, size = 0x12000, scoped, tag = 'internal scratch']
  #allocation2 [shape = 'f32[192,32]{1,0:T(8,128)}', space=vmem, size = 0x18000, scoped, tag = 'scratch operand']
  #allocation3 [shape = 'f32[192,32]{1,0:T(8,128)}', space=vmem, size = 0x18000, scoped, tag = 'scratch operand']
  #allocation4 [shape = 'f32[8,32]{1,0:T(8,128)}', space=vmem, size = 0x1000, scoped, tag = 'scratch operand']
  %s0 = inlined_call_operand.vmem [shape: f32[2,8,32], index: 0, kind: input, shape index: {}]
  %s1 = inlined_call_operand.vmem [shape: f32[3,8,32], index: 1, kind: input, shape index: {}]
  %s2 = inlined_call_operand.vmem [shape: bf16[32,32], index: 2, kind: input, shape index: {}]
  %s3 = inlined_call_operand.vmem [shape: f32[24,96], index: 3, kind: input, shape index: {}]
  %s4 = inlined_call_operand.vmem [shape: f32[8,32], index: 4, kind: input, shape index: {}]
  %s5 = inlined_call_operand.vmem [shape: bf16[2,32,32], index: 5, kind: input, shape index: {}]
  %s6 = inlined_call_operand.vmem [shape: bf16[2,32,32], index: 6, kind: input, shape index: {}]
  %s7 = inlined_call_operand.vmem [shape: bf16[2,32,96], index: 7, kind: input, shape index: {}]
  %s8 = inlined_call_operand.vmem [shape: f32[2,1,96], index: 8, kind: input, shape index: {}]
  %s9 = inlined_call_operand.vmem [shape: bf16[2,32,32], index: 9, kind: input, shape index: {}]
  %s10 = inlined_call_operand.vmem [shape: f32[2,1,32], index: 10, kind: input, shape index: {}]
  %s11 = inlined_call_operand.vmem [shape: bf16[2,32,32], index: 11, kind: input, shape index: {}]
  %s12 = inlined_call_operand.vmem [shape: f32[2,1,32], index: 12, kind: input, shape index: {}]
  %s13 = inlined_call_operand.vmem [shape: bf16[2,32,32], index: 13, kind: input, shape index: {}]
  %s14 = inlined_call_operand.vmem [shape: f32[2,1,32], index: 14, kind: input, shape index: {}]
  %s15 = inlined_call_operand.vmem [shape: bf16[2,32,64], index: 15, kind: input, shape index: {}]
  %s16 = inlined_call_operand.vmem [shape: f32[2,1,64], index: 16, kind: input, shape index: {}]
  %s17 = inlined_call_operand.vmem [shape: bf16[2,64,32], index: 17, kind: input, shape index: {}]
  %s18 = inlined_call_operand.vmem [shape: f32[2,1,32], index: 18, kind: input, shape index: {}]
  %s19 = inlined_call_operand.vmem [shape: f32[2,3,32], index: 19, kind: input, shape index: {}]
  %s20 = inlined_call_operand.vmem [shape: f32[2,3,32], index: 20, kind: input, shape index: {}]
  %s21 = inlined_call_operand.vmem [shape: f32[2,24,32], index: 21, kind: output, shape index: {}]
  %s22 = sld [smem:[#allocation0]]
  $region117: #{_lambda_.1} parent=0
    _
  %s24 = ssub.s32 1, %s22
  %s25 = scalar_select 0, %s24, %s22
  loop: start=0, step=1, limit=4
  $region2: #{_lambda_.1} parent=0 // loop_pre_header
    _
  $region3: #{_lambda_.1} parent=0 // loop_header
    %s27 = sphi 0, %s31
    %p28 = scmp.ge.s32.totalorder %s27, 4
    %s37 = sphi 0, %s39
    %s40 = sphi 0, %s37
    %s41 = sphi 0, %s40
    %s57 = sphi 0, %s41
    %s61 = sphi 0, %s61
    %s63 = sphi 0, %s61
    %s64 = sphi 0, %s63
    %s78 = sphi 0, %s64
    %s82 = sphi 0, %s82
    %s84 = sphi 0, %s82
    %s85 = sphi 0, %s84
    %s99 = sphi 0, %s85
    %s103 = sphi 0, %s103
    %s105 = sphi 0, %s103
    %s106 = sphi 0, %s105
    %s120 = sphi 0, %s106
    %s124 = sphi 0, %s124
    %s126 = sphi 0, %s124
    %s127 = sphi 0, %s126
    %s141 = sphi 0, %s127
    %s145 = sphi 0, %s145
    %s147 = sphi 0, %s145
    %s148 = sphi 0, %s147
    %s162 = sphi 0, %s148
    %s166 = sphi 0, %s166
    %s168 = sphi 0, %s166
    %s169 = sphi 0, %s168
    %s183 = sphi 0, %s169
    %s187 = sphi 0, %s187
    %s189 = sphi 0, %s187
    %s190 = sphi 0, %s189
    %s204 = sphi 0, %s190
    %s208 = sphi 0, %s208
    %s210 = sphi 0, %s208
    %s211 = sphi 0, %s210
    %s225 = sphi 0, %s211
    %s229 = sphi 0, %s229
    %s231 = sphi 0, %s229
    %s232 = sphi 0, %s231
    %s246 = sphi 0, %s232
    %s250 = sphi 0, %s250
    %s252 = sphi 0, %s250
    %s253 = sphi 0, %s252
    %s267 = sphi 0, %s253
    %s271 = sphi 0, %s271
    %s273 = sphi 0, %s271
    %s274 = sphi 0, %s273
    %s288 = sphi 0, %s274
    %s292 = sphi 0, %s292
    %s294 = sphi 0, %s292
    %s295 = sphi 0, %s294
    %s309 = sphi 0, %s295
    %s313 = sphi 0, %s313
    %s315 = sphi 0, %s313
    %s316 = sphi 0, %s315
    %s330 = sphi 0, %s316
    %s334 = sphi 0, %s334
    %s336 = sphi 0, %s334
    %s337 = sphi 0, %s336
    %s351 = sphi 0, %s337
    %s355 = sphi 0, %s355
    %s357 = sphi 0, %s355
    %s358 = sphi 0, %s357
    %s372 = sphi 0, %s358
    %s376 = sphi 0, %s376
    %s378 = sphi 0, %s376
    %s379 = sphi 0, %s378
    %s393 = sphi 0, %s379
    %s397 = sphi 0, %s397
    %s399 = sphi 0, %s397
    %s400 = sphi 0, %s399
    %s414 = sphi 0, %s400
    %s418 = sphi 0, %s418
    %s420 = sphi 0, %s418
    %s421 = sphi 0, %s420
    %s435 = sphi 0, %s421
    %s439 = sphi 0, %s439
    %s441 = sphi 0, %s439
    %s442 = sphi 0, %s441
    %s456 = sphi 0, %s442
    %s460 = sphi 0, %s460
    %s462 = sphi 0, %s460
    %s463 = sphi 0, %s462
    %s477 = sphi 0, %s463
    %s483 = sphi 0, %s485
    %s486 = sphi 0, %s483
    %s487 = sphi 0, %s486
    %s503 = sphi 0, %s487
  $region4: #{_lambda_.1} parent=0 // loop_header_branch
    %30 = sbr.rel (%p28) target = $region8
  $region5: #{_lambda_.1} parent=0 // loop_body
    %s32 = ssub.s32 %s27, 1
    %s33 = ssub.s32 %s27, 2
    %s34 = sadd.s32 %s27, 1
    %s35 = ssub.s32 %s27, %s34
    %p36 = scmp.eq.s32.totalorder %s35, 0
    %s38 = sadd.s32 %s37, 1
    %s39 = scalar_select %p36, %s37, %s38
    %p42 = pneg %p36
    %p43 = scmp.eq.s32.totalorder %s27, 1
    %p44 = por %p42, %p43
    %p45 = scmp.ne.s32.totalorder %s37, %s40
    %p46 = scmp.eq.s32.totalorder %s27, 0
    %p47 = por %p45, %p46
    %p48 = scmp.ne.s32.totalorder %s37, %s40
    %p49 = scmp.eq.s32.totalorder %s32, 1
    %p50 = por %p48, %p49
    %p51 = scmp.ne.s32.totalorder %s40, %s41
    %p52 = scmp.eq.s32.totalorder %s32, 0
    %p53 = por %p51, %p52
    %p54 = scmp.ne.s32.totalorder %s40, %s41
    %p55 = scmp.eq.s32.totalorder %s33, 1
    %p56 = por %p54, %p55
    %p58 = scmp.ne.s32.totalorder %s41, %s57
    %p59 = scmp.eq.s32.totalorder %s33, 0
    %p60 = por %p58, %p59
    %s62 = sadd.s32 %s61, 1
    %p65 = scmp.eq.s32.totalorder %s27, 1
    %p66 = scmp.ne.s32.totalorder %s61, %s63
    %p67 = scmp.eq.s32.totalorder %s27, 0
    %p68 = por %p66, %p67
    %p69 = scmp.ne.s32.totalorder %s61, %s63
    %p70 = scmp.eq.s32.totalorder %s32, 1
    %p71 = por %p69, %p70
    %p72 = scmp.ne.s32.totalorder %s63, %s64
    %p73 = scmp.eq.s32.totalorder %s32, 0
    %p74 = por %p72, %p73
    %p75 = scmp.ne.s32.totalorder %s63, %s64
    %p76 = scmp.eq.s32.totalorder %s33, 1
    %p77 = por %p75, %p76
    %p79 = scmp.ne.s32.totalorder %s64, %s78
    %p80 = scmp.eq.s32.totalorder %s33, 0
    %p81 = por %p79, %p80
    %s83 = sadd.s32 %s82, 1
    %p86 = scmp.eq.s32.totalorder %s27, 1
    %p87 = scmp.ne.s32.totalorder %s82, %s84
    %p88 = scmp.eq.s32.totalorder %s27, 0
    %p89 = por %p87, %p88
    %p90 = scmp.ne.s32.totalorder %s82, %s84
    %p91 = scmp.eq.s32.totalorder %s32, 1
    %p92 = por %p90, %p91
    %p93 = scmp.ne.s32.totalorder %s84, %s85
    %p94 = scmp.eq.s32.totalorder %s32, 0
    %p95 = por %p93, %p94
    %p96 = scmp.ne.s32.totalorder %s84, %s85
    %p97 = scmp.eq.s32.totalorder %s33, 1
    %p98 = por %p96, %p97
    %p100 = scmp.ne.s32.totalorder %s85, %s99
    %p101 = scmp.eq.s32.totalorder %s33, 0
    %p102 = por %p100, %p101
    %s104 = sadd.s32 %s103, 1
    %p107 = scmp.eq.s32.totalorder %s27, 1
    %p108 = scmp.ne.s32.totalorder %s103, %s105
    %p109 = scmp.eq.s32.totalorder %s27, 0
    %p110 = por %p108, %p109
    %p111 = scmp.ne.s32.totalorder %s103, %s105
    %p112 = scmp.eq.s32.totalorder %s32, 1
    %p113 = por %p111, %p112
    %p114 = scmp.ne.s32.totalorder %s105, %s106
    %p115 = scmp.eq.s32.totalorder %s32, 0
    %p116 = por %p114, %p115
    %p117 = scmp.ne.s32.totalorder %s105, %s106
    %p118 = scmp.eq.s32.totalorder %s33, 1
    %p119 = por %p117, %p118
    %p121 = scmp.ne.s32.totalorder %s106, %s120
    %p122 = scmp.eq.s32.totalorder %s33, 0
    %p123 = por %p121, %p122
    %s125 = sadd.s32 %s124, 1
    %p128 = scmp.eq.s32.totalorder %s27, 1
    %p129 = scmp.ne.s32.totalorder %s124, %s126
    %p130 = scmp.eq.s32.totalorder %s27, 0
    %p131 = por %p129, %p130
    %p132 = scmp.ne.s32.totalorder %s124, %s126
    %p133 = scmp.eq.s32.totalorder %s32, 1
    %p134 = por %p132, %p133
    %p135 = scmp.ne.s32.totalorder %s126, %s127
    %p136 = scmp.eq.s32.totalorder %s32, 0
    %p137 = por %p135, %p136
    %p138 = scmp.ne.s32.totalorder %s126, %s127
    %p139 = scmp.eq.s32.totalorder %s33, 1
    %p140 = por %p138, %p139
    %p142 = scmp.ne.s32.totalorder %s127, %s141
    %p143 = scmp.eq.s32.totalorder %s33, 0
    %p144 = por %p142, %p143
    %s146 = sadd.s32 %s145, 1
    %p149 = scmp.eq.s32.totalorder %s27, 1
    %p150 = scmp.ne.s32.totalorder %s145, %s147
    %p151 = scmp.eq.s32.totalorder %s27, 0
    %p152 = por %p150, %p151
    %p153 = scmp.ne.s32.totalorder %s145, %s147
    %p154 = scmp.eq.s32.totalorder %s32, 1
    %p155 = por %p153, %p154
    %p156 = scmp.ne.s32.totalorder %s147, %s148
    %p157 = scmp.eq.s32.totalorder %s32, 0
    %p158 = por %p156, %p157
    %p159 = scmp.ne.s32.totalorder %s147, %s148
    %p160 = scmp.eq.s32.totalorder %s33, 1
    %p161 = por %p159, %p160
    %p163 = scmp.ne.s32.totalorder %s148, %s162
    %p164 = scmp.eq.s32.totalorder %s33, 0
    %p165 = por %p163, %p164
    %s167 = sadd.s32 %s166, 1
    %p170 = scmp.eq.s32.totalorder %s27, 1
    %p171 = scmp.ne.s32.totalorder %s166, %s168
    %p172 = scmp.eq.s32.totalorder %s27, 0
    %p173 = por %p171, %p172
    %p174 = scmp.ne.s32.totalorder %s166, %s168
    %p175 = scmp.eq.s32.totalorder %s32, 1
    %p176 = por %p174, %p175
    %p177 = scmp.ne.s32.totalorder %s168, %s169
    %p178 = scmp.eq.s32.totalorder %s32, 0
    %p179 = por %p177, %p178
    %p180 = scmp.ne.s32.totalorder %s168, %s169
    %p181 = scmp.eq.s32.totalorder %s33, 1
    %p182 = por %p180, %p181
    %p184 = scmp.ne.s32.totalorder %s169, %s183
    %p185 = scmp.eq.s32.totalorder %s33, 0
    %p186 = por %p184, %p185
    %s188 = sadd.s32 %s187, 1
    %p191 = scmp.eq.s32.totalorder %s27, 1
    %p192 = scmp.ne.s32.totalorder %s187, %s189
    %p193 = scmp.eq.s32.totalorder %s27, 0
    %p194 = por %p192, %p193
    %p195 = scmp.ne.s32.totalorder %s187, %s189
    %p196 = scmp.eq.s32.totalorder %s32, 1
    %p197 = por %p195, %p196
    %p198 = scmp.ne.s32.totalorder %s189, %s190
    %p199 = scmp.eq.s32.totalorder %s32, 0
    %p200 = por %p198, %p199
    %p201 = scmp.ne.s32.totalorder %s189, %s190
    %p202 = scmp.eq.s32.totalorder %s33, 1
    %p203 = por %p201, %p202
    %p205 = scmp.ne.s32.totalorder %s190, %s204
    %p206 = scmp.eq.s32.totalorder %s33, 0
    %p207 = por %p205, %p206
    %s209 = sadd.s32 %s208, 1
    %p212 = scmp.eq.s32.totalorder %s27, 1
    %p213 = scmp.ne.s32.totalorder %s208, %s210
    %p214 = scmp.eq.s32.totalorder %s27, 0
    %p215 = por %p213, %p214
    %p216 = scmp.ne.s32.totalorder %s208, %s210
    %p217 = scmp.eq.s32.totalorder %s32, 1
    %p218 = por %p216, %p217
    %p219 = scmp.ne.s32.totalorder %s210, %s211
    %p220 = scmp.eq.s32.totalorder %s32, 0
    %p221 = por %p219, %p220
    %p222 = scmp.ne.s32.totalorder %s210, %s211
    %p223 = scmp.eq.s32.totalorder %s33, 1
    %p224 = por %p222, %p223
    %p226 = scmp.ne.s32.totalorder %s211, %s225
    %p227 = scmp.eq.s32.totalorder %s33, 0
    %p228 = por %p226, %p227
    %s230 = sadd.s32 %s229, 1
    %p233 = scmp.eq.s32.totalorder %s27, 1
    %p234 = scmp.ne.s32.totalorder %s229, %s231
    %p235 = scmp.eq.s32.totalorder %s27, 0
    %p236 = por %p234, %p235
    %p237 = scmp.ne.s32.totalorder %s229, %s231
    %p238 = scmp.eq.s32.totalorder %s32, 1
    %p239 = por %p237, %p238
    %p240 = scmp.ne.s32.totalorder %s231, %s232
    %p241 = scmp.eq.s32.totalorder %s32, 0
    %p242 = por %p240, %p241
    %p243 = scmp.ne.s32.totalorder %s231, %s232
    %p244 = scmp.eq.s32.totalorder %s33, 1
    %p245 = por %p243, %p244
    %p247 = scmp.ne.s32.totalorder %s232, %s246
    %p248 = scmp.eq.s32.totalorder %s33, 0
    %p249 = por %p247, %p248
    %s251 = sadd.s32 %s250, 1
    %p254 = scmp.eq.s32.totalorder %s27, 1
    %p255 = scmp.ne.s32.totalorder %s250, %s252
    %p256 = scmp.eq.s32.totalorder %s27, 0
    %p257 = por %p255, %p256
    %p258 = scmp.ne.s32.totalorder %s250, %s252
    %p259 = scmp.eq.s32.totalorder %s32, 1
    %p260 = por %p258, %p259
    %p261 = scmp.ne.s32.totalorder %s252, %s253
    %p262 = scmp.eq.s32.totalorder %s32, 0
    %p263 = por %p261, %p262
    %p264 = scmp.ne.s32.totalorder %s252, %s253
    %p265 = scmp.eq.s32.totalorder %s33, 1
    %p266 = por %p264, %p265
    %p268 = scmp.ne.s32.totalorder %s253, %s267
    %p269 = scmp.eq.s32.totalorder %s33, 0
    %p270 = por %p268, %p269
    %s272 = sadd.s32 %s271, 1
    %p275 = scmp.eq.s32.totalorder %s27, 1
    %p276 = scmp.ne.s32.totalorder %s271, %s273
    %p277 = scmp.eq.s32.totalorder %s27, 0
    %p278 = por %p276, %p277
    %p279 = scmp.ne.s32.totalorder %s271, %s273
    %p280 = scmp.eq.s32.totalorder %s32, 1
    %p281 = por %p279, %p280
    %p282 = scmp.ne.s32.totalorder %s273, %s274
    %p283 = scmp.eq.s32.totalorder %s32, 0
    %p284 = por %p282, %p283
    %p285 = scmp.ne.s32.totalorder %s273, %s274
    %p286 = scmp.eq.s32.totalorder %s33, 1
    %p287 = por %p285, %p286
    %p289 = scmp.ne.s32.totalorder %s274, %s288
    %p290 = scmp.eq.s32.totalorder %s33, 0
    %p291 = por %p289, %p290
    %s293 = sadd.s32 %s292, 1
    %p296 = scmp.eq.s32.totalorder %s27, 1
    %p297 = scmp.ne.s32.totalorder %s292, %s294
    %p298 = scmp.eq.s32.totalorder %s27, 0
    %p299 = por %p297, %p298
    %p300 = scmp.ne.s32.totalorder %s292, %s294
    %p301 = scmp.eq.s32.totalorder %s32, 1
    %p302 = por %p300, %p301
    %p303 = scmp.ne.s32.totalorder %s294, %s295
    %p304 = scmp.eq.s32.totalorder %s32, 0
    %p305 = por %p303, %p304
    %p306 = scmp.ne.s32.totalorder %s294, %s295
    %p307 = scmp.eq.s32.totalorder %s33, 1
    %p308 = por %p306, %p307
    %p310 = scmp.ne.s32.totalorder %s295, %s309
    %p311 = scmp.eq.s32.totalorder %s33, 0
    %p312 = por %p310, %p311
    %s314 = sadd.s32 %s313, 1
    %p317 = scmp.eq.s32.totalorder %s27, 1
    %p318 = scmp.ne.s32.totalorder %s313, %s315
    %p319 = scmp.eq.s32.totalorder %s27, 0
    %p320 = por %p318, %p319
    %p321 = scmp.ne.s32.totalorder %s313, %s315
    %p322 = scmp.eq.s32.totalorder %s32, 1
    %p323 = por %p321, %p322
    %p324 = scmp.ne.s32.totalorder %s315, %s316
    %p325 = scmp.eq.s32.totalorder %s32, 0
    %p326 = por %p324, %p325
    %p327 = scmp.ne.s32.totalorder %s315, %s316
    %p328 = scmp.eq.s32.totalorder %s33, 1
    %p329 = por %p327, %p328
    %p331 = scmp.ne.s32.totalorder %s316, %s330
    %p332 = scmp.eq.s32.totalorder %s33, 0
    %p333 = por %p331, %p332
    %s335 = sadd.s32 %s334, 1
    %p338 = scmp.eq.s32.totalorder %s27, 1
    %p339 = scmp.ne.s32.totalorder %s334, %s336
    %p340 = scmp.eq.s32.totalorder %s27, 0
    %p341 = por %p339, %p340
    %p342 = scmp.ne.s32.totalorder %s334, %s336
    %p343 = scmp.eq.s32.totalorder %s32, 1
    %p344 = por %p342, %p343
    %p345 = scmp.ne.s32.totalorder %s336, %s337
    %p346 = scmp.eq.s32.totalorder %s32, 0
    %p347 = por %p345, %p346
    %p348 = scmp.ne.s32.totalorder %s336, %s337
    %p349 = scmp.eq.s32.totalorder %s33, 1
    %p350 = por %p348, %p349
    %p352 = scmp.ne.s32.totalorder %s337, %s351
    %p353 = scmp.eq.s32.totalorder %s33, 0
    %p354 = por %p352, %p353
    %s356 = sadd.s32 %s355, 1
    %p359 = scmp.eq.s32.totalorder %s27, 1
    %p360 = scmp.ne.s32.totalorder %s355, %s357
    %p361 = scmp.eq.s32.totalorder %s27, 0
    %p362 = por %p360, %p361
    %p363 = scmp.ne.s32.totalorder %s355, %s357
    %p364 = scmp.eq.s32.totalorder %s32, 1
    %p365 = por %p363, %p364
    %p366 = scmp.ne.s32.totalorder %s357, %s358
    %p367 = scmp.eq.s32.totalorder %s32, 0
    %p368 = por %p366, %p367
    %p369 = scmp.ne.s32.totalorder %s357, %s358
    %p370 = scmp.eq.s32.totalorder %s33, 1
    %p371 = por %p369, %p370
    %p373 = scmp.ne.s32.totalorder %s358, %s372
    %p374 = scmp.eq.s32.totalorder %s33, 0
    %p375 = por %p373, %p374
    %s377 = sadd.s32 %s376, 1
    %p380 = scmp.eq.s32.totalorder %s27, 1
    %p381 = scmp.ne.s32.totalorder %s376, %s378
    %p382 = scmp.eq.s32.totalorder %s27, 0
    %p383 = por %p381, %p382
    %p384 = scmp.ne.s32.totalorder %s376, %s378
    %p385 = scmp.eq.s32.totalorder %s32, 1
    %p386 = por %p384, %p385
    %p387 = scmp.ne.s32.totalorder %s378, %s379
    %p388 = scmp.eq.s32.totalorder %s32, 0
    %p389 = por %p387, %p388
    %p390 = scmp.ne.s32.totalorder %s378, %s379
    %p391 = scmp.eq.s32.totalorder %s33, 1
    %p392 = por %p390, %p391
    %p394 = scmp.ne.s32.totalorder %s379, %s393
    %p395 = scmp.eq.s32.totalorder %s33, 0
    %p396 = por %p394, %p395
    %s398 = sadd.s32 %s397, 1
    %p401 = scmp.eq.s32.totalorder %s27, 1
    %p402 = scmp.ne.s32.totalorder %s397, %s399
    %p403 = scmp.eq.s32.totalorder %s27, 0
    %p404 = por %p402, %p403
    %p405 = scmp.ne.s32.totalorder %s397, %s399
    %p406 = scmp.eq.s32.totalorder %s32, 1
    %p407 = por %p405, %p406
    %p408 = scmp.ne.s32.totalorder %s399, %s400
    %p409 = scmp.eq.s32.totalorder %s32, 0
    %p410 = por %p408, %p409
    %p411 = scmp.ne.s32.totalorder %s399, %s400
    %p412 = scmp.eq.s32.totalorder %s33, 1
    %p413 = por %p411, %p412
    %p415 = scmp.ne.s32.totalorder %s400, %s414
    %p416 = scmp.eq.s32.totalorder %s33, 0
    %p417 = por %p415, %p416
    %s419 = sadd.s32 %s418, 1
    %p422 = scmp.eq.s32.totalorder %s27, 1
    %p423 = scmp.ne.s32.totalorder %s418, %s420
    %p424 = scmp.eq.s32.totalorder %s27, 0
    %p425 = por %p423, %p424
    %p426 = scmp.ne.s32.totalorder %s418, %s420
    %p427 = scmp.eq.s32.totalorder %s32, 1
    %p428 = por %p426, %p427
    %p429 = scmp.ne.s32.totalorder %s420, %s421
    %p430 = scmp.eq.s32.totalorder %s32, 0
    %p431 = por %p429, %p430
    %p432 = scmp.ne.s32.totalorder %s420, %s421
    %p433 = scmp.eq.s32.totalorder %s33, 1
    %p434 = por %p432, %p433
    %p436 = scmp.ne.s32.totalorder %s421, %s435
    %p437 = scmp.eq.s32.totalorder %s33, 0
    %p438 = por %p436, %p437
    %s440 = sadd.s32 %s439, 1
    %p443 = scmp.eq.s32.totalorder %s27, 1
    %p444 = scmp.ne.s32.totalorder %s439, %s441
    %p445 = scmp.eq.s32.totalorder %s27, 0
    %p446 = por %p444, %p445
    %p447 = scmp.ne.s32.totalorder %s439, %s441
    %p448 = scmp.eq.s32.totalorder %s32, 1
    %p449 = por %p447, %p448
    %p450 = scmp.ne.s32.totalorder %s441, %s442
    %p451 = scmp.eq.s32.totalorder %s32, 0
    %p452 = por %p450, %p451
    %p453 = scmp.ne.s32.totalorder %s441, %s442
    %p454 = scmp.eq.s32.totalorder %s33, 1
    %p455 = por %p453, %p454
    %p457 = scmp.ne.s32.totalorder %s442, %s456
    %p458 = scmp.eq.s32.totalorder %s33, 0
    %p459 = por %p457, %p458
    %s461 = sadd.s32 %s460, 1
    %p464 = scmp.eq.s32.totalorder %s27, 1
    %p465 = scmp.ne.s32.totalorder %s460, %s462
    %p466 = scmp.eq.s32.totalorder %s27, 0
    %p467 = por %p465, %p466
    %p468 = scmp.ne.s32.totalorder %s460, %s462
    %p469 = scmp.eq.s32.totalorder %s32, 1
    %p470 = por %p468, %p469
    %p471 = scmp.ne.s32.totalorder %s462, %s463
    %p472 = scmp.eq.s32.totalorder %s32, 0
    %p473 = por %p471, %p472
    %p474 = scmp.ne.s32.totalorder %s462, %s463
    %p475 = scmp.eq.s32.totalorder %s33, 1
    %p476 = por %p474, %p475
    %p478 = scmp.ne.s32.totalorder %s463, %s477
    %p479 = scmp.eq.s32.totalorder %s33, 0
    %p480 = por %p478, %p479
    %s481 = ssub.s32 %s27, %s34
    %p482 = scmp.eq.s32.totalorder %s481, 0
    %s484 = sadd.s32 %s483, 1
    %s485 = scalar_select %p482, %s483, %s484
    %p488 = pneg %p482
    %p489 = scmp.eq.s32.totalorder %s27, 1
    %p490 = por %p488, %p489
    %p491 = scmp.ne.s32.totalorder %s483, %s486
    %p492 = scmp.eq.s32.totalorder %s27, 0
    %p493 = por %p491, %p492
    %p494 = scmp.ne.s32.totalorder %s483, %s486
    %p495 = scmp.eq.s32.totalorder %s32, 1
    %p496 = por %p494, %p495
    %p497 = scmp.ne.s32.totalorder %s486, %s487
    %p498 = scmp.eq.s32.totalorder %s32, 0
    %p499 = por %p497, %p498
    %p500 = scmp.ne.s32.totalorder %s486, %s487
    %p501 = scmp.eq.s32.totalorder %s33, 1
    %p502 = por %p500, %p501
    %p504 = scmp.ne.s32.totalorder %s487, %s503
    %p505 = scmp.eq.s32.totalorder %s33, 0
    %p506 = por %p504, %p505
    %p507 = scmp.le.s32.totalorder 1, %s27
    %p508 = scmp.lt.s32.totalorder %s27, 3
    %p509 = pnand %p507, %p508
    %p510 = pneg %p509
    // Predicated region
    $region9: #{_lambda_.1} parent=5 // pred_check
      _
    $region10: #{_lambda_.1} parent=5 // pred_check_branch
      %512 = sbr.rel (%p509) target = $region12
    $region11: #{_lambda_.1} parent=5 // pred_region
      %s513 = ssub.s32 %s27, 1
      // Predicated region
      $region13: #{_lambda_.1} parent=11 // pred_check
        %p514 = pneg %p74
      $region14: #{_lambda_.1} parent=11 // pred_check_branch
        %516 = sbr.rel (%p514) target = $region16
      $region15: #{_lambda_.1} parent=11 // pred_region
        _
      $region16: #{_lambda_.1} parent=11 // pred_fallthru
        _
      // Predicated region
      $region17: #{_lambda_.1} parent=11 // pred_check
        %p517 = pneg %p95
      $region18: #{_lambda_.1} parent=11 // pred_check_branch
        %519 = sbr.rel (%p517) target = $region20
      $region19: #{_lambda_.1} parent=11 // pred_region
        _
      $region20: #{_lambda_.1} parent=11 // pred_fallthru
        _
      // Predicated region
      $region21: #{_lambda_.1} parent=11 // pred_check
        %p520 = pneg %p116
      $region22: #{_lambda_.1} parent=11 // pred_check_branch
        %522 = sbr.rel (%p520) target = $region24
      $region23: #{_lambda_.1} parent=11 // pred_region
        _
      $region24: #{_lambda_.1} parent=11 // pred_fallthru
        _
      // Predicated region
      $region25: #{_lambda_.1} parent=11 // pred_check
        %p523 = pneg %p137
      $region26: #{_lambda_.1} parent=11 // pred_check_branch
        %525 = sbr.rel (%p523) target = $region28
      $region27: #{_lambda_.1} parent=11 // pred_region
        _
      $region28: #{_lambda_.1} parent=11 // pred_fallthru
        _
      // Predicated region
      $region29: #{_lambda_.1} parent=11 // pred_check
        %p526 = pneg %p158
      $region30: #{_lambda_.1} parent=11 // pred_check_branch
        %528 = sbr.rel (%p526) target = $region32
      $region31: #{_lambda_.1} parent=11 // pred_region
        _
      $region32: #{_lambda_.1} parent=11 // pred_fallthru
        _
      // Predicated region
      $region33: #{_lambda_.1} parent=11 // pred_check
        %p529 = pneg %p179
      $region34: #{_lambda_.1} parent=11 // pred_check_branch
        %531 = sbr.rel (%p529) target = $region36
      $region35: #{_lambda_.1} parent=11 // pred_region
        _
      $region36: #{_lambda_.1} parent=11 // pred_fallthru
        _
      // Predicated region
      $region37: #{_lambda_.1} parent=11 // pred_check
        %p532 = pneg %p200
      $region38: #{_lambda_.1} parent=11 // pred_check_branch
        %534 = sbr.rel (%p532) target = $region40
      $region39: #{_lambda_.1} parent=11 // pred_region
        _
      $region40: #{_lambda_.1} parent=11 // pred_fallthru
        _
      // Predicated region
      $region41: #{_lambda_.1} parent=11 // pred_check
        %p535 = pneg %p221
      $region42: #{_lambda_.1} parent=11 // pred_check_branch
        %537 = sbr.rel (%p535) target = $region44
      $region43: #{_lambda_.1} parent=11 // pred_region
        _
      $region44: #{_lambda_.1} parent=11 // pred_fallthru
        _
      // Predicated region
      $region45: #{_lambda_.1} parent=11 // pred_check
        %p538 = pneg %p242
      $region46: #{_lambda_.1} parent=11 // pred_check_branch
        %540 = sbr.rel (%p538) target = $region48
      $region47: #{_lambda_.1} parent=11 // pred_region
        _
      $region48: #{_lambda_.1} parent=11 // pred_fallthru
        _
      // Predicated region
      $region49: #{_lambda_.1} parent=11 // pred_check
        %p541 = pneg %p263
      $region50: #{_lambda_.1} parent=11 // pred_check_branch
        %543 = sbr.rel (%p541) target = $region52
      $region51: #{_lambda_.1} parent=11 // pred_region
        _
      $region52: #{_lambda_.1} parent=11 // pred_fallthru
        _
      // Predicated region
      $region53: #{_lambda_.1} parent=11 // pred_check
        %p544 = pneg %p284
      $region54: #{_lambda_.1} parent=11 // pred_check_branch
        %546 = sbr.rel (%p544) target = $region56
      $region55: #{_lambda_.1} parent=11 // pred_region
        _
      $region56: #{_lambda_.1} parent=11 // pred_fallthru
        _
      // Predicated region
      $region57: #{_lambda_.1} parent=11 // pred_check
        %p547 = pneg %p305
      $region58: #{_lambda_.1} parent=11 // pred_check_branch
        %549 = sbr.rel (%p547) target = $region60
      $region59: #{_lambda_.1} parent=11 // pred_region
        _
      $region60: #{_lambda_.1} parent=11 // pred_fallthru
        _
      // Predicated region
      $region61: #{_lambda_.1} parent=11 // pred_check
        %p550 = pneg %p326
      $region62: #{_lambda_.1} parent=11 // pred_check_branch
        %552 = sbr.rel (%p550) target = $region64
      $region63: #{_lambda_.1} parent=11 // pred_region
        _
      $region64: #{_lambda_.1} parent=11 // pred_fallthru
        _
      // Predicated region
      $region65: #{_lambda_.1} parent=11 // pred_check
        %p553 = pneg %p347
      $region66: #{_lambda_.1} parent=11 // pred_check_branch
        %555 = sbr.rel (%p553) target = $region68
      $region67: #{_lambda_.1} parent=11 // pred_region
        _
      $region68: #{_lambda_.1} parent=11 // pred_fallthru
        _
      // Predicated region
      $region69: #{_lambda_.1} parent=11 // pred_check
        %p556 = pneg %p368
      $region70: #{_lambda_.1} parent=11 // pred_check_branch
        %558 = sbr.rel (%p556) target = $region72
      $region71: #{_lambda_.1} parent=11 // pred_region
        _
      $region72: #{_lambda_.1} parent=11 // pred_fallthru
        _
      // Predicated region
      $region73: #{_lambda_.1} parent=11 // pred_check
        %p559 = pneg %p389
      $region74: #{_lambda_.1} parent=11 // pred_check_branch
        %561 = sbr.rel (%p559) target = $region76
      $region75: #{_lambda_.1} parent=11 // pred_region
        _
      $region76: #{_lambda_.1} parent=11 // pred_fallthru
        _
      // Predicated region
      $region77: #{_lambda_.1} parent=11 // pred_check
        %p562 = pneg %p410
      $region78: #{_lambda_.1} parent=11 // pred_check_branch
        %564 = sbr.rel (%p562) target = $region80
      $region79: #{_lambda_.1} parent=11 // pred_region
        _
      $region80: #{_lambda_.1} parent=11 // pred_fallthru
        _
      // Predicated region
      $region81: #{_lambda_.1} parent=11 // pred_check
        %p565 = pneg %p431
      $region82: #{_lambda_.1} parent=11 // pred_check_branch
        %567 = sbr.rel (%p565) target = $region84
      $region83: #{_lambda_.1} parent=11 // pred_region
        _
      $region84: #{_lambda_.1} parent=11 // pred_fallthru
        _
      // Predicated region
      $region85: #{_lambda_.1} parent=11 // pred_check
        %p568 = pneg %p452
      $region86: #{_lambda_.1} parent=11 // pred_check_branch
        %570 = sbr.rel (%p568) target = $region88
      $region87: #{_lambda_.1} parent=11 // pred_region
        _
      $region88: #{_lambda_.1} parent=11 // pred_fallthru
        _
      // Predicated region
      $region89: #{_lambda_.1} parent=11 // pred_check
        %p571 = pneg %p473
      $region90: #{_lambda_.1} parent=11 // pred_check_branch
        %573 = sbr.rel (%p571) target = $region92
      $region91: #{_lambda_.1} parent=11 // pred_region
        _
      $region92: #{_lambda_.1} parent=11 // pred_fallthru
        _
    $region12: #{_lambda_.1} parent=5 // pred_fallthru
      _
    %p574 = scmp.lt.s32.totalorder %s27, 2
    // Predicated region
    $region93: #{_lambda_.1} parent=5 // pred_check
      %p575 = pneg %p574
    $region94: #{_lambda_.1} parent=5 // pred_check_branch
      %577 = sbr.rel (%p575) target = $region96
    $region95: #{_lambda_.1} parent=5 // pred_region
      // Predicated region
      $region97: #{_lambda_.1} parent=95 // pred_check
        %p578 = pneg %p47
      $region98: #{_lambda_.1} parent=95 // pred_check_branch
        %580 = sbr.rel (%p578) target = $region100
      $region99: #{_lambda_.1} parent=95 // pred_region
        %p581 = scmp.lt.s32.totalorder %s27, 1
        %s582 = scalar_select %p581, %s27, 1
        %s583 = smul.addr %s582, 8
        %s584 = scalar_lea.vmem %s0, %s583
      $region100: #{_lambda_.1} parent=95 // pred_fallthru
        _
    $region96: #{_lambda_.1} parent=5 // pred_fallthru
      _
    %p585 = scmp.le.s32.totalorder 1, %s27
    %p586 = scmp.lt.s32.totalorder %s27, 3
    %p587 = pnand %p585, %p586
    %p588 = pneg %p587
    // Predicated region
    $region101: #{_lambda_.1} parent=5 // pred_check
      _
    $region102: #{_lambda_.1} parent=5 // pred_check_branch
      %590 = sbr.rel (%p587) target = $region104
    $region103: #{_lambda_.1} parent=5 // pred_region
      %s591 = ssub.s32 %s27, 1
      %p592 = scmp.lt.s32.totalorder %s32, 1
      %s593 = scalar_select %p592, %s32, 1
      %s594 = smul.addr %s593, 8
      %s595 = scalar_lea.vmem %s0, %s594
      %p596 = pneg %p53
      %p597 = pneg %p50
      %p598 = pneg %p74
      %p599 = pneg %p71
      %p600 = pneg %p95
      %p601 = pneg %p92
      %p602 = pneg %p116
      %p603 = pneg %p113
      %p604 = pneg %p137
      %p605 = pneg %p134
      %p606 = pneg %p158
      %p607 = pneg %p155
      %p608 = pneg %p179
      %p609 = pneg %p176
      %p610 = pneg %p200
      %p611 = pneg %p197
      %p612 = pneg %p221
      %p613 = pneg %p218
      %p614 = pneg %p242
      %p615 = pneg %p239
      %p616 = pneg %p263
      %p617 = pneg %p260
      %p618 = pneg %p284
      %p619 = pneg %p281
      %p620 = pneg %p305
      %p621 = pneg %p302
      %p622 = pneg %p326
      %p623 = pneg %p323
      %p624 = pneg %p347
      %p625 = pneg %p344
      %p626 = pneg %p368
      %p627 = pneg %p365
      %p628 = pneg %p389
      %p629 = pneg %p386
      %p630 = pneg %p410
      %p631 = pneg %p407
      %p632 = pneg %p431
      %p633 = pneg %p428
      %p634 = pneg %p452
      %p635 = pneg %p449
      %p636 = pneg %p473
      %p637 = pneg %p470
      %p638 = pneg %p499
      %p639 = pneg %p496
      %p640 = scmp.lt.s32.totalorder %s32, 1
      %s641 = scalar_select %p640, %s32, 1
      %s642 = smul.addr %s641, 3
      %s643 = smul.addr %s642, 8
      %s644 = scalar_lea.vmem %s21, %s643
      %p645 = scmp.lt.s32.totalorder %s32, 1
      %s646 = scalar_select %p645, %s32, 1
      %s647 = smul.addr %s646, 8
      %s648 = scalar_lea.vmem %s0, %s647
      %p649 = scmp.lt.s32.totalorder %s32, 1
      %s650 = scalar_select %p649, %s32, 1
      %s651 = smul.addr %s650, 3
      %s652 = smul.addr %s651, 8
      %s653 = scalar_lea.vmem %s21, %s652
      %v655 = vld [vmem:[%s648] sm:$0xff]
      %v656 = vld [vmem:[%s4] sm:$0xff]
      %v657 = vld [vmem:[%s2] sm:$0xf]
      %v658 = vld [vmem:[%s2 + $0x4] sm:$0xf]
      %v659 = vld [vmem:[%s2 + $0x8] sm:$0xf]
      %v660 = vld [vmem:[%s2 + $0xc] sm:$0xf]
      %vm661 = vcmask 261120
      %662 = vst.msk [vmem:[#allocation2] sm:$0xff] %vm661, 0.0
      %663 = vst.msk [vmem:[#allocation2 + $0x8] sm:$0xff] %vm661, 0.0
      %664 = vst.msk [vmem:[#allocation2 + $0x10] sm:$0xff] %vm661, 0.0
      %665 = vst.msk [vmem:[#allocation2 + $0x18] sm:$0xff] %vm661, 0.0
      %666 = vst.msk [vmem:[#allocation2 + $0x20] sm:$0xff] %vm661, 0.0
      %667 = vst.msk [vmem:[#allocation2 + $0x28] sm:$0xff] %vm661, 0.0
      %668 = vst.msk [vmem:[#allocation2 + $0x30] sm:$0xff] %vm661, 0.0
      %669 = vst.msk [vmem:[#allocation2 + $0x38] sm:$0xff] %vm661, 0.0
      %670 = vst.msk [vmem:[#allocation2 + $0x40] sm:$0xff] %vm661, 0.0
      %671 = vst.msk [vmem:[#allocation2 + $0x48] sm:$0xff] %vm661, 0.0
      %672 = vst.msk [vmem:[#allocation2 + $0x50] sm:$0xff] %vm661, 0.0
      %673 = vst.msk [vmem:[#allocation2 + $0x58] sm:$0xff] %vm661, 0.0
      %674 = vst.msk [vmem:[#allocation2 + $0x60] sm:$0xff] %vm661, 0.0
      %675 = vst.msk [vmem:[#allocation2 + $0x68] sm:$0xff] %vm661, 0.0
      %676 = vst.msk [vmem:[#allocation2 + $0x70] sm:$0xff] %vm661, 0.0
      %677 = vst.msk [vmem:[#allocation2 + $0x78] sm:$0xff] %vm661, 0.0
      %678 = vst.msk [vmem:[#allocation2 + $0x80] sm:$0xff] %vm661, 0.0
      %679 = vst.msk [vmem:[#allocation2 + $0x88] sm:$0xff] %vm661, 0.0
      %680 = vst.msk [vmem:[#allocation2 + $0x90] sm:$0xff] %vm661, 0.0
      %681 = vst.msk [vmem:[#allocation2 + $0x98] sm:$0xff] %vm661, 0.0
      %682 = vst.msk [vmem:[#allocation2 + $0xa0] sm:$0xff] %vm661, 0.0
      %683 = vst.msk [vmem:[#allocation2 + $0xa8] sm:$0xff] %vm661, 0.0
      %684 = vst.msk [vmem:[#allocation2 + $0xb0] sm:$0xff] %vm661, 0.0
      %685 = vst.msk [vmem:[#allocation2 + $0xb8] sm:$0xff] %vm661, 0.0
      %686 = vst.msk [vmem:[#allocation3] sm:$0xff] %vm661, 0.0
      %687 = vst.msk [vmem:[#allocation3 + $0x8] sm:$0xff] %vm661, 0.0
      %688 = vst.msk [vmem:[#allocation3 + $0x10] sm:$0xff] %vm661, 0.0
      %689 = vst.msk [vmem:[#allocation3 + $0x18] sm:$0xff] %vm661, 0.0
      %690 = vst.msk [vmem:[#allocation3 + $0x20] sm:$0xff] %vm661, 0.0
      %691 = vst.msk [vmem:[#allocation3 + $0x28] sm:$0xff] %vm661, 0.0
      %692 = vst.msk [vmem:[#allocation3 + $0x30] sm:$0xff] %vm661, 0.0
      %693 = vst.msk [vmem:[#allocation3 + $0x38] sm:$0xff] %vm661, 0.0
      %694 = vst.msk [vmem:[#allocation3 + $0x40] sm:$0xff] %vm661, 0.0
      %695 = vst.msk [vmem:[#allocation3 + $0x48] sm:$0xff] %vm661, 0.0
      %696 = vst.msk [vmem:[#allocation3 + $0x50] sm:$0xff] %vm661, 0.0
      %697 = vst.msk [vmem:[#allocation3 + $0x58] sm:$0xff] %vm661, 0.0
      %698 = vst.msk [vmem:[#allocation3 + $0x60] sm:$0xff] %vm661, 0.0
      %699 = vst.msk [vmem:[#allocation3 + $0x68] sm:$0xff] %vm661, 0.0
      %700 = vst.msk [vmem:[#allocation3 + $0x70] sm:$0xff] %vm661, 0.0
      %701 = vst.msk [vmem:[#allocation3 + $0x78] sm:$0xff] %vm661, 0.0
      %702 = vst.msk [vmem:[#allocation3 + $0x80] sm:$0xff] %vm661, 0.0
      %703 = vst.msk [vmem:[#allocation3 + $0x88] sm:$0xff] %vm661, 0.0
      %704 = vst.msk [vmem:[#allocation3 + $0x90] sm:$0xff] %vm661, 0.0
      %705 = vst.msk [vmem:[#allocation3 + $0x98] sm:$0xff] %vm661, 0.0
      %706 = vst.msk [vmem:[#allocation3 + $0xa0] sm:$0xff] %vm661, 0.0
      %707 = vst.msk [vmem:[#allocation3 + $0xa8] sm:$0xff] %vm661, 0.0
      %708 = vst.msk [vmem:[#allocation3 + $0xb0] sm:$0xff] %vm661, 0.0
      %709 = vst.msk [vmem:[#allocation3 + $0xb8] sm:$0xff] %vm661, 0.0
      %v710 = vld [vmem:[%s1] sm:$0xff]
      %v711 = vadd.f32 %v710, %v655
      %v712 = vld [vmem:[%s3] sm:$0xff]
      %v713 = vld [vmem:[%s8] sm:$0x1]
      %v714 = vld [vmem:[%s10] sm:$0x1]
      %v715 = vld [vmem:[%s12] sm:$0x1]
      %v716 = vld [vmem:[%s14] sm:$0x1]
      %v717 = vld [vmem:[%s16] sm:$0x1]
      %v718 = vld [vmem:[%s18] sm:$0x1]
      %v719 = vld [vmem:[%s19] sm:$0x7]
      %v720 = vld [vmem:[%s20] sm:$0x7]
      %v721 = vpack.c.bf16 %v711, %v711
      %v722 = vld [vmem:[%s7] sm:$0xf]
      %v723 = vld [vmem:[%s7 + $0x4] sm:$0xf]
      %v724 = vld [vmem:[%s7 + $0x8] sm:$0xf]
      %v725 = vld [vmem:[%s7 + $0xc] sm:$0xf]
      %v727 = vlaneseq
      %v728 = vshrl.u32 %v727, 7
      %v729 = vsub.s32 0, %v728
      %v730 = vrot.slane %v713, %v729
      %v736 = vunpack.c.l.b16 %v722
      %v737 = vunpack.c.l.b16 %v723
      %v738 = vunpack.c.l.b16 %v724
      %v739 = vunpack.c.l.b16 %v725
      %v740 = vpack.c.b16 %v737, %v736
      %v741 = vpack.c.b16 %v739, %v738
      %v745 = vsel %vm661, %v721, 0
      %747 = vmatprep.subr.bf16.mxu0 0
      %748 = vmatpush1.bf16.msra.mxu0 %v740
      %749 = vmatprep.subr.bf16.mxu0 0
      %750 = vmatpush1.bf16.msra.mxu0 %v741
      %751 = vmatprep.subr.bf16.mxu0 0
      %752 = vmatpush1.bf16.msra.mxu0 0
      %753 = vmatprep.subr.bf16.mxu0 0
      %754 = vmatpush1.bf16.msra.mxu0 0
      %755 = vmatprep.subr.bf16.mxu0 0
      %756 = vmatpush1.bf16.msra.mxu0 0
      %757 = vmatprep.subr.bf16.mxu0 0
      %758 = vmatpush1.bf16.msra.mxu0 0
      %759 = vmatprep.subr.bf16.mxu0 0
      %760 = vmatpush1.bf16.msra.mxu0 0
      %761 = vmatprep.subr.bf16.mxu0 0
      %762 = vmatpush1.bf16.msra.mxu0 0
      %763 = vmatprep.subr.bf16.mxu0 0
      %764 = vmatpush1.bf16.msra.mxu0 0
      %765 = vmatprep.subr.bf16.mxu0 0
      %766 = vmatpush1.bf16.msra.mxu0 0
      %767 = vmatprep.subr.bf16.mxu0 0
      %768 = vmatpush1.bf16.msra.mxu0 0
      %769 = vmatprep.subr.bf16.mxu0 0
      %770 = vmatpush1.bf16.msra.mxu0 0
      %771 = vmatprep.subr.bf16.mxu0 0
      %772 = vmatpush1.bf16.msra.mxu0 0
      %773 = vmatprep.subr.bf16.mxu0 0
      %774 = vmatpush1.bf16.msra.mxu0 0
      %775 = vmatprep.subr.bf16.mxu0 0
      %776 = vmatpush1.bf16.msra.mxu0 0
      %777 = vmatprep.subr.bf16.mxu0 0
      %778 = vmatpush1.bf16.msra.mxu0 0
      %779 = vmatprep.mubr.bf16.mxu0 0
      %780 = vmatmul.mubr.bf16.gmra.mrb[0].mxu0 %v745
      %v781 = vpop.f32.mrb[0].mxu0
      %v782 = vadd.f32 %v730, %v781
      %v783 = vpop.f32.mrb[0].mxu0
      %v784 = vpop.f32.mrb[0].mxu0
      %v785 = vpop.f32.mrb[0].mxu0
      %786 = vdwg.mxu0
      %788 = vrot.lane.b32.xlu0 %v782, 96
      %v789 = vpop.permute.xlu0 %788
      %vm791 = vcmask 64512
      %792 = vst.msk [vmem:[#allocation2] sm:$0xff] %vm791, %v789
      %793 = vrot.lane.b32.xlu0 %v782, 64
      %v794 = vpop.permute.xlu0 %793
      %796 = vst.msk [vmem:[#allocation3] sm:$0xff] %vm791, %v794
      %vm797 = vcmask 130112
      %798 = vst.msk [vmem:[#allocation2 + $0x18] sm:$0xff] %vm797, %v789
      %799 = vst.msk [vmem:[#allocation3 + $0x18] sm:$0xff] %vm797, %v794
      %vm800 = vcmask 195712
      %801 = vst.msk [vmem:[#allocation2 + $0x30] sm:$0xff] %vm800, %v789
      %802 = vst.msk [vmem:[#allocation3 + $0x30] sm:$0xff] %vm800, %v794
      %vm803 = vcmask 261312
      %804 = vst.msk [vmem:[#allocation2 + $0x48] sm:$0xff] %vm803, %v789
      %805 = vst.msk [vmem:[#allocation3 + $0x48] sm:$0xff] %vm803, %v794
      %v806 = vld [vmem:[#allocation2] sm:$0xff]
      %v807 = vld [vmem:[#allocation2 + $0x8] sm:$0xff]
      %v808 = vld [vmem:[#allocation2 + $0x10] sm:$0xff]
      %v809 = vld [vmem:[#allocation2 + $0x18] sm:$0xff]
      %v810 = vld [vmem:[#allocation2 + $0x20] sm:$0xff]
      %v811 = vld [vmem:[#allocation2 + $0x28] sm:$0xff]
      %v812 = vld [vmem:[#allocation2 + $0x30] sm:$0xff]
      %v813 = vld [vmem:[#allocation2 + $0x38] sm:$0xff]
      %v814 = vld [vmem:[#allocation2 + $0x40] sm:$0xff]
      %v815 = vld [vmem:[#allocation2 + $0x48] sm:$0xff]
      %v816 = vld [vmem:[#allocation2 + $0x50] sm:$0xff]
      %v817 = vld [vmem:[#allocation2 + $0x58] sm:$0xff]
      %v818 = vld [vmem:[#allocation3] sm:$0xff]
      %v819 = vld [vmem:[#allocation3 + $0x8] sm:$0xff]
      %v820 = vld [vmem:[#allocation3 + $0x10] sm:$0xff]
      %v821 = vld [vmem:[#allocation3 + $0x18] sm:$0xff]
      %v822 = vld [vmem:[#allocation3 + $0x20] sm:$0xff]
      %v823 = vld [vmem:[#allocation3 + $0x28] sm:$0xff]
      %v824 = vld [vmem:[#allocation3 + $0x30] sm:$0xff]
      %v825 = vld [vmem:[#allocation3 + $0x38] sm:$0xff]
      %v826 = vld [vmem:[#allocation3 + $0x40] sm:$0xff]
      %v827 = vld [vmem:[#allocation3 + $0x48] sm:$0xff]
      %v828 = vld [vmem:[#allocation3 + $0x50] sm:$0xff]
      %v829 = vld [vmem:[#allocation3 + $0x58] sm:$0xff]
      %v830 = vld [vmem:[%s9] sm:$0xf]
      %v831 = vld [vmem:[%s9 + $0x4] sm:$0xf]
      %v832 = vld [vmem:[%s9 + $0x8] sm:$0xf]
      %v833 = vld [vmem:[%s9 + $0xc] sm:$0xf]
      %v834 = vpack.c.bf16 %v782, %v782
      %v835 = vpack.c.bf16 %v807, %v806
      %v836 = vpack.c.bf16 %v809, %v808
      %v837 = vpack.c.bf16 %v811, %v810
      %v838 = vpack.c.bf16 %v813, %v812
      %v839 = vpack.c.bf16 %v815, %v814
      %v840 = vpack.c.bf16 %v817, %v816
      %v842 = vsel %vm661, %v834, 0
      %v845 = vsel %vm661, %v835, 0
      %v848 = vsel %vm661, %v836, 0
      %v851 = vsel %vm661, %v837, 0
      %v854 = vsel %vm661, %v838, 0
      %v857 = vsel %vm661, %v839, 0
      %v860 = vsel %vm661, %v840, 0
      %862 = vmatprep.subr.bf16.mxu0 0
      %863 = vmatpush1.bf16.xpose.msra.mxu0 %v845
      %864 = vmatprep.subr.bf16.mxu0 0
      %865 = vmatpush1.bf16.xpose.msra.mxu0 %v848
      %866 = vmatprep.subr.bf16.mxu0 0
      %867 = vmatpush1.bf16.xpose.msra.mxu0 %v851
      %868 = vmatprep.subr.bf16.mxu0 0
      %869 = vmatpush1.bf16.xpose.msra.mxu0 %v854
      %870 = vmatprep.subr.bf16.mxu0 0
      %871 = vmatpush1.bf16.xpose.msra.mxu0 %v857
      %872 = vmatprep.subr.bf16.mxu0 0
      %873 = vmatpush1.bf16.xpose.msra.mxu0 %v860
      %874 = vmatprep.subr.bf16.mxu0 0
      %875 = vmatpush1.bf16.xpose.msra.mxu0 0
      %876 = vmatprep.subr.bf16.mxu0 0
      %877 = vmatpush1.bf16.xpose.msra.mxu0 0
      %878 = vmatprep.subr.bf16.mxu0 0
      %879 = vmatpush1.bf16.xpose.msra.mxu0 0
      %880 = vmatprep.subr.bf16.mxu0 0
      %881 = vmatpush1.bf16.xpose.msra.mxu0 0
      %882 = vmatprep.subr.bf16.mxu0 0
      %883 = vmatpush1.bf16.xpose.msra.mxu0 0
      %884 = vmatprep.subr.bf16.mxu0 0
      %885 = vmatpush1.bf16.xpose.msra.mxu0 0
      %886 = vmatprep.subr.bf16.mxu0 0
      %887 = vmatpush1.bf16.xpose.msra.mxu0 0
      %888 = vmatprep.subr.bf16.mxu0 0
      %889 = vmatpush1.bf16.xpose.msra.mxu0 0
      %890 = vmatprep.subr.bf16.mxu0 0
      %891 = vmatpush1.bf16.xpose.msra.mxu0 0
      %892 = vmatprep.subr.bf16.mxu0 0
      %893 = vmatpush1.bf16.xpose.msra.mxu0 0
      %894 = vmatprep.mubr.bf16.mxu0 0
      %895 = vmatmul.mubr.bf16.gmra.mrb[0].mxu0 %v842
      %v896 = vpop.f32.mrb[0].mxu0
      %v897 = vadd.f32 0.0, %v896
      %v898 = vpop.f32.mrb[0].mxu0
      %v899 = vpop.f32.mrb[0].mxu0
      %v900 = vpop.f32.mrb[0].mxu0
      %901 = vdwg.mxu0
      %v902 = vmul.f32 %v897, 0.35355338
      %v903 = vadd.f32 %v902, %v712
      %vm904 = vcmask 785408
      %v905 = vsel %vm904, %v903, -inf
      %906 = vmax.xlane.f32.xlu0 %v905
      %v907 = vpop.xlane.xlu0 %906
      %v908 = vsub.f32 %v903, %v907
      %v909 = vmul.f32 %v908, 1.442695
      %v910 = vpow.pop %v909
      %v911 = vpack.c.bf16 %v910, %v910
      %v912 = vpack.c.bf16 %v819, %v818
      %v913 = vpack.c.bf16 %v821, %v820
      %v914 = vpack.c.bf16 %v823, %v822
      %v915 = vpack.c.bf16 %v825, %v824
      %v916 = vpack.c.bf16 %v827, %v826
      %v917 = vpack.c.bf16 %v829, %v828
      %v919 = vsel %vm904, %v911, 0
      %921 = vmatprep.subr.bf16.mxu0 0
      %922 = vmatpush1.bf16.msra.mxu0 %v912
      %923 = vmatprep.subr.bf16.mxu0 0
      %924 = vmatpush1.bf16.msra.mxu0 %v913
      %925 = vmatprep.subr.bf16.mxu0 0
      %926 = vmatpush1.bf16.msra.mxu0 %v914
      %927 = vmatprep.subr.bf16.mxu0 0
      %928 = vmatpush1.bf16.msra.mxu0 %v915
      %929 = vmatprep.subr.bf16.mxu0 0
      %930 = vmatpush1.bf16.msra.mxu0 %v916
      %931 = vmatprep.subr.bf16.mxu0 0
      %932 = vmatpush1.bf16.msra.mxu0 %v917
      %933 = vmatprep.subr.bf16.mxu0 0
      %934 = vmatpush1.bf16.msra.mxu0 0
      %935 = vmatprep.subr.bf16.mxu0 0
      %936 = vmatpush1.bf16.msra.mxu0 0
      %937 = vmatprep.subr.bf16.mxu0 0
      %938 = vmatpush1.bf16.msra.mxu0 0
      %939 = vmatprep.subr.bf16.mxu0 0
      %940 = vmatpush1.bf16.msra.mxu0 0
      %941 = vmatprep.subr.bf16.mxu0 0
      %942 = vmatpush1.bf16.msra.mxu0 0
      %943 = vmatprep.subr.bf16.mxu0 0
      %944 = vmatpush1.bf16.msra.mxu0 0
      %945 = vmatprep.subr.bf16.mxu0 0
      %946 = vmatpush1.bf16.msra.mxu0 0
      %947 = vmatprep.subr.bf16.mxu0 0
      %948 = vmatpush1.bf16.msra.mxu0 0
      %949 = vmatprep.subr.bf16.mxu0 0
      %950 = vmatpush1.bf16.msra.mxu0 0
      %951 = vmatprep.subr.bf16.mxu0 0
      %952 = vmatpush1.bf16.msra.mxu0 0
      %953 = vmatprep.mubr.bf16.mxu0 0
      %954 = vmatmul.mubr.bf16.gmra.mrb[0].mxu0 %v919
      %v955 = vpop.f32.mrb[0].mxu0
      %v956 = vadd.f32 0.0, %v955
      %v957 = vpop.f32.mrb[0].mxu0
      %v958 = vpop.f32.mrb[0].mxu0
      %v959 = vpop.f32.mrb[0].mxu0
      %960 = vdwg.mxu0
      %vm961 = vcmask 195584
      %v962 = vsel %vm961, %v910, 0.0
      %963 = vadd.xlane.f32.xlu0 %v962
      %v964 = vpop.xlane.xlu0 %963
      %v965 = vrcp.pop %v964
      %v966 = vmul.f32 %v956, %v965
      %967 = vst.msk [vmem:[#allocation4] sm:$0xff] %vm791, %v966
      %969 = vrot.lane.b32.xlu0 %v910, 104
      %v970 = vpop.permute.xlu0 %969
      %v972 = vsel %vm961, %v970, 0.0
      %973 = vadd.xlane.f32.xlu0 %v972
      %v974 = vpop.xlane.xlu0 %973
      %v975 = vrcp.pop %v974
      %v976 = vmul.f32 %v956, %v975
      %977 = vst.msk [vmem:[#allocation4] sm:$0xff] %vm797, %v976
      %978 = vrot.lane.b32.xlu0 %v910, 80
      %v979 = vpop.permute.xlu0 %978
      %v981 = vsel %vm961, %v979, 0.0
      %982 = vadd.xlane.f32.xlu0 %v981
      %v983 = vpop.xlane.xlu0 %982
      %v984 = vrcp.pop %v983
      %v985 = vmul.f32 %v956, %v984
      %986 = vst.msk [vmem:[#allocation4] sm:$0xff] %vm800, %v985
      %987 = vrot.lane.b32.xlu0 %v910, 56
      %v988 = vpop.permute.xlu0 %987
      %v990 = vsel %vm961, %v988, 0.0
      %991 = vadd.xlane.f32.xlu0 %v990
      %v992 = vpop.xlane.xlu0 %991
      %v993 = vrcp.pop %v992
      %v994 = vmul.f32 %v956, %v993
      %995 = vst.msk [vmem:[#allocation4] sm:$0xff] %vm803, %v994
      %v996 = vld [vmem:[#allocation4] sm:$0xff]
      %v997 = vpack.c.bf16 %v996, %v996
      %v999 = vlaneseq
      %v1000 = vshrl.u32 %v999, 7
      %v1001 = vsub.s32 0, %v1000
      %v1002 = vrot.slane %v714, %v1001
      %v1008 = vunpack.c.l.b16 %v830
      %v1009 = vunpack.c.l.b16 %v831
      %v1010 = vunpack.c.l.b16 %v832
      %v1011 = vunpack.c.l.b16 %v833
      %v1012 = vpack.c.b16 %v1009, %v1008
      %v1013 = vpack.c.b16 %v1011, %v1010
      %v1017 = vsel %vm661, %v997, 0
      %1019 = vmatprep.subr.bf16.mxu0 0
      %1020 = vmatpush1.bf16.msra.mxu0 %v1012
      %1021 = vmatprep.subr.bf16.mxu0 0
      %1022 = vmatpush1.bf16.msra.mxu0 %v1013
      %1023 = vmatprep.subr.bf16.mxu0 0
      %1024 = vmatpush1.bf16.msra.mxu0 0
      %1025 = vmatprep.subr.bf16.mxu0 0
      %1026 = vmatpush1.bf16.msra.mxu0 0
      %1027 = vmatprep.subr.bf16.mxu0 0
      %1028 = vmatpush1.bf16.msra.mxu0 0
      %1029 = vmatprep.subr.bf16.mxu0 0
      %1030 = vmatpush1.bf16.msra.mxu0 0
      %1031 = vmatprep.subr.bf16.mxu0 0
      %1032 = vmatpush1.bf16.msra.mxu0 0
      %1033 = vmatprep.subr.bf16.mxu0 0
      %1034 = vmatpush1.bf16.msra.mxu0 0
      %1035 = vmatprep.subr.bf16.mxu0 0
      %1036 = vmatpush1.bf16.msra.mxu0 0
      %1037 = vmatprep.subr.bf16.mxu0 0
      %1038 = vmatpush1.bf16.msra.mxu0 0
      %1039 = vmatprep.subr.bf16.mxu0 0
      %1040 = vmatpush1.bf16.msra.mxu0 0
      %1041 = vmatprep.subr.bf16.mxu0 0
      %1042 = vmatpush1.bf16.msra.mxu0 0
      %1043 = vmatprep.subr.bf16.mxu0 0
      %1044 = vmatpush1.bf16.msra.mxu0 0
      %1045 = vmatprep.subr.bf16.mxu0 0
      %1046 = vmatpush1.bf16.msra.mxu0 0
      %1047 = vmatprep.subr.bf16.mxu0 0
      %1048 = vmatpush1.bf16.msra.mxu0 0
      %1049 = vmatprep.subr.bf16.mxu0 0
      %1050 = vmatpush1.bf16.msra.mxu0 0
      %1051 = vmatprep.mubr.bf16.mxu0 0
      %1052 = vmatmul.mubr.bf16.gmra.mrb[0].mxu0 %v1017
      %v1053 = vpop.f32.mrb[0].mxu0
      %v1054 = vadd.f32 %v1002, %v1053
      %v1055 = vpop.f32.mrb[0].mxu0
      %v1056 = vpop.f32.mrb[0].mxu0
      %v1057 = vpop.f32.mrb[0].mxu0
      %1058 = vdwg.mxu0
      %v1059 = vadd.f32 %v711, %v1054
      %v1060 = vsel %vm661, %v1059, 0.0
      %1061 = vadd.xlane.f32.xlu0 %v1060
      %v1062 = vpop.xlane.xlu0 %1061
      %v1063 = vrcp.pop 32.0
      %v1064 = vmul.f32 %v1062, %v1063
      %v1065 = vsub.f32 %v1059, %v1064
      %v1066 = vmul.f32 %v1065, %v1065
      %v1067 = vsel %vm661, %v1066, 0.0
      %1068 = vadd.xlane.f32.xlu0 %v1067
      %v1069 = vpop.xlane.xlu0 %1068
      %v1070 = vmul.f32 %v1069, %v1063
      %v1071 = vadd.f32 %v1070, 1e-05
      %v1072 = vrsqrt.pop %v1071
      %v1073 = vmul.f32 %v1065, %v1072
      %v1074 = vlaneseq
      %v1075 = vshrl.u32 %v1074, 7
      %v1076 = vsub.s32 0, %v1075
      %v1077 = vrot.slane %v719, %v1076
      %v1078 = vmul.f32 %v1073, %v1077
      %v1079 = vlaneseq
      %v1080 = vshrl.u32 %v1079, 7
      %v1081 = vsub.s32 0, %v1080
      %v1082 = vrot.slane %v720, %v1081
      %v1083 = vadd.f32 %v1078, %v1082
      %v1084 = vpack.c.bf16 %v1083, %v1083
      %v1085 = vld [vmem:[%s11] sm:$0xf]
      %v1086 = vld [vmem:[%s11 + $0x4] sm:$0xf]
      %v1087 = vld [vmem:[%s11 + $0x8] sm:$0xf]
      %v1088 = vld [vmem:[%s11 + $0xc] sm:$0xf]
      %v1090 = vlaneseq
      %v1091 = vshrl.u32 %v1090, 7
      %v1092 = vsub.s32 0, %v1091
      %v1093 = vrot.slane %v715, %v1092
      %v1099 = vunpack.c.l.b16 %v1085
      %v1100 = vunpack.c.l.b16 %v1086
      %v1101 = vunpack.c.l.b16 %v1087
      %v1102 = vunpack.c.l.b16 %v1088
      %v1103 = vpack.c.b16 %v1100, %v1099
      %v1104 = vpack.c.b16 %v1102, %v1101
      %v1108 = vsel %vm661, %v1084, 0
      %1110 = vmatprep.subr.bf16.mxu0 0
      %1111 = vmatpush1.bf16.msra.mxu0 %v1103
      %1112 = vmatprep.subr.bf16.mxu0 0
      %1113 = vmatpush1.bf16.msra.mxu0 %v1104
      %1114 = vmatprep.subr.bf16.mxu0 0
      %1115 = vmatpush1.bf16.msra.mxu0 0
      %1116 = vmatprep.subr.bf16.mxu0 0
      %1117 = vmatpush1.bf16.msra.mxu0 0
      %1118 = vmatprep.subr.bf16.mxu0 0
      %1119 = vmatpush1.bf16.msra.mxu0 0
      %1120 = vmatprep.subr.bf16.mxu0 0
      %1121 = vmatpush1.bf16.msra.mxu0 0
      %1122 = vmatprep.subr.bf16.mxu0 0
      %1123 = vmatpush1.bf16.msra.mxu0 0
      %1124 = vmatprep.subr.bf16.mxu0 0
      %1125 = vmatpush1.bf16.msra.mxu0 0
      %1126 = vmatprep.subr.bf16.mxu0 0
      %1127 = vmatpush1.bf16.msra.mxu0 0
      %1128 = vmatprep.subr.bf16.mxu0 0
      %1129 = vmatpush1.bf16.msra.mxu0 0
      %1130 = vmatprep.subr.bf16.mxu0 0
      %1131 = vmatpush1.bf16.msra.mxu0 0
      %1132 = vmatprep.subr.bf16.mxu0 0
      %1133 = vmatpush1.bf16.msra.mxu0 0
      %1134 = vmatprep.subr.bf16.mxu0 0
      %1135 = vmatpush1.bf16.msra.mxu0 0
      %1136 = vmatprep.subr.bf16.mxu0 0
      %1137 = vmatpush1.bf16.msra.mxu0 0
      %1138 = vmatprep.subr.bf16.mxu0 0
      %1139 = vmatpush1.bf16.msra.mxu0 0
      %1140 = vmatprep.subr.bf16.mxu0 0
      %1141 = vmatpush1.bf16.msra.mxu0 0
      %1142 = vmatprep.mubr.bf16.mxu0 0
      %1143 = vmatmul.mubr.bf16.gmra.mrb[0].mxu0 %v1108
      %v1144 = vpop.f32.mrb[0].mxu0
      %v1145 = vadd.f32 %v1093, %v1144
      %v1146 = vpop.f32.mrb[0].mxu0
      %v1147 = vpop.f32.mrb[0].mxu0
      %v1148 = vpop.f32.mrb[0].mxu0
      %1149 = vdwg.mxu0
      %v1150 = vld [vmem:[%s5] sm:$0xf]
      %v1151 = vld [vmem:[%s5 + $0x4] sm:$0xf]
      %v1152 = vld [vmem:[%s5 + $0x8] sm:$0xf]
      %v1153 = vld [vmem:[%s5 + $0xc] sm:$0xf]
      %v1154 = vld [vmem:[%s6] sm:$0xf]
      %v1155 = vld [vmem:[%s6 + $0x4] sm:$0xf]
      %v1156 = vld [vmem:[%s6 + $0x8] sm:$0xf]
      %v1157 = vld [vmem:[%s6 + $0xc] sm:$0xf]
      %v1158 = vld [vmem:[%s13] sm:$0xf]
      %v1159 = vld [vmem:[%s13 + $0x4] sm:$0xf]
      %v1160 = vld [vmem:[%s13 + $0x8] sm:$0xf]
      %v1161 = vld [vmem:[%s13 + $0xc] sm:$0xf]
      %v1162 = vpack.c.bf16 %v1145, %v1145
      %v1167 = vunpack.c.l.b16 %v1150
      %v1168 = vunpack.c.l.b16 %v1151
      %v1169 = vunpack.c.l.b16 %v1152
      %v1170 = vunpack.c.l.b16 %v1153
      %v1171 = vpack.c.b16 %v1168, %v1167
      %v1172 = vpack.c.b16 %v1170, %v1169
      %v1174 = vsel %vm661, %v1162, 0
      %v1177 = vsel %vm661, %v1171, 0
      %v1180 = vsel %vm661, %v1172, 0
      %1182 = vmatprep.subr.bf16.mxu0 0
      %1183 = vmatpush1.bf16.xpose.msra.mxu0 %v1177
      %1184 = vmatprep.subr.bf16.mxu0 0
      %1185 = vmatpush1.bf16.xpose.msra.mxu0 %v1180
      %1186 = vmatprep.subr.bf16.mxu0 0
      %1187 = vmatpush1.bf16.xpose.msra.mxu0 0
      %1188 = vmatprep.subr.bf16.mxu0 0
      %1189 = vmatpush1.bf16.xpose.msra.mxu0 0
      %1190 = vmatprep.subr.bf16.mxu0 0
      %1191 = vmatpush1.bf16.xpose.msra.mxu0 0
      %1192 = vmatprep.subr.bf16.mxu0 0
      %1193 = vmatpush1.bf16.xpose.msra.mxu0 0
      %1194 = vmatprep.subr.bf16.mxu0 0
      %1195 = vmatpush1.bf16.xpose.msra.mxu0 0
      %1196 = vmatprep.subr.bf16.mxu0 0
      %1197 = vmatpush1.bf16.xpose.msra.mxu0 0
      %1198 = vmatprep.subr.bf16.mxu0 0
      %1199 = vmatpush1.bf16.xpose.msra.mxu0 0
      %1200 = vmatprep.subr.bf16.mxu0 0
      %1201 = vmatpush1.bf16.xpose.msra.mxu0 0
      %1202 = vmatprep.subr.bf16.mxu0 0
      %1203 = vmatpush1.bf16.xpose.msra.mxu0 0
      %1204 = vmatprep.subr.bf16.mxu0 0
      %1205 = vmatpush1.bf16.xpose.msra.mxu0 0
      %1206 = vmatprep.subr.bf16.mxu0 0
      %1207 = vmatpush1.bf16.xpose.msra.mxu0 0
      %1208 = vmatprep.subr.bf16.mxu0 0
      %1209 = vmatpush1.bf16.xpose.msra.mxu0 0
      %1210 = vmatprep.subr.bf16.mxu0 0
      %1211 = vmatpush1.bf16.xpose.msra.mxu0 0
      %1212 = vmatprep.subr.bf16.mxu0 0
      %1213 = vmatpush1.bf16.xpose.msra.mxu0 0
      %1214 = vmatprep.mubr.bf16.mxu0 0
      %1215 = vmatmul.mubr.bf16.gmra.mrb[0].mxu0 %v1174
      %v1216 = vpop.f32.mrb[0].mxu0
      %v1217 = vadd.f32 0.0, %v1216
      %v1218 = vpop.f32.mrb[0].mxu0
      %v1219 = vpop.f32.mrb[0].mxu0
      %v1220 = vpop.f32.mrb[0].mxu0
      %1221 = vdwg.mxu0
      %v1222 = vmul.f32 %v1217, 0.35355338
      %v1223 = vadd.f32 %v1222, %v656
      %v1224 = vsel %vm661, %v1223, -inf
      %1225 = vmax.xlane.f32.xlu0 %v1224
      %v1226 = vpop.xlane.xlu0 %1225
      %v1227 = vsub.f32 %v1223, %v1226
      %v1228 = vmul.f32 %v1227, 1.442695
      %v1229 = vpow.pop %v1228
      %v1230 = vpack.c.bf16 %v1229, %v1229
      %v1235 = vunpack.c.l.b16 %v1154
      %v1236 = vunpack.c.l.b16 %v1155
      %v1237 = vunpack.c.l.b16 %v1156
      %v1238 = vunpack.c.l.b16 %v1157
      %v1239 = vpack.c.b16 %v1236, %v1235
      %v1240 = vpack.c.b16 %v1238, %v1237
      %v1244 = vsel %vm661, %v1230, 0
      %1246 = vmatprep.subr.bf16.mxu0 0
      %1247 = vmatpush1.bf16.msra.mxu0 %v1239
      %1248 = vmatprep.subr.bf16.mxu0 0
      %1249 = vmatpush1.bf16.msra.mxu0 %v1240
      %1250 = vmatprep.subr.bf16.mxu0 0
      %1251 = vmatpush1.bf16.msra.mxu0 0
      %1252 = vmatprep.subr.bf16.mxu0 0
      %1253 = vmatpush1.bf16.msra.mxu0 0
      %1254 = vmatprep.subr.bf16.mxu0 0
      %1255 = vmatpush1.bf16.msra.mxu0 0
      %1256 = vmatprep.subr.bf16.mxu0 0
      %1257 = vmatpush1.bf16.msra.mxu0 0
      %1258 = vmatprep.subr.bf16.mxu0 0
      %1259 = vmatpush1.bf16.msra.mxu0 0
      %1260 = vmatprep.subr.bf16.mxu0 0
      %1261 = vmatpush1.bf16.msra.mxu0 0
      %1262 = vmatprep.subr.bf16.mxu0 0
      %1263 = vmatpush1.bf16.msra.mxu0 0
      %1264 = vmatprep.subr.bf16.mxu0 0
      %1265 = vmatpush1.bf16.msra.mxu0 0
      %1266 = vmatprep.subr.bf16.mxu0 0
      %1267 = vmatpush1.bf16.msra.mxu0 0
      %1268 = vmatprep.subr.bf16.mxu0 0
      %1269 = vmatpush1.bf16.msra.mxu0 0
      %1270 = vmatprep.subr.bf16.mxu0 0
      %1271 = vmatpush1.bf16.msra.mxu0 0
      %1272 = vmatprep.subr.bf16.mxu0 0
      %1273 = vmatpush1.bf16.msra.mxu0 0
      %1274 = vmatprep.subr.bf16.mxu0 0
      %1275 = vmatpush1.bf16.msra.mxu0 0
      %1276 = vmatprep.subr.bf16.mxu0 0
      %1277 = vmatpush1.bf16.msra.mxu0 0
      %1278 = vmatprep.mubr.bf16.mxu0 0
      %1279 = vmatmul.mubr.bf16.gmra.mrb[0].mxu0 %v1244
      %v1280 = vpop.f32.mrb[0].mxu0
      %v1281 = vadd.f32 0.0, %v1280
      %v1282 = vpop.f32.mrb[0].mxu0
      %v1283 = vpop.f32.mrb[0].mxu0
      %v1284 = vpop.f32.mrb[0].mxu0
      %1285 = vdwg.mxu0
      %v1286 = vsel %vm791, %v1229, 0.0
      %1287 = vadd.xlane.f32.xlu0 %v1286
      %v1288 = vpop.xlane.xlu0 %1287
      %v1289 = vrcp.pop %v1288
      %v1290 = vmul.f32 %v1281, %v1289
      %1291 = vst.msk [vmem:[#allocation4] sm:$0xff] %vm791, %v1290
      %1293 = vrot.lane.b32.xlu0 %v1229, 120
      %v1294 = vpop.permute.xlu0 %1293
      %v1296 = vsel %vm791, %v1294, 0.0
      %1297 = vadd.xlane.f32.xlu0 %v1296
      %v1298 = vpop.xlane.xlu0 %1297
      %v1299 = vrcp.pop %v1298
      %v1300 = vmul.f32 %v1281, %v1299
      %1301 = vst.msk [vmem:[#allocation4] sm:$0xff] %vm797, %v1300
      %1302 = vrot.lane.b32.xlu0 %v1229, 112
      %v1303 = vpop.permute.xlu0 %1302
      %v1305 = vsel %vm791, %v1303, 0.0
      %1306 = vadd.xlane.f32.xlu0 %v1305
      %v1307 = vpop.xlane.xlu0 %1306
      %v1308 = vrcp.pop %v1307
      %v1309 = vmul.f32 %v1281, %v1308
      %1310 = vst.msk [vmem:[#allocation4] sm:$0xff] %vm800, %v1309
      %1311 = vrot.lane.b32.xlu0 %v1229, 104
      %v1312 = vpop.permute.xlu0 %1311
      %v1314 = vsel %vm791, %v1312, 0.0
      %1315 = vadd.xlane.f32.xlu0 %v1314
      %v1316 = vpop.xlane.xlu0 %1315
      %v1317 = vrcp.pop %v1316
      %v1318 = vmul.f32 %v1281, %v1317
      %1319 = vst.msk [vmem:[#allocation4] sm:$0xff] %vm803, %v1318
      %v1320 = vld [vmem:[#allocation4] sm:$0xff]
      %v1321 = vpack.c.bf16 %v1320, %v1320
      %v1323 = vlaneseq
      %v1324 = vshrl.u32 %v1323, 7
      %v1325 = vsub.s32 0, %v1324
      %v1326 = vrot.slane %v716, %v1325
      %v1332 = vunpack.c.l.b16 %v1158
      %v1333 = vunpack.c.l.b16 %v1159
      %v1334 = vunpack.c.l.b16 %v1160
      %v1335 = vunpack.c.l.b16 %v1161
      %v1336 = vpack.c.b16 %v1333, %v1332
      %v1337 = vpack.c.b16 %v1335, %v1334
      %v1341 = vsel %vm661, %v1321, 0
      %1343 = vmatprep.subr.bf16.mxu0 0
      %1344 = vmatpush1.bf16.msra.mxu0 %v1336
      %1345 = vmatprep.subr.bf16.mxu0 0
      %1346 = vmatpush1.bf16.msra.mxu0 %v1337
      %1347 = vmatprep.subr.bf16.mxu0 0
      %1348 = vmatpush1.bf16.msra.mxu0 0
      %1349 = vmatprep.subr.bf16.mxu0 0
      %1350 = vmatpush1.bf16.msra.mxu0 0
      %1351 = vmatprep.subr.bf16.mxu0 0
      %1352 = vmatpush1.bf16.msra.mxu0 0
      %1353 = vmatprep.subr.bf16.mxu0 0
      %1354 = vmatpush1.bf16.msra.mxu0 0
      %1355 = vmatprep.subr.bf16.mxu0 0
      %1356 = vmatpush1.bf16.msra.mxu0 0
      %1357 = vmatprep.subr.bf16.mxu0 0
      %1358 = vmatpush1.bf16.msra.mxu0 0
      %1359 = vmatprep.subr.bf16.mxu0 0
      %1360 = vmatpush1.bf16.msra.mxu0 0
      %1361 = vmatprep.subr.bf16.mxu0 0
      %1362 = vmatpush1.bf16.msra.mxu0 0
      %1363 = vmatprep.subr.bf16.mxu0 0
      %1364 = vmatpush1.bf16.msra.mxu0 0
      %1365 = vmatprep.subr.bf16.mxu0 0
      %1366 = vmatpush1.bf16.msra.mxu0 0
      %1367 = vmatprep.subr.bf16.mxu0 0
      %1368 = vmatpush1.bf16.msra.mxu0 0
      %1369 = vmatprep.subr.bf16.mxu0 0
      %1370 = vmatpush1.bf16.msra.mxu0 0
      %1371 = vmatprep.subr.bf16.mxu0 0
      %1372 = vmatpush1.bf16.msra.mxu0 0
      %1373 = vmatprep.subr.bf16.mxu0 0
      %1374 = vmatpush1.bf16.msra.mxu0 0
      %1375 = vmatprep.mubr.bf16.mxu0 0
      %1376 = vmatmul.mubr.bf16.gmra.mrb[0].mxu0 %v1341
      %v1377 = vpop.f32.mrb[0].mxu0
      %v1378 = vadd.f32 %v1326, %v1377
      %v1379 = vpop.f32.mrb[0].mxu0
      %v1380 = vpop.f32.mrb[0].mxu0
      %v1381 = vpop.f32.mrb[0].mxu0
      %1382 = vdwg.mxu0
      %v1383 = vadd.f32 %v1083, %v1378
      %v1384 = vsel %vm661, %v1383, 0.0
      %1385 = vadd.xlane.f32.xlu0 %v1384
      %v1386 = vpop.xlane.xlu0 %1385
      %v1387 = vmul.f32 %v1386, %v1063
      %v1388 = vsub.f32 %v1383, %v1387
      %v1389 = vmul.f32 %v1388, %v1388
      %v1390 = vsel %vm661, %v1389, 0.0
      %1391 = vadd.xlane.f32.xlu0 %v1390
      %v1392 = vpop.xlane.xlu0 %1391
      %v1393 = vmul.f32 %v1392, %v1063
      %v1394 = vadd.f32 %v1393, 1e-05
      %v1395 = vrsqrt.pop %v1394
      %v1396 = vmul.f32 %v1388, %v1395
      %v1397 = vlaneseq
      %v1398 = vshrl.u32 %v1397, 7
      %v1399 = vsub.s32 1, %v1398
      %v1400 = vrot.slane %v719, %v1399
      %v1401 = vmul.f32 %v1396, %v1400
      %v1402 = vlaneseq
      %v1403 = vshrl.u32 %v1402, 7
      %v1404 = vsub.s32 1, %v1403
      %v1405 = vrot.slane %v720, %v1404
      %v1406 = vadd.f32 %v1401, %v1405
      %v1407 = vpack.c.bf16 %v1406, %v1406
      %v1408 = vld [vmem:[%s15] sm:$0xf]
      %v1409 = vld [vmem:[%s15 + $0x4] sm:$0xf]
      %v1410 = vld [vmem:[%s15 + $0x8] sm:$0xf]
      %v1411 = vld [vmem:[%s15 + $0xc] sm:$0xf]
      %v1413 = vlaneseq
      %v1414 = vshrl.u32 %v1413, 7
      %v1415 = vsub.s32 0, %v1414
      %v1416 = vrot.slane %v717, %v1415
      %v1422 = vunpack.c.l.b16 %v1408
      %v1423 = vunpack.c.l.b16 %v1409
      %v1424 = vunpack.c.l.b16 %v1410
      %v1425 = vunpack.c.l.b16 %v1411
      %v1426 = vpack.c.b16 %v1423, %v1422
      %v1427 = vpack.c.b16 %v1425, %v1424
      %v1431 = vsel %vm661, %v1407, 0
      %1433 = vmatprep.subr.bf16.mxu0 0
      %1434 = vmatpush1.bf16.msra.mxu0 %v1426
      %1435 = vmatprep.subr.bf16.mxu0 0
      %1436 = vmatpush1.bf16.msra.mxu0 %v1427
      %1437 = vmatprep.subr.bf16.mxu0 0
      %1438 = vmatpush1.bf16.msra.mxu0 0
      %1439 = vmatprep.subr.bf16.mxu0 0
      %1440 = vmatpush1.bf16.msra.mxu0 0
      %1441 = vmatprep.subr.bf16.mxu0 0
      %1442 = vmatpush1.bf16.msra.mxu0 0
      %1443 = vmatprep.subr.bf16.mxu0 0
      %1444 = vmatpush1.bf16.msra.mxu0 0
      %1445 = vmatprep.subr.bf16.mxu0 0
      %1446 = vmatpush1.bf16.msra.mxu0 0
      %1447 = vmatprep.subr.bf16.mxu0 0
      %1448 = vmatpush1.bf16.msra.mxu0 0
      %1449 = vmatprep.subr.bf16.mxu0 0
      %1450 = vmatpush1.bf16.msra.mxu0 0
      %1451 = vmatprep.subr.bf16.mxu0 0
      %1452 = vmatpush1.bf16.msra.mxu0 0
      %1453 = vmatprep.subr.bf16.mxu0 0
      %1454 = vmatpush1.bf16.msra.mxu0 0
      %1455 = vmatprep.subr.bf16.mxu0 0
      %1456 = vmatpush1.bf16.msra.mxu0 0
      %1457 = vmatprep.subr.bf16.mxu0 0
      %1458 = vmatpush1.bf16.msra.mxu0 0
      %1459 = vmatprep.subr.bf16.mxu0 0
      %1460 = vmatpush1.bf16.msra.mxu0 0
      %1461 = vmatprep.subr.bf16.mxu0 0
      %1462 = vmatpush1.bf16.msra.mxu0 0
      %1463 = vmatprep.subr.bf16.mxu0 0
      %1464 = vmatpush1.bf16.msra.mxu0 0
      %1465 = vmatprep.mubr.bf16.mxu0 0
      %1466 = vmatmul.mubr.bf16.gmra.mrb[0].mxu0 %v1431
      %v1467 = vpop.f32.mrb[0].mxu0
      %v1468 = vadd.f32 %v1416, %v1467
      %v1469 = vpop.f32.mrb[0].mxu0
      %v1470 = vpop.f32.mrb[0].mxu0
      %v1471 = vpop.f32.mrb[0].mxu0
      %1472 = vdwg.mxu0
      %v1473 = vmax.f32 %v1468, 0.0
      %v1474 = vpack.c.bf16 %v1473, %v1473
      %v1475 = vld [vmem:[%s17] sm:$0xf]
      %v1476 = vld [vmem:[%s17 + $0x4] sm:$0xf]
      %v1477 = vld [vmem:[%s17 + $0x8] sm:$0xf]
      %v1478 = vld [vmem:[%s17 + $0xc] sm:$0xf]
      %v1479 = vld [vmem:[%s17 + $0x10] sm:$0xf]
      %v1480 = vld [vmem:[%s17 + $0x14] sm:$0xf]
      %v1481 = vld [vmem:[%s17 + $0x18] sm:$0xf]
      %v1482 = vld [vmem:[%s17 + $0x1c] sm:$0xf]
      %v1484 = vlaneseq
      %v1485 = vshrl.u32 %v1484, 7
      %v1486 = vsub.s32 0, %v1485
      %v1487 = vrot.slane %v718, %v1486
      %v1497 = vunpack.c.l.b16 %v1475
      %v1498 = vunpack.c.l.b16 %v1476
      %v1499 = vunpack.c.l.b16 %v1477
      %v1500 = vunpack.c.l.b16 %v1478
      %v1501 = vunpack.c.l.b16 %v1479
      %v1502 = vunpack.c.l.b16 %v1480
      %v1503 = vunpack.c.l.b16 %v1481
      %v1504 = vunpack.c.l.b16 %v1482
      %v1505 = vpack.c.b16 %v1498, %v1497
      %v1506 = vpack.c.b16 %v1500, %v1499
      %v1507 = vpack.c.b16 %v1502, %v1501
      %v1508 = vpack.c.b16 %v1504, %v1503
      %vm1513 = vcmask 523264
      %v1515 = vsel %vm1513, %v1474, 0
      %1517 = vmatprep.subr.bf16.mxu0 0
      %1518 = vmatpush1.bf16.msra.mxu0 %v1505
      %1519 = vmatprep.subr.bf16.mxu0 0
      %1520 = vmatpush1.bf16.msra.mxu0 %v1506
      %1521 = vmatprep.subr.bf16.mxu0 0
      %1522 = vmatpush1.bf16.msra.mxu0 %v1507
      %1523 = vmatprep.subr.bf16.mxu0 0
      %1524 = vmatpush1.bf16.msra.mxu0 %v1508
      %1525 = vmatprep.subr.bf16.mxu0 0
      %1526 = vmatpush1.bf16.msra.mxu0 0
      %1527 = vmatprep.subr.bf16.mxu0 0
      %1528 = vmatpush1.bf16.msra.mxu0 0
      %1529 = vmatprep.subr.bf16.mxu0 0
      %1530 = vmatpush1.bf16.msra.mxu0 0
      %1531 = vmatprep.subr.bf16.mxu0 0
      %1532 = vmatpush1.bf16.msra.mxu0 0
      %1533 = vmatprep.subr.bf16.mxu0 0
      %1534 = vmatpush1.bf16.msra.mxu0 0
      %1535 = vmatprep.subr.bf16.mxu0 0
      %1536 = vmatpush1.bf16.msra.mxu0 0
      %1537 = vmatprep.subr.bf16.mxu0 0
      %1538 = vmatpush1.bf16.msra.mxu0 0
      %1539 = vmatprep.subr.bf16.mxu0 0
      %1540 = vmatpush1.bf16.msra.mxu0 0
      %1541 = vmatprep.subr.bf16.mxu0 0
      %1542 = vmatpush1.bf16.msra.mxu0 0
      %1543 = vmatprep.subr.bf16.mxu0 0
      %1544 = vmatpush1.bf16.msra.mxu0 0
      %1545 = vmatprep.subr.bf16.mxu0 0
      %1546 = vmatpush1.bf16.msra.mxu0 0
      %1547 = vmatprep.subr.bf16.mxu0 0
      %1548 = vmatpush1.bf16.msra.mxu0 0
      %1549 = vmatprep.mubr.bf16.mxu0 0
      %1550 = vmatmul.mubr.bf16.gmra.mrb[0].mxu0 %v1515
      %v1551 = vpop.f32.mrb[0].mxu0
      %v1552 = vadd.f32 %v1487, %v1551
      %v1553 = vpop.f32.mrb[0].mxu0
      %v1554 = vpop.f32.mrb[0].mxu0
      %v1555 = vpop.f32.mrb[0].mxu0
      %1556 = vdwg.mxu0
      %v1557 = vadd.f32 %v1406, %v1552
      %v1558 = vsel %vm661, %v1557, 0.0
      %1559 = vadd.xlane.f32.xlu0 %v1558
      %v1560 = vpop.xlane.xlu0 %1559
      %v1561 = vmul.f32 %v1560, %v1063
      %v1562 = vsub.f32 %v1557, %v1561
      %v1563 = vmul.f32 %v1562, %v1562
      %v1564 = vsel %vm661, %v1563, 0.0
      %1565 = vadd.xlane.f32.xlu0 %v1564
      %v1566 = vpop.xlane.xlu0 %1565
      %v1567 = vmul.f32 %v1566, %v1063
      %v1568 = vadd.f32 %v1567, 1e-05
      %v1569 = vrsqrt.pop %v1568
      %v1570 = vmul.f32 %v1562, %v1569
      %v1571 = vlaneseq
      %v1572 = vshrl.u32 %v1571, 7
      %v1573 = vsub.s32 2, %v1572
      %v1574 = vrot.slane %v719, %v1573
      %v1575 = vmul.f32 %v1570, %v1574
      %v1576 = vlaneseq
      %v1577 = vshrl.u32 %v1576, 7
      %v1578 = vsub.s32 2, %v1577
      %v1579 = vrot.slane %v720, %v1578
      %v1580 = vadd.f32 %v1575, %v1579
      %s1581 = scalar_lea.vmem %s8, 1
      %v1582 = vld [vmem:[%s1581] sm:$0x1]
      %s1583 = scalar_lea.vmem %s10, 1
      %v1584 = vld [vmem:[%s1583] sm:$0x1]
      %s1585 = scalar_lea.vmem %s12, 1
      %v1586 = vld [vmem:[%s1585] sm:$0x1]
      %s1587 = scalar_lea.vmem %s14, 1
      %v1588 = vld [vmem:[%s1587] sm:$0x1]
      %s1589 = scalar_lea.vmem %s16, 1
      %v1590 = vld [vmem:[%s1589] sm:$0x1]
      %s1591 = scalar_lea.vmem %s18, 1
      %v1592 = vld [vmem:[%s1591] sm:$0x1]
      %s1593 = scalar_lea.vmem %s19, 4
      %v1594 = vld [vmem:[%s1593] sm:$0x7]
      %s1595 = scalar_lea.vmem %s20, 4
      %v1596 = vld [vmem:[%s1595] sm:$0x7]
      %v1597 = vpack.c.bf16 %v1580, %v1580
      %s1598 = scalar_lea.vmem %s7, 16
      %v1599 = vld [vmem:[%s1598] sm:$0xf]
      %v1600 = vld [vmem:[%s1598 + $0x4] sm:$0xf]
      %v1601 = vld [vmem:[%s1598 + $0x8] sm:$0xf]
      %v1602 = vld [vmem:[%s1598 + $0xc] sm:$0xf]
      %v1604 = vlaneseq
      %v1605 = vshrl.u32 %v1604, 7
      %v1606 = vsub.s32 0, %v1605
      %v1607 = vrot.slane %v1582, %v1606
      %v1613 = vunpack.c.l.b16 %v1599
      %v1614 = vunpack.c.l.b16 %v1600
      %v1615 = vunpack.c.l.b16 %v1601
      %v1616 = vunpack.c.l.b16 %v1602
      %v1617 = vpack.c.b16 %v1614, %v1613
      %v1618 = vpack.c.b16 %v1616, %v1615
      %v1622 = vsel %vm661, %v1597, 0
      %1624 = vmatprep.subr.bf16.mxu0 0
      %1625 = vmatpush1.bf16.msra.mxu0 %v1617
      %1626 = vmatprep.subr.bf16.mxu0 0
      %1627 = vmatpush1.bf16.msra.mxu0 %v1618
      %1628 = vmatprep.subr.bf16.mxu0 0
      %1629 = vmatpush1.bf16.msra.mxu0 0
      %1630 = vmatprep.subr.bf16.mxu0 0
      %1631 = vmatpush1.bf16.msra.mxu0 0
      %1632 = vmatprep.subr.bf16.mxu0 0
      %1633 = vmatpush1.bf16.msra.mxu0 0
      %1634 = vmatprep.subr.bf16.mxu0 0
      %1635 = vmatpush1.bf16.msra.mxu0 0
      %1636 = vmatprep.subr.bf16.mxu0 0
      %1637 = vmatpush1.bf16.msra.mxu0 0
      %1638 = vmatprep.subr.bf16.mxu0 0
      %1639 = vmatpush1.bf16.msra.mxu0 0
      %1640 = vmatprep.subr.bf16.mxu0 0
      %1641 = vmatpush1.bf16.msra.mxu0 0
      %1642 = vmatprep.subr.bf16.mxu0 0
      %1643 = vmatpush1.bf16.msra.mxu0 0
      %1644 = vmatprep.subr.bf16.mxu0 0
      %1645 = vmatpush1.bf16.msra.mxu0 0
      %1646 = vmatprep.subr.bf16.mxu0 0
      %1647 = vmatpush1.bf16.msra.mxu0 0
      %1648 = vmatprep.subr.bf16.mxu0 0
      %1649 = vmatpush1.bf16.msra.mxu0 0
      %1650 = vmatprep.subr.bf16.mxu0 0
      %1651 = vmatpush1.bf16.msra.mxu0 0
      %1652 = vmatprep.subr.bf16.mxu0 0
      %1653 = vmatpush1.bf16.msra.mxu0 0
      %1654 = vmatprep.subr.bf16.mxu0 0
      %1655 = vmatpush1.bf16.msra.mxu0 0
      %1656 = vmatprep.mubr.bf16.mxu0 0
      %1657 = vmatmul.mubr.bf16.gmra.mrb[0].mxu0 %v1622
      %v1658 = vpop.f32.mrb[0].mxu0
      %v1659 = vadd.f32 %v1607, %v1658
      %v1660 = vpop.f32.mrb[0].mxu0
      %v1661 = vpop.f32.mrb[0].mxu0
      %v1662 = vpop.f32.mrb[0].mxu0
      %1663 = vdwg.mxu0
      %1665 = vrot.lane.b32.xlu0 %v1659, 96
      %v1666 = vpop.permute.xlu0 %1665
      %1668 = vst.msk [vmem:[#allocation2 + $0x60] sm:$0xff] %vm791, %v1666
      %1669 = vrot.lane.b32.xlu0 %v1659, 64
      %v1670 = vpop.permute.xlu0 %1669
      %1672 = vst.msk [vmem:[#allocation3 + $0x60] sm:$0xff] %vm791, %v1670
      %1673 = vst.msk [vmem:[#allocation2 + $0x78] sm:$0xff] %vm797, %v1666
      %1674 = vst.msk [vmem:[#allocation3 + $0x78] sm:$0xff] %vm797, %v1670
      %1675 = vst.msk [vmem:[#allocation2 + $0x90] sm:$0xff] %vm800, %v1666
      %1676 = vst.msk [vmem:[#allocation3 + $0x90] sm:$0xff] %vm800, %v1670
      %1677 = vst.msk [vmem:[#allocation2 + $0xa8] sm:$0xff] %vm803, %v1666
      %1678 = vst.msk [vmem:[#allocation3 + $0xa8] sm:$0xff] %vm803, %v1670
      %v1679 = vld [vmem:[#allocation2 + $0x60] sm:$0xff]
      %v1680 = vld [vmem:[#allocation2 + $0x68] sm:$0xff]
      %v1681 = vld [vmem:[#allocation2 + $0x70] sm:$0xff]
      %v1682 = vld [vmem:[#allocation2 + $0x78] sm:$0xff]
      %v1683 = vld [vmem:[#allocation2 + $0x80] sm:$0xff]
      %v1684 = vld [vmem:[#allocation2 + $0x88] sm:$0xff]
      %v1685 = vld [vmem:[#allocation2 + $0x90] sm:$0xff]
      %v1686 = vld [vmem:[#allocation2 + $0x98] sm:$0xff]
      %v1687 = vld [vmem:[#allocation2 + $0xa0] sm:$0xff]
      %v1688 = vld [vmem:[#allocation2 + $0xa8] sm:$0xff]
      %v1689 = vld [vmem:[#allocation2 + $0xb0] sm:$0xff]
      %v1690 = vld [vmem:[#allocation2 + $0xb8] sm:$0xff]
      %v1691 = vld [vmem:[#allocation3 + $0x60] sm:$0xff]
      %v1692 = vld [vmem:[#allocation3 + $0x68] sm:$0xff]
      %v1693 = vld [vmem:[#allocation3 + $0x70] sm:$0xff]
      %v1694 = vld [vmem:[#allocation3 + $0x78] sm:$0xff]
      %v1695 = vld [vmem:[#allocation3 + $0x80] sm:$0xff]
      %v1696 = vld [vmem:[#allocation3 + $0x88] sm:$0xff]
      %v1697 = vld [vmem:[#allocation3 + $0x90] sm:$0xff]
      %v1698 = vld [vmem:[#allocation3 + $0x98] sm:$0xff]
      %v1699 = vld [vmem:[#allocation3 + $0xa0] sm:$0xff]
      %v1700 = vld [vmem:[#allocation3 + $0xa8] sm:$0xff]
      %v1701 = vld [vmem:[#allocation3 + $0xb0] sm:$0xff]
      %v1702 = vld [vmem:[#allocation3 + $0xb8] sm:$0xff]
      %s1703 = scalar_lea.vmem %s9, 16
      %v1704 = vld [vmem:[%s1703] sm:$0xf]
      %v1705 = vld [vmem:[%s1703 + $0x4] sm:$0xf]
      %v1706 = vld [vmem:[%s1703 + $0x8] sm:$0xf]
      %v1707 = vld [vmem:[%s1703 + $0xc] sm:$0xf]
      %v1708 = vpack.c.bf16 %v1659, %v1659
      %v1709 = vpack.c.bf16 %v1680, %v1679
      %v1710 = vpack.c.bf16 %v1682, %v1681
      %v1711 = vpack.c.bf16 %v1684, %v1683
      %v1712 = vpack.c.bf16 %v1686, %v1685
      %v1713 = vpack.c.bf16 %v1688, %v1687
      %v1714 = vpack.c.bf16 %v1690, %v1689
      %v1716 = vsel %vm661, %v1708, 0
      %v1719 = vsel %vm661, %v1709, 0
      %v1722 = vsel %vm661, %v1710, 0
      %v1725 = vsel %vm661, %v1711, 0
      %v1728 = vsel %vm661, %v1712, 0
      %v1731 = vsel %vm661, %v1713, 0
      %v1734 = vsel %vm661, %v1714, 0
      %1736 = vmatprep.subr.bf16.mxu0 0
      %1737 = vmatpush1.bf16.xpose.msra.mxu0 %v1719
      %1738 = vmatprep.subr.bf16.mxu0 0
      %1739 = vmatpush1.bf16.xpose.msra.mxu0 %v1722
      %1740 = vmatprep.subr.bf16.mxu0 0
      %1741 = vmatpush1.bf16.xpose.msra.mxu0 %v1725
      %1742 = vmatprep.subr.bf16.mxu0 0
      %1743 = vmatpush1.bf16.xpose.msra.mxu0 %v1728
      %1744 = vmatprep.subr.bf16.mxu0 0
      %1745 = vmatpush1.bf16.xpose.msra.mxu0 %v1731
      %1746 = vmatprep.subr.bf16.mxu0 0
      %1747 = vmatpush1.bf16.xpose.msra.mxu0 %v1734
      %1748 = vmatprep.subr.bf16.mxu0 0
      %1749 = vmatpush1.bf16.xpose.msra.mxu0 0
      %1750 = vmatprep.subr.bf16.mxu0 0
      %1751 = vmatpush1.bf16.xpose.msra.mxu0 0
      %1752 = vmatprep.subr.bf16.mxu0 0
      %1753 = vmatpush1.bf16.xpose.msra.mxu0 0
      %1754 = vmatprep.subr.bf16.mxu0 0
      %1755 = vmatpush1.bf16.xpose.msra.mxu0 0
      %1756 = vmatprep.subr.bf16.mxu0 0
      %1757 = vmatpush1.bf16.xpose.msra.mxu0 0
      %1758 = vmatprep.subr.bf16.mxu0 0
      %1759 = vmatpush1.bf16.xpose.msra.mxu0 0
      %1760 = vmatprep.subr.bf16.mxu0 0
      %1761 = vmatpush1.bf16.xpose.msra.mxu0 0
      %1762 = vmatprep.subr.bf16.mxu0 0
      %1763 = vmatpush1.bf16.xpose.msra.mxu0 0
      %1764 = vmatprep.subr.bf16.mxu0 0
      %1765 = vmatpush1.bf16.xpose.msra.mxu0 0
      %1766 = vmatprep.subr.bf16.mxu0 0
      %1767 = vmatpush1.bf16.xpose.msra.mxu0 0
      %1768 = vmatprep.mubr.bf16.mxu0 0
      %1769 = vmatmul.mubr.bf16.gmra.mrb[0].mxu0 %v1716
      %v1770 = vpop.f32.mrb[0].mxu0
      %v1771 = vadd.f32 0.0, %v1770
      %v1772 = vpop.f32.mrb[0].mxu0
      %v1773 = vpop.f32.mrb[0].mxu0
      %v1774 = vpop.f32.mrb[0].mxu0
      %1775 = vdwg.mxu0
      %v1776 = vmul.f32 %v1771, 0.35355338
      %v1777 = vadd.f32 %v1776, %v712
      %v1778 = vsel %vm904, %v1777, -inf
      %1779 = vmax.xlane.f32.xlu0 %v1778
      %v1780 = vpop.xlane.xlu0 %1779
      %v1781 = vsub.f32 %v1777, %v1780
      %v1782 = vmul.f32 %v1781, 1.442695
      %v1783 = vpow.pop %v1782
      %v1784 = vpack.c.bf16 %v1783, %v1783
      %v1785 = vpack.c.bf16 %v1692, %v1691
      %v1786 = vpack.c.bf16 %v1694, %v1693
      %v1787 = vpack.c.bf16 %v1696, %v1695
      %v1788 = vpack.c.bf16 %v1698, %v1697
      %v1789 = vpack.c.bf16 %v1700, %v1699
      %v1790 = vpack.c.bf16 %v1702, %v1701
      %v1792 = vsel %vm904, %v1784, 0
      %1794 = vmatprep.subr.bf16.mxu0 0
      %1795 = vmatpush1.bf16.msra.mxu0 %v1785
      %1796 = vmatprep.subr.bf16.mxu0 0
      %1797 = vmatpush1.bf16.msra.mxu0 %v1786
      %1798 = vmatprep.subr.bf16.mxu0 0
      %1799 = vmatpush1.bf16.msra.mxu0 %v1787
      %1800 = vmatprep.subr.bf16.mxu0 0
      %1801 = vmatpush1.bf16.msra.mxu0 %v1788
      %1802 = vmatprep.subr.bf16.mxu0 0
      %1803 = vmatpush1.bf16.msra.mxu0 %v1789
      %1804 = vmatprep.subr.bf16.mxu0 0
      %1805 = vmatpush1.bf16.msra.mxu0 %v1790
      %1806 = vmatprep.subr.bf16.mxu0 0
      %1807 = vmatpush1.bf16.msra.mxu0 0
      %1808 = vmatprep.subr.bf16.mxu0 0
      %1809 = vmatpush1.bf16.msra.mxu0 0
      %1810 = vmatprep.subr.bf16.mxu0 0
      %1811 = vmatpush1.bf16.msra.mxu0 0
      %1812 = vmatprep.subr.bf16.mxu0 0
      %1813 = vmatpush1.bf16.msra.mxu0 0
      %1814 = vmatprep.subr.bf16.mxu0 0
      %1815 = vmatpush1.bf16.msra.mxu0 0
      %1816 = vmatprep.subr.bf16.mxu0 0
      %1817 = vmatpush1.bf16.msra.mxu0 0
      %1818 = vmatprep.subr.bf16.mxu0 0
      %1819 = vmatpush1.bf16.msra.mxu0 0
      %1820 = vmatprep.subr.bf16.mxu0 0
      %1821 = vmatpush1.bf16.msra.mxu0 0
      %1822 = vmatprep.subr.bf16.mxu0 0
      %1823 = vmatpush1.bf16.msra.mxu0 0
      %1824 = vmatprep.subr.bf16.mxu0 0
      %1825 = vmatpush1.bf16.msra.mxu0 0
      %1826 = vmatprep.mubr.bf16.mxu0 0
      %1827 = vmatmul.mubr.bf16.gmra.mrb[0].mxu0 %v1792
      %v1828 = vpop.f32.mrb[0].mxu0
      %v1829 = vadd.f32 0.0, %v1828
      %v1830 = vpop.f32.mrb[0].mxu0
      %v1831 = vpop.f32.mrb[0].mxu0
      %v1832 = vpop.f32.mrb[0].mxu0
      %1833 = vdwg.mxu0
      %v1834 = vsel %vm961, %v1783, 0.0
      %1835 = vadd.xlane.f32.xlu0 %v1834
      %v1836 = vpop.xlane.xlu0 %1835
      %v1837 = vrcp.pop %v1836
      %v1838 = vmul.f32 %v1829, %v1837
      %1839 = vst.msk [vmem:[#allocation4] sm:$0xff] %vm791, %v1838
      %1841 = vrot.lane.b32.xlu0 %v1783, 104
      %v1842 = vpop.permute.xlu0 %1841
      %v1844 = vsel %vm961, %v1842, 0.0
      %1845 = vadd.xlane.f32.xlu0 %v1844
      %v1846 = vpop.xlane.xlu0 %1845
      %v1847 = vrcp.pop %v1846
      %v1848 = vmul.f32 %v1829, %v1847
      %1849 = vst.msk [vmem:[#allocation4] sm:$0xff] %vm797, %v1848
      %1850 = vrot.lane.b32.xlu0 %v1783, 80
      %v1851 = vpop.permute.xlu0 %1850
      %v1853 = vsel %vm961, %v1851, 0.0
      %1854 = vadd.xlane.f32.xlu0 %v1853
      %v1855 = vpop.xlane.xlu0 %1854
      %v1856 = vrcp.pop %v1855
      %v1857 = vmul.f32 %v1829, %v1856
      %1858 = vst.msk [vmem:[#allocation4] sm:$0xff] %vm800, %v1857
      %1859 = vrot.lane.b32.xlu0 %v1783, 56
      %v1860 = vpop.permute.xlu0 %1859
      %v1862 = vsel %vm961, %v1860, 0.0
      %1863 = vadd.xlane.f32.xlu0 %v1862
      %v1864 = vpop.xlane.xlu0 %1863
      %v1865 = vrcp.pop %v1864
      %v1866 = vmul.f32 %v1829, %v1865
      %1867 = vst.msk [vmem:[#allocation4] sm:$0xff] %vm803, %v1866
      %v1868 = vld [vmem:[#allocation4] sm:$0xff]
      %v1869 = vpack.c.bf16 %v1868, %v1868
      %v1871 = vlaneseq
      %v1872 = vshrl.u32 %v1871, 7
      %v1873 = vsub.s32 0, %v1872
      %v1874 = vrot.slane %v1584, %v1873
      %v1880 = vunpack.c.l.b16 %v1704
      %v1881 = vunpack.c.l.b16 %v1705
      %v1882 = vunpack.c.l.b16 %v1706
      %v1883 = vunpack.c.l.b16 %v1707
      %v1884 = vpack.c.b16 %v1881, %v1880
      %v1885 = vpack.c.b16 %v1883, %v1882
      %v1889 = vsel %vm661, %v1869, 0
      %1891 = vmatprep.subr.bf16.mxu0 0
      %1892 = vmatpush1.bf16.msra.mxu0 %v1884
      %1893 = vmatprep.subr.bf16.mxu0 0
      %1894 = vmatpush1.bf16.msra.mxu0 %v1885
      %1895 = vmatprep.subr.bf16.mxu0 0
      %1896 = vmatpush1.bf16.msra.mxu0 0
      %1897 = vmatprep.subr.bf16.mxu0 0
      %1898 = vmatpush1.bf16.msra.mxu0 0
      %1899 = vmatprep.subr.bf16.mxu0 0
      %1900 = vmatpush1.bf16.msra.mxu0 0
      %1901 = vmatprep.subr.bf16.mxu0 0
      %1902 = vmatpush1.bf16.msra.mxu0 0
      %1903 = vmatprep.subr.bf16.mxu0 0
      %1904 = vmatpush1.bf16.msra.mxu0 0
      %1905 = vmatprep.subr.bf16.mxu0 0
      %1906 = vmatpush1.bf16.msra.mxu0 0
      %1907 = vmatprep.subr.bf16.mxu0 0
      %1908 = vmatpush1.bf16.msra.mxu0 0
      %1909 = vmatprep.subr.bf16.mxu0 0
      %1910 = vmatpush1.bf16.msra.mxu0 0
      %1911 = vmatprep.subr.bf16.mxu0 0
      %1912 = vmatpush1.bf16.msra.mxu0 0
      %1913 = vmatprep.subr.bf16.mxu0 0
      %1914 = vmatpush1.bf16.msra.mxu0 0
      %1915 = vmatprep.subr.bf16.mxu0 0
      %1916 = vmatpush1.bf16.msra.mxu0 0
      %1917 = vmatprep.subr.bf16.mxu0 0
      %1918 = vmatpush1.bf16.msra.mxu0 0
      %1919 = vmatprep.subr.bf16.mxu0 0
      %1920 = vmatpush1.bf16.msra.mxu0 0
      %1921 = vmatprep.subr.bf16.mxu0 0
      %1922 = vmatpush1.bf16.msra.mxu0 0
      %1923 = vmatprep.mubr.bf16.mxu0 0
      %1924 = vmatmul.mubr.bf16.gmra.mrb[0].mxu0 %v1889
      %v1925 = vpop.f32.mrb[0].mxu0
      %v1926 = vadd.f32 %v1874, %v1925
      %v1927 = vpop.f32.mrb[0].mxu0
      %v1928 = vpop.f32.mrb[0].mxu0
      %v1929 = vpop.f32.mrb[0].mxu0
      %1930 = vdwg.mxu0
      %v1931 = vadd.f32 %v1580, %v1926
      %v1932 = vsel %vm661, %v1931, 0.0
      %1933 = vadd.xlane.f32.xlu0 %v1932
      %v1934 = vpop.xlane.xlu0 %1933
      %v1935 = vmul.f32 %v1934, %v1063
      %v1936 = vsub.f32 %v1931, %v1935
      %v1937 = vmul.f32 %v1936, %v1936
      %v1938 = vsel %vm661, %v1937, 0.0
      %1939 = vadd.xlane.f32.xlu0 %v1938
      %v1940 = vpop.xlane.xlu0 %1939
      %v1941 = vmul.f32 %v1940, %v1063
      %v1942 = vadd.f32 %v1941, 1e-05
      %v1943 = vrsqrt.pop %v1942
      %v1944 = vmul.f32 %v1936, %v1943
      %v1945 = vlaneseq
      %v1946 = vshrl.u32 %v1945, 7
      %v1947 = vsub.s32 0, %v1946
      %v1948 = vrot.slane %v1594, %v1947
      %v1949 = vmul.f32 %v1944, %v1948
      %v1950 = vlaneseq
      %v1951 = vshrl.u32 %v1950, 7
      %v1952 = vsub.s32 0, %v1951
      %v1953 = vrot.slane %v1596, %v1952
      %v1954 = vadd.f32 %v1949, %v1953
      %v1955 = vpack.c.bf16 %v1954, %v1954
      %s1956 = scalar_lea.vmem %s11, 16
      %v1957 = vld [vmem:[%s1956] sm:$0xf]
      %v1958 = vld [vmem:[%s1956 + $0x4] sm:$0xf]
      %v1959 = vld [vmem:[%s1956 + $0x8] sm:$0xf]
      %v1960 = vld [vmem:[%s1956 + $0xc] sm:$0xf]
      %v1962 = vlaneseq
      %v1963 = vshrl.u32 %v1962, 7
      %v1964 = vsub.s32 0, %v1963
      %v1965 = vrot.slane %v1586, %v1964
      %v1971 = vunpack.c.l.b16 %v1957
      %v1972 = vunpack.c.l.b16 %v1958
      %v1973 = vunpack.c.l.b16 %v1959
      %v1974 = vunpack.c.l.b16 %v1960
      %v1975 = vpack.c.b16 %v1972, %v1971
      %v1976 = vpack.c.b16 %v1974, %v1973
      %v1980 = vsel %vm661, %v1955, 0
      %1982 = vmatprep.subr.bf16.mxu0 0
      %1983 = vmatpush1.bf16.msra.mxu0 %v1975
      %1984 = vmatprep.subr.bf16.mxu0 0
      %1985 = vmatpush1.bf16.msra.mxu0 %v1976
      %1986 = vmatprep.subr.bf16.mxu0 0
      %1987 = vmatpush1.bf16.msra.mxu0 0
      %1988 = vmatprep.subr.bf16.mxu0 0
      %1989 = vmatpush1.bf16.msra.mxu0 0
      %1990 = vmatprep.subr.bf16.mxu0 0
      %1991 = vmatpush1.bf16.msra.mxu0 0
      %1992 = vmatprep.subr.bf16.mxu0 0
      %1993 = vmatpush1.bf16.msra.mxu0 0
      %1994 = vmatprep.subr.bf16.mxu0 0
      %1995 = vmatpush1.bf16.msra.mxu0 0
      %1996 = vmatprep.subr.bf16.mxu0 0
      %1997 = vmatpush1.bf16.msra.mxu0 0
      %1998 = vmatprep.subr.bf16.mxu0 0
      %1999 = vmatpush1.bf16.msra.mxu0 0
      %2000 = vmatprep.subr.bf16.mxu0 0
      %2001 = vmatpush1.bf16.msra.mxu0 0
      %2002 = vmatprep.subr.bf16.mxu0 0
      %2003 = vmatpush1.bf16.msra.mxu0 0
      %2004 = vmatprep.subr.bf16.mxu0 0
      %2005 = vmatpush1.bf16.msra.mxu0 0
      %2006 = vmatprep.subr.bf16.mxu0 0
      %2007 = vmatpush1.bf16.msra.mxu0 0
      %2008 = vmatprep.subr.bf16.mxu0 0
      %2009 = vmatpush1.bf16.msra.mxu0 0
      %2010 = vmatprep.subr.bf16.mxu0 0
      %2011 = vmatpush1.bf16.msra.mxu0 0
      %2012 = vmatprep.subr.bf16.mxu0 0
      %2013 = vmatpush1.bf16.msra.mxu0 0
      %2014 = vmatprep.mubr.bf16.mxu0 0
      %2015 = vmatmul.mubr.bf16.gmra.mrb[0].mxu0 %v1980
      %v2016 = vpop.f32.mrb[0].mxu0
      %v2017 = vadd.f32 %v1965, %v2016
      %v2018 = vpop.f32.mrb[0].mxu0
      %v2019 = vpop.f32.mrb[0].mxu0
      %v2020 = vpop.f32.mrb[0].mxu0
      %2021 = vdwg.mxu0
      %s2022 = scalar_lea.vmem %s5, 16
      %v2023 = vld [vmem:[%s2022] sm:$0xf]
      %v2024 = vld [vmem:[%s2022 + $0x4] sm:$0xf]
      %v2025 = vld [vmem:[%s2022 + $0x8] sm:$0xf]
      %v2026 = vld [vmem:[%s2022 + $0xc] sm:$0xf]
      %s2027 = scalar_lea.vmem %s6, 16
      %v2028 = vld [vmem:[%s2027] sm:$0xf]
      %v2029 = vld [vmem:[%s2027 + $0x4] sm:$0xf]
      %v2030 = vld [vmem:[%s2027 + $0x8] sm:$0xf]
      %v2031 = vld [vmem:[%s2027 + $0xc] sm:$0xf]
      %s2032 = scalar_lea.vmem %s13, 16
      %v2033 = vld [vmem:[%s2032] sm:$0xf]
      %v2034 = vld [vmem:[%s2032 + $0x4] sm:$0xf]
      %v2035 = vld [vmem:[%s2032 + $0x8] sm:$0xf]
      %v2036 = vld [vmem:[%s2032 + $0xc] sm:$0xf]
      %v2037 = vpack.c.bf16 %v2017, %v2017
      %v2042 = vunpack.c.l.b16 %v2023
      %v2043 = vunpack.c.l.b16 %v2024
      %v2044 = vunpack.c.l.b16 %v2025
      %v2045 = vunpack.c.l.b16 %v2026
      %v2046 = vpack.c.b16 %v2043, %v2042
      %v2047 = vpack.c.b16 %v2045, %v2044
      %v2049 = vsel %vm661, %v2037, 0
      %v2052 = vsel %vm661, %v2046, 0
      %v2055 = vsel %vm661, %v2047, 0
      %2057 = vmatprep.subr.bf16.mxu0 0
      %2058 = vmatpush1.bf16.xpose.msra.mxu0 %v2052
      %2059 = vmatprep.subr.bf16.mxu0 0
      %2060 = vmatpush1.bf16.xpose.msra.mxu0 %v2055
      %2061 = vmatprep.subr.bf16.mxu0 0
      %2062 = vmatpush1.bf16.xpose.msra.mxu0 0
      %2063 = vmatprep.subr.bf16.mxu0 0
      %2064 = vmatpush1.bf16.xpose.msra.mxu0 0
      %2065 = vmatprep.subr.bf16.mxu0 0
      %2066 = vmatpush1.bf16.xpose.msra.mxu0 0
      %2067 = vmatprep.subr.bf16.mxu0 0
      %2068 = vmatpush1.bf16.xpose.msra.mxu0 0
      %2069 = vmatprep.subr.bf16.mxu0 0
      %2070 = vmatpush1.bf16.xpose.msra.mxu0 0
      %2071 = vmatprep.subr.bf16.mxu0 0
      %2072 = vmatpush1.bf16.xpose.msra.mxu0 0
      %2073 = vmatprep.subr.bf16.mxu0 0
      %2074 = vmatpush1.bf16.xpose.msra.mxu0 0
      %2075 = vmatprep.subr.bf16.mxu0 0
      %2076 = vmatpush1.bf16.xpose.msra.mxu0 0
      %2077 = vmatprep.subr.bf16.mxu0 0
      %2078 = vmatpush1.bf16.xpose.msra.mxu0 0
      %2079 = vmatprep.subr.bf16.mxu0 0
      %2080 = vmatpush1.bf16.xpose.msra.mxu0 0
      %2081 = vmatprep.subr.bf16.mxu0 0
      %2082 = vmatpush1.bf16.xpose.msra.mxu0 0
      %2083 = vmatprep.subr.bf16.mxu0 0
      %2084 = vmatpush1.bf16.xpose.msra.mxu0 0
      %2085 = vmatprep.subr.bf16.mxu0 0
      %2086 = vmatpush1.bf16.xpose.msra.mxu0 0
      %2087 = vmatprep.subr.bf16.mxu0 0
      %2088 = vmatpush1.bf16.xpose.msra.mxu0 0
      %2089 = vmatprep.mubr.bf16.mxu0 0
      %2090 = vmatmul.mubr.bf16.gmra.mrb[0].mxu0 %v2049
      %v2091 = vpop.f32.mrb[0].mxu0
      %v2092 = vadd.f32 0.0, %v2091
      %v2093 = vpop.f32.mrb[0].mxu0
      %v2094 = vpop.f32.mrb[0].mxu0
      %v2095 = vpop.f32.mrb[0].mxu0
      %2096 = vdwg.mxu0
      %v2097 = vmul.f32 %v2092, 0.35355338
      %v2098 = vadd.f32 %v2097, %v656
      %v2099 = vsel %vm661, %v2098, -inf
      %2100 = vmax.xlane.f32.xlu0 %v2099
      %v2101 = vpop.xlane.xlu0 %2100
      %v2102 = vsub.f32 %v2098, %v2101
      %v2103 = vmul.f32 %v2102, 1.442695
      %v2104 = vpow.pop %v2103
      %v2105 = vpack.c.bf16 %v2104, %v2104
      %v2110 = vunpack.c.l.b16 %v2028
      %v2111 = vunpack.c.l.b16 %v2029
      %v2112 = vunpack.c.l.b16 %v2030
      %v2113 = vunpack.c.l.b16 %v2031
      %v2114 = vpack.c.b16 %v2111, %v2110
      %v2115 = vpack.c.b16 %v2113, %v2112
      %v2119 = vsel %vm661, %v2105, 0
      %2121 = vmatprep.subr.bf16.mxu0 0
      %2122 = vmatpush1.bf16.msra.mxu0 %v2114
      %2123 = vmatprep.subr.bf16.mxu0 0
      %2124 = vmatpush1.bf16.msra.mxu0 %v2115
      %2125 = vmatprep.subr.bf16.mxu0 0
      %2126 = vmatpush1.bf16.msra.mxu0 0
      %2127 = vmatprep.subr.bf16.mxu0 0
      %2128 = vmatpush1.bf16.msra.mxu0 0
      %2129 = vmatprep.subr.bf16.mxu0 0
      %2130 = vmatpush1.bf16.msra.mxu0 0
      %2131 = vmatprep.subr.bf16.mxu0 0
      %2132 = vmatpush1.bf16.msra.mxu0 0
      %2133 = vmatprep.subr.bf16.mxu0 0
      %2134 = vmatpush1.bf16.msra.mxu0 0
      %2135 = vmatprep.subr.bf16.mxu0 0
      %2136 = vmatpush1.bf16.msra.mxu0 0
      %2137 = vmatprep.subr.bf16.mxu0 0
      %2138 = vmatpush1.bf16.msra.mxu0 0
      %2139 = vmatprep.subr.bf16.mxu0 0
      %2140 = vmatpush1.bf16.msra.mxu0 0
      %2141 = vmatprep.subr.bf16.mxu0 0
      %2142 = vmatpush1.bf16.msra.mxu0 0
      %2143 = vmatprep.subr.bf16.mxu0 0
      %2144 = vmatpush1.bf16.msra.mxu0 0
      %2145 = vmatprep.subr.bf16.mxu0 0
      %2146 = vmatpush1.bf16.msra.mxu0 0
      %2147 = vmatprep.subr.bf16.mxu0 0
      %2148 = vmatpush1.bf16.msra.mxu0 0
      %2149 = vmatprep.subr.bf16.mxu0 0
      %2150 = vmatpush1.bf16.msra.mxu0 0
      %2151 = vmatprep.subr.bf16.mxu0 0
      %2152 = vmatpush1.bf16.msra.mxu0 0
      %2153 = vmatprep.mubr.bf16.mxu0 0
      %2154 = vmatmul.mubr.bf16.gmra.mrb[0].mxu0 %v2119
      %v2155 = vpop.f32.mrb[0].mxu0
      %v2156 = vadd.f32 0.0, %v2155
      %v2157 = vpop.f32.mrb[0].mxu0
      %v2158 = vpop.f32.mrb[0].mxu0
      %v2159 = vpop.f32.mrb[0].mxu0
      %2160 = vdwg.mxu0
      %v2161 = vsel %vm791, %v2104, 0.0
      %2162 = vadd.xlane.f32.xlu0 %v2161
      %v2163 = vpop.xlane.xlu0 %2162
      %v2164 = vrcp.pop %v2163
      %v2165 = vmul.f32 %v2156, %v2164
      %2166 = vst.msk [vmem:[#allocation4] sm:$0xff] %vm791, %v2165
      %2168 = vrot.lane.b32.xlu0 %v2104, 120
      %v2169 = vpop.permute.xlu0 %2168
      %v2171 = vsel %vm791, %v2169, 0.0
      %2172 = vadd.xlane.f32.xlu0 %v2171
      %v2173 = vpop.xlane.xlu0 %2172
      %v2174 = vrcp.pop %v2173
      %v2175 = vmul.f32 %v2156, %v2174
      %2176 = vst.msk [vmem:[#allocation4] sm:$0xff] %vm797, %v2175
      %2177 = vrot.lane.b32.xlu0 %v2104, 112
      %v2178 = vpop.permute.xlu0 %2177
      %v2180 = vsel %vm791, %v2178, 0.0
      %2181 = vadd.xlane.f32.xlu0 %v2180
      %v2182 = vpop.xlane.xlu0 %2181
      %v2183 = vrcp.pop %v2182
      %v2184 = vmul.f32 %v2156, %v2183
      %2185 = vst.msk [vmem:[#allocation4] sm:$0xff] %vm800, %v2184
      %2186 = vrot.lane.b32.xlu0 %v2104, 104
      %v2187 = vpop.permute.xlu0 %2186
      %v2189 = vsel %vm791, %v2187, 0.0
      %2190 = vadd.xlane.f32.xlu0 %v2189
      %v2191 = vpop.xlane.xlu0 %2190
      %v2192 = vrcp.pop %v2191
      %v2193 = vmul.f32 %v2156, %v2192
      %2194 = vst.msk [vmem:[#allocation4] sm:$0xff] %vm803, %v2193
      %v2195 = vld [vmem:[#allocation4] sm:$0xff]
      %v2196 = vpack.c.bf16 %v2195, %v2195
      %v2198 = vlaneseq
      %v2199 = vshrl.u32 %v2198, 7
      %v2200 = vsub.s32 0, %v2199
      %v2201 = vrot.slane %v1588, %v2200
      %v2207 = vunpack.c.l.b16 %v2033
      %v2208 = vunpack.c.l.b16 %v2034
      %v2209 = vunpack.c.l.b16 %v2035
      %v2210 = vunpack.c.l.b16 %v2036
      %v2211 = vpack.c.b16 %v2208, %v2207
      %v2212 = vpack.c.b16 %v2210, %v2209
      %v2216 = vsel %vm661, %v2196, 0
      %2218 = vmatprep.subr.bf16.mxu0 0
      %2219 = vmatpush1.bf16.msra.mxu0 %v2211
      %2220 = vmatprep.subr.bf16.mxu0 0
      %2221 = vmatpush1.bf16.msra.mxu0 %v2212
      %2222 = vmatprep.subr.bf16.mxu0 0
      %2223 = vmatpush1.bf16.msra.mxu0 0
      %2224 = vmatprep.subr.bf16.mxu0 0
      %2225 = vmatpush1.bf16.msra.mxu0 0
      %2226 = vmatprep.subr.bf16.mxu0 0
      %2227 = vmatpush1.bf16.msra.mxu0 0
      %2228 = vmatprep.subr.bf16.mxu0 0
      %2229 = vmatpush1.bf16.msra.mxu0 0
      %2230 = vmatprep.subr.bf16.mxu0 0
      %2231 = vmatpush1.bf16.msra.mxu0 0
      %2232 = vmatprep.subr.bf16.mxu0 0
      %2233 = vmatpush1.bf16.msra.mxu0 0
      %2234 = vmatprep.subr.bf16.mxu0 0
      %2235 = vmatpush1.bf16.msra.mxu0 0
      %2236 = vmatprep.subr.bf16.mxu0 0
      %2237 = vmatpush1.bf16.msra.mxu0 0
      %2238 = vmatprep.subr.bf16.mxu0 0
      %2239 = vmatpush1.bf16.msra.mxu0 0
      %2240 = vmatprep.subr.bf16.mxu0 0
      %2241 = vmatpush1.bf16.msra.mxu0 0
      %2242 = vmatprep.subr.bf16.mxu0 0
      %2243 = vmatpush1.bf16.msra.mxu0 0
      %2244 = vmatprep.subr.bf16.mxu0 0
      %2245 = vmatpush1.bf16.msra.mxu0 0
      %2246 = vmatprep.subr.bf16.mxu0 0
      %2247 = vmatpush1.bf16.msra.mxu0 0
      %2248 = vmatprep.subr.bf16.mxu0 0
      %2249 = vmatpush1.bf16.msra.mxu0 0
      %2250 = vmatprep.mubr.bf16.mxu0 0
      %2251 = vmatmul.mubr.bf16.gmra.mrb[0].mxu0 %v2216
      %v2252 = vpop.f32.mrb[0].mxu0
      %v2253 = vadd.f32 %v2201, %v2252
      %v2254 = vpop.f32.mrb[0].mxu0
      %v2255 = vpop.f32.mrb[0].mxu0
      %v2256 = vpop.f32.mrb[0].mxu0
      %2257 = vdwg.mxu0
      %v2258 = vadd.f32 %v1954, %v2253
      %v2259 = vsel %vm661, %v2258, 0.0
      %2260 = vadd.xlane.f32.xlu0 %v2259
      %v2261 = vpop.xlane.xlu0 %2260
      %v2262 = vmul.f32 %v2261, %v1063
      %v2263 = vsub.f32 %v2258, %v2262
      %v2264 = vmul.f32 %v2263, %v2263
      %v2265 = vsel %vm661, %v2264, 0.0
      %2266 = vadd.xlane.f32.xlu0 %v2265
      %v2267 = vpop.xlane.xlu0 %2266
      %v2268 = vmul.f32 %v2267, %v1063
      %v2269 = vadd.f32 %v2268, 1e-05
      %v2270 = vrsqrt.pop %v2269
      %v2271 = vmul.f32 %v2263, %v2270
      %v2272 = vlaneseq
      %v2273 = vshrl.u32 %v2272, 7
      %v2274 = vsub.s32 1, %v2273
      %v2275 = vrot.slane %v1594, %v2274
      %v2276 = vmul.f32 %v2271, %v2275
      %v2277 = vlaneseq
      %v2278 = vshrl.u32 %v2277, 7
      %v2279 = vsub.s32 1, %v2278
      %v2280 = vrot.slane %v1596, %v2279
      %v2281 = vadd.f32 %v2276, %v2280
      %v2282 = vpack.c.bf16 %v2281, %v2281
      %s2283 = scalar_lea.vmem %s15, 16
      %v2284 = vld [vmem:[%s2283] sm:$0xf]
      %v2285 = vld [vmem:[%s2283 + $0x4] sm:$0xf]
      %v2286 = vld [vmem:[%s2283 + $0x8] sm:$0xf]
      %v2287 = vld [vmem:[%s2283 + $0xc] sm:$0xf]
      %v2289 = vlaneseq
      %v2290 = vshrl.u32 %v2289, 7
      %v2291 = vsub.s32 0, %v2290
      %v2292 = vrot.slane %v1590, %v2291
      %v2298 = vunpack.c.l.b16 %v2284
      %v2299 = vunpack.c.l.b16 %v2285
      %v2300 = vunpack.c.l.b16 %v2286
      %v2301 = vunpack.c.l.b16 %v2287
      %v2302 = vpack.c.b16 %v2299, %v2298
      %v2303 = vpack.c.b16 %v2301, %v2300
      %v2307 = vsel %vm661, %v2282, 0
      %2309 = vmatprep.subr.bf16.mxu0 0
      %2310 = vmatpush1.bf16.msra.mxu0 %v2302
      %2311 = vmatprep.subr.bf16.mxu0 0
      %2312 = vmatpush1.bf16.msra.mxu0 %v2303
      %2313 = vmatprep.subr.bf16.mxu0 0
      %2314 = vmatpush1.bf16.msra.mxu0 0
      %2315 = vmatprep.subr.bf16.mxu0 0
      %2316 = vmatpush1.bf16.msra.mxu0 0
      %2317 = vmatprep.subr.bf16.mxu0 0
      %2318 = vmatpush1.bf16.msra.mxu0 0
      %2319 = vmatprep.subr.bf16.mxu0 0
      %2320 = vmatpush1.bf16.msra.mxu0 0
      %2321 = vmatprep.subr.bf16.mxu0 0
      %2322 = vmatpush1.bf16.msra.mxu0 0
      %2323 = vmatprep.subr.bf16.mxu0 0
      %2324 = vmatpush1.bf16.msra.mxu0 0
      %2325 = vmatprep.subr.bf16.mxu0 0
      %2326 = vmatpush1.bf16.msra.mxu0 0
      %2327 = vmatprep.subr.bf16.mxu0 0
      %2328 = vmatpush1.bf16.msra.mxu0 0
      %2329 = vmatprep.subr.bf16.mxu0 0
      %2330 = vmatpush1.bf16.msra.mxu0 0
      %2331 = vmatprep.subr.bf16.mxu0 0
      %2332 = vmatpush1.bf16.msra.mxu0 0
      %2333 = vmatprep.subr.bf16.mxu0 0
      %2334 = vmatpush1.bf16.msra.mxu0 0
      %2335 = vmatprep.subr.bf16.mxu0 0
      %2336 = vmatpush1.bf16.msra.mxu0 0
      %2337 = vmatprep.subr.bf16.mxu0 0
      %2338 = vmatpush1.bf16.msra.mxu0 0
      %2339 = vmatprep.subr.bf16.mxu0 0
      %2340 = vmatpush1.bf16.msra.mxu0 0
      %2341 = vmatprep.mubr.bf16.mxu0 0
      %2342 = vmatmul.mubr.bf16.gmra.mrb[0].mxu0 %v2307
      %v2343 = vpop.f32.mrb[0].mxu0
      %v2344 = vadd.f32 %v2292, %v2343
      %v2345 = vpop.f32.mrb[0].mxu0
      %v2346 = vpop.f32.mrb[0].mxu0
      %v2347 = vpop.f32.mrb[0].mxu0
      %2348 = vdwg.mxu0
      %v2349 = vmax.f32 %v2344, 0.0
      %v2350 = vpack.c.bf16 %v2349, %v2349
      %s2351 = scalar_lea.vmem %s17, 32
      %v2352 = vld [vmem:[%s2351] sm:$0xf]
      %v2353 = vld [vmem:[%s2351 + $0x4] sm:$0xf]
      %v2354 = vld [vmem:[%s2351 + $0x8] sm:$0xf]
      %v2355 = vld [vmem:[%s2351 + $0xc] sm:$0xf]
      %v2356 = vld [vmem:[%s2351 + $0x10] sm:$0xf]
      %v2357 = vld [vmem:[%s2351 + $0x14] sm:$0xf]
      %v2358 = vld [vmem:[%s2351 + $0x18] sm:$0xf]
      %v2359 = vld [vmem:[%s2351 + $0x1c] sm:$0xf]
      %v2361 = vlaneseq
      %v2362 = vshrl.u32 %v2361, 7
      %v2363 = vsub.s32 0, %v2362
      %v2364 = vrot.slane %v1592, %v2363
      %v2374 = vunpack.c.l.b16 %v2352
      %v2375 = vunpack.c.l.b16 %v2353
      %v2376 = vunpack.c.l.b16 %v2354
      %v2377 = vunpack.c.l.b16 %v2355
      %v2378 = vunpack.c.l.b16 %v2356
      %v2379 = vunpack.c.l.b16 %v2357
      %v2380 = vunpack.c.l.b16 %v2358
      %v2381 = vunpack.c.l.b16 %v2359
      %v2382 = vpack.c.b16 %v2375, %v2374
      %v2383 = vpack.c.b16 %v2377, %v2376
      %v2384 = vpack.c.b16 %v2379, %v2378
      %v2385 = vpack.c.b16 %v2381, %v2380
      %v2391 = vsel %vm1513, %v2350, 0
      %2393 = vmatprep.subr.bf16.mxu0 0
      %2394 = vmatpush1.bf16.msra.mxu0 %v2382
      %2395 = vmatprep.subr.bf16.mxu0 0
      %2396 = vmatpush1.bf16.msra.mxu0 %v2383
      %2397 = vmatprep.subr.bf16.mxu0 0
      %2398 = vmatpush1.bf16.msra.mxu0 %v2384
      %2399 = vmatprep.subr.bf16.mxu0 0
      %2400 = vmatpush1.bf16.msra.mxu0 %v2385
      %2401 = vmatprep.subr.bf16.mxu0 0
      %2402 = vmatpush1.bf16.msra.mxu0 0
      %2403 = vmatprep.subr.bf16.mxu0 0
      %2404 = vmatpush1.bf16.msra.mxu0 0
      %2405 = vmatprep.subr.bf16.mxu0 0
      %2406 = vmatpush1.bf16.msra.mxu0 0
      %2407 = vmatprep.subr.bf16.mxu0 0
      %2408 = vmatpush1.bf16.msra.mxu0 0
      %2409 = vmatprep.subr.bf16.mxu0 0
      %2410 = vmatpush1.bf16.msra.mxu0 0
      %2411 = vmatprep.subr.bf16.mxu0 0
      %2412 = vmatpush1.bf16.msra.mxu0 0
      %2413 = vmatprep.subr.bf16.mxu0 0
      %2414 = vmatpush1.bf16.msra.mxu0 0
      %2415 = vmatprep.subr.bf16.mxu0 0
      %2416 = vmatpush1.bf16.msra.mxu0 0
      %2417 = vmatprep.subr.bf16.mxu0 0
      %2418 = vmatpush1.bf16.msra.mxu0 0
      %2419 = vmatprep.subr.bf16.mxu0 0
      %2420 = vmatpush1.bf16.msra.mxu0 0
      %2421 = vmatprep.subr.bf16.mxu0 0
      %2422 = vmatpush1.bf16.msra.mxu0 0
      %2423 = vmatprep.subr.bf16.mxu0 0
      %2424 = vmatpush1.bf16.msra.mxu0 0
      %2425 = vmatprep.mubr.bf16.mxu0 0
      %2426 = vmatmul.mubr.bf16.gmra.mrb[0].mxu0 %v2391
      %v2427 = vpop.f32.mrb[0].mxu0
      %v2428 = vadd.f32 %v2364, %v2427
      %v2429 = vpop.f32.mrb[0].mxu0
      %v2430 = vpop.f32.mrb[0].mxu0
      %v2431 = vpop.f32.mrb[0].mxu0
      %2432 = vdwg.mxu0
      %v2433 = vadd.f32 %v2281, %v2428
      %v2434 = vsel %vm661, %v2433, 0.0
      %2435 = vadd.xlane.f32.xlu0 %v2434
      %v2436 = vpop.xlane.xlu0 %2435
      %v2437 = vmul.f32 %v2436, %v1063
      %v2438 = vsub.f32 %v2433, %v2437
      %v2439 = vmul.f32 %v2438, %v2438
      %v2440 = vsel %vm661, %v2439, 0.0
      %2441 = vadd.xlane.f32.xlu0 %v2440
      %v2442 = vpop.xlane.xlu0 %2441
      %v2443 = vmul.f32 %v2442, %v1063
      %v2444 = vadd.f32 %v2443, 1e-05
      %v2445 = vrsqrt.pop %v2444
      %v2446 = vmul.f32 %v2438, %v2445
      %v2447 = vlaneseq
      %v2448 = vshrl.u32 %v2447, 7
      %v2449 = vsub.s32 2, %v2448
      %v2450 = vrot.slane %v1594, %v2449
      %v2451 = vmul.f32 %v2446, %v2450
      %v2452 = vlaneseq
      %v2453 = vshrl.u32 %v2452, 7
      %v2454 = vsub.s32 2, %v2453
      %v2455 = vrot.slane %v1596, %v2454
      %v2456 = vadd.f32 %v2451, %v2455
      %2457 = vst.msk [vmem:[%s653] sm:$0xff] %vm661, %v2456
      %v2458 = vpack.c.bf16 %v2456, %v2456
      %s2459 = scalar_lea.vmem %s1, 8
      %v2460 = vld [vmem:[%s2459] sm:$0xff]
      %v2465 = vunpack.c.l.b16 %v657
      %v2466 = vunpack.c.l.b16 %v658
      %v2467 = vunpack.c.l.b16 %v659
      %v2468 = vunpack.c.l.b16 %v660
      %v2469 = vpack.c.b16 %v2466, %v2465
      %v2470 = vpack.c.b16 %v2468, %v2467
      %v2474 = vsel %vm661, %v2458, 0
      %2476 = vmatprep.subr.bf16.mxu0 0
      %2477 = vmatpush1.bf16.msra.mxu0 %v2469
      %2478 = vmatprep.subr.bf16.mxu0 0
      %2479 = vmatpush1.bf16.msra.mxu0 %v2470
      %2480 = vmatprep.subr.bf16.mxu0 0
      %2481 = vmatpush1.bf16.msra.mxu0 0
      %2482 = vmatprep.subr.bf16.mxu0 0
      %2483 = vmatpush1.bf16.msra.mxu0 0
      %2484 = vmatprep.subr.bf16.mxu0 0
      %2485 = vmatpush1.bf16.msra.mxu0 0
      %2486 = vmatprep.subr.bf16.mxu0 0
      %2487 = vmatpush1.bf16.msra.mxu0 0
      %2488 = vmatprep.subr.bf16.mxu0 0
      %2489 = vmatpush1.bf16.msra.mxu0 0
      %2490 = vmatprep.subr.bf16.mxu0 0
      %2491 = vmatpush1.bf16.msra.mxu0 0
      %2492 = vmatprep.subr.bf16.mxu0 0
      %2493 = vmatpush1.bf16.msra.mxu0 0
      %2494 = vmatprep.subr.bf16.mxu0 0
      %2495 = vmatpush1.bf16.msra.mxu0 0
      %2496 = vmatprep.subr.bf16.mxu0 0
      %2497 = vmatpush1.bf16.msra.mxu0 0
      %2498 = vmatprep.subr.bf16.mxu0 0
      %2499 = vmatpush1.bf16.msra.mxu0 0
      %2500 = vmatprep.subr.bf16.mxu0 0
      %2501 = vmatpush1.bf16.msra.mxu0 0
      %2502 = vmatprep.subr.bf16.mxu0 0
      %2503 = vmatpush1.bf16.msra.mxu0 0
      %2504 = vmatprep.subr.bf16.mxu0 0
      %2505 = vmatpush1.bf16.msra.mxu0 0
      %2506 = vmatprep.subr.bf16.mxu0 0
      %2507 = vmatpush1.bf16.msra.mxu0 0
      %2508 = vmatprep.mubr.bf16.mxu0 0
      %2509 = vmatmul.mubr.bf16.gmra.mrb[0].mxu0 %v2474
      %v2510 = vpop.f32.mrb[0].mxu0
      %v2511 = vadd.f32 %v2460, %v2510
      %v2512 = vpop.f32.mrb[0].mxu0
      %v2513 = vpop.f32.mrb[0].mxu0
      %v2514 = vpop.f32.mrb[0].mxu0
      %2515 = vdwg.mxu0
      %v2516 = vadd.f32 %v2511, %v655
      %v2517 = vld [vmem:[%s3 + $0x8] sm:$0xff]
      %v2518 = vld [vmem:[%s8] sm:$0x1]
      %v2519 = vld [vmem:[%s10] sm:$0x1]
      %v2520 = vld [vmem:[%s12] sm:$0x1]
      %v2521 = vld [vmem:[%s14] sm:$0x1]
      %v2522 = vld [vmem:[%s16] sm:$0x1]
      %v2523 = vld [vmem:[%s18] sm:$0x1]
      %v2524 = vld [vmem:[%s19] sm:$0x7]
      %v2525 = vld [vmem:[%s20] sm:$0x7]
      %v2526 = vpack.c.bf16 %v2516, %v2516
      %v2527 = vld [vmem:[%s7] sm:$0xf]
      %v2528 = vld [vmem:[%s7 + $0x4] sm:$0xf]
      %v2529 = vld [vmem:[%s7 + $0x8] sm:$0xf]
      %v2530 = vld [vmem:[%s7 + $0xc] sm:$0xf]
      %v2532 = vlaneseq
      %v2533 = vshrl.u32 %v2532, 7
      %v2534 = vsub.s32 0, %v2533
      %v2535 = vrot.slane %v2518, %v2534
      %v2541 = vunpack.c.l.b16 %v2527
      %v2542 = vunpack.c.l.b16 %v2528
      %v2543 = vunpack.c.l.b16 %v2529
      %v2544 = vunpack.c.l.b16 %v2530
      %v2545 = vpack.c.b16 %v2542, %v2541
      %v2546 = vpack.c.b16 %v2544, %v2543
      %v2550 = vsel %vm661, %v2526, 0
      %2552 = vmatprep.subr.bf16.mxu0 0
      %2553 = vmatpush1.bf16.msra.mxu0 %v2545
      %2554 = vmatprep.subr.bf16.mxu0 0
      %2555 = vmatpush1.bf16.msra.mxu0 %v2546
      %2556 = vmatprep.subr.bf16.mxu0 0
      %2557 = vmatpush1.bf16.msra.mxu0 0
      %2558 = vmatprep.subr.bf16.mxu0 0
      %2559 = vmatpush1.bf16.msra.mxu0 0
      %2560 = vmatprep.subr.bf16.mxu0 0
      %2561 = vmatpush1.bf16.msra.mxu0 0
      %2562 = vmatprep.subr.bf16.mxu0 0
      %2563 = vmatpush1.bf16.msra.mxu0 0
      %2564 = vmatprep.subr.bf16.mxu0 0
      %2565 = vmatpush1.bf16.msra.mxu0 0
      %2566 = vmatprep.subr.bf16.mxu0 0
      %2567 = vmatpush1.bf16.msra.mxu0 0
      %2568 = vmatprep.subr.bf16.mxu0 0
      %2569 = vmatpush1.bf16.msra.mxu0 0
      %2570 = vmatprep.subr.bf16.mxu0 0
      %2571 = vmatpush1.bf16.msra.mxu0 0
      %2572 = vmatprep.subr.bf16.mxu0 0
      %2573 = vmatpush1.bf16.msra.mxu0 0
      %2574 = vmatprep.subr.bf16.mxu0 0
      %2575 = vmatpush1.bf16.msra.mxu0 0
      %2576 = vmatprep.subr.bf16.mxu0 0
      %2577 = vmatpush1.bf16.msra.mxu0 0
      %2578 = vmatprep.subr.bf16.mxu0 0
      %2579 = vmatpush1.bf16.msra.mxu0 0
      %2580 = vmatprep.subr.bf16.mxu0 0
      %2581 = vmatpush1.bf16.msra.mxu0 0
      %2582 = vmatprep.subr.bf16.mxu0 0
      %2583 = vmatpush1.bf16.msra.mxu0 0
      %2584 = vmatprep.mubr.bf16.mxu0 0
      %2585 = vmatmul.mubr.bf16.gmra.mrb[0].mxu0 %v2550
      %v2586 = vpop.f32.mrb[0].mxu0
      %v2587 = vadd.f32 %v2535, %v2586
      %v2588 = vpop.f32.mrb[0].mxu0
      %v2589 = vpop.f32.mrb[0].mxu0
      %v2590 = vpop.f32.mrb[0].mxu0
      %2591 = vdwg.mxu0
      %2593 = vrot.lane.b32.xlu0 %v2587, 96
      %v2594 = vpop.permute.xlu0 %2593
      %2596 = vst.msk [vmem:[#allocation2 + $0x8] sm:$0xff] %vm791, %v2594
      %2597 = vrot.lane.b32.xlu0 %v2587, 64
      %v2598 = vpop.permute.xlu0 %2597
      %2600 = vst.msk [vmem:[#allocation3 + $0x8] sm:$0xff] %vm791, %v2598
      %2601 = vst.msk [vmem:[#allocation2 + $0x20] sm:$0xff] %vm797, %v2594
      %2602 = vst.msk [vmem:[#allocation3 + $0x20] sm:$0xff] %vm797, %v2598
      %2603 = vst.msk [vmem:[#allocation2 + $0x38] sm:$0xff] %vm800, %v2594
      %2604 = vst.msk [vmem:[#allocation3 + $0x38] sm:$0xff] %vm800, %v2598
      %2605 = vst.msk [vmem:[#allocation2 + $0x50] sm:$0xff] %vm803, %v2594
      %2606 = vst.msk [vmem:[#allocation3 + $0x50] sm:$0xff] %vm803, %v2598
      %v2607 = vld [vmem:[#allocation2] sm:$0xff]
      %v2608 = vld [vmem:[#allocation2 + $0x8] sm:$0xff]
      %v2609 = vld [vmem:[#allocation2 + $0x10] sm:$0xff]
      %v2610 = vld [vmem:[#allocation2 + $0x18] sm:$0xff]
      %v2611 = vld [vmem:[#allocation2 + $0x20] sm:$0xff]
      %v2612 = vld [vmem:[#allocation2 + $0x28] sm:$0xff]
      %v2613 = vld [vmem:[#allocation2 + $0x30] sm:$0xff]
      %v2614 = vld [vmem:[#allocation2 + $0x38] sm:$0xff]
      %v2615 = vld [vmem:[#allocation2 + $0x40] sm:$0xff]
      %v2616 = vld [vmem:[#allocation2 + $0x48] sm:$0xff]
      %v2617 = vld [vmem:[#allocation2 + $0x50] sm:$0xff]
      %v2618 = vld [vmem:[#allocation2 + $0x58] sm:$0xff]
      %v2619 = vld [vmem:[#allocation3] sm:$0xff]
      %v2620 = vld [vmem:[#allocation3 + $0x8] sm:$0xff]
      %v2621 = vld [vmem:[#allocation3 + $0x10] sm:$0xff]
      %v2622 = vld [vmem:[#allocation3 + $0x18] sm:$0xff]
      %v2623 = vld [vmem:[#allocation3 + $0x20] sm:$0xff]
      %v2624 = vld [vmem:[#allocation3 + $0x28] sm:$0xff]
      %v2625 = vld [vmem:[#allocation3 + $0x30] sm:$0xff]
      %v2626 = vld [vmem:[#allocation3 + $0x38] sm:$0xff]
      %v2627 = vld [vmem:[#allocation3 + $0x40] sm:$0xff]
      %v2628 = vld [vmem:[#allocation3 + $0x48] sm:$0xff]
      %v2629 = vld [vmem:[#allocation3 + $0x50] sm:$0xff]
      %v2630 = vld [vmem:[#allocation3 + $0x58] sm:$0xff]
      %v2631 = vld [vmem:[%s9] sm:$0xf]
      %v2632 = vld [vmem:[%s9 + $0x4] sm:$0xf]
      %v2633 = vld [vmem:[%s9 + $0x8] sm:$0xf]
      %v2634 = vld [vmem:[%s9 + $0xc] sm:$0xf]
      %v2635 = vpack.c.bf16 %v2587, %v2587
      %v2636 = vpack.c.bf16 %v2608, %v2607
      %v2637 = vpack.c.bf16 %v2610, %v2609
      %v2638 = vpack.c.bf16 %v2612, %v2611
      %v2639 = vpack.c.bf16 %v2614, %v2613
      %v2640 = vpack.c.bf16 %v2616, %v2615
      %v2641 = vpack.c.bf16 %v2618, %v2617
      %v2643 = vsel %vm661, %v2635, 0
      %v2646 = vsel %vm661, %v2636, 0
      %v2649 = vsel %vm661, %v2637, 0
      %v2652 = vsel %vm661, %v2638, 0
      %v2655 = vsel %vm661, %v2639, 0
      %v2658 = vsel %vm661, %v2640, 0
      %v2661 = vsel %vm661, %v2641, 0
      %2663 = vmatprep.subr.bf16.mxu0 0
      %2664 = vmatpush1.bf16.xpose.msra.mxu0 %v2646
      %2665 = vmatprep.subr.bf16.mxu0 0
      %2666 = vmatpush1.bf16.xpose.msra.mxu0 %v2649
      %2667 = vmatprep.subr.bf16.mxu0 0
      %2668 = vmatpush1.bf16.xpose.msra.mxu0 %v2652
      %2669 = vmatprep.subr.bf16.mxu0 0
      %2670 = vmatpush1.bf16.xpose.msra.mxu0 %v2655
      %2671 = vmatprep.subr.bf16.mxu0 0
      %2672 = vmatpush1.bf16.xpose.msra.mxu0 %v2658
      %2673 = vmatprep.subr.bf16.mxu0 0
      %2674 = vmatpush1.bf16.xpose.msra.mxu0 %v2661
      %2675 = vmatprep.subr.bf16.mxu0 0
      %2676 = vmatpush1.bf16.xpose.msra.mxu0 0
      %2677 = vmatprep.subr.bf16.mxu0 0
      %2678 = vmatpush1.bf16.xpose.msra.mxu0 0
      %2679 = vmatprep.subr.bf16.mxu0 0
      %2680 = vmatpush1.bf16.xpose.msra.mxu0 0
      %2681 = vmatprep.subr.bf16.mxu0 0
      %2682 = vmatpush1.bf16.xpose.msra.mxu0 0
      %2683 = vmatprep.subr.bf16.mxu0 0
      %2684 = vmatpush1.bf16.xpose.msra.mxu0 0
      %2685 = vmatprep.subr.bf16.mxu0 0
      %2686 = vmatpush1.bf16.xpose.msra.mxu0 0
      %2687 = vmatprep.subr.bf16.mxu0 0
      %2688 = vmatpush1.bf16.xpose.msra.mxu0 0
      %2689 = vmatprep.subr.bf16.mxu0 0
      %2690 = vmatpush1.bf16.xpose.msra.mxu0 0
      %2691 = vmatprep.subr.bf16.mxu0 0
      %2692 = vmatpush1.bf16.xpose.msra.mxu0 0
      %2693 = vmatprep.subr.bf16.mxu0 0
      %2694 = vmatpush1.bf16.xpose.msra.mxu0 0
      %2695 = vmatprep.mubr.bf16.mxu0 0
      %2696 = vmatmul.mubr.bf16.gmra.mrb[0].mxu0 %v2643
      %v2697 = vpop.f32.mrb[0].mxu0
      %v2698 = vadd.f32 0.0, %v2697
      %v2699 = vpop.f32.mrb[0].mxu0
      %v2700 = vpop.f32.mrb[0].mxu0
      %v2701 = vpop.f32.mrb[0].mxu0
      %2702 = vdwg.mxu0
      %v2703 = vmul.f32 %v2698, 0.35355338
      %v2704 = vadd.f32 %v2703, %v2517
      %v2705 = vsel %vm904, %v2704, -inf
      %2706 = vmax.xlane.f32.xlu0 %v2705
      %v2707 = vpop.xlane.xlu0 %2706
      %v2708 = vsub.f32 %v2704, %v2707
      %v2709 = vmul.f32 %v2708, 1.442695
      %v2710 = vpow.pop %v2709
      %v2711 = vpack.c.bf16 %v2710, %v2710
      %v2712 = vpack.c.bf16 %v2620, %v2619
      %v2713 = vpack.c.bf16 %v2622, %v2621
      %v2714 = vpack.c.bf16 %v2624, %v2623
      %v2715 = vpack.c.bf16 %v2626, %v2625
      %v2716 = vpack.c.bf16 %v2628, %v2627
      %v2717 = vpack.c.bf16 %v2630, %v2629
      %v2719 = vsel %vm904, %v2711, 0
      %2721 = vmatprep.subr.bf16.mxu0 0
      %2722 = vmatpush1.bf16.msra.mxu0 %v2712
      %2723 = vmatprep.subr.bf16.mxu0 0
      %2724 = vmatpush1.bf16.msra.mxu0 %v2713
      %2725 = vmatprep.subr.bf16.mxu0 0
      %2726 = vmatpush1.bf16.msra.mxu0 %v2714
      %2727 = vmatprep.subr.bf16.mxu0 0
      %2728 = vmatpush1.bf16.msra.mxu0 %v2715
      %2729 = vmatprep.subr.bf16.mxu0 0
      %2730 = vmatpush1.bf16.msra.mxu0 %v2716
      %2731 = vmatprep.subr.bf16.mxu0 0
      %2732 = vmatpush1.bf16.msra.mxu0 %v2717
      %2733 = vmatprep.subr.bf16.mxu0 0
      %2734 = vmatpush1.bf16.msra.mxu0 0
      %2735 = vmatprep.subr.bf16.mxu0 0
      %2736 = vmatpush1.bf16.msra.mxu0 0
      %2737 = vmatprep.subr.bf16.mxu0 0
      %2738 = vmatpush1.bf16.msra.mxu0 0
      %2739 = vmatprep.subr.bf16.mxu0 0
      %2740 = vmatpush1.bf16.msra.mxu0 0
      %2741 = vmatprep.subr.bf16.mxu0 0
      %2742 = vmatpush1.bf16.msra.mxu0 0
      %2743 = vmatprep.subr.bf16.mxu0 0
      %2744 = vmatpush1.bf16.msra.mxu0 0
      %2745 = vmatprep.subr.bf16.mxu0 0
      %2746 = vmatpush1.bf16.msra.mxu0 0
      %2747 = vmatprep.subr.bf16.mxu0 0
      %2748 = vmatpush1.bf16.msra.mxu0 0
      %2749 = vmatprep.subr.bf16.mxu0 0
      %2750 = vmatpush1.bf16.msra.mxu0 0
      %2751 = vmatprep.subr.bf16.mxu0 0
      %2752 = vmatpush1.bf16.msra.mxu0 0
      %2753 = vmatprep.mubr.bf16.mxu0 0
      %2754 = vmatmul.mubr.bf16.gmra.mrb[0].mxu0 %v2719
      %v2755 = vpop.f32.mrb[0].mxu0
      %v2756 = vadd.f32 0.0, %v2755
      %v2757 = vpop.f32.mrb[0].mxu0
      %v2758 = vpop.f32.mrb[0].mxu0
      %v2759 = vpop.f32.mrb[0].mxu0
      %2760 = vdwg.mxu0
      %v2761 = vsel %vm961, %v2710, 0.0
      %2762 = vadd.xlane.f32.xlu0 %v2761
      %v2763 = vpop.xlane.xlu0 %2762
      %v2764 = vrcp.pop %v2763
      %v2765 = vmul.f32 %v2756, %v2764
      %2766 = vst.msk [vmem:[#allocation4] sm:$0xff] %vm791, %v2765
      %2768 = vrot.lane.b32.xlu0 %v2710, 104
      %v2769 = vpop.permute.xlu0 %2768
      %v2771 = vsel %vm961, %v2769, 0.0
      %2772 = vadd.xlane.f32.xlu0 %v2771
      %v2773 = vpop.xlane.xlu0 %2772
      %v2774 = vrcp.pop %v2773
      %v2775 = vmul.f32 %v2756, %v2774
      %2776 = vst.msk [vmem:[#allocation4] sm:$0xff] %vm797, %v2775
      %2777 = vrot.lane.b32.xlu0 %v2710, 80
      %v2778 = vpop.permute.xlu0 %2777
      %v2780 = vsel %vm961, %v2778, 0.0
      %2781 = vadd.xlane.f32.xlu0 %v2780
      %v2782 = vpop.xlane.xlu0 %2781
      %v2783 = vrcp.pop %v2782
      %v2784 = vmul.f32 %v2756, %v2783
      %2785 = vst.msk [vmem:[#allocation4] sm:$0xff] %vm800, %v2784
      %2786 = vrot.lane.b32.xlu0 %v2710, 56
      %v2787 = vpop.permute.xlu0 %2786
      %v2789 = vsel %vm961, %v2787, 0.0
      %2790 = vadd.xlane.f32.xlu0 %v2789
      %v2791 = vpop.xlane.xlu0 %2790
      %v2792 = vrcp.pop %v2791
      %v2793 = vmul.f32 %v2756, %v2792
      %2794 = vst.msk [vmem:[#allocation4] sm:$0xff] %vm803, %v2793
      %v2795 = vld [vmem:[#allocation4] sm:$0xff]
      %v2796 = vpack.c.bf16 %v2795, %v2795
      %v2798 = vlaneseq
      %v2799 = vshrl.u32 %v2798, 7
      %v2800 = vsub.s32 0, %v2799
      %v2801 = vrot.slane %v2519, %v2800
      %v2807 = vunpack.c.l.b16 %v2631
      %v2808 = vunpack.c.l.b16 %v2632
      %v2809 = vunpack.c.l.b16 %v2633
      %v2810 = vunpack.c.l.b16 %v2634
      %v2811 = vpack.c.b16 %v2808, %v2807
      %v2812 = vpack.c.b16 %v2810, %v2809
      %v2816 = vsel %vm661, %v2796, 0
      %2818 = vmatprep.subr.bf16.mxu0 0
      %2819 = vmatpush1.bf16.msra.mxu0 %v2811
      %2820 = vmatprep.subr.bf16.mxu0 0
      %2821 = vmatpush1.bf16.msra.mxu0 %v2812
      %2822 = vmatprep.subr.bf16.mxu0 0
      %2823 = vmatpush1.bf16.msra.mxu0 0
      %2824 = vmatprep.subr.bf16.mxu0 0
      %2825 = vmatpush1.bf16.msra.mxu0 0
      %2826 = vmatprep.subr.bf16.mxu0 0
      %2827 = vmatpush1.bf16.msra.mxu0 0
      %2828 = vmatprep.subr.bf16.mxu0 0
      %2829 = vmatpush1.bf16.msra.mxu0 0
      %2830 = vmatprep.subr.bf16.mxu0 0
      %2831 = vmatpush1.bf16.msra.mxu0 0
      %2832 = vmatprep.subr.bf16.mxu0 0
      %2833 = vmatpush1.bf16.msra.mxu0 0
      %2834 = vmatprep.subr.bf16.mxu0 0
      %2835 = vmatpush1.bf16.msra.mxu0 0
      %2836 = vmatprep.subr.bf16.mxu0 0
      %2837 = vmatpush1.bf16.msra.mxu0 0
      %2838 = vmatprep.subr.bf16.mxu0 0
      %2839 = vmatpush1.bf16.msra.mxu0 0
      %2840 = vmatprep.subr.bf16.mxu0 0
      %2841 = vmatpush1.bf16.msra.mxu0 0
      %2842 = vmatprep.subr.bf16.mxu0 0
      %2843 = vmatpush1.bf16.msra.mxu0 0
      %2844 = vmatprep.subr.bf16.mxu0 0
      %2845 = vmatpush1.bf16.msra.mxu0 0
      %2846 = vmatprep.subr.bf16.mxu0 0
      %2847 = vmatpush1.bf16.msra.mxu0 0
      %2848 = vmatprep.subr.bf16.mxu0 0
      %2849 = vmatpush1.bf16.msra.mxu0 0
      %2850 = vmatprep.mubr.bf16.mxu0 0
      %2851 = vmatmul.mubr.bf16.gmra.mrb[0].mxu0 %v2816
      %v2852 = vpop.f32.mrb[0].mxu0
      %v2853 = vadd.f32 %v2801, %v2852
      %v2854 = vpop.f32.mrb[0].mxu0
      %v2855 = vpop.f32.mrb[0].mxu0
      %v2856 = vpop.f32.mrb[0].mxu0
      %2857 = vdwg.mxu0
      %v2858 = vadd.f32 %v2516, %v2853
      %v2859 = vsel %vm661, %v2858, 0.0
      %2860 = vadd.xlane.f32.xlu0 %v2859
      %v2861 = vpop.xlane.xlu0 %2860
      %v2862 = vmul.f32 %v2861, %v1063
      %v2863 = vsub.f32 %v2858, %v2862
      %v2864 = vmul.f32 %v2863, %v2863
      %v2865 = vsel %vm661, %v2864, 0.0
      %2866 = vadd.xlane.f32.xlu0 %v2865
      %v2867 = vpop.xlane.xlu0 %2866
      %v2868 = vmul.f32 %v2867, %v1063
      %v2869 = vadd.f32 %v2868, 1e-05
      %v2870 = vrsqrt.pop %v2869
      %v2871 = vmul.f32 %v2863, %v2870
      %v2872 = vlaneseq
      %v2873 = vshrl.u32 %v2872, 7
      %v2874 = vsub.s32 0, %v2873
      %v2875 = vrot.slane %v2524, %v2874
      %v2876 = vmul.f32 %v2871, %v2875
      %v2877 = vlaneseq
      %v2878 = vshrl.u32 %v2877, 7
      %v2879 = vsub.s32 0, %v2878
      %v2880 = vrot.slane %v2525, %v2879
      %v2881 = vadd.f32 %v2876, %v2880
      %v2882 = vpack.c.bf16 %v2881, %v2881
      %v2883 = vld [vmem:[%s11] sm:$0xf]
      %v2884 = vld [vmem:[%s11 + $0x4] sm:$0xf]
      %v2885 = vld [vmem:[%s11 + $0x8] sm:$0xf]
      %v2886 = vld [vmem:[%s11 + $0xc] sm:$0xf]
      %v2888 = vlaneseq
      %v2889 = vshrl.u32 %v2888, 7
      %v2890 = vsub.s32 0, %v2889
      %v2891 = vrot.slane %v2520, %v2890
      %v2897 = vunpack.c.l.b16 %v2883
      %v2898 = vunpack.c.l.b16 %v2884
      %v2899 = vunpack.c.l.b16 %v2885
      %v2900 = vunpack.c.l.b16 %v2886
      %v2901 = vpack.c.b16 %v2898, %v2897
      %v2902 = vpack.c.b16 %v2900, %v2899
      %v2906 = vsel %vm661, %v2882, 0
      %2908 = vmatprep.subr.bf16.mxu0 0
      %2909 = vmatpush1.bf16.msra.mxu0 %v2901
      %2910 = vmatprep.subr.bf16.mxu0 0
      %2911 = vmatpush1.bf16.msra.mxu0 %v2902
      %2912 = vmatprep.subr.bf16.mxu0 0
      %2913 = vmatpush1.bf16.msra.mxu0 0
      %2914 = vmatprep.subr.bf16.mxu0 0
      %2915 = vmatpush1.bf16.msra.mxu0 0
      %2916 = vmatprep.subr.bf16.mxu0 0
      %2917 = vmatpush1.bf16.msra.mxu0 0
      %2918 = vmatprep.subr.bf16.mxu0 0
      %2919 = vmatpush1.bf16.msra.mxu0 0
      %2920 = vmatprep.subr.bf16.mxu0 0
      %2921 = vmatpush1.bf16.msra.mxu0 0
      %2922 = vmatprep.subr.bf16.mxu0 0
      %2923 = vmatpush1.bf16.msra.mxu0 0
      %2924 = vmatprep.subr.bf16.mxu0 0
      %2925 = vmatpush1.bf16.msra.mxu0 0
      %2926 = vmatprep.subr.bf16.mxu0 0
      %2927 = vmatpush1.bf16.msra.mxu0 0
      %2928 = vmatprep.subr.bf16.mxu0 0
      %2929 = vmatpush1.bf16.msra.mxu0 0
      %2930 = vmatprep.subr.bf16.mxu0 0
      %2931 = vmatpush1.bf16.msra.mxu0 0
      %2932 = vmatprep.subr.bf16.mxu0 0
      %2933 = vmatpush1.bf16.msra.mxu0 0
      %2934 = vmatprep.subr.bf16.mxu0 0
      %2935 = vmatpush1.bf16.msra.mxu0 0
      %2936 = vmatprep.subr.bf16.mxu0 0
      %2937 = vmatpush1.bf16.msra.mxu0 0
      %2938 = vmatprep.subr.bf16.mxu0 0
      %2939 = vmatpush1.bf16.msra.mxu0 0
      %2940 = vmatprep.mubr.bf16.mxu0 0
      %2941 = vmatmul.mubr.bf16.gmra.mrb[0].mxu0 %v2906
      %v2942 = vpop.f32.mrb[0].mxu0
      %v2943 = vadd.f32 %v2891, %v2942
      %v2944 = vpop.f32.mrb[0].mxu0
      %v2945 = vpop.f32.mrb[0].mxu0
      %v2946 = vpop.f32.mrb[0].mxu0
      %2947 = vdwg.mxu0
      %v2948 = vld [vmem:[%s5] sm:$0xf]
      %v2949 = vld [vmem:[%s5 + $0x4] sm:$0xf]
      %v2950 = vld [vmem:[%s5 + $0x8] sm:$0xf]
      %v2951 = vld [vmem:[%s5 + $0xc] sm:$0xf]
      %v2952 = vld [vmem:[%s6] sm:$0xf]
      %v2953 = vld [vmem:[%s6 + $0x4] sm:$0xf]
      %v2954 = vld [vmem:[%s6 + $0x8] sm:$0xf]
      %v2955 = vld [vmem:[%s6 + $0xc] sm:$0xf]
      %v2956 = vld [vmem:[%s13] sm:$0xf]
      %v2957 = vld [vmem:[%s13 + $0x4] sm:$0xf]
      %v2958 = vld [vmem:[%s13 + $0x8] sm:$0xf]
      %v2959 = vld [vmem:[%s13 + $0xc] sm:$0xf]
      %v2960 = vpack.c.bf16 %v2943, %v2943
      %v2965 = vunpack.c.l.b16 %v2948
      %v2966 = vunpack.c.l.b16 %v2949
      %v2967 = vunpack.c.l.b16 %v2950
      %v2968 = vunpack.c.l.b16 %v2951
      %v2969 = vpack.c.b16 %v2966, %v2965
      %v2970 = vpack.c.b16 %v2968, %v2967
      %v2972 = vsel %vm661, %v2960, 0
      %v2975 = vsel %vm661, %v2969, 0
      %v2978 = vsel %vm661, %v2970, 0
      %2980 = vmatprep.subr.bf16.mxu0 0
      %2981 = vmatpush1.bf16.xpose.msra.mxu0 %v2975
      %2982 = vmatprep.subr.bf16.mxu0 0
      %2983 = vmatpush1.bf16.xpose.msra.mxu0 %v2978
      %2984 = vmatprep.subr.bf16.mxu0 0
      %2985 = vmatpush1.bf16.xpose.msra.mxu0 0
      %2986 = vmatprep.subr.bf16.mxu0 0
      %2987 = vmatpush1.bf16.xpose.msra.mxu0 0
      %2988 = vmatprep.subr.bf16.mxu0 0
      %2989 = vmatpush1.bf16.xpose.msra.mxu0 0
      %2990 = vmatprep.subr.bf16.mxu0 0
      %2991 = vmatpush1.bf16.xpose.msra.mxu0 0
      %2992 = vmatprep.subr.bf16.mxu0 0
      %2993 = vmatpush1.bf16.xpose.msra.mxu0 0
      %2994 = vmatprep.subr.bf16.mxu0 0
      %2995 = vmatpush1.bf16.xpose.msra.mxu0 0
      %2996 = vmatprep.subr.bf16.mxu0 0
      %2997 = vmatpush1.bf16.xpose.msra.mxu0 0
      %2998 = vmatprep.subr.bf16.mxu0 0
      %2999 = vmatpush1.bf16.xpose.msra.mxu0 0
      %3000 = vmatprep.subr.bf16.mxu0 0
      %3001 = vmatpush1.bf16.xpose.msra.mxu0 0
      %3002 = vmatprep.subr.bf16.mxu0 0
      %3003 = vmatpush1.bf16.xpose.msra.mxu0 0
      %3004 = vmatprep.subr.bf16.mxu0 0
      %3005 = vmatpush1.bf16.xpose.msra.mxu0 0
      %3006 = vmatprep.subr.bf16.mxu0 0
      %3007 = vmatpush1.bf16.xpose.msra.mxu0 0
      %3008 = vmatprep.subr.bf16.mxu0 0
      %3009 = vmatpush1.bf16.xpose.msra.mxu0 0
      %3010 = vmatprep.subr.bf16.mxu0 0
      %3011 = vmatpush1.bf16.xpose.msra.mxu0 0
      %3012 = vmatprep.mubr.bf16.mxu0 0
      %3013 = vmatmul.mubr.bf16.gmra.mrb[0].mxu0 %v2972
      %v3014 = vpop.f32.mrb[0].mxu0
      %v3015 = vadd.f32 0.0, %v3014
      %v3016 = vpop.f32.mrb[0].mxu0
      %v3017 = vpop.f32.mrb[0].mxu0
      %v3018 = vpop.f32.mrb[0].mxu0
      %3019 = vdwg.mxu0
      %v3020 = vmul.f32 %v3015, 0.35355338
      %v3021 = vadd.f32 %v3020, %v656
      %v3022 = vsel %vm661, %v3021, -inf
      %3023 = vmax.xlane.f32.xlu0 %v3022
      %v3024 = vpop.xlane.xlu0 %3023
      %v3025 = vsub.f32 %v3021, %v3024
      %v3026 = vmul.f32 %v3025, 1.442695
      %v3027 = vpow.pop %v3026
      %v3028 = vpack.c.bf16 %v3027, %v3027
      %v3033 = vunpack.c.l.b16 %v2952
      %v3034 = vunpack.c.l.b16 %v2953
      %v3035 = vunpack.c.l.b16 %v2954
      %v3036 = vunpack.c.l.b16 %v2955
      %v3037 = vpack.c.b16 %v3034, %v3033
      %v3038 = vpack.c.b16 %v3036, %v3035
      %v3042 = vsel %vm661, %v3028, 0
      %3044 = vmatprep.subr.bf16.mxu0 0
      %3045 = vmatpush1.bf16.msra.mxu0 %v3037
      %3046 = vmatprep.subr.bf16.mxu0 0
      %3047 = vmatpush1.bf16.msra.mxu0 %v3038
      %3048 = vmatprep.subr.bf16.mxu0 0
      %3049 = vmatpush1.bf16.msra.mxu0 0
      %3050 = vmatprep.subr.bf16.mxu0 0
      %3051 = vmatpush1.bf16.msra.mxu0 0
      %3052 = vmatprep.subr.bf16.mxu0 0
      %3053 = vmatpush1.bf16.msra.mxu0 0
      %3054 = vmatprep.subr.bf16.mxu0 0
      %3055 = vmatpush1.bf16.msra.mxu0 0
      %3056 = vmatprep.subr.bf16.mxu0 0
      %3057 = vmatpush1.bf16.msra.mxu0 0
      %3058 = vmatprep.subr.bf16.mxu0 0
      %3059 = vmatpush1.bf16.msra.mxu0 0
      %3060 = vmatprep.subr.bf16.mxu0 0
      %3061 = vmatpush1.bf16.msra.mxu0 0
      %3062 = vmatprep.subr.bf16.mxu0 0
      %3063 = vmatpush1.bf16.msra.mxu0 0
      %3064 = vmatprep.subr.bf16.mxu0 0
      %3065 = vmatpush1.bf16.msra.mxu0 0
      %3066 = vmatprep.subr.bf16.mxu0 0
      %3067 = vmatpush1.bf16.msra.mxu0 0
      %3068 = vmatprep.subr.bf16.mxu0 0
      %3069 = vmatpush1.bf16.msra.mxu0 0
      %3070 = vmatprep.subr.bf16.mxu0 0
      %3071 = vmatpush1.bf16.msra.mxu0 0
      %3072 = vmatprep.subr.bf16.mxu0 0
      %3073 = vmatpush1.bf16.msra.mxu0 0
      %3074 = vmatprep.subr.bf16.mxu0 0
      %3075 = vmatpush1.bf16.msra.mxu0 0
      %3076 = vmatprep.mubr.bf16.mxu0 0
      %3077 = vmatmul.mubr.bf16.gmra.mrb[0].mxu0 %v3042
      %v3078 = vpop.f32.mrb[0].mxu0
      %v3079 = vadd.f32 0.0, %v3078
      %v3080 = vpop.f32.mrb[0].mxu0
      %v3081 = vpop.f32.mrb[0].mxu0
      %v3082 = vpop.f32.mrb[0].mxu0
      %3083 = vdwg.mxu0
      %v3084 = vsel %vm791, %v3027, 0.0
      %3085 = vadd.xlane.f32.xlu0 %v3084
      %v3086 = vpop.xlane.xlu0 %3085
      %v3087 = vrcp.pop %v3086
      %v3088 = vmul.f32 %v3079, %v3087
      %3089 = vst.msk [vmem:[#allocation4] sm:$0xff] %vm791, %v3088
      %3091 = vrot.lane.b32.xlu0 %v3027, 120
      %v3092 = vpop.permute.xlu0 %3091
      %v3094 = vsel %vm791, %v3092, 0.0
      %3095 = vadd.xlane.f32.xlu0 %v3094
      %v3096 = vpop.xlane.xlu0 %3095
      %v3097 = vrcp.pop %v3096
      %v3098 = vmul.f32 %v3079, %v3097
      %3099 = vst.msk [vmem:[#allocation4] sm:$0xff] %vm797, %v3098
      %3100 = vrot.lane.b32.xlu0 %v3027, 112
      %v3101 = vpop.permute.xlu0 %3100
      %v3103 = vsel %vm791, %v3101, 0.0
      %3104 = vadd.xlane.f32.xlu0 %v3103
      %v3105 = vpop.xlane.xlu0 %3104
      %v3106 = vrcp.pop %v3105
      %v3107 = vmul.f32 %v3079, %v3106
      %3108 = vst.msk [vmem:[#allocation4] sm:$0xff] %vm800, %v3107
      %3109 = vrot.lane.b32.xlu0 %v3027, 104
      %v3110 = vpop.permute.xlu0 %3109
      %v3112 = vsel %vm791, %v3110, 0.0
      %3113 = vadd.xlane.f32.xlu0 %v3112
      %v3114 = vpop.xlane.xlu0 %3113
      %v3115 = vrcp.pop %v3114
      %v3116 = vmul.f32 %v3079, %v3115
      %3117 = vst.msk [vmem:[#allocation4] sm:$0xff] %vm803, %v3116
      %v3118 = vld [vmem:[#allocation4] sm:$0xff]
      %v3119 = vpack.c.bf16 %v3118, %v3118
      %v3121 = vlaneseq
      %v3122 = vshrl.u32 %v3121, 7
      %v3123 = vsub.s32 0, %v3122
      %v3124 = vrot.slane %v2521, %v3123
      %v3130 = vunpack.c.l.b16 %v2956
      %v3131 = vunpack.c.l.b16 %v2957
      %v3132 = vunpack.c.l.b16 %v2958
      %v3133 = vunpack.c.l.b16 %v2959
      %v3134 = vpack.c.b16 %v3131, %v3130
      %v3135 = vpack.c.b16 %v3133, %v3132
      %v3139 = vsel %vm661, %v3119, 0
      %3141 = vmatprep.subr.bf16.mxu0 0
      %3142 = vmatpush1.bf16.msra.mxu0 %v3134
      %3143 = vmatprep.subr.bf16.mxu0 0
      %3144 = vmatpush1.bf16.msra.mxu0 %v3135
      %3145 = vmatprep.subr.bf16.mxu0 0
      %3146 = vmatpush1.bf16.msra.mxu0 0
      %3147 = vmatprep.subr.bf16.mxu0 0
      %3148 = vmatpush1.bf16.msra.mxu0 0
      %3149 = vmatprep.subr.bf16.mxu0 0
      %3150 = vmatpush1.bf16.msra.mxu0 0
      %3151 = vmatprep.subr.bf16.mxu0 0
      %3152 = vmatpush1.bf16.msra.mxu0 0
      %3153 = vmatprep.subr.bf16.mxu0 0
      %3154 = vmatpush1.bf16.msra.mxu0 0
      %3155 = vmatprep.subr.bf16.mxu0 0
      %3156 = vmatpush1.bf16.msra.mxu0 0
      %3157 = vmatprep.subr.bf16.mxu0 0
      %3158 = vmatpush1.bf16.msra.mxu0 0
      %3159 = vmatprep.subr.bf16.mxu0 0
      %3160 = vmatpush1.bf16.msra.mxu0 0
      %3161 = vmatprep.subr.bf16.mxu0 0
      %3162 = vmatpush1.bf16.msra.mxu0 0
      %3163 = vmatprep.subr.bf16.mxu0 0
      %3164 = vmatpush1.bf16.msra.mxu0 0
      %3165 = vmatprep.subr.bf16.mxu0 0
      %3166 = vmatpush1.bf16.msra.mxu0 0
      %3167 = vmatprep.subr.bf16.mxu0 0
      %3168 = vmatpush1.bf16.msra.mxu0 0
      %3169 = vmatprep.subr.bf16.mxu0 0
      %3170 = vmatpush1.bf16.msra.mxu0 0
      %3171 = vmatprep.subr.bf16.mxu0 0
      %3172 = vmatpush1.bf16.msra.mxu0 0
      %3173 = vmatprep.mubr.bf16.mxu0 0
      %3174 = vmatmul.mubr.bf16.gmra.mrb[0].mxu0 %v3139
      %v3175 = vpop.f32.mrb[0].mxu0
      %v3176 = vadd.f32 %v3124, %v3175
      %v3177 = vpop.f32.mrb[0].mxu0
      %v3178 = vpop.f32.mrb[0].mxu0
      %v3179 = vpop.f32.mrb[0].mxu0
      %3180 = vdwg.mxu0
      %v3181 = vadd.f32 %v2881, %v3176
      %v3182 = vsel %vm661, %v3181, 0.0
      %3183 = vadd.xlane.f32.xlu0 %v3182
      %v3184 = vpop.xlane.xlu0 %3183
      %v3185 = vmul.f32 %v3184, %v1063
      %v3186 = vsub.f32 %v3181, %v3185
      %v3187 = vmul.f32 %v3186, %v3186
      %v3188 = vsel %vm661, %v3187, 0.0
      %3189 = vadd.xlane.f32.xlu0 %v3188
      %v3190 = vpop.xlane.xlu0 %3189
      %v3191 = vmul.f32 %v3190, %v1063
      %v3192 = vadd.f32 %v3191, 1e-05
      %v3193 = vrsqrt.pop %v3192
      %v3194 = vmul.f32 %v3186, %v3193
      %v3195 = vlaneseq
      %v3196 = vshrl.u32 %v3195, 7
      %v3197 = vsub.s32 1, %v3196
      %v3198 = vrot.slane %v2524, %v3197
      %v3199 = vmul.f32 %v3194, %v3198
      %v3200 = vlaneseq
      %v3201 = vshrl.u32 %v3200, 7
      %v3202 = vsub.s32 1, %v3201
      %v3203 = vrot.slane %v2525, %v3202
      %v3204 = vadd.f32 %v3199, %v3203
      %v3205 = vpack.c.bf16 %v3204, %v3204
      %v3206 = vld [vmem:[%s15] sm:$0xf]
      %v3207 = vld [vmem:[%s15 + $0x4] sm:$0xf]
      %v3208 = vld [vmem:[%s15 + $0x8] sm:$0xf]
      %v3209 = vld [vmem:[%s15 + $0xc] sm:$0xf]
      %v3211 = vlaneseq
      %v3212 = vshrl.u32 %v3211, 7
      %v3213 = vsub.s32 0, %v3212
      %v3214 = vrot.slane %v2522, %v3213
      %v3220 = vunpack.c.l.b16 %v3206
      %v3221 = vunpack.c.l.b16 %v3207
      %v3222 = vunpack.c.l.b16 %v3208
      %v3223 = vunpack.c.l.b16 %v3209
      %v3224 = vpack.c.b16 %v3221, %v3220
      %v3225 = vpack.c.b16 %v3223, %v3222
      %v3229 = vsel %vm661, %v3205, 0
      %3231 = vmatprep.subr.bf16.mxu0 0
      %3232 = vmatpush1.bf16.msra.mxu0 %v3224
      %3233 = vmatprep.subr.bf16.mxu0 0
      %3234 = vmatpush1.bf16.msra.mxu0 %v3225
      %3235 = vmatprep.subr.bf16.mxu0 0
      %3236 = vmatpush1.bf16.msra.mxu0 0
      %3237 = vmatprep.subr.bf16.mxu0 0
      %3238 = vmatpush1.bf16.msra.mxu0 0
      %3239 = vmatprep.subr.bf16.mxu0 0
      %3240 = vmatpush1.bf16.msra.mxu0 0
      %3241 = vmatprep.subr.bf16.mxu0 0
      %3242 = vmatpush1.bf16.msra.mxu0 0
      %3243 = vmatprep.subr.bf16.mxu0 0
      %3244 = vmatpush1.bf16.msra.mxu0 0
      %3245 = vmatprep.subr.bf16.mxu0 0
      %3246 = vmatpush1.bf16.msra.mxu0 0
      %3247 = vmatprep.subr.bf16.mxu0 0
      %3248 = vmatpush1.bf16.msra.mxu0 0
      %3249 = vmatprep.subr.bf16.mxu0 0
      %3250 = vmatpush1.bf16.msra.mxu0 0
      %3251 = vmatprep.subr.bf16.mxu0 0
      %3252 = vmatpush1.bf16.msra.mxu0 0
      %3253 = vmatprep.subr.bf16.mxu0 0
      %3254 = vmatpush1.bf16.msra.mxu0 0
      %3255 = vmatprep.subr.bf16.mxu0 0
      %3256 = vmatpush1.bf16.msra.mxu0 0
      %3257 = vmatprep.subr.bf16.mxu0 0
      %3258 = vmatpush1.bf16.msra.mxu0 0
      %3259 = vmatprep.subr.bf16.mxu0 0
      %3260 = vmatpush1.bf16.msra.mxu0 0
      %3261 = vmatprep.subr.bf16.mxu0 0
      %3262 = vmatpush1.bf16.msra.mxu0 0
      %3263 = vmatprep.mubr.bf16.mxu0 0
      %3264 = vmatmul.mubr.bf16.gmra.mrb[0].mxu0 %v3229
      %v3265 = vpop.f32.mrb[0].mxu0
      %v3266 = vadd.f32 %v3214, %v3265
      %v3267 = vpop.f32.mrb[0].mxu0
      %v3268 = vpop.f32.mrb[0].mxu0
      %v3269 = vpop.f32.mrb[0].mxu0
      %3270 = vdwg.mxu0
      %v3271 = vmax.f32 %v3266, 0.0
      %v3272 = vpack.c.bf16 %v3271, %v3271
      %v3273 = vld [vmem:[%s17] sm:$0xf]
      %v3274 = vld [vmem:[%s17 + $0x4] sm:$0xf]
      %v3275 = vld [vmem:[%s17 + $0x8] sm:$0xf]
      %v3276 = vld [vmem:[%s17 + $0xc] sm:$0xf]
      %v3277 = vld [vmem:[%s17 + $0x10] sm:$0xf]
      %v3278 = vld [vmem:[%s17 + $0x14] sm:$0xf]
      %v3279 = vld [vmem:[%s17 + $0x18] sm:$0xf]
      %v3280 = vld [vmem:[%s17 + $0x1c] sm:$0xf]
      %v3282 = vlaneseq
      %v3283 = vshrl.u32 %v3282, 7
      %v3284 = vsub.s32 0, %v3283
      %v3285 = vrot.slane %v2523, %v3284
      %v3295 = vunpack.c.l.b16 %v3273
      %v3296 = vunpack.c.l.b16 %v3274
      %v3297 = vunpack.c.l.b16 %v3275
      %v3298 = vunpack.c.l.b16 %v3276
      %v3299 = vunpack.c.l.b16 %v3277
      %v3300 = vunpack.c.l.b16 %v3278
      %v3301 = vunpack.c.l.b16 %v3279
      %v3302 = vunpack.c.l.b16 %v3280
      %v3303 = vpack.c.b16 %v3296, %v3295
      %v3304 = vpack.c.b16 %v3298, %v3297
      %v3305 = vpack.c.b16 %v3300, %v3299
      %v3306 = vpack.c.b16 %v3302, %v3301
      %v3312 = vsel %vm1513, %v3272, 0
      %3314 = vmatprep.subr.bf16.mxu0 0
      %3315 = vmatpush1.bf16.msra.mxu0 %v3303
      %3316 = vmatprep.subr.bf16.mxu0 0
      %3317 = vmatpush1.bf16.msra.mxu0 %v3304
      %3318 = vmatprep.subr.bf16.mxu0 0
      %3319 = vmatpush1.bf16.msra.mxu0 %v3305
      %3320 = vmatprep.subr.bf16.mxu0 0
      %3321 = vmatpush1.bf16.msra.mxu0 %v3306
      %3322 = vmatprep.subr.bf16.mxu0 0
      %3323 = vmatpush1.bf16.msra.mxu0 0
      %3324 = vmatprep.subr.bf16.mxu0 0
      %3325 = vmatpush1.bf16.msra.mxu0 0
      %3326 = vmatprep.subr.bf16.mxu0 0
      %3327 = vmatpush1.bf16.msra.mxu0 0
      %3328 = vmatprep.subr.bf16.mxu0 0
      %3329 = vmatpush1.bf16.msra.mxu0 0
      %3330 = vmatprep.subr.bf16.mxu0 0
      %3331 = vmatpush1.bf16.msra.mxu0 0
      %3332 = vmatprep.subr.bf16.mxu0 0
      %3333 = vmatpush1.bf16.msra.mxu0 0
      %3334 = vmatprep.subr.bf16.mxu0 0
      %3335 = vmatpush1.bf16.msra.mxu0 0
      %3336 = vmatprep.subr.bf16.mxu0 0
      %3337 = vmatpush1.bf16.msra.mxu0 0
      %3338 = vmatprep.subr.bf16.mxu0 0
      %3339 = vmatpush1.bf16.msra.mxu0 0
      %3340 = vmatprep.subr.bf16.mxu0 0
      %3341 = vmatpush1.bf16.msra.mxu0 0
      %3342 = vmatprep.subr.bf16.mxu0 0
      %3343 = vmatpush1.bf16.msra.mxu0 0
      %3344 = vmatprep.subr.bf16.mxu0 0
      %3345 = vmatpush1.bf16.msra.mxu0 0
      %3346 = vmatprep.mubr.bf16.mxu0 0
      %3347 = vmatmul.mubr.bf16.gmra.mrb[0].mxu0 %v3312
      %v3348 = vpop.f32.mrb[0].mxu0
      %v3349 = vadd.f32 %v3285, %v3348
      %v3350 = vpop.f32.mrb[0].mxu0
      %v3351 = vpop.f32.mrb[0].mxu0
      %v3352 = vpop.f32.mrb[0].mxu0
      %3353 = vdwg.mxu0
      %v3354 = vadd.f32 %v3204, %v3349
      %v3355 = vsel %vm661, %v3354, 0.0
      %3356 = vadd.xlane.f32.xlu0 %v3355
      %v3357 = vpop.xlane.xlu0 %3356
      %v3358 = vmul.f32 %v3357, %v1063
      %v3359 = vsub.f32 %v3354, %v3358
      %v3360 = vmul.f32 %v3359, %v3359
      %v3361 = vsel %vm661, %v3360, 0.0
      %3362 = vadd.xlane.f32.xlu0 %v3361
      %v3363 = vpop.xlane.xlu0 %3362
      %v3364 = vmul.f32 %v3363, %v1063
      %v3365 = vadd.f32 %v3364, 1e-05
      %v3366 = vrsqrt.pop %v3365
      %v3367 = vmul.f32 %v3359, %v3366
      %v3368 = vlaneseq
      %v3369 = vshrl.u32 %v3368, 7
      %v3370 = vsub.s32 2, %v3369
      %v3371 = vrot.slane %v2524, %v3370
      %v3372 = vmul.f32 %v3367, %v3371
      %v3373 = vlaneseq
      %v3374 = vshrl.u32 %v3373, 7
      %v3375 = vsub.s32 2, %v3374
      %v3376 = vrot.slane %v2525, %v3375
      %v3377 = vadd.f32 %v3372, %v3376
      %v3378 = vld [vmem:[%s1581] sm:$0x1]
      %v3379 = vld [vmem:[%s1583] sm:$0x1]
      %v3380 = vld [vmem:[%s1585] sm:$0x1]
      %v3381 = vld [vmem:[%s1587] sm:$0x1]
      %v3382 = vld [vmem:[%s1589] sm:$0x1]
      %v3383 = vld [vmem:[%s1591] sm:$0x1]
      %v3384 = vld [vmem:[%s1593] sm:$0x7]
      %v3385 = vld [vmem:[%s1595] sm:$0x7]
      %v3386 = vpack.c.bf16 %v3377, %v3377
      %v3387 = vld [vmem:[%s1598] sm:$0xf]
      %v3388 = vld [vmem:[%s1598 + $0x4] sm:$0xf]
      %v3389 = vld [vmem:[%s1598 + $0x8] sm:$0xf]
      %v3390 = vld [vmem:[%s1598 + $0xc] sm:$0xf]
      %v3392 = vlaneseq
      %v3393 = vshrl.u32 %v3392, 7
      %v3394 = vsub.s32 0, %v3393
      %v3395 = vrot.slane %v3378, %v3394
      %v3401 = vunpack.c.l.b16 %v3387
      %v3402 = vunpack.c.l.b16 %v3388
      %v3403 = vunpack.c.l.b16 %v3389
      %v3404 = vunpack.c.l.b16 %v3390
      %v3405 = vpack.c.b16 %v3402, %v3401
      %v3406 = vpack.c.b16 %v3404, %v3403
      %v3410 = vsel %vm661, %v3386, 0
      %3412 = vmatprep.subr.bf16.mxu0 0
      %3413 = vmatpush1.bf16.msra.mxu0 %v3405
      %3414 = vmatprep.subr.bf16.mxu0 0
      %3415 = vmatpush1.bf16.msra.mxu0 %v3406
      %3416 = vmatprep.subr.bf16.mxu0 0
      %3417 = vmatpush1.bf16.msra.mxu0 0
      %3418 = vmatprep.subr.bf16.mxu0 0
      %3419 = vmatpush1.bf16.msra.mxu0 0
      %3420 = vmatprep.subr.bf16.mxu0 0
      %3421 = vmatpush1.bf16.msra.mxu0 0
      %3422 = vmatprep.subr.bf16.mxu0 0
      %3423 = vmatpush1.bf16.msra.mxu0 0
      %3424 = vmatprep.subr.bf16.mxu0 0
      %3425 = vmatpush1.bf16.msra.mxu0 0
      %3426 = vmatprep.subr.bf16.mxu0 0
      %3427 = vmatpush1.bf16.msra.mxu0 0
      %3428 = vmatprep.subr.bf16.mxu0 0
      %3429 = vmatpush1.bf16.msra.mxu0 0
      %3430 = vmatprep.subr.bf16.mxu0 0
      %3431 = vmatpush1.bf16.msra.mxu0 0
      %3432 = vmatprep.subr.bf16.mxu0 0
      %3433 = vmatpush1.bf16.msra.mxu0 0
      %3434 = vmatprep.subr.bf16.mxu0 0
      %3435 = vmatpush1.bf16.msra.mxu0 0
      %3436 = vmatprep.subr.bf16.mxu0 0
      %3437 = vmatpush1.bf16.msra.mxu0 0
      %3438 = vmatprep.subr.bf16.mxu0 0
      %3439 = vmatpush1.bf16.msra.mxu0 0
      %3440 = vmatprep.subr.bf16.mxu0 0
      %3441 = vmatpush1.bf16.msra.mxu0 0
      %3442 = vmatprep.subr.bf16.mxu0 0
      %3443 = vmatpush1.bf16.msra.mxu0 0
      %3444 = vmatprep.mubr.bf16.mxu0 0
      %3445 = vmatmul.mubr.bf16.gmra.mrb[0].mxu0 %v3410
      %v3446 = vpop.f32.mrb[0].mxu0
      %v3447 = vadd.f32 %v3395, %v3446
      %v3448 = vpop.f32.mrb[0].mxu0
      %v3449 = vpop.f32.mrb[0].mxu0
      %v3450 = vpop.f32.mrb[0].mxu0
      %3451 = vdwg.mxu0
      %3453 = vrot.lane.b32.xlu0 %v3447, 96
      %v3454 = vpop.permute.xlu0 %3453
      %3456 = vst.msk [vmem:[#allocation2 + $0x68] sm:$0xff] %vm791, %v3454
      %3457 = vrot.lane.b32.xlu0 %v3447, 64
      %v3458 = vpop.permute.xlu0 %3457
      %3460 = vst.msk [vmem:[#allocation3 + $0x68] sm:$0xff] %vm791, %v3458
      %3461 = vst.msk [vmem:[#allocation2 + $0x80] sm:$0xff] %vm797, %v3454
      %3462 = vst.msk [vmem:[#allocation3 + $0x80] sm:$0xff] %vm797, %v3458
      %3463 = vst.msk [vmem:[#allocation2 + $0x98] sm:$0xff] %vm800, %v3454
      %3464 = vst.msk [vmem:[#allocation3 + $0x98] sm:$0xff] %vm800, %v3458
      %3465 = vst.msk [vmem:[#allocation2 + $0xb0] sm:$0xff] %vm803, %v3454
      %3466 = vst.msk [vmem:[#allocation3 + $0xb0] sm:$0xff] %vm803, %v3458
      %v3467 = vld [vmem:[#allocation2 + $0x60] sm:$0xff]
      %v3468 = vld [vmem:[#allocation2 + $0x68] sm:$0xff]
      %v3469 = vld [vmem:[#allocation2 + $0x70] sm:$0xff]
      %v3470 = vld [vmem:[#allocation2 + $0x78] sm:$0xff]
      %v3471 = vld [vmem:[#allocation2 + $0x80] sm:$0xff]
      %v3472 = vld [vmem:[#allocation2 + $0x88] sm:$0xff]
      %v3473 = vld [vmem:[#allocation2 + $0x90] sm:$0xff]
      %v3474 = vld [vmem:[#allocation2 + $0x98] sm:$0xff]
      %v3475 = vld [vmem:[#allocation2 + $0xa0] sm:$0xff]
      %v3476 = vld [vmem:[#allocation2 + $0xa8] sm:$0xff]
      %v3477 = vld [vmem:[#allocation2 + $0xb0] sm:$0xff]
      %v3478 = vld [vmem:[#allocation2 + $0xb8] sm:$0xff]
      %v3479 = vld [vmem:[#allocation3 + $0x60] sm:$0xff]
      %v3480 = vld [vmem:[#allocation3 + $0x68] sm:$0xff]
      %v3481 = vld [vmem:[#allocation3 + $0x70] sm:$0xff]
      %v3482 = vld [vmem:[#allocation3 + $0x78] sm:$0xff]
      %v3483 = vld [vmem:[#allocation3 + $0x80] sm:$0xff]
      %v3484 = vld [vmem:[#allocation3 + $0x88] sm:$0xff]
      %v3485 = vld [vmem:[#allocation3 + $0x90] sm:$0xff]
      %v3486 = vld [vmem:[#allocation3 + $0x98] sm:$0xff]
      %v3487 = vld [vmem:[#allocation3 + $0xa0] sm:$0xff]
      %v3488 = vld [vmem:[#allocation3 + $0xa8] sm:$0xff]
      %v3489 = vld [vmem:[#allocation3 + $0xb0] sm:$0xff]
      %v3490 = vld [vmem:[#allocation3 + $0xb8] sm:$0xff]
      %v3491 = vld [vmem:[%s1703] sm:$0xf]
      %v3492 = vld [vmem:[%s1703 + $0x4] sm:$0xf]
      %v3493 = vld [vmem:[%s1703 + $0x8] sm:$0xf]
      %v3494 = vld [vmem:[%s1703 + $0xc] sm:$0xf]
      %v3495 = vpack.c.bf16 %v3447, %v3447
      %v3496 = vpack.c.bf16 %v3468, %v3467
      %v3497 = vpack.c.bf16 %v3470, %v3469
      %v3498 = vpack.c.bf16 %v3472, %v3471
      %v3499 = vpack.c.bf16 %v3474, %v3473
      %v3500 = vpack.c.bf16 %v3476, %v3475
      %v3501 = vpack.c.bf16 %v3478, %v3477
      %v3503 = vsel %vm661, %v3495, 0
      %v3506 = vsel %vm661, %v3496, 0
      %v3509 = vsel %vm661, %v3497, 0
      %v3512 = vsel %vm661, %v3498, 0
      %v3515 = vsel %vm661, %v3499, 0
      %v3518 = vsel %vm661, %v3500, 0
      %v3521 = vsel %vm661, %v3501, 0
      %3523 = vmatprep.subr.bf16.mxu0 0
      %3524 = vmatpush1.bf16.xpose.msra.mxu0 %v3506
      %3525 = vmatprep.subr.bf16.mxu0 0
      %3526 = vmatpush1.bf16.xpose.msra.mxu0 %v3509
      %3527 = vmatprep.subr.bf16.mxu0 0
      %3528 = vmatpush1.bf16.xpose.msra.mxu0 %v3512
      %3529 = vmatprep.subr.bf16.mxu0 0
      %3530 = vmatpush1.bf16.xpose.msra.mxu0 %v3515
      %3531 = vmatprep.subr.bf16.mxu0 0
      %3532 = vmatpush1.bf16.xpose.msra.mxu0 %v3518
      %3533 = vmatprep.subr.bf16.mxu0 0
      %3534 = vmatpush1.bf16.xpose.msra.mxu0 %v3521
      %3535 = vmatprep.subr.bf16.mxu0 0
      %3536 = vmatpush1.bf16.xpose.msra.mxu0 0
      %3537 = vmatprep.subr.bf16.mxu0 0
      %3538 = vmatpush1.bf16.xpose.msra.mxu0 0
      %3539 = vmatprep.subr.bf16.mxu0 0
      %3540 = vmatpush1.bf16.xpose.msra.mxu0 0
      %3541 = vmatprep.subr.bf16.mxu0 0
      %3542 = vmatpush1.bf16.xpose.msra.mxu0 0
      %3543 = vmatprep.subr.bf16.mxu0 0
      %3544 = vmatpush1.bf16.xpose.msra.mxu0 0
      %3545 = vmatprep.subr.bf16.mxu0 0
      %3546 = vmatpush1.bf16.xpose.msra.mxu0 0
      %3547 = vmatprep.subr.bf16.mxu0 0
      %3548 = vmatpush1.bf16.xpose.msra.mxu0 0
      %3549 = vmatprep.subr.bf16.mxu0 0
      %3550 = vmatpush1.bf16.xpose.msra.mxu0 0
      %3551 = vmatprep.subr.bf16.mxu0 0
      %3552 = vmatpush1.bf16.xpose.msra.mxu0 0
      %3553 = vmatprep.subr.bf16.mxu0 0
      %3554 = vmatpush1.bf16.xpose.msra.mxu0 0
      %3555 = vmatprep.mubr.bf16.mxu0 0
      %3556 = vmatmul.mubr.bf16.gmra.mrb[0].mxu0 %v3503
      %v3557 = vpop.f32.mrb[0].mxu0
      %v3558 = vadd.f32 0.0, %v3557
      %v3559 = vpop.f32.mrb[0].mxu0
      %v3560 = vpop.f32.mrb[0].mxu0
      %v3561 = vpop.f32.mrb[0].mxu0
      %3562 = vdwg.mxu0
      %v3563 = vmul.f32 %v3558, 0.35355338
      %v3564 = vadd.f32 %v3563, %v2517
      %v3565 = vsel %vm904, %v3564, -inf
      %3566 = vmax.xlane.f32.xlu0 %v3565
      %v3567 = vpop.xlane.xlu0 %3566
      %v3568 = vsub.f32 %v3564, %v3567
      %v3569 = vmul.f32 %v3568, 1.442695
      %v3570 = vpow.pop %v3569
      %v3571 = vpack.c.bf16 %v3570, %v3570
      %v3572 = vpack.c.bf16 %v3480, %v3479
      %v3573 = vpack.c.bf16 %v3482, %v3481
      %v3574 = vpack.c.bf16 %v3484, %v3483
      %v3575 = vpack.c.bf16 %v3486, %v3485
      %v3576 = vpack.c.bf16 %v3488, %v3487
      %v3577 = vpack.c.bf16 %v3490, %v3489
      %v3579 = vsel %vm904, %v3571, 0
      %3581 = vmatprep.subr.bf16.mxu0 0
      %3582 = vmatpush1.bf16.msra.mxu0 %v3572
      %3583 = vmatprep.subr.bf16.mxu0 0
      %3584 = vmatpush1.bf16.msra.mxu0 %v3573
      %3585 = vmatprep.subr.bf16.mxu0 0
      %3586 = vmatpush1.bf16.msra.mxu0 %v3574
      %3587 = vmatprep.subr.bf16.mxu0 0
      %3588 = vmatpush1.bf16.msra.mxu0 %v3575
      %3589 = vmatprep.subr.bf16.mxu0 0
      %3590 = vmatpush1.bf16.msra.mxu0 %v3576
      %3591 = vmatprep.subr.bf16.mxu0 0
      %3592 = vmatpush1.bf16.msra.mxu0 %v3577
      %3593 = vmatprep.subr.bf16.mxu0 0
      %3594 = vmatpush1.bf16.msra.mxu0 0
      %3595 = vmatprep.subr.bf16.mxu0 0
      %3596 = vmatpush1.bf16.msra.mxu0 0
      %3597 = vmatprep.subr.bf16.mxu0 0
      %3598 = vmatpush1.bf16.msra.mxu0 0
      %3599 = vmatprep.subr.bf16.mxu0 0
      %3600 = vmatpush1.bf16.msra.mxu0 0
      %3601 = vmatprep.subr.bf16.mxu0 0
      %3602 = vmatpush1.bf16.msra.mxu0 0
      %3603 = vmatprep.subr.bf16.mxu0 0
      %3604 = vmatpush1.bf16.msra.mxu0 0
      %3605 = vmatprep.subr.bf16.mxu0 0
      %3606 = vmatpush1.bf16.msra.mxu0 0
      %3607 = vmatprep.subr.bf16.mxu0 0
      %3608 = vmatpush1.bf16.msra.mxu0 0
      %3609 = vmatprep.subr.bf16.mxu0 0
      %3610 = vmatpush1.bf16.msra.mxu0 0
      %3611 = vmatprep.subr.bf16.mxu0 0
      %3612 = vmatpush1.bf16.msra.mxu0 0
      %3613 = vmatprep.mubr.bf16.mxu0 0
      %3614 = vmatmul.mubr.bf16.gmra.mrb[0].mxu0 %v3579
      %v3615 = vpop.f32.mrb[0].mxu0
      %v3616 = vadd.f32 0.0, %v3615
      %v3617 = vpop.f32.mrb[0].mxu0
      %v3618 = vpop.f32.mrb[0].mxu0
      %v3619 = vpop.f32.mrb[0].mxu0
      %3620 = vdwg.mxu0
      %v3621 = vsel %vm961, %v3570, 0.0
      %3622 = vadd.xlane.f32.xlu0 %v3621
      %v3623 = vpop.xlane.xlu0 %3622
      %v3624 = vrcp.pop %v3623
      %v3625 = vmul.f32 %v3616, %v3624
      %3626 = vst.msk [vmem:[#allocation4] sm:$0xff] %vm791, %v3625
      %3628 = vrot.lane.b32.xlu0 %v3570, 104
      %v3629 = vpop.permute.xlu0 %3628
      %v3631 = vsel %vm961, %v3629, 0.0
      %3632 = vadd.xlane.f32.xlu0 %v3631
      %v3633 = vpop.xlane.xlu0 %3632
      %v3634 = vrcp.pop %v3633
      %v3635 = vmul.f32 %v3616, %v3634
      %3636 = vst.msk [vmem:[#allocation4] sm:$0xff] %vm797, %v3635
      %3637 = vrot.lane.b32.xlu0 %v3570, 80
      %v3638 = vpop.permute.xlu0 %3637
      %v3640 = vsel %vm961, %v3638, 0.0
      %3641 = vadd.xlane.f32.xlu0 %v3640
      %v3642 = vpop.xlane.xlu0 %3641
      %v3643 = vrcp.pop %v3642
      %v3644 = vmul.f32 %v3616, %v3643
      %3645 = vst.msk [vmem:[#allocation4] sm:$0xff] %vm800, %v3644
      %3646 = vrot.lane.b32.xlu0 %v3570, 56
      %v3647 = vpop.permute.xlu0 %3646
      %v3649 = vsel %vm961, %v3647, 0.0
      %3650 = vadd.xlane.f32.xlu0 %v3649
      %v3651 = vpop.xlane.xlu0 %3650
      %v3652 = vrcp.pop %v3651
      %v3653 = vmul.f32 %v3616, %v3652
      %3654 = vst.msk [vmem:[#allocation4] sm:$0xff] %vm803, %v3653
      %v3655 = vld [vmem:[#allocation4] sm:$0xff]
      %v3656 = vpack.c.bf16 %v3655, %v3655
      %v3658 = vlaneseq
      %v3659 = vshrl.u32 %v3658, 7
      %v3660 = vsub.s32 0, %v3659
      %v3661 = vrot.slane %v3379, %v3660
      %v3667 = vunpack.c.l.b16 %v3491
      %v3668 = vunpack.c.l.b16 %v3492
      %v3669 = vunpack.c.l.b16 %v3493
      %v3670 = vunpack.c.l.b16 %v3494
      %v3671 = vpack.c.b16 %v3668, %v3667
      %v3672 = vpack.c.b16 %v3670, %v3669
      %v3676 = vsel %vm661, %v3656, 0
      %3678 = vmatprep.subr.bf16.mxu0 0
      %3679 = vmatpush1.bf16.msra.mxu0 %v3671
      %3680 = vmatprep.subr.bf16.mxu0 0
      %3681 = vmatpush1.bf16.msra.mxu0 %v3672
      %3682 = vmatprep.subr.bf16.mxu0 0
      %3683 = vmatpush1.bf16.msra.mxu0 0
      %3684 = vmatprep.subr.bf16.mxu0 0
      %3685 = vmatpush1.bf16.msra.mxu0 0
      %3686 = vmatprep.subr.bf16.mxu0 0
      %3687 = vmatpush1.bf16.msra.mxu0 0
      %3688 = vmatprep.subr.bf16.mxu0 0
      %3689 = vmatpush1.bf16.msra.mxu0 0
      %3690 = vmatprep.subr.bf16.mxu0 0
      %3691 = vmatpush1.bf16.msra.mxu0 0
      %3692 = vmatprep.subr.bf16.mxu0 0
      %3693 = vmatpush1.bf16.msra.mxu0 0
      %3694 = vmatprep.subr.bf16.mxu0 0
      %3695 = vmatpush1.bf16.msra.mxu0 0
      %3696 = vmatprep.subr.bf16.mxu0 0
      %3697 = vmatpush1.bf16.msra.mxu0 0
      %3698 = vmatprep.subr.bf16.mxu0 0
      %3699 = vmatpush1.bf16.msra.mxu0 0
      %3700 = vmatprep.subr.bf16.mxu0 0
      %3701 = vmatpush1.bf16.msra.mxu0 0
      %3702 = vmatprep.subr.bf16.mxu0 0
      %3703 = vmatpush1.bf16.msra.mxu0 0
      %3704 = vmatprep.subr.bf16.mxu0 0
      %3705 = vmatpush1.bf16.msra.mxu0 0
      %3706 = vmatprep.subr.bf16.mxu0 0
      %3707 = vmatpush1.bf16.msra.mxu0 0
      %3708 = vmatprep.subr.bf16.mxu0 0
      %3709 = vmatpush1.bf16.msra.mxu0 0
      %3710 = vmatprep.mubr.bf16.mxu0 0
      %3711 = vmatmul.mubr.bf16.gmra.mrb[0].mxu0 %v3676
      %v3712 = vpop.f32.mrb[0].mxu0
      %v3713 = vadd.f32 %v3661, %v3712
      %v3714 = vpop.f32.mrb[0].mxu0
      %v3715 = vpop.f32.mrb[0].mxu0
      %v3716 = vpop.f32.mrb[0].mxu0
      %3717 = vdwg.mxu0
      %v3718 = vadd.f32 %v3377, %v3713
      %v3719 = vsel %vm661, %v3718, 0.0
      %3720 = vadd.xlane.f32.xlu0 %v3719
      %v3721 = vpop.xlane.xlu0 %3720
      %v3722 = vmul.f32 %v3721, %v1063
      %v3723 = vsub.f32 %v3718, %v3722
      %v3724 = vmul.f32 %v3723, %v3723
      %v3725 = vsel %vm661, %v3724, 0.0
      %3726 = vadd.xlane.f32.xlu0 %v3725
      %v3727 = vpop.xlane.xlu0 %3726
      %v3728 = vmul.f32 %v3727, %v1063
      %v3729 = vadd.f32 %v3728, 1e-05
      %v3730 = vrsqrt.pop %v3729
      %v3731 = vmul.f32 %v3723, %v3730
      %v3732 = vlaneseq
      %v3733 = vshrl.u32 %v3732, 7
      %v3734 = vsub.s32 0, %v3733
      %v3735 = vrot.slane %v3384, %v3734
      %v3736 = vmul.f32 %v3731, %v3735
      %v3737 = vlaneseq
      %v3738 = vshrl.u32 %v3737, 7
      %v3739 = vsub.s32 0, %v3738
      %v3740 = vrot.slane %v3385, %v3739
      %v3741 = vadd.f32 %v3736, %v3740
      %v3742 = vpack.c.bf16 %v3741, %v3741
      %v3743 = vld [vmem:[%s1956] sm:$0xf]
      %v3744 = vld [vmem:[%s1956 + $0x4] sm:$0xf]
      %v3745 = vld [vmem:[%s1956 + $0x8] sm:$0xf]
      %v3746 = vld [vmem:[%s1956 + $0xc] sm:$0xf]
      %v3748 = vlaneseq
      %v3749 = vshrl.u32 %v3748, 7
      %v3750 = vsub.s32 0, %v3749
      %v3751 = vrot.slane %v3380, %v3750
      %v3757 = vunpack.c.l.b16 %v3743
      %v3758 = vunpack.c.l.b16 %v3744
      %v3759 = vunpack.c.l.b16 %v3745
      %v3760 = vunpack.c.l.b16 %v3746
      %v3761 = vpack.c.b16 %v3758, %v3757
      %v3762 = vpack.c.b16 %v3760, %v3759
      %v3766 = vsel %vm661, %v3742, 0
      %3768 = vmatprep.subr.bf16.mxu0 0
      %3769 = vmatpush1.bf16.msra.mxu0 %v3761
      %3770 = vmatprep.subr.bf16.mxu0 0
      %3771 = vmatpush1.bf16.msra.mxu0 %v3762
      %3772 = vmatprep.subr.bf16.mxu0 0
      %3773 = vmatpush1.bf16.msra.mxu0 0
      %3774 = vmatprep.subr.bf16.mxu0 0
      %3775 = vmatpush1.bf16.msra.mxu0 0
      %3776 = vmatprep.subr.bf16.mxu0 0
      %3777 = vmatpush1.bf16.msra.mxu0 0
      %3778 = vmatprep.subr.bf16.mxu0 0
      %3779 = vmatpush1.bf16.msra.mxu0 0
      %3780 = vmatprep.subr.bf16.mxu0 0
      %3781 = vmatpush1.bf16.msra.mxu0 0
      %3782 = vmatprep.subr.bf16.mxu0 0
      %3783 = vmatpush1.bf16.msra.mxu0 0
      %3784 = vmatprep.subr.bf16.mxu0 0
      %3785 = vmatpush1.bf16.msra.mxu0 0
      %3786 = vmatprep.subr.bf16.mxu0 0
      %3787 = vmatpush1.bf16.msra.mxu0 0
      %3788 = vmatprep.subr.bf16.mxu0 0
      %3789 = vmatpush1.bf16.msra.mxu0 0
      %3790 = vmatprep.subr.bf16.mxu0 0
      %3791 = vmatpush1.bf16.msra.mxu0 0
      %3792 = vmatprep.subr.bf16.mxu0 0
      %3793 = vmatpush1.bf16.msra.mxu0 0
      %3794 = vmatprep.subr.bf16.mxu0 0
      %3795 = vmatpush1.bf16.msra.mxu0 0
      %3796 = vmatprep.subr.bf16.mxu0 0
      %3797 = vmatpush1.bf16.msra.mxu0 0
      %3798 = vmatprep.subr.bf16.mxu0 0
      %3799 = vmatpush1.bf16.msra.mxu0 0
      %3800 = vmatprep.mubr.bf16.mxu0 0
      %3801 = vmatmul.mubr.bf16.gmra.mrb[0].mxu0 %v3766
      %v3802 = vpop.f32.mrb[0].mxu0
      %v3803 = vadd.f32 %v3751, %v3802
      %v3804 = vpop.f32.mrb[0].mxu0
      %v3805 = vpop.f32.mrb[0].mxu0
      %v3806 = vpop.f32.mrb[0].mxu0
      %3807 = vdwg.mxu0
      %v3808 = vld [vmem:[%s2022] sm:$0xf]
      %v3809 = vld [vmem:[%s2022 + $0x4] sm:$0xf]
      %v3810 = vld [vmem:[%s2022 + $0x8] sm:$0xf]
      %v3811 = vld [vmem:[%s2022 + $0xc] sm:$0xf]
      %v3812 = vld [vmem:[%s2027] sm:$0xf]
      %v3813 = vld [vmem:[%s2027 + $0x4] sm:$0xf]
      %v3814 = vld [vmem:[%s2027 + $0x8] sm:$0xf]
      %v3815 = vld [vmem:[%s2027 + $0xc] sm:$0xf]
      %v3816 = vld [vmem:[%s2032] sm:$0xf]
      %v3817 = vld [vmem:[%s2032 + $0x4] sm:$0xf]
      %v3818 = vld [vmem:[%s2032 + $0x8] sm:$0xf]
      %v3819 = vld [vmem:[%s2032 + $0xc] sm:$0xf]
      %v3820 = vpack.c.bf16 %v3803, %v3803
      %v3825 = vunpack.c.l.b16 %v3808
      %v3826 = vunpack.c.l.b16 %v3809
      %v3827 = vunpack.c.l.b16 %v3810
      %v3828 = vunpack.c.l.b16 %v3811
      %v3829 = vpack.c.b16 %v3826, %v3825
      %v3830 = vpack.c.b16 %v3828, %v3827
      %v3832 = vsel %vm661, %v3820, 0
      %v3835 = vsel %vm661, %v3829, 0
      %v3838 = vsel %vm661, %v3830, 0
      %3840 = vmatprep.subr.bf16.mxu0 0
      %3841 = vmatpush1.bf16.xpose.msra.mxu0 %v3835
      %3842 = vmatprep.subr.bf16.mxu0 0
      %3843 = vmatpush1.bf16.xpose.msra.mxu0 %v3838
      %3844 = vmatprep.subr.bf16.mxu0 0
      %3845 = vmatpush1.bf16.xpose.msra.mxu0 0
      %3846 = vmatprep.subr.bf16.mxu0 0
      %3847 = vmatpush1.bf16.xpose.msra.mxu0 0
      %3848 = vmatprep.subr.bf16.mxu0 0
      %3849 = vmatpush1.bf16.xpose.msra.mxu0 0
      %3850 = vmatprep.subr.bf16.mxu0 0
      %3851 = vmatpush1.bf16.xpose.msra.mxu0 0
      %3852 = vmatprep.subr.bf16.mxu0 0
      %3853 = vmatpush1.bf16.xpose.msra.mxu0 0
      %3854 = vmatprep.subr.bf16.mxu0 0
      %3855 = vmatpush1.bf16.xpose.msra.mxu0 0
      %3856 = vmatprep.subr.bf16.mxu0 0
      %3857 = vmatpush1.bf16.xpose.msra.mxu0 0
      %3858 = vmatprep.subr.bf16.mxu0 0
      %3859 = vmatpush1.bf16.xpose.msra.mxu0 0
      %3860 = vmatprep.subr.bf16.mxu0 0
      %3861 = vmatpush1.bf16.xpose.msra.mxu0 0
      %3862 = vmatprep.subr.bf16.mxu0 0
      %3863 = vmatpush1.bf16.xpose.msra.mxu0 0
      %3864 = vmatprep.subr.bf16.mxu0 0
      %3865 = vmatpush1.bf16.xpose.msra.mxu0 0
      %3866 = vmatprep.subr.bf16.mxu0 0
      %3867 = vmatpush1.bf16.xpose.msra.mxu0 0
      %3868 = vmatprep.subr.bf16.mxu0 0
      %3869 = vmatpush1.bf16.xpose.msra.mxu0 0
      %3870 = vmatprep.subr.bf16.mxu0 0
      %3871 = vmatpush1.bf16.xpose.msra.mxu0 0
      %3872 = vmatprep.mubr.bf16.mxu0 0
      %3873 = vmatmul.mubr.bf16.gmra.mrb[0].mxu0 %v3832
      %v3874 = vpop.f32.mrb[0].mxu0
      %v3875 = vadd.f32 0.0, %v3874
      %v3876 = vpop.f32.mrb[0].mxu0
      %v3877 = vpop.f32.mrb[0].mxu0
      %v3878 = vpop.f32.mrb[0].mxu0
      %3879 = vdwg.mxu0
      %v3880 = vmul.f32 %v3875, 0.35355338
      %v3881 = vadd.f32 %v3880, %v656
      %v3882 = vsel %vm661, %v3881, -inf
      %3883 = vmax.xlane.f32.xlu0 %v3882
      %v3884 = vpop.xlane.xlu0 %3883
      %v3885 = vsub.f32 %v3881, %v3884
      %v3886 = vmul.f32 %v3885, 1.442695
      %v3887 = vpow.pop %v3886
      %v3888 = vpack.c.bf16 %v3887, %v3887
      %v3893 = vunpack.c.l.b16 %v3812
      %v3894 = vunpack.c.l.b16 %v3813
      %v3895 = vunpack.c.l.b16 %v3814
      %v3896 = vunpack.c.l.b16 %v3815
      %v3897 = vpack.c.b16 %v3894, %v3893
      %v3898 = vpack.c.b16 %v3896, %v3895
      %v3902 = vsel %vm661, %v3888, 0
      %3904 = vmatprep.subr.bf16.mxu0 0
      %3905 = vmatpush1.bf16.msra.mxu0 %v3897
      %3906 = vmatprep.subr.bf16.mxu0 0
      %3907 = vmatpush1.bf16.msra.mxu0 %v3898
      %3908 = vmatprep.subr.bf16.mxu0 0
      %3909 = vmatpush1.bf16.msra.mxu0 0
      %3910 = vmatprep.subr.bf16.mxu0 0
      %3911 = vmatpush1.bf16.msra.mxu0 0
      %3912 = vmatprep.subr.bf16.mxu0 0
      %3913 = vmatpush1.bf16.msra.mxu0 0
      %3914 = vmatprep.subr.bf16.mxu0 0
      %3915 = vmatpush1.bf16.msra.mxu0 0
      %3916 = vmatprep.subr.bf16.mxu0 0
      %3917 = vmatpush1.bf16.msra.mxu0 0
      %3918 = vmatprep.subr.bf16.mxu0 0
      %3919 = vmatpush1.bf16.msra.mxu0 0
      %3920 = vmatprep.subr.bf16.mxu0 0
      %3921 = vmatpush1.bf16.msra.mxu0 0
      %3922 = vmatprep.subr.bf16.mxu0 0
      %3923 = vmatpush1.bf16.msra.mxu0 0
      %3924 = vmatprep.subr.bf16.mxu0 0
      %3925 = vmatpush1.bf16.msra.mxu0 0
      %3926 = vmatprep.subr.bf16.mxu0 0
      %3927 = vmatpush1.bf16.msra.mxu0 0
      %3928 = vmatprep.subr.bf16.mxu0 0
      %3929 = vmatpush1.bf16.msra.mxu0 0
      %3930 = vmatprep.subr.bf16.mxu0 0
      %3931 = vmatpush1.bf16.msra.mxu0 0
      %3932 = vmatprep.subr.bf16.mxu0 0
      %3933 = vmatpush1.bf16.msra.mxu0 0
      %3934 = vmatprep.subr.bf16.mxu0 0
      %3935 = vmatpush1.bf16.msra.mxu0 0
      %3936 = vmatprep.mubr.bf16.mxu0 0
      %3937 = vmatmul.mubr.bf16.gmra.mrb[0].mxu0 %v3902
      %v3938 = vpop.f32.mrb[0].mxu0
      %v3939 = vadd.f32 0.0, %v3938
      %v3940 = vpop.f32.mrb[0].mxu0
      %v3941 = vpop.f32.mrb[0].mxu0
      %v3942 = vpop.f32.mrb[0].mxu0
      %3943 = vdwg.mxu0
      %v3944 = vsel %vm791, %v3887, 0.0
      %3945 = vadd.xlane.f32.xlu0 %v3944
      %v3946 = vpop.xlane.xlu0 %3945
      %v3947 = vrcp.pop %v3946
      %v3948 = vmul.f32 %v3939, %v3947
      %3949 = vst.msk [vmem:[#allocation4] sm:$0xff] %vm791, %v3948
      %3951 = vrot.lane.b32.xlu0 %v3887, 120
      %v3952 = vpop.permute.xlu0 %3951
      %v3954 = vsel %vm791, %v3952, 0.0
      %3955 = vadd.xlane.f32.xlu0 %v3954
      %v3956 = vpop.xlane.xlu0 %3955
      %v3957 = vrcp.pop %v3956
      %v3958 = vmul.f32 %v3939, %v3957
      %3959 = vst.msk [vmem:[#allocation4] sm:$0xff] %vm797, %v3958
      %3960 = vrot.lane.b32.xlu0 %v3887, 112
      %v3961 = vpop.permute.xlu0 %3960
      %v3963 = vsel %vm791, %v3961, 0.0
      %3964 = vadd.xlane.f32.xlu0 %v3963
      %v3965 = vpop.xlane.xlu0 %3964
      %v3966 = vrcp.pop %v3965
      %v3967 = vmul.f32 %v3939, %v3966
      %3968 = vst.msk [vmem:[#allocation4] sm:$0xff] %vm800, %v3967
      %3969 = vrot.lane.b32.xlu0 %v3887, 104
      %v3970 = vpop.permute.xlu0 %3969
      %v3972 = vsel %vm791, %v3970, 0.0
      %3973 = vadd.xlane.f32.xlu0 %v3972
      %v3974 = vpop.xlane.xlu0 %3973
      %v3975 = vrcp.pop %v3974
      %v3976 = vmul.f32 %v3939, %v3975
      %3977 = vst.msk [vmem:[#allocation4] sm:$0xff] %vm803, %v3976
      %v3978 = vld [vmem:[#allocation4] sm:$0xff]
      %v3979 = vpack.c.bf16 %v3978, %v3978
      %v3981 = vlaneseq
      %v3982 = vshrl.u32 %v3981, 7
      %v3983 = vsub.s32 0, %v3982
      %v3984 = vrot.slane %v3381, %v3983
      %v3990 = vunpack.c.l.b16 %v3816
      %v3991 = vunpack.c.l.b16 %v3817
      %v3992 = vunpack.c.l.b16 %v3818
      %v3993 = vunpack.c.l.b16 %v3819
      %v3994 = vpack.c.b16 %v3991, %v3990
      %v3995 = vpack.c.b16 %v3993, %v3992
      %v3999 = vsel %vm661, %v3979, 0
      %4001 = vmatprep.subr.bf16.mxu0 0
      %4002 = vmatpush1.bf16.msra.mxu0 %v3994
      %4003 = vmatprep.subr.bf16.mxu0 0
      %4004 = vmatpush1.bf16.msra.mxu0 %v3995
      %4005 = vmatprep.subr.bf16.mxu0 0
      %4006 = vmatpush1.bf16.msra.mxu0 0
      %4007 = vmatprep.subr.bf16.mxu0 0
      %4008 = vmatpush1.bf16.msra.mxu0 0
      %4009 = vmatprep.subr.bf16.mxu0 0
      %4010 = vmatpush1.bf16.msra.mxu0 0
      %4011 = vmatprep.subr.bf16.mxu0 0
      %4012 = vmatpush1.bf16.msra.mxu0 0
      %4013 = vmatprep.subr.bf16.mxu0 0
      %4014 = vmatpush1.bf16.msra.mxu0 0
      %4015 = vmatprep.subr.bf16.mxu0 0
      %4016 = vmatpush1.bf16.msra.mxu0 0
      %4017 = vmatprep.subr.bf16.mxu0 0
      %4018 = vmatpush1.bf16.msra.mxu0 0
      %4019 = vmatprep.subr.bf16.mxu0 0
      %4020 = vmatpush1.bf16.msra.mxu0 0
      %4021 = vmatprep.subr.bf16.mxu0 0
      %4022 = vmatpush1.bf16.msra.mxu0 0
      %4023 = vmatprep.subr.bf16.mxu0 0
      %4024 = vmatpush1.bf16.msra.mxu0 0
      %4025 = vmatprep.subr.bf16.mxu0 0
      %4026 = vmatpush1.bf16.msra.mxu0 0
      %4027 = vmatprep.subr.bf16.mxu0 0
      %4028 = vmatpush1.bf16.msra.mxu0 0
      %4029 = vmatprep.subr.bf16.mxu0 0
      %4030 = vmatpush1.bf16.msra.mxu0 0
      %4031 = vmatprep.subr.bf16.mxu0 0
      %4032 = vmatpush1.bf16.msra.mxu0 0
      %4033 = vmatprep.mubr.bf16.mxu0 0
      %4034 = vmatmul.mubr.bf16.gmra.mrb[0].mxu0 %v3999
      %v4035 = vpop.f32.mrb[0].mxu0
      %v4036 = vadd.f32 %v3984, %v4035
      %v4037 = vpop.f32.mrb[0].mxu0
      %v4038 = vpop.f32.mrb[0].mxu0
      %v4039 = vpop.f32.mrb[0].mxu0
      %4040 = vdwg.mxu0
      %v4041 = vadd.f32 %v3741, %v4036
      %v4042 = vsel %vm661, %v4041, 0.0
      %4043 = vadd.xlane.f32.xlu0 %v4042
      %v4044 = vpop.xlane.xlu0 %4043
      %v4045 = vmul.f32 %v4044, %v1063
      %v4046 = vsub.f32 %v4041, %v4045
      %v4047 = vmul.f32 %v4046, %v4046
      %v4048 = vsel %vm661, %v4047, 0.0
      %4049 = vadd.xlane.f32.xlu0 %v4048
      %v4050 = vpop.xlane.xlu0 %4049
      %v4051 = vmul.f32 %v4050, %v1063
      %v4052 = vadd.f32 %v4051, 1e-05
      %v4053 = vrsqrt.pop %v4052
      %v4054 = vmul.f32 %v4046, %v4053
      %v4055 = vlaneseq
      %v4056 = vshrl.u32 %v4055, 7
      %v4057 = vsub.s32 1, %v4056
      %v4058 = vrot.slane %v3384, %v4057
      %v4059 = vmul.f32 %v4054, %v4058
      %v4060 = vlaneseq
      %v4061 = vshrl.u32 %v4060, 7
      %v4062 = vsub.s32 1, %v4061
      %v4063 = vrot.slane %v3385, %v4062
      %v4064 = vadd.f32 %v4059, %v4063
      %v4065 = vpack.c.bf16 %v4064, %v4064
      %v4066 = vld [vmem:[%s2283] sm:$0xf]
      %v4067 = vld [vmem:[%s2283 + $0x4] sm:$0xf]
      %v4068 = vld [vmem:[%s2283 + $0x8] sm:$0xf]
      %v4069 = vld [vmem:[%s2283 + $0xc] sm:$0xf]
      %v4071 = vlaneseq
      %v4072 = vshrl.u32 %v4071, 7
      %v4073 = vsub.s32 0, %v4072
      %v4074 = vrot.slane %v3382, %v4073
      %v4080 = vunpack.c.l.b16 %v4066
      %v4081 = vunpack.c.l.b16 %v4067
      %v4082 = vunpack.c.l.b16 %v4068
      %v4083 = vunpack.c.l.b16 %v4069
      %v4084 = vpack.c.b16 %v4081, %v4080
      %v4085 = vpack.c.b16 %v4083, %v4082
      %v4089 = vsel %vm661, %v4065, 0
      %4091 = vmatprep.subr.bf16.mxu0 0
      %4092 = vmatpush1.bf16.msra.mxu0 %v4084
      %4093 = vmatprep.subr.bf16.mxu0 0
      %4094 = vmatpush1.bf16.msra.mxu0 %v4085
      %4095 = vmatprep.subr.bf16.mxu0 0
      %4096 = vmatpush1.bf16.msra.mxu0 0
      %4097 = vmatprep.subr.bf16.mxu0 0
      %4098 = vmatpush1.bf16.msra.mxu0 0
      %4099 = vmatprep.subr.bf16.mxu0 0
      %4100 = vmatpush1.bf16.msra.mxu0 0
      %4101 = vmatprep.subr.bf16.mxu0 0
      %4102 = vmatpush1.bf16.msra.mxu0 0
      %4103 = vmatprep.subr.bf16.mxu0 0
      %4104 = vmatpush1.bf16.msra.mxu0 0
      %4105 = vmatprep.subr.bf16.mxu0 0
      %4106 = vmatpush1.bf16.msra.mxu0 0
      %4107 = vmatprep.subr.bf16.mxu0 0
      %4108 = vmatpush1.bf16.msra.mxu0 0
      %4109 = vmatprep.subr.bf16.mxu0 0
      %4110 = vmatpush1.bf16.msra.mxu0 0
      %4111 = vmatprep.subr.bf16.mxu0 0
      %4112 = vmatpush1.bf16.msra.mxu0 0
      %4113 = vmatprep.subr.bf16.mxu0 0
      %4114 = vmatpush1.bf16.msra.mxu0 0
      %4115 = vmatprep.subr.bf16.mxu0 0
      %4116 = vmatpush1.bf16.msra.mxu0 0
      %4117 = vmatprep.subr.bf16.mxu0 0
      %4118 = vmatpush1.bf16.msra.mxu0 0
      %4119 = vmatprep.subr.bf16.mxu0 0
      %4120 = vmatpush1.bf16.msra.mxu0 0
      %4121 = vmatprep.subr.bf16.mxu0 0
      %4122 = vmatpush1.bf16.msra.mxu0 0
      %4123 = vmatprep.mubr.bf16.mxu0 0
      %4124 = vmatmul.mubr.bf16.gmra.mrb[0].mxu0 %v4089
      %v4125 = vpop.f32.mrb[0].mxu0
      %v4126 = vadd.f32 %v4074, %v4125
      %v4127 = vpop.f32.mrb[0].mxu0
      %v4128 = vpop.f32.mrb[0].mxu0
      %v4129 = vpop.f32.mrb[0].mxu0
      %4130 = vdwg.mxu0
      %v4131 = vmax.f32 %v4126, 0.0
      %v4132 = vpack.c.bf16 %v4131, %v4131
      %v4133 = vld [vmem:[%s2351] sm:$0xf]
      %v4134 = vld [vmem:[%s2351 + $0x4] sm:$0xf]
      %v4135 = vld [vmem:[%s2351 + $0x8] sm:$0xf]
      %v4136 = vld [vmem:[%s2351 + $0xc] sm:$0xf]
      %v4137 = vld [vmem:[%s2351 + $0x10] sm:$0xf]
      %v4138 = vld [vmem:[%s2351 + $0x14] sm:$0xf]
      %v4139 = vld [vmem:[%s2351 + $0x18] sm:$0xf]
      %v4140 = vld [vmem:[%s2351 + $0x1c] sm:$0xf]
      %v4142 = vlaneseq
      %v4143 = vshrl.u32 %v4142, 7
      %v4144 = vsub.s32 0, %v4143
      %v4145 = vrot.slane %v3383, %v4144
      %v4155 = vunpack.c.l.b16 %v4133
      %v4156 = vunpack.c.l.b16 %v4134
      %v4157 = vunpack.c.l.b16 %v4135
      %v4158 = vunpack.c.l.b16 %v4136
      %v4159 = vunpack.c.l.b16 %v4137
      %v4160 = vunpack.c.l.b16 %v4138
      %v4161 = vunpack.c.l.b16 %v4139
      %v4162 = vunpack.c.l.b16 %v4140
      %v4163 = vpack.c.b16 %v4156, %v4155
      %v4164 = vpack.c.b16 %v4158, %v4157
      %v4165 = vpack.c.b16 %v4160, %v4159
      %v4166 = vpack.c.b16 %v4162, %v4161
      %v4172 = vsel %vm1513, %v4132, 0
      %4174 = vmatprep.subr.bf16.mxu0 0
      %4175 = vmatpush1.bf16.msra.mxu0 %v4163
      %4176 = vmatprep.subr.bf16.mxu0 0
      %4177 = vmatpush1.bf16.msra.mxu0 %v4164
      %4178 = vmatprep.subr.bf16.mxu0 0
      %4179 = vmatpush1.bf16.msra.mxu0 %v4165
      %4180 = vmatprep.subr.bf16.mxu0 0
      %4181 = vmatpush1.bf16.msra.mxu0 %v4166
      %4182 = vmatprep.subr.bf16.mxu0 0
      %4183 = vmatpush1.bf16.msra.mxu0 0
      %4184 = vmatprep.subr.bf16.mxu0 0
      %4185 = vmatpush1.bf16.msra.mxu0 0
      %4186 = vmatprep.subr.bf16.mxu0 0
      %4187 = vmatpush1.bf16.msra.mxu0 0
      %4188 = vmatprep.subr.bf16.mxu0 0
      %4189 = vmatpush1.bf16.msra.mxu0 0
      %4190 = vmatprep.subr.bf16.mxu0 0
      %4191 = vmatpush1.bf16.msra.mxu0 0
      %4192 = vmatprep.subr.bf16.mxu0 0
      %4193 = vmatpush1.bf16.msra.mxu0 0
      %4194 = vmatprep.subr.bf16.mxu0 0
      %4195 = vmatpush1.bf16.msra.mxu0 0
      %4196 = vmatprep.subr.bf16.mxu0 0
      %4197 = vmatpush1.bf16.msra.mxu0 0
      %4198 = vmatprep.subr.bf16.mxu0 0
      %4199 = vmatpush1.bf16.msra.mxu0 0
      %4200 = vmatprep.subr.bf16.mxu0 0
      %4201 = vmatpush1.bf16.msra.mxu0 0
      %4202 = vmatprep.subr.bf16.mxu0 0
      %4203 = vmatpush1.bf16.msra.mxu0 0
      %4204 = vmatprep.subr.bf16.mxu0 0
      %4205 = vmatpush1.bf16.msra.mxu0 0
      %4206 = vmatprep.mubr.bf16.mxu0 0
      %4207 = vmatmul.mubr.bf16.gmra.mrb[0].mxu0 %v4172
      %v4208 = vpop.f32.mrb[0].mxu0
      %v4209 = vadd.f32 %v4145, %v4208
      %v4210 = vpop.f32.mrb[0].mxu0
      %v4211 = vpop.f32.mrb[0].mxu0
      %v4212 = vpop.f32.mrb[0].mxu0
      %4213 = vdwg.mxu0
      %v4214 = vadd.f32 %v4064, %v4209
      %v4215 = vsel %vm661, %v4214, 0.0
      %4216 = vadd.xlane.f32.xlu0 %v4215
      %v4217 = vpop.xlane.xlu0 %4216
      %v4218 = vmul.f32 %v4217, %v1063
      %v4219 = vsub.f32 %v4214, %v4218
      %v4220 = vmul.f32 %v4219, %v4219
      %v4221 = vsel %vm661, %v4220, 0.0
      %4222 = vadd.xlane.f32.xlu0 %v4221
      %v4223 = vpop.xlane.xlu0 %4222
      %v4224 = vmul.f32 %v4223, %v1063
      %v4225 = vadd.f32 %v4224, 1e-05
      %v4226 = vrsqrt.pop %v4225
      %v4227 = vmul.f32 %v4219, %v4226
      %v4228 = vlaneseq
      %v4229 = vshrl.u32 %v4228, 7
      %v4230 = vsub.s32 2, %v4229
      %v4231 = vrot.slane %v3384, %v4230
      %v4232 = vmul.f32 %v4227, %v4231
      %v4233 = vlaneseq
      %v4234 = vshrl.u32 %v4233, 7
      %v4235 = vsub.s32 2, %v4234
      %v4236 = vrot.slane %v3385, %v4235
      %v4237 = vadd.f32 %v4232, %v4236
      %4238 = vst.msk [vmem:[%s653 + $0x8] sm:$0xff] %vm661, %v4237
      %v4239 = vpack.c.bf16 %v4237, %v4237
      %s4240 = scalar_lea.vmem %s1, 16
      %v4241 = vld [vmem:[%s4240] sm:$0xff]
      %v4243 = vsel %vm661, %v4239, 0
      %4245 = vmatprep.subr.bf16.mxu0 0
      %4246 = vmatpush1.bf16.msra.mxu0 %v2469
      %4247 = vmatprep.subr.bf16.mxu0 0
      %4248 = vmatpush1.bf16.msra.mxu0 %v2470
      %4249 = vmatprep.subr.bf16.mxu0 0
      %4250 = vmatpush1.bf16.msra.mxu0 0
      %4251 = vmatprep.subr.bf16.mxu0 0
      %4252 = vmatpush1.bf16.msra.mxu0 0
      %4253 = vmatprep.subr.bf16.mxu0 0
      %4254 = vmatpush1.bf16.msra.mxu0 0
      %4255 = vmatprep.subr.bf16.mxu0 0
      %4256 = vmatpush1.bf16.msra.mxu0 0
      %4257 = vmatprep.subr.bf16.mxu0 0
      %4258 = vmatpush1.bf16.msra.mxu0 0
      %4259 = vmatprep.subr.bf16.mxu0 0
      %4260 = vmatpush1.bf16.msra.mxu0 0
      %4261 = vmatprep.subr.bf16.mxu0 0
      %4262 = vmatpush1.bf16.msra.mxu0 0
      %4263 = vmatprep.subr.bf16.mxu0 0
      %4264 = vmatpush1.bf16.msra.mxu0 0
      %4265 = vmatprep.subr.bf16.mxu0 0
      %4266 = vmatpush1.bf16.msra.mxu0 0
      %4267 = vmatprep.subr.bf16.mxu0 0
      %4268 = vmatpush1.bf16.msra.mxu0 0
      %4269 = vmatprep.subr.bf16.mxu0 0
      %4270 = vmatpush1.bf16.msra.mxu0 0
      %4271 = vmatprep.subr.bf16.mxu0 0
      %4272 = vmatpush1.bf16.msra.mxu0 0
      %4273 = vmatprep.subr.bf16.mxu0 0
      %4274 = vmatpush1.bf16.msra.mxu0 0
      %4275 = vmatprep.subr.bf16.mxu0 0
      %4276 = vmatpush1.bf16.msra.mxu0 0
      %4277 = vmatprep.mubr.bf16.mxu0 0
      %4278 = vmatmul.mubr.bf16.gmra.mrb[0].mxu0 %v4243
      %v4279 = vpop.f32.mrb[0].mxu0
      %v4280 = vadd.f32 %v4241, %v4279
      %v4281 = vpop.f32.mrb[0].mxu0
      %v4282 = vpop.f32.mrb[0].mxu0
      %v4283 = vpop.f32.mrb[0].mxu0
      %4284 = vdwg.mxu0
      %v4285 = vadd.f32 %v4280, %v655
      %v4286 = vld [vmem:[%s3 + $0x10] sm:$0xff]
      %v4287 = vld [vmem:[%s8] sm:$0x1]
      %v4288 = vld [vmem:[%s10] sm:$0x1]
      %v4289 = vld [vmem:[%s12] sm:$0x1]
      %v4290 = vld [vmem:[%s14] sm:$0x1]
      %v4291 = vld [vmem:[%s16] sm:$0x1]
      %v4292 = vld [vmem:[%s18] sm:$0x1]
      %v4293 = vld [vmem:[%s19] sm:$0x7]
      %v4294 = vld [vmem:[%s20] sm:$0x7]
      %v4295 = vpack.c.bf16 %v4285, %v4285
      %v4296 = vld [vmem:[%s7] sm:$0xf]
      %v4297 = vld [vmem:[%s7 + $0x4] sm:$0xf]
      %v4298 = vld [vmem:[%s7 + $0x8] sm:$0xf]
      %v4299 = vld [vmem:[%s7 + $0xc] sm:$0xf]
      %v4301 = vlaneseq
      %v4302 = vshrl.u32 %v4301, 7
      %v4303 = vsub.s32 0, %v4302
      %v4304 = vrot.slane %v4287, %v4303
      %v4310 = vunpack.c.l.b16 %v4296
      %v4311 = vunpack.c.l.b16 %v4297
      %v4312 = vunpack.c.l.b16 %v4298
      %v4313 = vunpack.c.l.b16 %v4299
      %v4314 = vpack.c.b16 %v4311, %v4310
      %v4315 = vpack.c.b16 %v4313, %v4312
      %v4319 = vsel %vm661, %v4295, 0
      %4321 = vmatprep.subr.bf16.mxu0 0
      %4322 = vmatpush1.bf16.msra.mxu0 %v4314
      %4323 = vmatprep.subr.bf16.mxu0 0
      %4324 = vmatpush1.bf16.msra.mxu0 %v4315
      %4325 = vmatprep.subr.bf16.mxu0 0
      %4326 = vmatpush1.bf16.msra.mxu0 0
      %4327 = vmatprep.subr.bf16.mxu0 0
      %4328 = vmatpush1.bf16.msra.mxu0 0
      %4329 = vmatprep.subr.bf16.mxu0 0
      %4330 = vmatpush1.bf16.msra.mxu0 0
      %4331 = vmatprep.subr.bf16.mxu0 0
      %4332 = vmatpush1.bf16.msra.mxu0 0
      %4333 = vmatprep.subr.bf16.mxu0 0
      %4334 = vmatpush1.bf16.msra.mxu0 0
      %4335 = vmatprep.subr.bf16.mxu0 0
      %4336 = vmatpush1.bf16.msra.mxu0 0
      %4337 = vmatprep.subr.bf16.mxu0 0
      %4338 = vmatpush1.bf16.msra.mxu0 0
      %4339 = vmatprep.subr.bf16.mxu0 0
      %4340 = vmatpush1.bf16.msra.mxu0 0
      %4341 = vmatprep.subr.bf16.mxu0 0
      %4342 = vmatpush1.bf16.msra.mxu0 0
      %4343 = vmatprep.subr.bf16.mxu0 0
      %4344 = vmatpush1.bf16.msra.mxu0 0
      %4345 = vmatprep.subr.bf16.mxu0 0
      %4346 = vmatpush1.bf16.msra.mxu0 0
      %4347 = vmatprep.subr.bf16.mxu0 0
      %4348 = vmatpush1.bf16.msra.mxu0 0
      %4349 = vmatprep.subr.bf16.mxu0 0
      %4350 = vmatpush1.bf16.msra.mxu0 0
      %4351 = vmatprep.subr.bf16.mxu0 0
      %4352 = vmatpush1.bf16.msra.mxu0 0
      %4353 = vmatprep.mubr.bf16.mxu0 0
      %4354 = vmatmul.mubr.bf16.gmra.mrb[0].mxu0 %v4319
      %v4355 = vpop.f32.mrb[0].mxu0
      %v4356 = vadd.f32 %v4304, %v4355
      %v4357 = vpop.f32.mrb[0].mxu0
      %v4358 = vpop.f32.mrb[0].mxu0
      %v4359 = vpop.f32.mrb[0].mxu0
      %4360 = vdwg.mxu0
      %4362 = vrot.lane.b32.xlu0 %v4356, 96
      %v4363 = vpop.permute.xlu0 %4362
      %4365 = vst.msk [vmem:[#allocation2 + $0x10] sm:$0xff] %vm791, %v4363
      %4366 = vrot.lane.b32.xlu0 %v4356, 64
      %v4367 = vpop.permute.xlu0 %4366
      %4369 = vst.msk [vmem:[#allocation3 + $0x10] sm:$0xff] %vm791, %v4367
      %4370 = vst.msk [vmem:[#allocation2 + $0x28] sm:$0xff] %vm797, %v4363
      %4371 = vst.msk [vmem:[#allocation3 + $0x28] sm:$0xff] %vm797, %v4367
      %4372 = vst.msk [vmem:[#allocation2 + $0x40] sm:$0xff] %vm800, %v4363
      %4373 = vst.msk [vmem:[#allocation3 + $0x40] sm:$0xff] %vm800, %v4367
      %4374 = vst.msk [vmem:[#allocation2 + $0x58] sm:$0xff] %vm803, %v4363
      %4375 = vst.msk [vmem:[#allocation3 + $0x58] sm:$0xff] %vm803, %v4367
      %v4376 = vld [vmem:[#allocation2] sm:$0xff]
      %v4377 = vld [vmem:[#allocation2 + $0x8] sm:$0xff]
      %v4378 = vld [vmem:[#allocation2 + $0x10] sm:$0xff]
      %v4379 = vld [vmem:[#allocation2 + $0x18] sm:$0xff]
      %v4380 = vld [vmem:[#allocation2 + $0x20] sm:$0xff]
      %v4381 = vld [vmem:[#allocation2 + $0x28] sm:$0xff]
      %v4382 = vld [vmem:[#allocation2 + $0x30] sm:$0xff]
      %v4383 = vld [vmem:[#allocation2 + $0x38] sm:$0xff]
      %v4384 = vld [vmem:[#allocation2 + $0x40] sm:$0xff]
      %v4385 = vld [vmem:[#allocation2 + $0x48] sm:$0xff]
      %v4386 = vld [vmem:[#allocation2 + $0x50] sm:$0xff]
      %v4387 = vld [vmem:[#allocation2 + $0x58] sm:$0xff]
      %v4388 = vld [vmem:[#allocation3] sm:$0xff]
      %v4389 = vld [vmem:[#allocation3 + $0x8] sm:$0xff]
      %v4390 = vld [vmem:[#allocation3 + $0x10] sm:$0xff]
      %v4391 = vld [vmem:[#allocation3 + $0x18] sm:$0xff]
      %v4392 = vld [vmem:[#allocation3 + $0x20] sm:$0xff]
      %v4393 = vld [vmem:[#allocation3 + $0x28] sm:$0xff]
      %v4394 = vld [vmem:[#allocation3 + $0x30] sm:$0xff]
      %v4395 = vld [vmem:[#allocation3 + $0x38] sm:$0xff]
      %v4396 = vld [vmem:[#allocation3 + $0x40] sm:$0xff]
      %v4397 = vld [vmem:[#allocation3 + $0x48] sm:$0xff]
      %v4398 = vld [vmem:[#allocation3 + $0x50] sm:$0xff]
      %v4399 = vld [vmem:[#allocation3 + $0x58] sm:$0xff]
      %v4400 = vld [vmem:[%s9] sm:$0xf]
      %v4401 = vld [vmem:[%s9 + $0x4] sm:$0xf]
      %v4402 = vld [vmem:[%s9 + $0x8] sm:$0xf]
      %v4403 = vld [vmem:[%s9 + $0xc] sm:$0xf]
      %v4404 = vpack.c.bf16 %v4356, %v4356
      %v4405 = vpack.c.bf16 %v4377, %v4376
      %v4406 = vpack.c.bf16 %v4379, %v4378
      %v4407 = vpack.c.bf16 %v4381, %v4380
      %v4408 = vpack.c.bf16 %v4383, %v4382
      %v4409 = vpack.c.bf16 %v4385, %v4384
      %v4410 = vpack.c.bf16 %v4387, %v4386
      %v4412 = vsel %vm661, %v4404, 0
      %v4415 = vsel %vm661, %v4405, 0
      %v4418 = vsel %vm661, %v4406, 0
      %v4421 = vsel %vm661, %v4407, 0
      %v4424 = vsel %vm661, %v4408, 0
      %v4427 = vsel %vm661, %v4409, 0
      %v4430 = vsel %vm661, %v4410, 0
      %4432 = vmatprep.subr.bf16.mxu0 0
      %4433 = vmatpush1.bf16.xpose.msra.mxu0 %v4415
      %4434 = vmatprep.subr.bf16.mxu0 0
      %4435 = vmatpush1.bf16.xpose.msra.mxu0 %v4418
      %4436 = vmatprep.subr.bf16.mxu0 0
      %4437 = vmatpush1.bf16.xpose.msra.mxu0 %v4421
      %4438 = vmatprep.subr.bf16.mxu0 0
      %4439 = vmatpush1.bf16.xpose.msra.mxu0 %v4424
      %4440 = vmatprep.subr.bf16.mxu0 0
      %4441 = vmatpush1.bf16.xpose.msra.mxu0 %v4427
      %4442 = vmatprep.subr.bf16.mxu0 0
      %4443 = vmatpush1.bf16.xpose.msra.mxu0 %v4430
      %4444 = vmatprep.subr.bf16.mxu0 0
      %4445 = vmatpush1.bf16.xpose.msra.mxu0 0
      %4446 = vmatprep.subr.bf16.mxu0 0
      %4447 = vmatpush1.bf16.xpose.msra.mxu0 0
      %4448 = vmatprep.subr.bf16.mxu0 0
      %4449 = vmatpush1.bf16.xpose.msra.mxu0 0
      %4450 = vmatprep.subr.bf16.mxu0 0
      %4451 = vmatpush1.bf16.xpose.msra.mxu0 0
      %4452 = vmatprep.subr.bf16.mxu0 0
      %4453 = vmatpush1.bf16.xpose.msra.mxu0 0
      %4454 = vmatprep.subr.bf16.mxu0 0
      %4455 = vmatpush1.bf16.xpose.msra.mxu0 0
      %4456 = vmatprep.subr.bf16.mxu0 0
      %4457 = vmatpush1.bf16.xpose.msra.mxu0 0
      %4458 = vmatprep.subr.bf16.mxu0 0
      %4459 = vmatpush1.bf16.xpose.msra.mxu0 0
      %4460 = vmatprep.subr.bf16.mxu0 0
      %4461 = vmatpush1.bf16.xpose.msra.mxu0 0
      %4462 = vmatprep.subr.bf16.mxu0 0
      %4463 = vmatpush1.bf16.xpose.msra.mxu0 0
      %4464 = vmatprep.mubr.bf16.mxu0 0
      %4465 = vmatmul.mubr.bf16.gmra.mrb[0].mxu0 %v4412
      %v4466 = vpop.f32.mrb[0].mxu0
      %v4467 = vadd.f32 0.0, %v4466
      %v4468 = vpop.f32.mrb[0].mxu0
      %v4469 = vpop.f32.mrb[0].mxu0
      %v4470 = vpop.f32.mrb[0].mxu0
      %4471 = vdwg.mxu0
      %v4472 = vmul.f32 %v4467, 0.35355338
      %v4473 = vadd.f32 %v4472, %v4286
      %v4474 = vsel %vm904, %v4473, -inf
      %4475 = vmax.xlane.f32.xlu0 %v4474
      %v4476 = vpop.xlane.xlu0 %4475
      %v4477 = vsub.f32 %v4473, %v4476
      %v4478 = vmul.f32 %v4477, 1.442695
      %v4479 = vpow.pop %v4478
      %v4480 = vpack.c.bf16 %v4479, %v4479
      %v4481 = vpack.c.bf16 %v4389, %v4388
      %v4482 = vpack.c.bf16 %v4391, %v4390
      %v4483 = vpack.c.bf16 %v4393, %v4392
      %v4484 = vpack.c.bf16 %v4395, %v4394
      %v4485 = vpack.c.bf16 %v4397, %v4396
      %v4486 = vpack.c.bf16 %v4399, %v4398
      %v4488 = vsel %vm904, %v4480, 0
      %4490 = vmatprep.subr.bf16.mxu0 0
      %4491 = vmatpush1.bf16.msra.mxu0 %v4481
      %4492 = vmatprep.subr.bf16.mxu0 0
      %4493 = vmatpush1.bf16.msra.mxu0 %v4482
      %4494 = vmatprep.subr.bf16.mxu0 0
      %4495 = vmatpush1.bf16.msra.mxu0 %v4483
      %4496 = vmatprep.subr.bf16.mxu0 0
      %4497 = vmatpush1.bf16.msra.mxu0 %v4484
      %4498 = vmatprep.subr.bf16.mxu0 0
      %4499 = vmatpush1.bf16.msra.mxu0 %v4485
      %4500 = vmatprep.subr.bf16.mxu0 0
      %4501 = vmatpush1.bf16.msra.mxu0 %v4486
      %4502 = vmatprep.subr.bf16.mxu0 0
      %4503 = vmatpush1.bf16.msra.mxu0 0
      %4504 = vmatprep.subr.bf16.mxu0 0
      %4505 = vmatpush1.bf16.msra.mxu0 0
      %4506 = vmatprep.subr.bf16.mxu0 0
      %4507 = vmatpush1.bf16.msra.mxu0 0
      %4508 = vmatprep.subr.bf16.mxu0 0
      %4509 = vmatpush1.bf16.msra.mxu0 0
      %4510 = vmatprep.subr.bf16.mxu0 0
      %4511 = vmatpush1.bf16.msra.mxu0 0
      %4512 = vmatprep.subr.bf16.mxu0 0
      %4513 = vmatpush1.bf16.msra.mxu0 0
      %4514 = vmatprep.subr.bf16.mxu0 0
      %4515 = vmatpush1.bf16.msra.mxu0 0
      %4516 = vmatprep.subr.bf16.mxu0 0
      %4517 = vmatpush1.bf16.msra.mxu0 0
      %4518 = vmatprep.subr.bf16.mxu0 0
      %4519 = vmatpush1.bf16.msra.mxu0 0
      %4520 = vmatprep.subr.bf16.mxu0 0
      %4521 = vmatpush1.bf16.msra.mxu0 0
      %4522 = vmatprep.mubr.bf16.mxu0 0
      %4523 = vmatmul.mubr.bf16.gmra.mrb[0].mxu0 %v4488
      %v4524 = vpop.f32.mrb[0].mxu0
      %v4525 = vadd.f32 0.0, %v4524
      %v4526 = vpop.f32.mrb[0].mxu0
      %v4527 = vpop.f32.mrb[0].mxu0
      %v4528 = vpop.f32.mrb[0].mxu0
      %4529 = vdwg.mxu0
      %v4530 = vsel %vm961, %v4479, 0.0
      %4531 = vadd.xlane.f32.xlu0 %v4530
      %v4532 = vpop.xlane.xlu0 %4531
      %v4533 = vrcp.pop %v4532
      %v4534 = vmul.f32 %v4525, %v4533
      %4535 = vst.msk [vmem:[#allocation4] sm:$0xff] %vm791, %v4534
      %4537 = vrot.lane.b32.xlu0 %v4479, 104
      %v4538 = vpop.permute.xlu0 %4537
      %v4540 = vsel %vm961, %v4538, 0.0
      %4541 = vadd.xlane.f32.xlu0 %v4540
      %v4542 = vpop.xlane.xlu0 %4541
      %v4543 = vrcp.pop %v4542
      %v4544 = vmul.f32 %v4525, %v4543
      %4545 = vst.msk [vmem:[#allocation4] sm:$0xff] %vm797, %v4544
      %4546 = vrot.lane.b32.xlu0 %v4479, 80
      %v4547 = vpop.permute.xlu0 %4546
      %v4549 = vsel %vm961, %v4547, 0.0
      %4550 = vadd.xlane.f32.xlu0 %v4549
      %v4551 = vpop.xlane.xlu0 %4550
      %v4552 = vrcp.pop %v4551
      %v4553 = vmul.f32 %v4525, %v4552
      %4554 = vst.msk [vmem:[#allocation4] sm:$0xff] %vm800, %v4553
      %4555 = vrot.lane.b32.xlu0 %v4479, 56
      %v4556 = vpop.permute.xlu0 %4555
      %v4558 = vsel %vm961, %v4556, 0.0
      %4559 = vadd.xlane.f32.xlu0 %v4558
      %v4560 = vpop.xlane.xlu0 %4559
      %v4561 = vrcp.pop %v4560
      %v4562 = vmul.f32 %v4525, %v4561
      %4563 = vst.msk [vmem:[#allocation4] sm:$0xff] %vm803, %v4562
      %v4564 = vld [vmem:[#allocation4] sm:$0xff]
      %v4565 = vpack.c.bf16 %v4564, %v4564
      %v4567 = vlaneseq
      %v4568 = vshrl.u32 %v4567, 7
      %v4569 = vsub.s32 0, %v4568
      %v4570 = vrot.slane %v4288, %v4569
      %v4576 = vunpack.c.l.b16 %v4400
      %v4577 = vunpack.c.l.b16 %v4401
      %v4578 = vunpack.c.l.b16 %v4402
      %v4579 = vunpack.c.l.b16 %v4403
      %v4580 = vpack.c.b16 %v4577, %v4576
      %v4581 = vpack.c.b16 %v4579, %v4578
      %v4585 = vsel %vm661, %v4565, 0
      %4587 = vmatprep.subr.bf16.mxu0 0
      %4588 = vmatpush1.bf16.msra.mxu0 %v4580
      %4589 = vmatprep.subr.bf16.mxu0 0
      %4590 = vmatpush1.bf16.msra.mxu0 %v4581
      %4591 = vmatprep.subr.bf16.mxu0 0
      %4592 = vmatpush1.bf16.msra.mxu0 0
      %4593 = vmatprep.subr.bf16.mxu0 0
      %4594 = vmatpush1.bf16.msra.mxu0 0
      %4595 = vmatprep.subr.bf16.mxu0 0
      %4596 = vmatpush1.bf16.msra.mxu0 0
      %4597 = vmatprep.subr.bf16.mxu0 0
      %4598 = vmatpush1.bf16.msra.mxu0 0
      %4599 = vmatprep.subr.bf16.mxu0 0
      %4600 = vmatpush1.bf16.msra.mxu0 0
      %4601 = vmatprep.subr.bf16.mxu0 0
      %4602 = vmatpush1.bf16.msra.mxu0 0
      %4603 = vmatprep.subr.bf16.mxu0 0
      %4604 = vmatpush1.bf16.msra.mxu0 0
      %4605 = vmatprep.subr.bf16.mxu0 0
      %4606 = vmatpush1.bf16.msra.mxu0 0
      %4607 = vmatprep.subr.bf16.mxu0 0
      %4608 = vmatpush1.bf16.msra.mxu0 0
      %4609 = vmatprep.subr.bf16.mxu0 0
      %4610 = vmatpush1.bf16.msra.mxu0 0
      %4611 = vmatprep.subr.bf16.mxu0 0
      %4612 = vmatpush1.bf16.msra.mxu0 0
      %4613 = vmatprep.subr.bf16.mxu0 0
      %4614 = vmatpush1.bf16.msra.mxu0 0
      %4615 = vmatprep.subr.bf16.mxu0 0
      %4616 = vmatpush1.bf16.msra.mxu0 0
      %4617 = vmatprep.subr.bf16.mxu0 0
      %4618 = vmatpush1.bf16.msra.mxu0 0
      %4619 = vmatprep.mubr.bf16.mxu0 0
      %4620 = vmatmul.mubr.bf16.gmra.mrb[0].mxu0 %v4585
      %v4621 = vpop.f32.mrb[0].mxu0
      %v4622 = vadd.f32 %v4570, %v4621
      %v4623 = vpop.f32.mrb[0].mxu0
      %v4624 = vpop.f32.mrb[0].mxu0
      %v4625 = vpop.f32.mrb[0].mxu0
      %4626 = vdwg.mxu0
      %v4627 = vadd.f32 %v4285, %v4622
      %v4628 = vsel %vm661, %v4627, 0.0
      %4629 = vadd.xlane.f32.xlu0 %v4628
      %v4630 = vpop.xlane.xlu0 %4629
      %v4631 = vmul.f32 %v4630, %v1063
      %v4632 = vsub.f32 %v4627, %v4631
      %v4633 = vmul.f32 %v4632, %v4632
      %v4634 = vsel %vm661, %v4633, 0.0
      %4635 = vadd.xlane.f32.xlu0 %v4634
      %v4636 = vpop.xlane.xlu0 %4635
      %v4637 = vmul.f32 %v4636, %v1063
      %v4638 = vadd.f32 %v4637, 1e-05
      %v4639 = vrsqrt.pop %v4638
      %v4640 = vmul.f32 %v4632, %v4639
      %v4641 = vlaneseq
      %v4642 = vshrl.u32 %v4641, 7
      %v4643 = vsub.s32 0, %v4642
      %v4644 = vrot.slane %v4293, %v4643
      %v4645 = vmul.f32 %v4640, %v4644
      %v4646 = vlaneseq
      %v4647 = vshrl.u32 %v4646, 7
      %v4648 = vsub.s32 0, %v4647
      %v4649 = vrot.slane %v4294, %v4648
      %v4650 = vadd.f32 %v4645, %v4649
      %v4651 = vpack.c.bf16 %v4650, %v4650
      %v4652 = vld [vmem:[%s11] sm:$0xf]
      %v4653 = vld [vmem:[%s11 + $0x4] sm:$0xf]
      %v4654 = vld [vmem:[%s11 + $0x8] sm:$0xf]
      %v4655 = vld [vmem:[%s11 + $0xc] sm:$0xf]
      %v4657 = vlaneseq
      %v4658 = vshrl.u32 %v4657, 7
      %v4659 = vsub.s32 0, %v4658
      %v4660 = vrot.slane %v4289, %v4659
      %v4666 = vunpack.c.l.b16 %v4652
      %v4667 = vunpack.c.l.b16 %v4653
      %v4668 = vunpack.c.l.b16 %v4654
      %v4669 = vunpack.c.l.b16 %v4655
      %v4670 = vpack.c.b16 %v4667, %v4666
      %v4671 = vpack.c.b16 %v4669, %v4668
      %v4675 = vsel %vm661, %v4651, 0
      %4677 = vmatprep.subr.bf16.mxu0 0
      %4678 = vmatpush1.bf16.msra.mxu0 %v4670
      %4679 = vmatprep.subr.bf16.mxu0 0
      %4680 = vmatpush1.bf16.msra.mxu0 %v4671
      %4681 = vmatprep.subr.bf16.mxu0 0
      %4682 = vmatpush1.bf16.msra.mxu0 0
      %4683 = vmatprep.subr.bf16.mxu0 0
      %4684 = vmatpush1.bf16.msra.mxu0 0
      %4685 = vmatprep.subr.bf16.mxu0 0
      %4686 = vmatpush1.bf16.msra.mxu0 0
      %4687 = vmatprep.subr.bf16.mxu0 0
      %4688 = vmatpush1.bf16.msra.mxu0 0
      %4689 = vmatprep.subr.bf16.mxu0 0
      %4690 = vmatpush1.bf16.msra.mxu0 0
      %4691 = vmatprep.subr.bf16.mxu0 0
      %4692 = vmatpush1.bf16.msra.mxu0 0
      %4693 = vmatprep.subr.bf16.mxu0 0
      %4694 = vmatpush1.bf16.msra.mxu0 0
      %4695 = vmatprep.subr.bf16.mxu0 0
      %4696 = vmatpush1.bf16.msra.mxu0 0
      %4697 = vmatprep.subr.bf16.mxu0 0
      %4698 = vmatpush1.bf16.msra.mxu0 0
      %4699 = vmatprep.subr.bf16.mxu0 0
      %4700 = vmatpush1.bf16.msra.mxu0 0
      %4701 = vmatprep.subr.bf16.mxu0 0
      %4702 = vmatpush1.bf16.msra.mxu0 0
      %4703 = vmatprep.subr.bf16.mxu0 0
      %4704 = vmatpush1.bf16.msra.mxu0 0
      %4705 = vmatprep.subr.bf16.mxu0 0
      %4706 = vmatpush1.bf16.msra.mxu0 0
      %4707 = vmatprep.subr.bf16.mxu0 0
      %4708 = vmatpush1.bf16.msra.mxu0 0
      %4709 = vmatprep.mubr.bf16.mxu0 0
      %4710 = vmatmul.mubr.bf16.gmra.mrb[0].mxu0 %v4675
      %v4711 = vpop.f32.mrb[0].mxu0
      %v4712 = vadd.f32 %v4660, %v4711
      %v4713 = vpop.f32.mrb[0].mxu0
      %v4714 = vpop.f32.mrb[0].mxu0
      %v4715 = vpop.f32.mrb[0].mxu0
      %4716 = vdwg.mxu0
      %v4717 = vld [vmem:[%s5] sm:$0xf]
      %v4718 = vld [vmem:[%s5 + $0x4] sm:$0xf]
      %v4719 = vld [vmem:[%s5 + $0x8] sm:$0xf]
      %v4720 = vld [vmem:[%s5 + $0xc] sm:$0xf]
      %v4721 = vld [vmem:[%s6] sm:$0xf]
      %v4722 = vld [vmem:[%s6 + $0x4] sm:$0xf]
      %v4723 = vld [vmem:[%s6 + $0x8] sm:$0xf]
      %v4724 = vld [vmem:[%s6 + $0xc] sm:$0xf]
      %v4725 = vld [vmem:[%s13] sm:$0xf]
      %v4726 = vld [vmem:[%s13 + $0x4] sm:$0xf]
      %v4727 = vld [vmem:[%s13 + $0x8] sm:$0xf]
      %v4728 = vld [vmem:[%s13 + $0xc] sm:$0xf]
      %v4729 = vpack.c.bf16 %v4712, %v4712
      %v4734 = vunpack.c.l.b16 %v4717
      %v4735 = vunpack.c.l.b16 %v4718
      %v4736 = vunpack.c.l.b16 %v4719
      %v4737 = vunpack.c.l.b16 %v4720
      %v4738 = vpack.c.b16 %v4735, %v4734
      %v4739 = vpack.c.b16 %v4737, %v4736
      %v4741 = vsel %vm661, %v4729, 0
      %v4744 = vsel %vm661, %v4738, 0
      %v4747 = vsel %vm661, %v4739, 0
      %4749 = vmatprep.subr.bf16.mxu0 0
      %4750 = vmatpush1.bf16.xpose.msra.mxu0 %v4744
      %4751 = vmatprep.subr.bf16.mxu0 0
      %4752 = vmatpush1.bf16.xpose.msra.mxu0 %v4747
      %4753 = vmatprep.subr.bf16.mxu0 0
      %4754 = vmatpush1.bf16.xpose.msra.mxu0 0
      %4755 = vmatprep.subr.bf16.mxu0 0
      %4756 = vmatpush1.bf16.xpose.msra.mxu0 0
      %4757 = vmatprep.subr.bf16.mxu0 0
      %4758 = vmatpush1.bf16.xpose.msra.mxu0 0
      %4759 = vmatprep.subr.bf16.mxu0 0
      %4760 = vmatpush1.bf16.xpose.msra.mxu0 0
      %4761 = vmatprep.subr.bf16.mxu0 0
      %4762 = vmatpush1.bf16.xpose.msra.mxu0 0
      %4763 = vmatprep.subr.bf16.mxu0 0
      %4764 = vmatpush1.bf16.xpose.msra.mxu0 0
      %4765 = vmatprep.subr.bf16.mxu0 0
      %4766 = vmatpush1.bf16.xpose.msra.mxu0 0
      %4767 = vmatprep.subr.bf16.mxu0 0
      %4768 = vmatpush1.bf16.xpose.msra.mxu0 0
      %4769 = vmatprep.subr.bf16.mxu0 0
      %4770 = vmatpush1.bf16.xpose.msra.mxu0 0
      %4771 = vmatprep.subr.bf16.mxu0 0
      %4772 = vmatpush1.bf16.xpose.msra.mxu0 0
      %4773 = vmatprep.subr.bf16.mxu0 0
      %4774 = vmatpush1.bf16.xpose.msra.mxu0 0
      %4775 = vmatprep.subr.bf16.mxu0 0
      %4776 = vmatpush1.bf16.xpose.msra.mxu0 0
      %4777 = vmatprep.subr.bf16.mxu0 0
      %4778 = vmatpush1.bf16.xpose.msra.mxu0 0
      %4779 = vmatprep.subr.bf16.mxu0 0
      %4780 = vmatpush1.bf16.xpose.msra.mxu0 0
      %4781 = vmatprep.mubr.bf16.mxu0 0
      %4782 = vmatmul.mubr.bf16.gmra.mrb[0].mxu0 %v4741
      %v4783 = vpop.f32.mrb[0].mxu0
      %v4784 = vadd.f32 0.0, %v4783
      %v4785 = vpop.f32.mrb[0].mxu0
      %v4786 = vpop.f32.mrb[0].mxu0
      %v4787 = vpop.f32.mrb[0].mxu0
      %4788 = vdwg.mxu0
      %v4789 = vmul.f32 %v4784, 0.35355338
      %v4790 = vadd.f32 %v4789, %v656
      %v4791 = vsel %vm661, %v4790, -inf
      %4792 = vmax.xlane.f32.xlu0 %v4791
      %v4793 = vpop.xlane.xlu0 %4792
      %v4794 = vsub.f32 %v4790, %v4793
      %v4795 = vmul.f32 %v4794, 1.442695
      %v4796 = vpow.pop %v4795
      %v4797 = vpack.c.bf16 %v4796, %v4796
      %v4802 = vunpack.c.l.b16 %v4721
      %v4803 = vunpack.c.l.b16 %v4722
      %v4804 = vunpack.c.l.b16 %v4723
      %v4805 = vunpack.c.l.b16 %v4724
      %v4806 = vpack.c.b16 %v4803, %v4802
      %v4807 = vpack.c.b16 %v4805, %v4804
      %v4811 = vsel %vm661, %v4797, 0
      %4813 = vmatprep.subr.bf16.mxu0 0
      %4814 = vmatpush1.bf16.msra.mxu0 %v4806
      %4815 = vmatprep.subr.bf16.mxu0 0
      %4816 = vmatpush1.bf16.msra.mxu0 %v4807
      %4817 = vmatprep.subr.bf16.mxu0 0
      %4818 = vmatpush1.bf16.msra.mxu0 0
      %4819 = vmatprep.subr.bf16.mxu0 0
      %4820 = vmatpush1.bf16.msra.mxu0 0
      %4821 = vmatprep.subr.bf16.mxu0 0
      %4822 = vmatpush1.bf16.msra.mxu0 0
      %4823 = vmatprep.subr.bf16.mxu0 0
      %4824 = vmatpush1.bf16.msra.mxu0 0
      %4825 = vmatprep.subr.bf16.mxu0 0
      %4826 = vmatpush1.bf16.msra.mxu0 0
      %4827 = vmatprep.subr.bf16.mxu0 0
      %4828 = vmatpush1.bf16.msra.mxu0 0
      %4829 = vmatprep.subr.bf16.mxu0 0
      %4830 = vmatpush1.bf16.msra.mxu0 0
      %4831 = vmatprep.subr.bf16.mxu0 0
      %4832 = vmatpush1.bf16.msra.mxu0 0
      %4833 = vmatprep.subr.bf16.mxu0 0
      %4834 = vmatpush1.bf16.msra.mxu0 0
      %4835 = vmatprep.subr.bf16.mxu0 0
      %4836 = vmatpush1.bf16.msra.mxu0 0
      %4837 = vmatprep.subr.bf16.mxu0 0
      %4838 = vmatpush1.bf16.msra.mxu0 0
      %4839 = vmatprep.subr.bf16.mxu0 0
      %4840 = vmatpush1.bf16.msra.mxu0 0
      %4841 = vmatprep.subr.bf16.mxu0 0
      %4842 = vmatpush1.bf16.msra.mxu0 0
      %4843 = vmatprep.subr.bf16.mxu0 0
      %4844 = vmatpush1.bf16.msra.mxu0 0
      %4845 = vmatprep.mubr.bf16.mxu0 0
      %4846 = vmatmul.mubr.bf16.gmra.mrb[0].mxu0 %v4811
      %v4847 = vpop.f32.mrb[0].mxu0
      %v4848 = vadd.f32 0.0, %v4847
      %v4849 = vpop.f32.mrb[0].mxu0
      %v4850 = vpop.f32.mrb[0].mxu0
      %v4851 = vpop.f32.mrb[0].mxu0
      %4852 = vdwg.mxu0
      %v4853 = vsel %vm791, %v4796, 0.0
      %4854 = vadd.xlane.f32.xlu0 %v4853
      %v4855 = vpop.xlane.xlu0 %4854
      %v4856 = vrcp.pop %v4855
      %v4857 = vmul.f32 %v4848, %v4856
      %4858 = vst.msk [vmem:[#allocation4] sm:$0xff] %vm791, %v4857
      %4860 = vrot.lane.b32.xlu0 %v4796, 120
      %v4861 = vpop.permute.xlu0 %4860
      %v4863 = vsel %vm791, %v4861, 0.0
      %4864 = vadd.xlane.f32.xlu0 %v4863
      %v4865 = vpop.xlane.xlu0 %4864
      %v4866 = vrcp.pop %v4865
      %v4867 = vmul.f32 %v4848, %v4866
      %4868 = vst.msk [vmem:[#allocation4] sm:$0xff] %vm797, %v4867
      %4869 = vrot.lane.b32.xlu0 %v4796, 112
      %v4870 = vpop.permute.xlu0 %4869
      %v4872 = vsel %vm791, %v4870, 0.0
      %4873 = vadd.xlane.f32.xlu0 %v4872
      %v4874 = vpop.xlane.xlu0 %4873
      %v4875 = vrcp.pop %v4874
      %v4876 = vmul.f32 %v4848, %v4875
      %4877 = vst.msk [vmem:[#allocation4] sm:$0xff] %vm800, %v4876
      %4878 = vrot.lane.b32.xlu0 %v4796, 104
      %v4879 = vpop.permute.xlu0 %4878
      %v4881 = vsel %vm791, %v4879, 0.0
      %4882 = vadd.xlane.f32.xlu0 %v4881
      %v4883 = vpop.xlane.xlu0 %4882
      %v4884 = vrcp.pop %v4883
      %v4885 = vmul.f32 %v4848, %v4884
      %4886 = vst.msk [vmem:[#allocation4] sm:$0xff] %vm803, %v4885
      %v4887 = vld [vmem:[#allocation4] sm:$0xff]
      %v4888 = vpack.c.bf16 %v4887, %v4887
      %v4890 = vlaneseq
      %v4891 = vshrl.u32 %v4890, 7
      %v4892 = vsub.s32 0, %v4891
      %v4893 = vrot.slane %v4290, %v4892
      %v4899 = vunpack.c.l.b16 %v4725
      %v4900 = vunpack.c.l.b16 %v4726
      %v4901 = vunpack.c.l.b16 %v4727
      %v4902 = vunpack.c.l.b16 %v4728
      %v4903 = vpack.c.b16 %v4900, %v4899
      %v4904 = vpack.c.b16 %v4902, %v4901
      %v4908 = vsel %vm661, %v4888, 0
      %4910 = vmatprep.subr.bf16.mxu0 0
      %4911 = vmatpush1.bf16.msra.mxu0 %v4903
      %4912 = vmatprep.subr.bf16.mxu0 0
      %4913 = vmatpush1.bf16.msra.mxu0 %v4904
      %4914 = vmatprep.subr.bf16.mxu0 0
      %4915 = vmatpush1.bf16.msra.mxu0 0
      %4916 = vmatprep.subr.bf16.mxu0 0
      %4917 = vmatpush1.bf16.msra.mxu0 0
      %4918 = vmatprep.subr.bf16.mxu0 0
      %4919 = vmatpush1.bf16.msra.mxu0 0
      %4920 = vmatprep.subr.bf16.mxu0 0
      %4921 = vmatpush1.bf16.msra.mxu0 0
      %4922 = vmatprep.subr.bf16.mxu0 0
      %4923 = vmatpush1.bf16.msra.mxu0 0
      %4924 = vmatprep.subr.bf16.mxu0 0
      %4925 = vmatpush1.bf16.msra.mxu0 0
      %4926 = vmatprep.subr.bf16.mxu0 0
      %4927 = vmatpush1.bf16.msra.mxu0 0
      %4928 = vmatprep.subr.bf16.mxu0 0
      %4929 = vmatpush1.bf16.msra.mxu0 0
      %4930 = vmatprep.subr.bf16.mxu0 0
      %4931 = vmatpush1.bf16.msra.mxu0 0
      %4932 = vmatprep.subr.bf16.mxu0 0
      %4933 = vmatpush1.bf16.msra.mxu0 0
      %4934 = vmatprep.subr.bf16.mxu0 0
      %4935 = vmatpush1.bf16.msra.mxu0 0
      %4936 = vmatprep.subr.bf16.mxu0 0
      %4937 = vmatpush1.bf16.msra.mxu0 0
      %4938 = vmatprep.subr.bf16.mxu0 0
      %4939 = vmatpush1.bf16.msra.mxu0 0
      %4940 = vmatprep.subr.bf16.mxu0 0
      %4941 = vmatpush1.bf16.msra.mxu0 0
      %4942 = vmatprep.mubr.bf16.mxu0 0
      %4943 = vmatmul.mubr.bf16.gmra.mrb[0].mxu0 %v4908
      %v4944 = vpop.f32.mrb[0].mxu0
      %v4945 = vadd.f32 %v4893, %v4944
      %v4946 = vpop.f32.mrb[0].mxu0
      %v4947 = vpop.f32.mrb[0].mxu0
      %v4948 = vpop.f32.mrb[0].mxu0
      %4949 = vdwg.mxu0
      %v4950 = vadd.f32 %v4650, %v4945
      %v4951 = vsel %vm661, %v4950, 0.0
      %4952 = vadd.xlane.f32.xlu0 %v4951
      %v4953 = vpop.xlane.xlu0 %4952
      %v4954 = vmul.f32 %v4953, %v1063
      %v4955 = vsub.f32 %v4950, %v4954
      %v4956 = vmul.f32 %v4955, %v4955
      %v4957 = vsel %vm661, %v4956, 0.0
      %4958 = vadd.xlane.f32.xlu0 %v4957
      %v4959 = vpop.xlane.xlu0 %4958
      %v4960 = vmul.f32 %v4959, %v1063
      %v4961 = vadd.f32 %v4960, 1e-05
      %v4962 = vrsqrt.pop %v4961
      %v4963 = vmul.f32 %v4955, %v4962
      %v4964 = vlaneseq
      %v4965 = vshrl.u32 %v4964, 7
      %v4966 = vsub.s32 1, %v4965
      %v4967 = vrot.slane %v4293, %v4966
      %v4968 = vmul.f32 %v4963, %v4967
      %v4969 = vlaneseq
      %v4970 = vshrl.u32 %v4969, 7
      %v4971 = vsub.s32 1, %v4970
      %v4972 = vrot.slane %v4294, %v4971
      %v4973 = vadd.f32 %v4968, %v4972
      %v4974 = vpack.c.bf16 %v4973, %v4973
      %v4975 = vld [vmem:[%s15] sm:$0xf]
      %v4976 = vld [vmem:[%s15 + $0x4] sm:$0xf]
      %v4977 = vld [vmem:[%s15 + $0x8] sm:$0xf]
      %v4978 = vld [vmem:[%s15 + $0xc] sm:$0xf]
      %v4980 = vlaneseq
      %v4981 = vshrl.u32 %v4980, 7
      %v4982 = vsub.s32 0, %v4981
      %v4983 = vrot.slane %v4291, %v4982
      %v4989 = vunpack.c.l.b16 %v4975
      %v4990 = vunpack.c.l.b16 %v4976
      %v4991 = vunpack.c.l.b16 %v4977
      %v4992 = vunpack.c.l.b16 %v4978
      %v4993 = vpack.c.b16 %v4990, %v4989
      %v4994 = vpack.c.b16 %v4992, %v4991
      %v4998 = vsel %vm661, %v4974, 0
      %5000 = vmatprep.subr.bf16.mxu0 0
      %5001 = vmatpush1.bf16.msra.mxu0 %v4993
      %5002 = vmatprep.subr.bf16.mxu0 0
      %5003 = vmatpush1.bf16.msra.mxu0 %v4994
      %5004 = vmatprep.subr.bf16.mxu0 0
      %5005 = vmatpush1.bf16.msra.mxu0 0
      %5006 = vmatprep.subr.bf16.mxu0 0
      %5007 = vmatpush1.bf16.msra.mxu0 0
      %5008 = vmatprep.subr.bf16.mxu0 0
      %5009 = vmatpush1.bf16.msra.mxu0 0
      %5010 = vmatprep.subr.bf16.mxu0 0
      %5011 = vmatpush1.bf16.msra.mxu0 0
      %5012 = vmatprep.subr.bf16.mxu0 0
      %5013 = vmatpush1.bf16.msra.mxu0 0
      %5014 = vmatprep.subr.bf16.mxu0 0
      %5015 = vmatpush1.bf16.msra.mxu0 0
      %5016 = vmatprep.subr.bf16.mxu0 0
      %5017 = vmatpush1.bf16.msra.mxu0 0
      %5018 = vmatprep.subr.bf16.mxu0 0
      %5019 = vmatpush1.bf16.msra.mxu0 0
      %5020 = vmatprep.subr.bf16.mxu0 0
      %5021 = vmatpush1.bf16.msra.mxu0 0
      %5022 = vmatprep.subr.bf16.mxu0 0
      %5023 = vmatpush1.bf16.msra.mxu0 0
      %5024 = vmatprep.subr.bf16.mxu0 0
      %5025 = vmatpush1.bf16.msra.mxu0 0
      %5026 = vmatprep.subr.bf16.mxu0 0
      %5027 = vmatpush1.bf16.msra.mxu0 0
      %5028 = vmatprep.subr.bf16.mxu0 0
      %5029 = vmatpush1.bf16.msra.mxu0 0
      %5030 = vmatprep.subr.bf16.mxu0 0
      %5031 = vmatpush1.bf16.msra.mxu0 0
      %5032 = vmatprep.mubr.bf16.mxu0 0
      %5033 = vmatmul.mubr.bf16.gmra.mrb[0].mxu0 %v4998
      %v5034 = vpop.f32.mrb[0].mxu0
      %v5035 = vadd.f32 %v4983, %v5034
      %v5036 = vpop.f32.mrb[0].mxu0
      %v5037 = vpop.f32.mrb[0].mxu0
      %v5038 = vpop.f32.mrb[0].mxu0
      %5039 = vdwg.mxu0
      %v5040 = vmax.f32 %v5035, 0.0
      %v5041 = vpack.c.bf16 %v5040, %v5040
      %v5042 = vld [vmem:[%s17] sm:$0xf]
      %v5043 = vld [vmem:[%s17 + $0x4] sm:$0xf]
      %v5044 = vld [vmem:[%s17 + $0x8] sm:$0xf]
      %v5045 = vld [vmem:[%s17 + $0xc] sm:$0xf]
      %v5046 = vld [vmem:[%s17 + $0x10] sm:$0xf]
      %v5047 = vld [vmem:[%s17 + $0x14] sm:$0xf]
      %v5048 = vld [vmem:[%s17 + $0x18] sm:$0xf]
      %v5049 = vld [vmem:[%s17 + $0x1c] sm:$0xf]
      %v5051 = vlaneseq
      %v5052 = vshrl.u32 %v5051, 7
      %v5053 = vsub.s32 0, %v5052
      %v5054 = vrot.slane %v4292, %v5053
      %v5064 = vunpack.c.l.b16 %v5042
      %v5065 = vunpack.c.l.b16 %v5043
      %v5066 = vunpack.c.l.b16 %v5044
      %v5067 = vunpack.c.l.b16 %v5045
      %v5068 = vunpack.c.l.b16 %v5046
      %v5069 = vunpack.c.l.b16 %v5047
      %v5070 = vunpack.c.l.b16 %v5048
      %v5071 = vunpack.c.l.b16 %v5049
      %v5072 = vpack.c.b16 %v5065, %v5064
      %v5073 = vpack.c.b16 %v5067, %v5066
      %v5074 = vpack.c.b16 %v5069, %v5068
      %v5075 = vpack.c.b16 %v5071, %v5070
      %v5081 = vsel %vm1513, %v5041, 0
      %5083 = vmatprep.subr.bf16.mxu0 0
      %5084 = vmatpush1.bf16.msra.mxu0 %v5072
      %5085 = vmatprep.subr.bf16.mxu0 0
      %5086 = vmatpush1.bf16.msra.mxu0 %v5073
      %5087 = vmatprep.subr.bf16.mxu0 0
      %5088 = vmatpush1.bf16.msra.mxu0 %v5074
      %5089 = vmatprep.subr.bf16.mxu0 0
      %5090 = vmatpush1.bf16.msra.mxu0 %v5075
      %5091 = vmatprep.subr.bf16.mxu0 0
      %5092 = vmatpush1.bf16.msra.mxu0 0
      %5093 = vmatprep.subr.bf16.mxu0 0
      %5094 = vmatpush1.bf16.msra.mxu0 0
      %5095 = vmatprep.subr.bf16.mxu0 0
      %5096 = vmatpush1.bf16.msra.mxu0 0
      %5097 = vmatprep.subr.bf16.mxu0 0
      %5098 = vmatpush1.bf16.msra.mxu0 0
      %5099 = vmatprep.subr.bf16.mxu0 0
      %5100 = vmatpush1.bf16.msra.mxu0 0
      %5101 = vmatprep.subr.bf16.mxu0 0
      %5102 = vmatpush1.bf16.msra.mxu0 0
      %5103 = vmatprep.subr.bf16.mxu0 0
      %5104 = vmatpush1.bf16.msra.mxu0 0
      %5105 = vmatprep.subr.bf16.mxu0 0
      %5106 = vmatpush1.bf16.msra.mxu0 0
      %5107 = vmatprep.subr.bf16.mxu0 0
      %5108 = vmatpush1.bf16.msra.mxu0 0
      %5109 = vmatprep.subr.bf16.mxu0 0
      %5110 = vmatpush1.bf16.msra.mxu0 0
      %5111 = vmatprep.subr.bf16.mxu0 0
      %5112 = vmatpush1.bf16.msra.mxu0 0
      %5113 = vmatprep.subr.bf16.mxu0 0
      %5114 = vmatpush1.bf16.msra.mxu0 0
      %5115 = vmatprep.mubr.bf16.mxu0 0
      %5116 = vmatmul.mubr.bf16.gmra.mrb[0].mxu0 %v5081
      %v5117 = vpop.f32.mrb[0].mxu0
      %v5118 = vadd.f32 %v5054, %v5117
      %v5119 = vpop.f32.mrb[0].mxu0
      %v5120 = vpop.f32.mrb[0].mxu0
      %v5121 = vpop.f32.mrb[0].mxu0
      %5122 = vdwg.mxu0
      %v5123 = vadd.f32 %v4973, %v5118
      %v5124 = vsel %vm661, %v5123, 0.0
      %5125 = vadd.xlane.f32.xlu0 %v5124
      %v5126 = vpop.xlane.xlu0 %5125
      %v5127 = vmul.f32 %v5126, %v1063
      %v5128 = vsub.f32 %v5123, %v5127
      %v5129 = vmul.f32 %v5128, %v5128
      %v5130 = vsel %vm661, %v5129, 0.0
      %5131 = vadd.xlane.f32.xlu0 %v5130
      %v5132 = vpop.xlane.xlu0 %5131
      %v5133 = vmul.f32 %v5132, %v1063
      %v5134 = vadd.f32 %v5133, 1e-05
      %v5135 = vrsqrt.pop %v5134
      %v5136 = vmul.f32 %v5128, %v5135
      %v5137 = vlaneseq
      %v5138 = vshrl.u32 %v5137, 7
      %v5139 = vsub.s32 2, %v5138
      %v5140 = vrot.slane %v4293, %v5139
      %v5141 = vmul.f32 %v5136, %v5140
      %v5142 = vlaneseq
      %v5143 = vshrl.u32 %v5142, 7
      %v5144 = vsub.s32 2, %v5143
      %v5145 = vrot.slane %v4294, %v5144
      %v5146 = vadd.f32 %v5141, %v5145
      %v5147 = vld [vmem:[%s1581] sm:$0x1]
      %v5148 = vld [vmem:[%s1583] sm:$0x1]
      %v5149 = vld [vmem:[%s1585] sm:$0x1]
      %v5150 = vld [vmem:[%s1587] sm:$0x1]
      %v5151 = vld [vmem:[%s1589] sm:$0x1]
      %v5152 = vld [vmem:[%s1591] sm:$0x1]
      %v5153 = vld [vmem:[%s1593] sm:$0x7]
      %v5154 = vld [vmem:[%s1595] sm:$0x7]
      %v5155 = vpack.c.bf16 %v5146, %v5146
      %v5156 = vld [vmem:[%s1598] sm:$0xf]
      %v5157 = vld [vmem:[%s1598 + $0x4] sm:$0xf]
      %v5158 = vld [vmem:[%s1598 + $0x8] sm:$0xf]
      %v5159 = vld [vmem:[%s1598 + $0xc] sm:$0xf]
      %v5161 = vlaneseq
      %v5162 = vshrl.u32 %v5161, 7
      %v5163 = vsub.s32 0, %v5162
      %v5164 = vrot.slane %v5147, %v5163
      %v5170 = vunpack.c.l.b16 %v5156
      %v5171 = vunpack.c.l.b16 %v5157
      %v5172 = vunpack.c.l.b16 %v5158
      %v5173 = vunpack.c.l.b16 %v5159
      %v5174 = vpack.c.b16 %v5171, %v5170
      %v5175 = vpack.c.b16 %v5173, %v5172
      %v5179 = vsel %vm661, %v5155, 0
      %5181 = vmatprep.subr.bf16.mxu0 0
      %5182 = vmatpush1.bf16.msra.mxu0 %v5174
      %5183 = vmatprep.subr.bf16.mxu0 0
      %5184 = vmatpush1.bf16.msra.mxu0 %v5175
      %5185 = vmatprep.subr.bf16.mxu0 0
      %5186 = vmatpush1.bf16.msra.mxu0 0
      %5187 = vmatprep.subr.bf16.mxu0 0
      %5188 = vmatpush1.bf16.msra.mxu0 0
      %5189 = vmatprep.subr.bf16.mxu0 0
      %5190 = vmatpush1.bf16.msra.mxu0 0
      %5191 = vmatprep.subr.bf16.mxu0 0
      %5192 = vmatpush1.bf16.msra.mxu0 0
      %5193 = vmatprep.subr.bf16.mxu0 0
      %5194 = vmatpush1.bf16.msra.mxu0 0
      %5195 = vmatprep.subr.bf16.mxu0 0
      %5196 = vmatpush1.bf16.msra.mxu0 0
      %5197 = vmatprep.subr.bf16.mxu0 0
      %5198 = vmatpush1.bf16.msra.mxu0 0
      %5199 = vmatprep.subr.bf16.mxu0 0
      %5200 = vmatpush1.bf16.msra.mxu0 0
      %5201 = vmatprep.subr.bf16.mxu0 0
      %5202 = vmatpush1.bf16.msra.mxu0 0
      %5203 = vmatprep.subr.bf16.mxu0 0
      %5204 = vmatpush1.bf16.msra.mxu0 0
      %5205 = vmatprep.subr.bf16.mxu0 0
      %5206 = vmatpush1.bf16.msra.mxu0 0
      %5207 = vmatprep.subr.bf16.mxu0 0
      %5208 = vmatpush1.bf16.msra.mxu0 0
      %5209 = vmatprep.subr.bf16.mxu0 0
      %5210 = vmatpush1.bf16.msra.mxu0 0
      %5211 = vmatprep.subr.bf16.mxu0 0
      %5212 = vmatpush1.bf16.msra.mxu0 0
      %5213 = vmatprep.mubr.bf16.mxu0 0
      %5214 = vmatmul.mubr.bf16.gmra.mrb[0].mxu0 %v5179
      %v5215 = vpop.f32.mrb[0].mxu0
      %v5216 = vadd.f32 %v5164, %v5215
      %v5217 = vpop.f32.mrb[0].mxu0
      %v5218 = vpop.f32.mrb[0].mxu0
      %v5219 = vpop.f32.mrb[0].mxu0
      %5220 = vdwg.mxu0
      %5222 = vrot.lane.b32.xlu0 %v5216, 96
      %v5223 = vpop.permute.xlu0 %5222
      %5225 = vst.msk [vmem:[#allocation2 + $0x70] sm:$0xff] %vm791, %v5223
      %5226 = vrot.lane.b32.xlu0 %v5216, 64
      %v5227 = vpop.permute.xlu0 %5226
      %5229 = vst.msk [vmem:[#allocation3 + $0x70] sm:$0xff] %vm791, %v5227
      %5230 = vst.msk [vmem:[#allocation2 + $0x88] sm:$0xff] %vm797, %v5223
      %5231 = vst.msk [vmem:[#allocation3 + $0x88] sm:$0xff] %vm797, %v5227
      %5232 = vst.msk [vmem:[#allocation2 + $0xa0] sm:$0xff] %vm800, %v5223
      %5233 = vst.msk [vmem:[#allocation3 + $0xa0] sm:$0xff] %vm800, %v5227
      %5234 = vst.msk [vmem:[#allocation2 + $0xb8] sm:$0xff] %vm803, %v5223
      %5235 = vst.msk [vmem:[#allocation3 + $0xb8] sm:$0xff] %vm803, %v5227
      %v5236 = vld [vmem:[#allocation2 + $0x60] sm:$0xff]
      %v5237 = vld [vmem:[#allocation2 + $0x68] sm:$0xff]
      %v5238 = vld [vmem:[#allocation2 + $0x70] sm:$0xff]
      %v5239 = vld [vmem:[#allocation2 + $0x78] sm:$0xff]
      %v5240 = vld [vmem:[#allocation2 + $0x80] sm:$0xff]
      %v5241 = vld [vmem:[#allocation2 + $0x88] sm:$0xff]
      %v5242 = vld [vmem:[#allocation2 + $0x90] sm:$0xff]
      %v5243 = vld [vmem:[#allocation2 + $0x98] sm:$0xff]
      %v5244 = vld [vmem:[#allocation2 + $0xa0] sm:$0xff]
      %v5245 = vld [vmem:[#allocation2 + $0xa8] sm:$0xff]
      %v5246 = vld [vmem:[#allocation2 + $0xb0] sm:$0xff]
      %v5247 = vld [vmem:[#allocation2 + $0xb8] sm:$0xff]
      %v5248 = vld [vmem:[#allocation3 + $0x60] sm:$0xff]
      %v5249 = vld [vmem:[#allocation3 + $0x68] sm:$0xff]
      %v5250 = vld [vmem:[#allocation3 + $0x70] sm:$0xff]
      %v5251 = vld [vmem:[#allocation3 + $0x78] sm:$0xff]
      %v5252 = vld [vmem:[#allocation3 + $0x80] sm:$0xff]
      %v5253 = vld [vmem:[#allocation3 + $0x88] sm:$0xff]
      %v5254 = vld [vmem:[#allocation3 + $0x90] sm:$0xff]
      %v5255 = vld [vmem:[#allocation3 + $0x98] sm:$0xff]
      %v5256 = vld [vmem:[#allocation3 + $0xa0] sm:$0xff]
      %v5257 = vld [vmem:[#allocation3 + $0xa8] sm:$0xff]
      %v5258 = vld [vmem:[#allocation3 + $0xb0] sm:$0xff]
      %v5259 = vld [vmem:[#allocation3 + $0xb8] sm:$0xff]
      %v5260 = vld [vmem:[%s1703] sm:$0xf]
      %v5261 = vld [vmem:[%s1703 + $0x4] sm:$0xf]
      %v5262 = vld [vmem:[%s1703 + $0x8] sm:$0xf]
      %v5263 = vld [vmem:[%s1703 + $0xc] sm:$0xf]
      %v5264 = vpack.c.bf16 %v5216, %v5216
      %v5265 = vpack.c.bf16 %v5237, %v5236
      %v5266 = vpack.c.bf16 %v5239, %v5238
      %v5267 = vpack.c.bf16 %v5241, %v5240
      %v5268 = vpack.c.bf16 %v5243, %v5242
      %v5269 = vpack.c.bf16 %v5245, %v5244
      %v5270 = vpack.c.bf16 %v5247, %v5246
      %v5272 = vsel %vm661, %v5264, 0
      %v5275 = vsel %vm661, %v5265, 0
      %v5278 = vsel %vm661, %v5266, 0
      %v5281 = vsel %vm661, %v5267, 0
      %v5284 = vsel %vm661, %v5268, 0
      %v5287 = vsel %vm661, %v5269, 0
      %v5290 = vsel %vm661, %v5270, 0
      %5292 = vmatprep.subr.bf16.mxu0 0
      %5293 = vmatpush1.bf16.xpose.msra.mxu0 %v5275
      %5294 = vmatprep.subr.bf16.mxu0 0
      %5295 = vmatpush1.bf16.xpose.msra.mxu0 %v5278
      %5296 = vmatprep.subr.bf16.mxu0 0
      %5297 = vmatpush1.bf16.xpose.msra.mxu0 %v5281
      %5298 = vmatprep.subr.bf16.mxu0 0
      %5299 = vmatpush1.bf16.xpose.msra.mxu0 %v5284
      %5300 = vmatprep.subr.bf16.mxu0 0
      %5301 = vmatpush1.bf16.xpose.msra.mxu0 %v5287
      %5302 = vmatprep.subr.bf16.mxu0 0
      %5303 = vmatpush1.bf16.xpose.msra.mxu0 %v5290
      %5304 = vmatprep.subr.bf16.mxu0 0
      %5305 = vmatpush1.bf16.xpose.msra.mxu0 0
      %5306 = vmatprep.subr.bf16.mxu0 0
      %5307 = vmatpush1.bf16.xpose.msra.mxu0 0
      %5308 = vmatprep.subr.bf16.mxu0 0
      %5309 = vmatpush1.bf16.xpose.msra.mxu0 0
      %5310 = vmatprep.subr.bf16.mxu0 0
      %5311 = vmatpush1.bf16.xpose.msra.mxu0 0
      %5312 = vmatprep.subr.bf16.mxu0 0
      %5313 = vmatpush1.bf16.xpose.msra.mxu0 0
      %5314 = vmatprep.subr.bf16.mxu0 0
      %5315 = vmatpush1.bf16.xpose.msra.mxu0 0
      %5316 = vmatprep.subr.bf16.mxu0 0
      %5317 = vmatpush1.bf16.xpose.msra.mxu0 0
      %5318 = vmatprep.subr.bf16.mxu0 0
      %5319 = vmatpush1.bf16.xpose.msra.mxu0 0
      %5320 = vmatprep.subr.bf16.mxu0 0
      %5321 = vmatpush1.bf16.xpose.msra.mxu0 0
      %5322 = vmatprep.subr.bf16.mxu0 0
      %5323 = vmatpush1.bf16.xpose.msra.mxu0 0
      %5324 = vmatprep.mubr.bf16.mxu0 0
      %5325 = vmatmul.mubr.bf16.gmra.mrb[0].mxu0 %v5272
      %v5326 = vpop.f32.mrb[0].mxu0
      %v5327 = vadd.f32 0.0, %v5326
      %v5328 = vpop.f32.mrb[0].mxu0
      %v5329 = vpop.f32.mrb[0].mxu0
      %v5330 = vpop.f32.mrb[0].mxu0
      %5331 = vdwg.mxu0
      %v5332 = vmul.f32 %v5327, 0.35355338
      %v5333 = vadd.f32 %v5332, %v4286
      %v5334 = vsel %vm904, %v5333, -inf
      %5335 = vmax.xlane.f32.xlu0 %v5334
      %v5336 = vpop.xlane.xlu0 %5335
      %v5337 = vsub.f32 %v5333, %v5336
      %v5338 = vmul.f32 %v5337, 1.442695
      %v5339 = vpow.pop %v5338
      %v5340 = vpack.c.bf16 %v5339, %v5339
      %v5341 = vpack.c.bf16 %v5249, %v5248
      %v5342 = vpack.c.bf16 %v5251, %v5250
      %v5343 = vpack.c.bf16 %v5253, %v5252
      %v5344 = vpack.c.bf16 %v5255, %v5254
      %v5345 = vpack.c.bf16 %v5257, %v5256
      %v5346 = vpack.c.bf16 %v5259, %v5258
      %v5348 = vsel %vm904, %v5340, 0
      %5350 = vmatprep.subr.bf16.mxu0 0
      %5351 = vmatpush1.bf16.msra.mxu0 %v5341
      %5352 = vmatprep.subr.bf16.mxu0 0
      %5353 = vmatpush1.bf16.msra.mxu0 %v5342
      %5354 = vmatprep.subr.bf16.mxu0 0
      %5355 = vmatpush1.bf16.msra.mxu0 %v5343
      %5356 = vmatprep.subr.bf16.mxu0 0
      %5357 = vmatpush1.bf16.msra.mxu0 %v5344
      %5358 = vmatprep.subr.bf16.mxu0 0
      %5359 = vmatpush1.bf16.msra.mxu0 %v5345
      %5360 = vmatprep.subr.bf16.mxu0 0
      %5361 = vmatpush1.bf16.msra.mxu0 %v5346
      %5362 = vmatprep.subr.bf16.mxu0 0
      %5363 = vmatpush1.bf16.msra.mxu0 0
      %5364 = vmatprep.subr.bf16.mxu0 0
      %5365 = vmatpush1.bf16.msra.mxu0 0
      %5366 = vmatprep.subr.bf16.mxu0 0
      %5367 = vmatpush1.bf16.msra.mxu0 0
      %5368 = vmatprep.subr.bf16.mxu0 0
      %5369 = vmatpush1.bf16.msra.mxu0 0
      %5370 = vmatprep.subr.bf16.mxu0 0
      %5371 = vmatpush1.bf16.msra.mxu0 0
      %5372 = vmatprep.subr.bf16.mxu0 0
      %5373 = vmatpush1.bf16.msra.mxu0 0
      %5374 = vmatprep.subr.bf16.mxu0 0
      %5375 = vmatpush1.bf16.msra.mxu0 0
      %5376 = vmatprep.subr.bf16.mxu0 0
      %5377 = vmatpush1.bf16.msra.mxu0 0
      %5378 = vmatprep.subr.bf16.mxu0 0
      %5379 = vmatpush1.bf16.msra.mxu0 0
      %5380 = vmatprep.subr.bf16.mxu0 0
      %5381 = vmatpush1.bf16.msra.mxu0 0
      %5382 = vmatprep.mubr.bf16.mxu0 0
      %5383 = vmatmul.mubr.bf16.gmra.mrb[0].mxu0 %v5348
      %v5384 = vpop.f32.mrb[0].mxu0
      %v5385 = vadd.f32 0.0, %v5384
      %v5386 = vpop.f32.mrb[0].mxu0
      %v5387 = vpop.f32.mrb[0].mxu0
      %v5388 = vpop.f32.mrb[0].mxu0
      %5389 = vdwg.mxu0
      %v5390 = vsel %vm961, %v5339, 0.0
      %5391 = vadd.xlane.f32.xlu0 %v5390
      %v5392 = vpop.xlane.xlu0 %5391
      %v5393 = vrcp.pop %v5392
      %v5394 = vmul.f32 %v5385, %v5393
      %5395 = vst.msk [vmem:[#allocation4] sm:$0xff] %vm791, %v5394
      %5397 = vrot.lane.b32.xlu0 %v5339, 104
      %v5398 = vpop.permute.xlu0 %5397
      %v5400 = vsel %vm961, %v5398, 0.0
      %5401 = vadd.xlane.f32.xlu0 %v5400
      %v5402 = vpop.xlane.xlu0 %5401
      %v5403 = vrcp.pop %v5402
      %v5404 = vmul.f32 %v5385, %v5403
      %5405 = vst.msk [vmem:[#allocation4] sm:$0xff] %vm797, %v5404
      %5406 = vrot.lane.b32.xlu0 %v5339, 80
      %v5407 = vpop.permute.xlu0 %5406
      %v5409 = vsel %vm961, %v5407, 0.0
      %5410 = vadd.xlane.f32.xlu0 %v5409
      %v5411 = vpop.xlane.xlu0 %5410
      %v5412 = vrcp.pop %v5411
      %v5413 = vmul.f32 %v5385, %v5412
      %5414 = vst.msk [vmem:[#allocation4] sm:$0xff] %vm800, %v5413
      %5415 = vrot.lane.b32.xlu0 %v5339, 56
      %v5416 = vpop.permute.xlu0 %5415
      %v5418 = vsel %vm961, %v5416, 0.0
      %5419 = vadd.xlane.f32.xlu0 %v5418
      %v5420 = vpop.xlane.xlu0 %5419
      %v5421 = vrcp.pop %v5420
      %v5422 = vmul.f32 %v5385, %v5421
      %5423 = vst.msk [vmem:[#allocation4] sm:$0xff] %vm803, %v5422
      %v5424 = vld [vmem:[#allocation4] sm:$0xff]
      %v5425 = vpack.c.bf16 %v5424, %v5424
      %v5427 = vlaneseq
      %v5428 = vshrl.u32 %v5427, 7
      %v5429 = vsub.s32 0, %v5428
      %v5430 = vrot.slane %v5148, %v5429
      %v5436 = vunpack.c.l.b16 %v5260
      %v5437 = vunpack.c.l.b16 %v5261
      %v5438 = vunpack.c.l.b16 %v5262
      %v5439 = vunpack.c.l.b16 %v5263
      %v5440 = vpack.c.b16 %v5437, %v5436
      %v5441 = vpack.c.b16 %v5439, %v5438
      %v5445 = vsel %vm661, %v5425, 0
      %5447 = vmatprep.subr.bf16.mxu0 0
      %5448 = vmatpush1.bf16.msra.mxu0 %v5440
      %5449 = vmatprep.subr.bf16.mxu0 0
      %5450 = vmatpush1.bf16.msra.mxu0 %v5441
      %5451 = vmatprep.subr.bf16.mxu0 0
      %5452 = vmatpush1.bf16.msra.mxu0 0
      %5453 = vmatprep.subr.bf16.mxu0 0
      %5454 = vmatpush1.bf16.msra.mxu0 0
      %5455 = vmatprep.subr.bf16.mxu0 0
      %5456 = vmatpush1.bf16.msra.mxu0 0
      %5457 = vmatprep.subr.bf16.mxu0 0
      %5458 = vmatpush1.bf16.msra.mxu0 0
      %5459 = vmatprep.subr.bf16.mxu0 0
      %5460 = vmatpush1.bf16.msra.mxu0 0
      %5461 = vmatprep.subr.bf16.mxu0 0
      %5462 = vmatpush1.bf16.msra.mxu0 0
      %5463 = vmatprep.subr.bf16.mxu0 0
      %5464 = vmatpush1.bf16.msra.mxu0 0
      %5465 = vmatprep.subr.bf16.mxu0 0
      %5466 = vmatpush1.bf16.msra.mxu0 0
      %5467 = vmatprep.subr.bf16.mxu0 0
      %5468 = vmatpush1.bf16.msra.mxu0 0
      %5469 = vmatprep.subr.bf16.mxu0 0
      %5470 = vmatpush1.bf16.msra.mxu0 0
      %5471 = vmatprep.subr.bf16.mxu0 0
      %5472 = vmatpush1.bf16.msra.mxu0 0
      %5473 = vmatprep.subr.bf16.mxu0 0
      %5474 = vmatpush1.bf16.msra.mxu0 0
      %5475 = vmatprep.subr.bf16.mxu0 0
      %5476 = vmatpush1.bf16.msra.mxu0 0
      %5477 = vmatprep.subr.bf16.mxu0 0
      %5478 = vmatpush1.bf16.msra.mxu0 0
      %5479 = vmatprep.mubr.bf16.mxu0 0
      %5480 = vmatmul.mubr.bf16.gmra.mrb[0].mxu0 %v5445
      %v5481 = vpop.f32.mrb[0].mxu0
      %v5482 = vadd.f32 %v5430, %v5481
      %v5483 = vpop.f32.mrb[0].mxu0
      %v5484 = vpop.f32.mrb[0].mxu0
      %v5485 = vpop.f32.mrb[0].mxu0
      %5486 = vdwg.mxu0
      %v5487 = vadd.f32 %v5146, %v5482
      %v5488 = vsel %vm661, %v5487, 0.0
      %5489 = vadd.xlane.f32.xlu0 %v5488
      %v5490 = vpop.xlane.xlu0 %5489
      %v5491 = vmul.f32 %v5490, %v1063
      %v5492 = vsub.f32 %v5487, %v5491
      %v5493 = vmul.f32 %v5492, %v5492
      %v5494 = vsel %vm661, %v5493, 0.0
      %5495 = vadd.xlane.f32.xlu0 %v5494
      %v5496 = vpop.xlane.xlu0 %5495
      %v5497 = vmul.f32 %v5496, %v1063
      %v5498 = vadd.f32 %v5497, 1e-05
      %v5499 = vrsqrt.pop %v5498
      %v5500 = vmul.f32 %v5492, %v5499
      %v5501 = vlaneseq
      %v5502 = vshrl.u32 %v5501, 7
      %v5503 = vsub.s32 0, %v5502
      %v5504 = vrot.slane %v5153, %v5503
      %v5505 = vmul.f32 %v5500, %v5504
      %v5506 = vlaneseq
      %v5507 = vshrl.u32 %v5506, 7
      %v5508 = vsub.s32 0, %v5507
      %v5509 = vrot.slane %v5154, %v5508
      %v5510 = vadd.f32 %v5505, %v5509
      %v5511 = vpack.c.bf16 %v5510, %v5510
      %v5512 = vld [vmem:[%s1956] sm:$0xf]
      %v5513 = vld [vmem:[%s1956 + $0x4] sm:$0xf]
      %v5514 = vld [vmem:[%s1956 + $0x8] sm:$0xf]
      %v5515 = vld [vmem:[%s1956 + $0xc] sm:$0xf]
      %v5517 = vlaneseq
      %v5518 = vshrl.u32 %v5517, 7
      %v5519 = vsub.s32 0, %v5518
      %v5520 = vrot.slane %v5149, %v5519
      %v5526 = vunpack.c.l.b16 %v5512
      %v5527 = vunpack.c.l.b16 %v5513
      %v5528 = vunpack.c.l.b16 %v5514
      %v5529 = vunpack.c.l.b16 %v5515
      %v5530 = vpack.c.b16 %v5527, %v5526
      %v5531 = vpack.c.b16 %v5529, %v5528
      %v5535 = vsel %vm661, %v5511, 0
      %5537 = vmatprep.subr.bf16.mxu0 0
      %5538 = vmatpush1.bf16.msra.mxu0 %v5530
      %5539 = vmatprep.subr.bf16.mxu0 0
      %5540 = vmatpush1.bf16.msra.mxu0 %v5531
      %5541 = vmatprep.subr.bf16.mxu0 0
      %5542 = vmatpush1.bf16.msra.mxu0 0
      %5543 = vmatprep.subr.bf16.mxu0 0
      %5544 = vmatpush1.bf16.msra.mxu0 0
      %5545 = vmatprep.subr.bf16.mxu0 0
      %5546 = vmatpush1.bf16.msra.mxu0 0
      %5547 = vmatprep.subr.bf16.mxu0 0
      %5548 = vmatpush1.bf16.msra.mxu0 0
      %5549 = vmatprep.subr.bf16.mxu0 0
      %5550 = vmatpush1.bf16.msra.mxu0 0
      %5551 = vmatprep.subr.bf16.mxu0 0
      %5552 = vmatpush1.bf16.msra.mxu0 0
      %5553 = vmatprep.subr.bf16.mxu0 0
      %5554 = vmatpush1.bf16.msra.mxu0 0
      %5555 = vmatprep.subr.bf16.mxu0 0
      %5556 = vmatpush1.bf16.msra.mxu0 0
      %5557 = vmatprep.subr.bf16.mxu0 0
      %5558 = vmatpush1.bf16.msra.mxu0 0
      %5559 = vmatprep.subr.bf16.mxu0 0
      %5560 = vmatpush1.bf16.msra.mxu0 0
      %5561 = vmatprep.subr.bf16.mxu0 0
      %5562 = vmatpush1.bf16.msra.mxu0 0
      %5563 = vmatprep.subr.bf16.mxu0 0
      %5564 = vmatpush1.bf16.msra.mxu0 0
      %5565 = vmatprep.subr.bf16.mxu0 0
      %5566 = vmatpush1.bf16.msra.mxu0 0
      %5567 = vmatprep.subr.bf16.mxu0 0
      %5568 = vmatpush1.bf16.msra.mxu0 0
      %5569 = vmatprep.mubr.bf16.mxu0 0
      %5570 = vmatmul.mubr.bf16.gmra.mrb[0].mxu0 %v5535
      %v5571 = vpop.f32.mrb[0].mxu0
      %v5572 = vadd.f32 %v5520, %v5571
      %v5573 = vpop.f32.mrb[0].mxu0
      %v5574 = vpop.f32.mrb[0].mxu0
      %v5575 = vpop.f32.mrb[0].mxu0
      %5576 = vdwg.mxu0
      %v5577 = vld [vmem:[%s2022] sm:$0xf]
      %v5578 = vld [vmem:[%s2022 + $0x4] sm:$0xf]
      %v5579 = vld [vmem:[%s2022 + $0x8] sm:$0xf]
      %v5580 = vld [vmem:[%s2022 + $0xc] sm:$0xf]
      %v5581 = vld [vmem:[%s2027] sm:$0xf]
      %v5582 = vld [vmem:[%s2027 + $0x4] sm:$0xf]
      %v5583 = vld [vmem:[%s2027 + $0x8] sm:$0xf]
      %v5584 = vld [vmem:[%s2027 + $0xc] sm:$0xf]
      %v5585 = vld [vmem:[%s2032] sm:$0xf]
      %v5586 = vld [vmem:[%s2032 + $0x4] sm:$0xf]
      %v5587 = vld [vmem:[%s2032 + $0x8] sm:$0xf]
      %v5588 = vld [vmem:[%s2032 + $0xc] sm:$0xf]
      %v5589 = vpack.c.bf16 %v5572, %v5572
      %v5594 = vunpack.c.l.b16 %v5577
      %v5595 = vunpack.c.l.b16 %v5578
      %v5596 = vunpack.c.l.b16 %v5579
      %v5597 = vunpack.c.l.b16 %v5580
      %v5598 = vpack.c.b16 %v5595, %v5594
      %v5599 = vpack.c.b16 %v5597, %v5596
      %v5601 = vsel %vm661, %v5589, 0
      %v5604 = vsel %vm661, %v5598, 0
      %v5607 = vsel %vm661, %v5599, 0
      %5609 = vmatprep.subr.bf16.mxu0 0
      %5610 = vmatpush1.bf16.xpose.msra.mxu0 %v5604
      %5611 = vmatprep.subr.bf16.mxu0 0
      %5612 = vmatpush1.bf16.xpose.msra.mxu0 %v5607
      %5613 = vmatprep.subr.bf16.mxu0 0
      %5614 = vmatpush1.bf16.xpose.msra.mxu0 0
      %5615 = vmatprep.subr.bf16.mxu0 0
      %5616 = vmatpush1.bf16.xpose.msra.mxu0 0
      %5617 = vmatprep.subr.bf16.mxu0 0
      %5618 = vmatpush1.bf16.xpose.msra.mxu0 0
      %5619 = vmatprep.subr.bf16.mxu0 0
      %5620 = vmatpush1.bf16.xpose.msra.mxu0 0
      %5621 = vmatprep.subr.bf16.mxu0 0
      %5622 = vmatpush1.bf16.xpose.msra.mxu0 0
      %5623 = vmatprep.subr.bf16.mxu0 0
      %5624 = vmatpush1.bf16.xpose.msra.mxu0 0
      %5625 = vmatprep.subr.bf16.mxu0 0
      %5626 = vmatpush1.bf16.xpose.msra.mxu0 0
      %5627 = vmatprep.subr.bf16.mxu0 0
      %5628 = vmatpush1.bf16.xpose.msra.mxu0 0
      %5629 = vmatprep.subr.bf16.mxu0 0
      %5630 = vmatpush1.bf16.xpose.msra.mxu0 0
      %5631 = vmatprep.subr.bf16.mxu0 0
      %5632 = vmatpush1.bf16.xpose.msra.mxu0 0
      %5633 = vmatprep.subr.bf16.mxu0 0
      %5634 = vmatpush1.bf16.xpose.msra.mxu0 0
      %5635 = vmatprep.subr.bf16.mxu0 0
      %5636 = vmatpush1.bf16.xpose.msra.mxu0 0
      %5637 = vmatprep.subr.bf16.mxu0 0
      %5638 = vmatpush1.bf16.xpose.msra.mxu0 0
      %5639 = vmatprep.subr.bf16.mxu0 0
      %5640 = vmatpush1.bf16.xpose.msra.mxu0 0
      %5641 = vmatprep.mubr.bf16.mxu0 0
      %5642 = vmatmul.mubr.bf16.gmra.mrb[0].mxu0 %v5601
      %v5643 = vpop.f32.mrb[0].mxu0
      %v5644 = vadd.f32 0.0, %v5643
      %v5645 = vpop.f32.mrb[0].mxu0
      %v5646 = vpop.f32.mrb[0].mxu0
      %v5647 = vpop.f32.mrb[0].mxu0
      %5648 = vdwg.mxu0
      %v5649 = vmul.f32 %v5644, 0.35355338
      %v5650 = vadd.f32 %v5649, %v656
      %v5651 = vsel %vm661, %v5650, -inf
      %5652 = vmax.xlane.f32.xlu0 %v5651
      %v5653 = vpop.xlane.xlu0 %5652
      %v5654 = vsub.f32 %v5650, %v5653
      %v5655 = vmul.f32 %v5654, 1.442695
      %v5656 = vpow.pop %v5655
      %v5657 = vpack.c.bf16 %v5656, %v5656
      %v5662 = vunpack.c.l.b16 %v5581
      %v5663 = vunpack.c.l.b16 %v5582
      %v5664 = vunpack.c.l.b16 %v5583
      %v5665 = vunpack.c.l.b16 %v5584
      %v5666 = vpack.c.b16 %v5663, %v5662
      %v5667 = vpack.c.b16 %v5665, %v5664
      %v5671 = vsel %vm661, %v5657, 0
      %5673 = vmatprep.subr.bf16.mxu0 0
      %5674 = vmatpush1.bf16.msra.mxu0 %v5666
      %5675 = vmatprep.subr.bf16.mxu0 0
      %5676 = vmatpush1.bf16.msra.mxu0 %v5667
      %5677 = vmatprep.subr.bf16.mxu0 0
      %5678 = vmatpush1.bf16.msra.mxu0 0
      %5679 = vmatprep.subr.bf16.mxu0 0
      %5680 = vmatpush1.bf16.msra.mxu0 0
      %5681 = vmatprep.subr.bf16.mxu0 0
      %5682 = vmatpush1.bf16.msra.mxu0 0
      %5683 = vmatprep.subr.bf16.mxu0 0
      %5684 = vmatpush1.bf16.msra.mxu0 0
      %5685 = vmatprep.subr.bf16.mxu0 0
      %5686 = vmatpush1.bf16.msra.mxu0 0
      %5687 = vmatprep.subr.bf16.mxu0 0
      %5688 = vmatpush1.bf16.msra.mxu0 0
      %5689 = vmatprep.subr.bf16.mxu0 0
      %5690 = vmatpush1.bf16.msra.mxu0 0
      %5691 = vmatprep.subr.bf16.mxu0 0
      %5692 = vmatpush1.bf16.msra.mxu0 0
      %5693 = vmatprep.subr.bf16.mxu0 0
      %5694 = vmatpush1.bf16.msra.mxu0 0
      %5695 = vmatprep.subr.bf16.mxu0 0
      %5696 = vmatpush1.bf16.msra.mxu0 0
      %5697 = vmatprep.subr.bf16.mxu0 0
      %5698 = vmatpush1.bf16.msra.mxu0 0
      %5699 = vmatprep.subr.bf16.mxu0 0
      %5700 = vmatpush1.bf16.msra.mxu0 0
      %5701 = vmatprep.subr.bf16.mxu0 0
      %5702 = vmatpush1.bf16.msra.mxu0 0
      %5703 = vmatprep.subr.bf16.mxu0 0
      %5704 = vmatpush1.bf16.msra.mxu0 0
      %5705 = vmatprep.mubr.bf16.mxu0 0
      %5706 = vmatmul.mubr.bf16.gmra.mrb[0].mxu0 %v5671
      %v5707 = vpop.f32.mrb[0].mxu0
      %v5708 = vadd.f32 0.0, %v5707
      %v5709 = vpop.f32.mrb[0].mxu0
      %v5710 = vpop.f32.mrb[0].mxu0
      %v5711 = vpop.f32.mrb[0].mxu0
      %5712 = vdwg.mxu0
      %v5713 = vsel %vm791, %v5656, 0.0
      %5714 = vadd.xlane.f32.xlu0 %v5713
      %v5715 = vpop.xlane.xlu0 %5714
      %v5716 = vrcp.pop %v5715
      %v5717 = vmul.f32 %v5708, %v5716
      %5718 = vst.msk [vmem:[#allocation4] sm:$0xff] %vm791, %v5717
      %5720 = vrot.lane.b32.xlu0 %v5656, 120
      %v5721 = vpop.permute.xlu0 %5720
      %v5723 = vsel %vm791, %v5721, 0.0
      %5724 = vadd.xlane.f32.xlu0 %v5723
      %v5725 = vpop.xlane.xlu0 %5724
      %v5726 = vrcp.pop %v5725
      %v5727 = vmul.f32 %v5708, %v5726
      %5728 = vst.msk [vmem:[#allocation4] sm:$0xff] %vm797, %v5727
      %5729 = vrot.lane.b32.xlu0 %v5656, 112
      %v5730 = vpop.permute.xlu0 %5729
      %v5732 = vsel %vm791, %v5730, 0.0
      %5733 = vadd.xlane.f32.xlu0 %v5732
      %v5734 = vpop.xlane.xlu0 %5733
      %v5735 = vrcp.pop %v5734
      %v5736 = vmul.f32 %v5708, %v5735
      %5737 = vst.msk [vmem:[#allocation4] sm:$0xff] %vm800, %v5736
      %5738 = vrot.lane.b32.xlu0 %v5656, 104
      %v5739 = vpop.permute.xlu0 %5738
      %v5741 = vsel %vm791, %v5739, 0.0
      %5742 = vadd.xlane.f32.xlu0 %v5741
      %v5743 = vpop.xlane.xlu0 %5742
      %v5744 = vrcp.pop %v5743
      %v5745 = vmul.f32 %v5708, %v5744
      %5746 = vst.msk [vmem:[#allocation4] sm:$0xff] %vm803, %v5745
      %v5747 = vld [vmem:[#allocation4] sm:$0xff]
      %v5748 = vpack.c.bf16 %v5747, %v5747
      %v5750 = vlaneseq
      %v5751 = vshrl.u32 %v5750, 7
      %v5752 = vsub.s32 0, %v5751
      %v5753 = vrot.slane %v5150, %v5752
      %v5759 = vunpack.c.l.b16 %v5585
      %v5760 = vunpack.c.l.b16 %v5586
      %v5761 = vunpack.c.l.b16 %v5587
      %v5762 = vunpack.c.l.b16 %v5588
      %v5763 = vpack.c.b16 %v5760, %v5759
      %v5764 = vpack.c.b16 %v5762, %v5761
      %v5768 = vsel %vm661, %v5748, 0
      %5770 = vmatprep.subr.bf16.mxu0 0
      %5771 = vmatpush1.bf16.msra.mxu0 %v5763
      %5772 = vmatprep.subr.bf16.mxu0 0
      %5773 = vmatpush1.bf16.msra.mxu0 %v5764
      %5774 = vmatprep.subr.bf16.mxu0 0
      %5775 = vmatpush1.bf16.msra.mxu0 0
      %5776 = vmatprep.subr.bf16.mxu0 0
      %5777 = vmatpush1.bf16.msra.mxu0 0
      %5778 = vmatprep.subr.bf16.mxu0 0
      %5779 = vmatpush1.bf16.msra.mxu0 0
      %5780 = vmatprep.subr.bf16.mxu0 0
      %5781 = vmatpush1.bf16.msra.mxu0 0
      %5782 = vmatprep.subr.bf16.mxu0 0
      %5783 = vmatpush1.bf16.msra.mxu0 0
      %5784 = vmatprep.subr.bf16.mxu0 0
      %5785 = vmatpush1.bf16.msra.mxu0 0
      %5786 = vmatprep.subr.bf16.mxu0 0
      %5787 = vmatpush1.bf16.msra.mxu0 0
      %5788 = vmatprep.subr.bf16.mxu0 0
      %5789 = vmatpush1.bf16.msra.mxu0 0
      %5790 = vmatprep.subr.bf16.mxu0 0
      %5791 = vmatpush1.bf16.msra.mxu0 0
      %5792 = vmatprep.subr.bf16.mxu0 0
      %5793 = vmatpush1.bf16.msra.mxu0 0
      %5794 = vmatprep.subr.bf16.mxu0 0
      %5795 = vmatpush1.bf16.msra.mxu0 0
      %5796 = vmatprep.subr.bf16.mxu0 0
      %5797 = vmatpush1.bf16.msra.mxu0 0
      %5798 = vmatprep.subr.bf16.mxu0 0
      %5799 = vmatpush1.bf16.msra.mxu0 0
      %5800 = vmatprep.subr.bf16.mxu0 0
      %5801 = vmatpush1.bf16.msra.mxu0 0
      %5802 = vmatprep.mubr.bf16.mxu0 0
      %5803 = vmatmul.mubr.bf16.gmra.mrb[0].mxu0 %v5768
      %v5804 = vpop.f32.mrb[0].mxu0
      %v5805 = vadd.f32 %v5753, %v5804
      %v5806 = vpop.f32.mrb[0].mxu0
      %v5807 = vpop.f32.mrb[0].mxu0
      %v5808 = vpop.f32.mrb[0].mxu0
      %5809 = vdwg.mxu0
      %v5810 = vadd.f32 %v5510, %v5805
      %v5811 = vsel %vm661, %v5810, 0.0
      %5812 = vadd.xlane.f32.xlu0 %v5811
      %v5813 = vpop.xlane.xlu0 %5812
      %v5814 = vmul.f32 %v5813, %v1063
      %v5815 = vsub.f32 %v5810, %v5814
      %v5816 = vmul.f32 %v5815, %v5815
      %v5817 = vsel %vm661, %v5816, 0.0
      %5818 = vadd.xlane.f32.xlu0 %v5817
      %v5819 = vpop.xlane.xlu0 %5818
      %v5820 = vmul.f32 %v5819, %v1063
      %v5821 = vadd.f32 %v5820, 1e-05
      %v5822 = vrsqrt.pop %v5821
      %v5823 = vmul.f32 %v5815, %v5822
      %v5824 = vlaneseq
      %v5825 = vshrl.u32 %v5824, 7
      %v5826 = vsub.s32 1, %v5825
      %v5827 = vrot.slane %v5153, %v5826
      %v5828 = vmul.f32 %v5823, %v5827
      %v5829 = vlaneseq
      %v5830 = vshrl.u32 %v5829, 7
      %v5831 = vsub.s32 1, %v5830
      %v5832 = vrot.slane %v5154, %v5831
      %v5833 = vadd.f32 %v5828, %v5832
      %v5834 = vpack.c.bf16 %v5833, %v5833
      %v5835 = vld [vmem:[%s2283] sm:$0xf]
      %v5836 = vld [vmem:[%s2283 + $0x4] sm:$0xf]
      %v5837 = vld [vmem:[%s2283 + $0x8] sm:$0xf]
      %v5838 = vld [vmem:[%s2283 + $0xc] sm:$0xf]
      %v5840 = vlaneseq
      %v5841 = vshrl.u32 %v5840, 7
      %v5842 = vsub.s32 0, %v5841
      %v5843 = vrot.slane %v5151, %v5842
      %v5849 = vunpack.c.l.b16 %v5835
      %v5850 = vunpack.c.l.b16 %v5836
      %v5851 = vunpack.c.l.b16 %v5837
      %v5852 = vunpack.c.l.b16 %v5838
      %v5853 = vpack.c.b16 %v5850, %v5849
      %v5854 = vpack.c.b16 %v5852, %v5851
      %v5858 = vsel %vm661, %v5834, 0
      %5860 = vmatprep.subr.bf16.mxu0 0
      %5861 = vmatpush1.bf16.msra.mxu0 %v5853
      %5862 = vmatprep.subr.bf16.mxu0 0
      %5863 = vmatpush1.bf16.msra.mxu0 %v5854
      %5864 = vmatprep.subr.bf16.mxu0 0
      %5865 = vmatpush1.bf16.msra.mxu0 0
      %5866 = vmatprep.subr.bf16.mxu0 0
      %5867 = vmatpush1.bf16.msra.mxu0 0
      %5868 = vmatprep.subr.bf16.mxu0 0
      %5869 = vmatpush1.bf16.msra.mxu0 0
      %5870 = vmatprep.subr.bf16.mxu0 0
      %5871 = vmatpush1.bf16.msra.mxu0 0
      %5872 = vmatprep.subr.bf16.mxu0 0
      %5873 = vmatpush1.bf16.msra.mxu0 0
      %5874 = vmatprep.subr.bf16.mxu0 0
      %5875 = vmatpush1.bf16.msra.mxu0 0
      %5876 = vmatprep.subr.bf16.mxu0 0
      %5877 = vmatpush1.bf16.msra.mxu0 0
      %5878 = vmatprep.subr.bf16.mxu0 0
      %5879 = vmatpush1.bf16.msra.mxu0 0
      %5880 = vmatprep.subr.bf16.mxu0 0
      %5881 = vmatpush1.bf16.msra.mxu0 0
      %5882 = vmatprep.subr.bf16.mxu0 0
      %5883 = vmatpush1.bf16.msra.mxu0 0
      %5884 = vmatprep.subr.bf16.mxu0 0
      %5885 = vmatpush1.bf16.msra.mxu0 0
      %5886 = vmatprep.subr.bf16.mxu0 0
      %5887 = vmatpush1.bf16.msra.mxu0 0
      %5888 = vmatprep.subr.bf16.mxu0 0
      %5889 = vmatpush1.bf16.msra.mxu0 0
      %5890 = vmatprep.subr.bf16.mxu0 0
      %5891 = vmatpush1.bf16.msra.mxu0 0
      %5892 = vmatprep.mubr.bf16.mxu0 0
      %5893 = vmatmul.mubr.bf16.gmra.mrb[0].mxu0 %v5858
      %v5894 = vpop.f32.mrb[0].mxu0
      %v5895 = vadd.f32 %v5843, %v5894
      %v5896 = vpop.f32.mrb[0].mxu0
      %v5897 = vpop.f32.mrb[0].mxu0
      %v5898 = vpop.f32.mrb[0].mxu0
      %5899 = vdwg.mxu0
      %v5900 = vmax.f32 %v5895, 0.0
      %v5901 = vpack.c.bf16 %v5900, %v5900
      %v5902 = vld [vmem:[%s2351] sm:$0xf]
      %v5903 = vld [vmem:[%s2351 + $0x4] sm:$0xf]
      %v5904 = vld [vmem:[%s2351 + $0x8] sm:$0xf]
      %v5905 = vld [vmem:[%s2351 + $0xc] sm:$0xf]
      %v5906 = vld [vmem:[%s2351 + $0x10] sm:$0xf]
      %v5907 = vld [vmem:[%s2351 + $0x14] sm:$0xf]
      %v5908 = vld [vmem:[%s2351 + $0x18] sm:$0xf]
      %v5909 = vld [vmem:[%s2351 + $0x1c] sm:$0xf]
      %v5911 = vlaneseq
      %v5912 = vshrl.u32 %v5911, 7
      %v5913 = vsub.s32 0, %v5912
      %v5914 = vrot.slane %v5152, %v5913
      %v5924 = vunpack.c.l.b16 %v5902
      %v5925 = vunpack.c.l.b16 %v5903
      %v5926 = vunpack.c.l.b16 %v5904
      %v5927 = vunpack.c.l.b16 %v5905
      %v5928 = vunpack.c.l.b16 %v5906
      %v5929 = vunpack.c.l.b16 %v5907
      %v5930 = vunpack.c.l.b16 %v5908
      %v5931 = vunpack.c.l.b16 %v5909
      %v5932 = vpack.c.b16 %v5925, %v5924
      %v5933 = vpack.c.b16 %v5927, %v5926
      %v5934 = vpack.c.b16 %v5929, %v5928
      %v5935 = vpack.c.b16 %v5931, %v5930
      %v5941 = vsel %vm1513, %v5901, 0
      %5943 = vmatprep.subr.bf16.mxu0 0
      %5944 = vmatpush1.bf16.msra.mxu0 %v5932
      %5945 = vmatprep.subr.bf16.mxu0 0
      %5946 = vmatpush1.bf16.msra.mxu0 %v5933
      %5947 = vmatprep.subr.bf16.mxu0 0
      %5948 = vmatpush1.bf16.msra.mxu0 %v5934
      %5949 = vmatprep.subr.bf16.mxu0 0
      %5950 = vmatpush1.bf16.msra.mxu0 %v5935
      %5951 = vmatprep.subr.bf16.mxu0 0
      %5952 = vmatpush1.bf16.msra.mxu0 0
      %5953 = vmatprep.subr.bf16.mxu0 0
      %5954 = vmatpush1.bf16.msra.mxu0 0
      %5955 = vmatprep.subr.bf16.mxu0 0
      %5956 = vmatpush1.bf16.msra.mxu0 0
      %5957 = vmatprep.subr.bf16.mxu0 0
      %5958 = vmatpush1.bf16.msra.mxu0 0
      %5959 = vmatprep.subr.bf16.mxu0 0
      %5960 = vmatpush1.bf16.msra.mxu0 0
      %5961 = vmatprep.subr.bf16.mxu0 0
      %5962 = vmatpush1.bf16.msra.mxu0 0
      %5963 = vmatprep.subr.bf16.mxu0 0
      %5964 = vmatpush1.bf16.msra.mxu0 0
      %5965 = vmatprep.subr.bf16.mxu0 0
      %5966 = vmatpush1.bf16.msra.mxu0 0
      %5967 = vmatprep.subr.bf16.mxu0 0
      %5968 = vmatpush1.bf16.msra.mxu0 0
      %5969 = vmatprep.subr.bf16.mxu0 0
      %5970 = vmatpush1.bf16.msra.mxu0 0
      %5971 = vmatprep.subr.bf16.mxu0 0
      %5972 = vmatpush1.bf16.msra.mxu0 0
      %5973 = vmatprep.subr.bf16.mxu0 0
      %5974 = vmatpush1.bf16.msra.mxu0 0
      %5975 = vmatprep.mubr.bf16.mxu0 0
      %5976 = vmatmul.mubr.bf16.gmra.mrb[0].mxu0 %v5941
      %v5977 = vpop.f32.mrb[0].mxu0
      %v5978 = vadd.f32 %v5914, %v5977
      %v5979 = vpop.f32.mrb[0].mxu0
      %v5980 = vpop.f32.mrb[0].mxu0
      %v5981 = vpop.f32.mrb[0].mxu0
      %5982 = vdwg.mxu0
      %v5983 = vadd.f32 %v5833, %v5978
      %v5984 = vsel %vm661, %v5983, 0.0
      %5985 = vadd.xlane.f32.xlu0 %v5984
      %v5986 = vpop.xlane.xlu0 %5985
      %v5987 = vmul.f32 %v5986, %v1063
      %v5988 = vsub.f32 %v5983, %v5987
      %v5989 = vmul.f32 %v5988, %v5988
      %v5990 = vsel %vm661, %v5989, 0.0
      %5991 = vadd.xlane.f32.xlu0 %v5990
      %v5992 = vpop.xlane.xlu0 %5991
      %v5993 = vmul.f32 %v5992, %v1063
      %v5994 = vadd.f32 %v5993, 1e-05
      %v5995 = vrsqrt.pop %v5994
      %v5996 = vmul.f32 %v5988, %v5995
      %v5997 = vlaneseq
      %v5998 = vshrl.u32 %v5997, 7
      %v5999 = vsub.s32 2, %v5998
      %v6000 = vrot.slane %v5153, %v5999
      %v6001 = vmul.f32 %v5996, %v6000
      %v6002 = vlaneseq
      %v6003 = vshrl.u32 %v6002, 7
      %v6004 = vsub.s32 2, %v6003
      %v6005 = vrot.slane %v5154, %v6004
      %v6006 = vadd.f32 %v6001, %v6005
      %6007 = vst.msk [vmem:[%s653 + $0x10] sm:$0xff] %vm661, %v6006
      %p6008 = scmp.lt.s32.totalorder %s32, 1
      %s6009 = scalar_select %p6008, %s32, 1
      %s6010 = smul.addr %s6009, 3
      %s6011 = smul.addr %s6010, 8
      %s6012 = scalar_lea.vmem %s21, %s6011
      // Predicated region
      $region105: #{_lambda_.1} parent=103 // pred_check
        %p6013 = pneg %p496
      $region106: #{_lambda_.1} parent=103 // pred_check_branch
        %6015 = sbr.rel (%p6013) target = $region108
      $region107: #{_lambda_.1} parent=103 // pred_region
        _
      $region108: #{_lambda_.1} parent=103 // pred_fallthru
        _
    $region104: #{_lambda_.1} parent=5 // pred_fallthru
      _
    %p6016 = scmp.le.s32.totalorder 2, %s27
    // Predicated region
    $region109: #{_lambda_.1} parent=5 // pred_check
      %p6017 = pneg %p6016
    $region110: #{_lambda_.1} parent=5 // pred_check_branch
      %6019 = sbr.rel (%p6017) target = $region112
    $region111: #{_lambda_.1} parent=5 // pred_region
      %s6020 = ssub.s32 %s27, 2
      // Predicated region
      $region113: #{_lambda_.1} parent=111 // pred_check
        %p6021 = pneg %p502
      $region114: #{_lambda_.1} parent=111 // pred_check_branch
        %6023 = sbr.rel (%p6021) target = $region116
      $region115: #{_lambda_.1} parent=111 // pred_region
        %p6024 = scmp.lt.s32.totalorder %s33, 1
        %s6025 = scalar_select %p6024, %s33, 1
        %s6026 = smul.addr %s6025, 3
        %s6027 = smul.addr %s6026, 8
        %s6028 = scalar_lea.vmem %s21, %s6027
      $region116: #{_lambda_.1} parent=111 // pred_fallthru
        _
    $region112: #{_lambda_.1} parent=5 // pred_fallthru
      _
  $region6: #{_lambda_.1} parent=0 // loop_footer
    %s31 = sadd.s32 1, %s27
  $region7: #{_lambda_.1} parent=0 // loop_footer_branch
    %26 = sbr.rel target = $region3
  $region8: #{_lambda_.1} parent=0 // loop_exit
    _

</llo_original>
